<compile_context>
chip_gen: v6e
topology: v6e:2x2x1
jax: 0.10.0
libtpu: 0.0.40
codegen_flags: <defaults>
</compile_context>

<pallas_src>
import numpy as np

import jax
import jax.numpy as jnp
from jax.experimental import pallas as pl
from jax.experimental.pallas import tpu as pltpu

_EPS = 1e-5


def _round_up(x, m):
    return (x + m - 1) // m * m


# ---------------------------------------------------------------------------
# VMEM budgeting (derive vmem_limit_bytes from the per-step footprint).
# ---------------------------------------------------------------------------
def _padded_bytes(shape, dtype):
    it = np.dtype(dtype).itemsize
    s = [int(d) for d in shape]
    if len(s) >= 1:
        s[-1] = _round_up(s[-1], 128)                       # lanes
    if len(s) >= 2:
        s[-2] = _round_up(s[-2], 8 * max(1, 4 // it))       # (packed) sublanes
    n = 1
    for d in s:
        n *= d
    return n * it


def _vmem_limit(block_bufs, scratch_bufs):
    total = sum(2 * _padded_bytes(s, d) for s, d in block_bufs)   # double-buffered
    total += sum(_padded_bytes(s, d) for s, d in scratch_bufs)
    total = int(total * 1.5) + (2 << 20)
    # 48 MiB cap keeps headroom under v7x's 64 MiB physical VMEM; on v5e/v6e
    # (128 MiB) this could be raised (~100 MiB) to allow larger strips.
    return max(16 << 20, min(total, 48 << 20))


def _pick_strip(H):
    # >= 8-row output strips; several strips per image give the DMA pipeline steps
    # to overlap with MXU work and keep both v7x TensorCores busy at small N.
    # TODO(synk): for large images replace the VMEM-resident whole-image input with
    # a manual TH+2-row halo DMA (memory_space=pl.ANY) so per-step VMEM stays bounded.
    if H > 8 and H % 8 == 0:
        return 8
    return H


# ---------------------------------------------------------------------------
# Kernel bodies
# ---------------------------------------------------------------------------
def _zero_halo(xpad_ref):
    Hp2, Wp2, C = xpad_ref.shape
    z_row = jnp.zeros((1, Wp2, C), xpad_ref.dtype)
    xpad_ref[0:1, :, :] = z_row
    xpad_ref[Hp2 - 1:Hp2, :, :] = z_row
    z_col = jnp.zeros((Hp2, 1, C), xpad_ref.dtype)
    xpad_ref[:, 0:1, :] = z_col
    xpad_ref[:, Wp2 - 1:Wp2, :] = z_col


def _conv_taps(xpads, w_refs, y_ref, st_ref):
    """3x3 conv of one TH-row output strip: 9 accumulating MXU dots per channel group,
    taken straight from the padded bf16 scratch (no im2col buffer), f32 accumulation.
    Also emits shifted per-strip BN partials (sum, sum of squared deviations)."""
    _, TH, W, Cout = y_ref.shape
    r = pl.program_id(1)
    row0 = pl.multiple_of(r * TH, TH)

    acc = jnp.zeros((TH * W, Cout), jnp.float32)
    for xpad_ref, w_ref in zip(xpads, w_refs):
        Cg = xpad_ref.shape[-1]
        for dy in range(3):
            for dx in range(3):
                tap = xpad_ref[pl.ds(row0 + dy, TH), dx:dx + W, :].reshape(TH * W, Cg)
                acc = acc + jnp.dot(tap, w_ref[dy * 3 + dx],
                                    preferred_element_type=jnp.float32)

    y_ref[...] = acc.reshape(1, TH, W, Cout).astype(y_ref.dtype)

    # Shifted per-strip BN partials; combined across strips in the wrapper with the
    # parallel-variance formula (avoids E[x^2]-mean^2 cancellation).
    cnt = float(TH * W)
    s = jnp.sum(acc, axis=0)                       # (Cout,)
    d = acc - (s / cnt)[None, :]
    m2 = jnp.sum(d * d, axis=0)                    # (Cout,)
    st_ref[0:1, 0:1, 0:1, :] = s.reshape(1, 1, 1, Cout)
    st_ref[0:1, 0:1, 1:2, :] = m2.reshape(1, 1, 1, Cout)


def _conv1_kernel(x2_ref, up_ref, wa_ref, wb_ref, y_ref, st_ref, xpa_ref, xpb_ref):
    """conv1: the channel concat [x2, up(x1)] is fused 'virtually' — each group has
    its own padded scratch + weight slab, accumulated into the same f32 accumulator."""
    _, H, W, _ = x2_ref.shape

    @pl.when(pl.program_id(1) == 0)
    def _():
        _zero_halo(xpa_ref)
        _zero_halo(xpb_ref)
        xpa_ref[1:H + 1, 1:W + 1, :] = x2_ref[0]
        xpb_ref[1:H + 1, 1:W + 1, :] = up_ref[0]

    _conv_taps([xpa_ref, xpb_ref], [wa_ref, wb_ref], y_ref, st_ref)


def _conv2_kernel(y1_ref, scale_ref, shift_ref, w_ref, y_ref, st_ref, xpad_ref):
    """conv2: previous BatchNorm (folded scale/shift, f32 math) + ReLU fused into the
    padded-scratch fill; the scratch is bf16 so the MXU sees bf16 operands."""
    _, H, W, _ = y1_ref.shape

    @pl.when(pl.program_id(1) == 0)
    def _():
        _zero_halo(xpad_ref)
        a = y1_ref[0].astype(jnp.float32) * scale_ref[0] + shift_ref[0]
        xpad_ref[1:H + 1, 1:W + 1, :] = jnp.maximum(a, 0.0).astype(xpad_ref.dtype)

    _conv_taps([xpad_ref], [w_ref], y_ref, st_ref)


def _bn_relu_kernel(y_ref, scale_ref, shift_ref, o_ref):
    a = y_ref[...].astype(jnp.float32) * scale_ref[0] + shift_ref[0]
    o_ref[...] = jnp.maximum(a, 0.0).astype(o_ref.dtype)


# ---------------------------------------------------------------------------
# pallas_call wrappers
# ---------------------------------------------------------------------------
def _conv_stage(imgs, ws, TH, scale=None, shift=None):
    """One fused (optional BN+ReLU ->) conv3x3 -> per-strip BN-partials Pallas pass.
    imgs / ws: per-channel-group NHWC bf16 inputs and matching (9, Cg, Cout) weights."""
    N, H, W, _ = imgs[0].shape
    Cout = ws[0].shape[-1]
    n_strips = H // TH

    img_specs = [pl.BlockSpec((1, H, W, x.shape[-1]), lambda n, r: (n, 0, 0, 0))
                 for x in imgs]
    w_specs = [pl.BlockSpec(w.shape, lambda n, r: (0, 0, 0)) for w in ws]
    y_spec = pl.BlockSpec((1, TH, W, Cout), lambda n, r: (n, r, 0, 0))
    st_spec = pl.BlockSpec((1, 1, 2, Cout), lambda n, r: (n, r, 0, 0))

    if scale is None:
        kernel = _conv1_kernel
        in_specs = img_specs + w_specs
        call_args = (*imgs, *ws)
    else:
        kernel = _conv2_kernel
        vec_spec = pl.BlockSpec((1, scale.shape[-1]), lambda n, r: (0, 0))
        in_specs = img_specs + [vec_spec, vec_spec] + w_specs
        call_args = (*imgs, scale, shift, *ws)

    scratch_shapes = [pltpu.VMEM((H + 2, W + 2, x.shape[-1]), jnp.bfloat16)
                      for x in imgs]

    # VMEM budget & scheduler hints.
    block_bufs = [((1, H, W, x.shape[-1]), x.dtype) for x in imgs]
    block_bufs += [(w.shape, w.dtype) for w in ws]
    if scale is not None:
        block_bufs += [((1, scale.shape[-1]), jnp.float32)] * 2
    block_bufs += [((1, TH, W, Cout), jnp.bfloat16), ((1, 1, 2, Cout), jnp.float32)]
    scratch_bufs = [((H + 2, W + 2, x.shape[-1]), jnp.bfloat16) for x in imgs]

    cin_total = sum(int(x.shape[-1]) for x in imgs)
    flops = 2 * N * H * W * 9 * cin_total * Cout
    bytes_accessed = int(sum(x.size * x.dtype.itemsize for x in imgs)
                         + sum(w.size * w.dtype.itemsize for w in ws)
                         + N * H * W * Cout * 2          # bf16 conv output
                         + N * n_strips * 2 * Cout * 4)  # f32 BN partials

    return pl.pallas_call(
        kernel,
        out_shape=(jax.ShapeDtypeStruct((N, H, W, Cout), jnp.bfloat16),
                   jax.ShapeDtypeStruct((N, n_strips, 2, Cout), jnp.float32)),
        grid=(N, n_strips),
        in_specs=in_specs,
        out_specs=(y_spec, st_spec),
        scratch_shapes=scratch_shapes,
        compiler_params=pltpu.CompilerParams(
            dimension_semantics=("parallel", "arbitrary"),
            vmem_limit_bytes=_vmem_limit(block_bufs, scratch_bufs)),
        cost_estimate=pl.CostEstimate(flops=flops, transcendentals=0,
                                      bytes_accessed=bytes_accessed),
    )(*call_args)


def _bn_relu_stage(y, scale, shift, TH):
    """Final BN + ReLU, in place on the bf16 conv2 output (pure HBM-bandwidth pass)."""
    N, H, W, C = y.shape
    n_strips = H // TH
    blk = pl.BlockSpec((1, TH, W, C), lambda n, r: (n, r, 0, 0))
    vec = pl.BlockSpec((1, C), lambda n, r: (0, 0))
    bytes_accessed = int(2 * y.size * y.dtype.itemsize + 2 * C * 4)
    return pl.pallas_call(
        _bn_relu_kernel,
        out_shape=jax.ShapeDtypeStruct((N, H, W, C), y.dtype),
        grid=(N, n_strips),
        in_specs=[blk, vec, vec],
        out_specs=blk,
        input_output_aliases={0: 0},
        compiler_params=pltpu.CompilerParams(
            dimension_semantics=("parallel", "parallel"),
            vmem_limit_bytes=_vmem_limit(
                [((1, TH, W, C), y.dtype), ((1, C), jnp.float32),
                 ((1, C), jnp.float32), ((1, TH, W, C), y.dtype)], [])),
        cost_estimate=pl.CostEstimate(flops=2 * int(y.size), transcendentals=0,
                                      bytes_accessed=bytes_accessed),
    )(y, scale, shift)


def _bn_fold(st, gamma, beta, strip_count, total_count):
    """Combine per-strip (sum, M2) partials (parallel-variance formula) into the folded
    per-channel BatchNorm scale/shift (training mode: biased batch variance)."""
    C = st.shape[-1]
    st = st.reshape(-1, 2, C)
    sums = st[:, 0, :]
    m2s = st[:, 1, :]
    mean = jnp.sum(sums, axis=0) / total_count
    strip_means = sums / strip_count
    m2 = jnp.sum(m2s, axis=0) + strip_count * jnp.sum(
        (strip_means - mean[None, :]) ** 2, axis=0)
    var = jnp.maximum(m2 / total_count, 0.0)
    inv = jax.lax.rsqrt(var + _EPS)
    scale = gamma * inv
    shift = beta - mean * scale
    return (scale.reshape(1, -1).astype(jnp.float32),
            shift.reshape(1, -1).astype(jnp.float32))


# ---------------------------------------------------------------------------
# Bilinear (align_corners=True) interpolation matrix, like torch nn.Upsample.
# ---------------------------------------------------------------------------
def _bilinear_matrix(n_in, n_out):
    i = jnp.arange(n_out, dtype=jnp.float32)
    if n_out == 1:
        src = jnp.zeros((1,), jnp.float32)
    else:
        src = i * (float(n_in - 1) / float(n_out - 1))
    i0 = jnp.clip(jnp.floor(src).astype(jnp.int32), 0, n_in - 1)
    i1 = jnp.clip(i0 + 1, 0, n_in - 1)
    w1 = src - i0.astype(jnp.float32)
    w0 = 1.0 - w1
    m = jnp.zeros((n_out, n_in), jnp.float32)
    m = m.at[jnp.arange(n_out), i0].add(w0)
    m = m.at[jnp.arange(n_out), i1].add(w1)
    return m


# ---------------------------------------------------------------------------
# Wrapper reproducing Up.forward(x1, x2)  (bilinear=True)
# ---------------------------------------------------------------------------
def up_forward(x1_nchw, x2_nchw, params):
    (w1, g1, be1, w2, g2, be2) = params            # w: (3,3,Cin,Cout) HWIO
    N, C1, H1, W1 = x1_nchw.shape
    _, C2, H2, W2 = x2_nchw.shape
    Cin, Cmid, Cout = C1 + C2, w1.shape[-1], w2.shape[-1]

    # nn.Upsample(scale_factor=2, mode='bilinear', align_corners=True) in NHWC
    # (tiny dense interpolation matrices, applied in XLA).
    Hu, Wu = 2 * H1, 2 * W1
    A = _bilinear_matrix(H1, Hu)
    B = _bilinear_matrix(W1, Wu)
    x1_nhwc = jnp.transpose(x1_nchw, (0, 2, 3, 1)).astype(jnp.float32)
    up = jnp.einsum('hH,wW,nHWc->nhwc', A, B, x1_nhwc)

    # F.pad(x1, [diffX//2, diffX-diffX//2, diffY//2, diffY-diffY//2])
    diffY, diffX = H2 - Hu, W2 - Wu
    up = jnp.pad(up, ((0, 0),
                      (diffY // 2, diffY - diffY // 2),
                      (diffX // 2, diffX - diffX // 2),
                      (0, 0)))

    # bf16 MXU operands; channels stay un-padded in HBM (no 128-lane inflation).
    # torch.cat([x2, up], dim=1) is fused into conv1 via per-group scratches/weights.
    x2_b = jnp.transpose(x2_nchw, (0, 2, 3, 1)).astype(jnp.bfloat16)
    up_b = up.astype(jnp.bfloat16)
    w1_b = w1.astype(jnp.bfloat16)
    w1a = w1_b[:, :, :C2, :].reshape(9, C2, Cmid)     # taps for the x2 channel group
    w1b = w1_b[:, :, C2:, :].reshape(9, C1, Cmid)     # taps for the upsampled group
    w2_b = w2.astype(jnp.bfloat16).reshape(9, Cmid, Cout)

    TH = _pick_strip(H2)
    strip_count = TH * W2
    total_count = N * H2 * W2

    # conv1 (fused concat) + per-strip BN partials
    y1, st1 = _conv_stage([x2_b, up_b], [w1a, w1b], TH)
    scale1, shift1 = _bn_fold(st1, g1, be1, strip_count, total_count)

    # BN1 + ReLU fused into conv2's scratch fill; conv2 + per-strip BN partials
    y2, st2 = _conv_stage([y1], [w2_b], TH, scale1, shift1)
    scale2, shift2 = _bn_fold(st2, g2, be2, strip_count, total_count)

    # final BN2 + ReLU, in place (aliased) on the bf16 conv2 output
    out_nhwc = _bn_relu_stage(y2, scale2, shift2, TH)

    # TODO(synk): BatchNorm running_mean/running_var buffers are not emitted
    # (the reference forward only returns the activation tensor).
    return jnp.transpose(out_nhwc.astype(jnp.float32), (0, 3, 1, 2))


# ---------------------------------------------------------------------------
def make_params(key, in_channels, out_channels):
    """DoubleConv(in_channels, out_channels) parameters, deterministic.
    Conv biases omitted (exactly cancelled by the BatchNorm mean subtraction)."""
    ks = jax.random.split(key, 6)
    w1 = 0.1 * jax.random.normal(ks[0], (out_channels, in_channels, 3, 3), jnp.float32)
    w1 = jnp.transpose(w1, (2, 3, 1, 0))                      # (3,3,Cin,Cmid)
    g1 = 1.0 + 0.1 * jax.random.normal(ks[1], (out_channels,), jnp.float32)
    be1 = 0.1 * jax.random.normal(ks[2], (out_channels,), jnp.float32)
    w2 = 0.1 * jax.random.normal(ks[3], (out_channels, out_channels, 3, 3), jnp.float32)
    w2 = jnp.transpose(w2, (2, 3, 1, 0))                      # (3,3,Cmid,Cout)
    g2 = 1.0 + 0.1 * jax.random.normal(ks[4], (out_channels,), jnp.float32)
    be2 = 0.1 * jax.random.normal(ks[5], (out_channels,), jnp.float32)
    return (w1, g1, be1, w2, g2, be2)


if __name__ == "__main__":
    key = jax.random.PRNGKey(0)
    k_x1, k_x2, k_p = jax.random.split(key, 3)

    # Up(in_channels=8, out_channels=4, bilinear=True)
    # x1: decoder feature (N, 4, 8, 8); x2: skip connection (N, 4, 16, 16)
    x1 = jax.random.normal(k_x1, (2, 4, 8, 8), jnp.float32)
    x2 = jax.random.normal(k_x2, (2, 4, 16, 16), jnp.float32)
    params = make_params(k_p, in_channels=8, out_channels=4)

    out = jax.jit(up_forward)(x1, x2, params)
    jax.block_until_ready(out)
    assert out.shape == (2, 4, 16, 16)
    print("KERNEL_OK")
</pallas_src>

<mosaic_0001>
module attributes {stable_mosaic.version = 11 : i64} {
  func.func private @main(%arg0: i32) attributes {dimension_semantics = [#tpu.dimension_semantics<core_parallel>], iteration_bounds = array<i64: 2>, tpu.core_type = #tpu.core_type<sc_scalar_subcore>, window_params = []} {
    return
  }
}

module attributes {stable_mosaic.version = 11 : i64} {
  func.func private @main(%arg0: i32) attributes {dimension_semantics = [#tpu.dimension_semantics<core_parallel>], iteration_bounds = array<i64: 2>, tpu.core_type = #tpu.core_type<sc_scalar_subcore>, window_params = []} {
    return
  }
}

module attributes {stable_mosaic.version = 11 : i64} {
  func.func @_conv1_kernel(%arg0: i32, %arg1: i32, %arg2: memref<1x16x16x4xbf16, #tpu.memory_space<vmem>>, %arg3: memref<1x16x16x4xbf16, #tpu.memory_space<vmem>>, %arg4: memref<9x4x4xbf16, #tpu.memory_space<vmem>>, %arg5: memref<9x4x4xbf16, #tpu.memory_space<vmem>>, %arg6: memref<1x8x16x4xbf16, #tpu.memory_space<vmem>>, %arg7: memref<1x1x2x4xf32, #tpu.memory_space<vmem>>, %arg8: memref<18x18x4xbf16, #tpu.memory_space<vmem>>, %arg9: memref<18x18x4xbf16, #tpu.memory_space<vmem>>) attributes {dimension_semantics = [#tpu.dimension_semantics<parallel>, #tpu.dimension_semantics<arbitrary>], iteration_bounds = array<i64: 2, 2>, scalar_prefetch = 0 : i64, scratch_operands = 2 : i64, tpu.core_type = #tpu.core_type<tc>, window_params = [{transform_indices = @transform_0, window_bounds = array<i64: 1, 16, 16, 4>}, {transform_indices = @transform_1, window_bounds = array<i64: 1, 16, 16, 4>}, {pipeline_mode = #tpu.pipeline_mode<synchronous>, transform_indices = @transform_2, window_bounds = array<i64: 9, 4, 4>}, {pipeline_mode = #tpu.pipeline_mode<synchronous>, transform_indices = @transform_3, window_bounds = array<i64: 9, 4, 4>}, {transform_indices = @transform_4, window_bounds = array<i64: 1, 8, 16, 4>}, {transform_indices = @transform_5, window_bounds = array<i64: 1, 1, 2, 4>}]} {
    %c0_i32 = arith.constant 0 : i32
    %0 = arith.cmpi eq, %arg1, %c0_i32 : i32
    %1 = arith.extui %0 : i1 to i32
    %c0_i32_0 = arith.constant 0 : i32
    %2 = arith.cmpi ne, %1, %c0_i32_0 : i32
    scf.if %2 {
      %cst_131 = arith.constant 0.000000e+00 : bf16
      %165 = vector.broadcast %cst_131 : bf16 to vector<1x18x4xbf16>
      %c0_132 = arith.constant 0 : index
      %c0_133 = arith.constant 0 : index
      %c0_134 = arith.constant 0 : index
      %166 = vector.load %arg8[%c0_132, %c0_133, %c0_134] : memref<18x18x4xbf16, #tpu.memory_space<vmem>>, vector<1x18x4xbf16>
      tpu.vector_store %arg8[%c0_132, %c0_133, %c0_134], %165 {strides = array<i32>} : memref<18x18x4xbf16, #tpu.memory_space<vmem>>, vector<1x18x4xbf16>,
      %c17 = arith.constant 17 : index
      %c0_135 = arith.constant 0 : index
      %c0_136 = arith.constant 0 : index
      %167 = vector.load %arg8[%c17, %c0_135, %c0_136] : memref<18x18x4xbf16, #tpu.memory_space<vmem>>, vector<1x18x4xbf16>
      tpu.vector_store %arg8[%c17, %c0_135, %c0_136], %165 {strides = array<i32>} : memref<18x18x4xbf16, #tpu.memory_space<vmem>>, vector<1x18x4xbf16>,
      %cst_137 = arith.constant 0.000000e+00 : bf16
      %168 = vector.broadcast %cst_137 : bf16 to vector<18x1x4xbf16>
      %c0_138 = arith.constant 0 : index
      %c0_139 = arith.constant 0 : index
      %c0_140 = arith.constant 0 : index
      %169 = vector.load %arg8[%c0_138, %c0_139, %c0_140] : memref<18x18x4xbf16, #tpu.memory_space<vmem>>, vector<18x1x4xbf16>
      tpu.vector_store %arg8[%c0_138, %c0_139, %c0_140], %168 {strides = array<i32>} : memref<18x18x4xbf16, #tpu.memory_space<vmem>>, vector<18x1x4xbf16>,
      %c0_141 = arith.constant 0 : index
      %c17_142 = arith.constant 17 : index
      %c0_143 = arith.constant 0 : index
      %170 = vector.load %arg8[%c0_141, %c17_142, %c0_143] : memref<18x18x4xbf16, #tpu.memory_space<vmem>>, vector<18x1x4xbf16>
      tpu.vector_store %arg8[%c0_141, %c17_142, %c0_143], %168 {strides = array<i32>} : memref<18x18x4xbf16, #tpu.memory_space<vmem>>, vector<18x1x4xbf16>,
      %cst_144 = arith.constant 0.000000e+00 : bf16
      %171 = vector.broadcast %cst_144 : bf16 to vector<1x18x4xbf16>
      %c0_145 = arith.constant 0 : index
      %c0_146 = arith.constant 0 : index
      %c0_147 = arith.constant 0 : index
      %172 = vector.load %arg9[%c0_145, %c0_146, %c0_147] : memref<18x18x4xbf16, #tpu.memory_space<vmem>>, vector<1x18x4xbf16>
      tpu.vector_store %arg9[%c0_145, %c0_146, %c0_147], %171 {strides = array<i32>} : memref<18x18x4xbf16, #tpu.memory_space<vmem>>, vector<1x18x4xbf16>,
      %c17_148 = arith.constant 17 : index
      %c0_149 = arith.constant 0 : index
      %c0_150 = arith.constant 0 : index
      %173 = vector.load %arg9[%c17_148, %c0_149, %c0_150] : memref<18x18x4xbf16, #tpu.memory_space<vmem>>, vector<1x18x4xbf16>
      tpu.vector_store %arg9[%c17_148, %c0_149, %c0_150], %171 {strides = array<i32>} : memref<18x18x4xbf16, #tpu.memory_space<vmem>>, vector<1x18x4xbf16>,
      %cst_151 = arith.constant 0.000000e+00 : bf16
      %174 = vector.broadcast %cst_151 : bf16 to vector<18x1x4xbf16>
      %c0_152 = arith.constant 0 : index
      %c0_153 = arith.constant 0 : index
      %c0_154 = arith.constant 0 : index
      %175 = vector.load %arg9[%c0_152, %c0_153, %c0_154] : memref<18x18x4xbf16, #tpu.memory_space<vmem>>, vector<18x1x4xbf16>
      tpu.vector_store %arg9[%c0_152, %c0_153, %c0_154], %174 {strides = array<i32>} : memref<18x18x4xbf16, #tpu.memory_space<vmem>>, vector<18x1x4xbf16>,
      %c0_155 = arith.constant 0 : index
      %c17_156 = arith.constant 17 : index
      %c0_157 = arith.constant 0 : index
      %176 = vector.load %arg9[%c0_155, %c17_156, %c0_157] : memref<18x18x4xbf16, #tpu.memory_space<vmem>>, vector<18x1x4xbf16>
      tpu.vector_store %arg9[%c0_155, %c17_156, %c0_157], %174 {strides = array<i32>} : memref<18x18x4xbf16, #tpu.memory_space<vmem>>, vector<18x1x4xbf16>,
      %c0_158 = arith.constant 0 : index
      %c0_159 = arith.constant 0 : index
      %c0_160 = arith.constant 0 : index
      %c0_161 = arith.constant 0 : index
      %177 = vector.load %arg2[%c0_158, %c0_159, %c0_160, %c0_161] : memref<1x16x16x4xbf16, #tpu.memory_space<vmem>>, vector<1x16x16x4xbf16>
      %178 = vector.shape_cast %177 : vector<1x16x16x4xbf16> to vector<16x16x4xbf16>
      %c1_162 = arith.constant 1 : index
      %c1_163 = arith.constant 1 : index
      %c0_164 = arith.constant 0 : index
      %179 = vector.load %arg8[%c1_162, %c1_163, %c0_164] : memref<18x18x4xbf16, #tpu.memory_space<vmem>>, vector<16x16x4xbf16>
      tpu.vector_store %arg8[%c1_162, %c1_163, %c0_164], %178 {strides = array<i32>} : memref<18x18x4xbf16, #tpu.memory_space<vmem>>, vector<16x16x4xbf16>,
      %c0_165 = arith.constant 0 : index
      %c0_166 = arith.constant 0 : index
      %c0_167 = arith.constant 0 : index
      %c0_168 = arith.constant 0 : index
      %180 = vector.load %arg3[%c0_165, %c0_166, %c0_167, %c0_168] : memref<1x16x16x4xbf16, #tpu.memory_space<vmem>>, vector<1x16x16x4xbf16>
      %181 = vector.shape_cast %180 : vector<1x16x16x4xbf16> to vector<16x16x4xbf16>
      %c1_169 = arith.constant 1 : index
      %c1_170 = arith.constant 1 : index
      %c0_171 = arith.constant 0 : index
      %182 = vector.load %arg9[%c1_169, %c1_170, %c0_171] : memref<18x18x4xbf16, #tpu.memory_space<vmem>>, vector<16x16x4xbf16>
      tpu.vector_store %arg9[%c1_169, %c1_170, %c0_171], %181 {strides = array<i32>} : memref<18x18x4xbf16, #tpu.memory_space<vmem>>, vector<16x16x4xbf16>,
    } else {
    }
    %c8_i32 = arith.constant 8 : i32
    %3 = arith.muli %arg1, %c8_i32 : i32
    %4 = tpu.assume_multiple %3, 8 : i32
    %cst = arith.constant 0.000000e+00 : f32
    %5 = vector.broadcast %cst : f32 to vector<128x4xf32>
    %c0_i32_1 = arith.constant 0 : i32
    %6 = arith.addi %4, %c0_i32_1 : i32
    %7 = arith.index_cast %6 : i32 to index
    %c0 = arith.constant 0 : index
    %c0_2 = arith.constant 0 : index
    %8 = vector.load %arg8[%7, %c0, %c0_2] : memref<18x18x4xbf16, #tpu.memory_space<vmem>>, vector<8x16x4xbf16>
    %9 = vector.shape_cast %8 : vector<8x16x4xbf16> to vector<128x4xbf16>
    %c0_3 = arith.constant 0 : index
    %c0_4 = arith.constant 0 : index
    %c0_5 = arith.constant 0 : index
    %10 = vector.load %arg4[%c0_3, %c0_4, %c0_5] : memref<9x4x4xbf16, #tpu.memory_space<vmem>>, vector<1x4x4xbf16>
    %11 = vector.shape_cast %10 : vector<1x4x4xbf16> to vector<4x4xbf16>
    %cst_6 = arith.constant dense<0.000000e+00> : vector<128x4xf32>
    %12 = tpu.matmul %9, %11, %cst_6 {dimension_numbers = #tpu.dot_dimension_numbers<[1], [0], [0], [1], [0, 0, 1, 1], [], []>} : vector<128x4xbf16>, vector<4x4xbf16>, vector<128x4xf32> -> vector<128x4xf32>
    %13 = arith.addf %5, %12 : vector<128x4xf32>
    %c0_i32_7 = arith.constant 0 : i32
    %14 = arith.addi %4, %c0_i32_7 : i32
    %15 = arith.index_cast %14 : i32 to index
    %c1 = arith.constant 1 : index
    %c0_8 = arith.constant 0 : index
    %16 = vector.load %arg8[%15, %c1, %c0_8] : memref<18x18x4xbf16, #tpu.memory_space<vmem>>, vector<8x16x4xbf16>
    %17 = vector.shape_cast %16 : vector<8x16x4xbf16> to vector<128x4xbf16>
    %c1_9 = arith.constant 1 : index
    %c0_10 = arith.constant 0 : index
    %c0_11 = arith.constant 0 : index
    %18 = vector.load %arg4[%c1_9, %c0_10, %c0_11] : memref<9x4x4xbf16, #tpu.memory_space<vmem>>, vector<1x4x4xbf16>
    %19 = vector.shape_cast %18 : vector<1x4x4xbf16> to vector<4x4xbf16>
    %cst_12 = arith.constant dense<0.000000e+00> : vector<128x4xf32>
    %20 = tpu.matmul %17, %19, %cst_12 {dimension_numbers = #tpu.dot_dimension_numbers<[1], [0], [0], [1], [0, 0, 1, 1], [], []>} : vector<128x4xbf16>, vector<4x4xbf16>, vector<128x4xf32> -> vector<128x4xf32>
    %21 = arith.addf %13, %20 : vector<128x4xf32>
    %c0_i32_13 = arith.constant 0 : i32
    %22 = arith.addi %4, %c0_i32_13 : i32
    %23 = arith.index_cast %22 : i32 to index
    %c2 = arith.constant 2 : index
    %c0_14 = arith.constant 0 : index
    %24 = vector.load %arg8[%23, %c2, %c0_14] : memref<18x18x4xbf16, #tpu.memory_space<vmem>>, vector<8x16x4xbf16>
    %25 = vector.shape_cast %24 : vector<8x16x4xbf16> to vector<128x4xbf16>
    %c2_15 = arith.constant 2 : index
    %c0_16 = arith.constant 0 : index
    %c0_17 = arith.constant 0 : index
    %26 = vector.load %arg4[%c2_15, %c0_16, %c0_17] : memref<9x4x4xbf16, #tpu.memory_space<vmem>>, vector<1x4x4xbf16>
    %27 = vector.shape_cast %26 : vector<1x4x4xbf16> to vector<4x4xbf16>
    %cst_18 = arith.constant dense<0.000000e+00> : vector<128x4xf32>
    %28 = tpu.matmul %25, %27, %cst_18 {dimension_numbers = #tpu.dot_dimension_numbers<[1], [0], [0], [1], [0, 0, 1, 1], [], []>} : vector<128x4xbf16>, vector<4x4xbf16>, vector<128x4xf32> -> vector<128x4xf32>
    %29 = arith.addf %21, %28 : vector<128x4xf32>
    %c1_i32 = arith.constant 1 : i32
    %30 = arith.addi %4, %c1_i32 : i32
    %31 = arith.index_cast %30 : i32 to index
    %c0_19 = arith.constant 0 : index
    %c0_20 = arith.constant 0 : index
    %32 = vector.load %arg8[%31, %c0_19, %c0_20] : memref<18x18x4xbf16, #tpu.memory_space<vmem>>, vector<8x16x4xbf16>
    %33 = vector.shape_cast %32 : vector<8x16x4xbf16> to vector<128x4xbf16>
    %c3 = arith.constant 3 : index
    %c0_21 = arith.constant 0 : index
    %c0_22 = arith.constant 0 : index
    %34 = vector.load %arg4[%c3, %c0_21, %c0_22] : memref<9x4x4xbf16, #tpu.memory_space<vmem>>, vector<1x4x4xbf16>
    %35 = vector.shape_cast %34 : vector<1x4x4xbf16> to vector<4x4xbf16>
    %cst_23 = arith.constant dense<0.000000e+00> : vector<128x4xf32>
    %36 = tpu.matmul %33, %35, %cst_23 {dimension_numbers = #tpu.dot_dimension_numbers<[1], [0], [0], [1], [0, 0, 1, 1], [], []>} : vector<128x4xbf16>, vector<4x4xbf16>, vector<128x4xf32> -> vector<128x4xf32>
    %37 = arith.addf %29, %36 : vector<128x4xf32>
    %c1_i32_24 = arith.constant 1 : i32
    %38 = arith.addi %4, %c1_i32_24 : i32
    %39 = arith.index_cast %38 : i32 to index
    %c1_25 = arith.constant 1 : index
    %c0_26 = arith.constant 0 : index
    %40 = vector.load %arg8[%39, %c1_25, %c0_26] : memref<18x18x4xbf16, #tpu.memory_space<vmem>>, vector<8x16x4xbf16>
    %41 = vector.shape_cast %40 : vector<8x16x4xbf16> to vector<128x4xbf16>
    %c4 = arith.constant 4 : index
    %c0_27 = arith.constant 0 : index
    %c0_28 = arith.constant 0 : index
    %42 = vector.load %arg4[%c4, %c0_27, %c0_28] : memref<9x4x4xbf16, #tpu.memory_space<vmem>>, vector<1x4x4xbf16>
    %43 = vector.shape_cast %42 : vector<1x4x4xbf16> to vector<4x4xbf16>
    %cst_29 = arith.constant dense<0.000000e+00> : vector<128x4xf32>
    %44 = tpu.matmul %41, %43, %cst_29 {dimension_numbers = #tpu.dot_dimension_numbers<[1], [0], [0], [1], [0, 0, 1, 1], [], []>} : vector<128x4xbf16>, vector<4x4xbf16>, vector<128x4xf32> -> vector<128x4xf32>
    %45 = arith.addf %37, %44 : vector<128x4xf32>
    %c1_i32_30 = arith.constant 1 : i32
    %46 = arith.addi %4, %c1_i32_30 : i32
    %47 = arith.index_cast %46 : i32 to index
    %c2_31 = arith.constant 2 : index
    %c0_32 = arith.constant 0 : index
    %48 = vector.load %arg8[%47, %c2_31, %c0_32] : memref<18x18x4xbf16, #tpu.memory_space<vmem>>, vector<8x16x4xbf16>
    %49 = vector.shape_cast %48 : vector<8x16x4xbf16> to vector<128x4xbf16>
    %c5 = arith.constant 5 : index
    %c0_33 = arith.constant 0 : index
    %c0_34 = arith.constant 0 : index
    %50 = vector.load %arg4[%c5, %c0_33, %c0_34] : memref<9x4x4xbf16, #tpu.memory_space<vmem>>, vector<1x4x4xbf16>
    %51 = vector.shape_cast %50 : vector<1x4x4xbf16> to vector<4x4xbf16>
    %cst_35 = arith.constant dense<0.000000e+00> : vector<128x4xf32>
    %52 = tpu.matmul %49, %51, %cst_35 {dimension_numbers = #tpu.dot_dimension_numbers<[1], [0], [0], [1], [0, 0, 1, 1], [], []>} : vector<128x4xbf16>, vector<4x4xbf16>, vector<128x4xf32> -> vector<128x4xf32>
    %53 = arith.addf %45, %52 : vector<128x4xf32>
    %c2_i32 = arith.constant 2 : i32
    %54 = arith.addi %4, %c2_i32 : i32
    %55 = arith.index_cast %54 : i32 to index
    %c0_36 = arith.constant 0 : index
    %c0_37 = arith.constant 0 : index
    %56 = vector.load %arg8[%55, %c0_36, %c0_37] : memref<18x18x4xbf16, #tpu.memory_space<vmem>>, vector<8x16x4xbf16>
    %57 = vector.shape_cast %56 : vector<8x16x4xbf16> to vector<128x4xbf16>
    %c6 = arith.constant 6 : index
    %c0_38 = arith.constant 0 : index
    %c0_39 = arith.constant 0 : index
    %58 = vector.load %arg4[%c6, %c0_38, %c0_39] : memref<9x4x4xbf16, #tpu.memory_space<vmem>>, vector<1x4x4xbf16>
    %59 = vector.shape_cast %58 : vector<1x4x4xbf16> to vector<4x4xbf16>
    %cst_40 = arith.constant dense<0.000000e+00> : vector<128x4xf32>
    %60 = tpu.matmul %57, %59, %cst_40 {dimension_numbers = #tpu.dot_dimension_numbers<[1], [0], [0], [1], [0, 0, 1, 1], [], []>} : vector<128x4xbf16>, vector<4x4xbf16>, vector<128x4xf32> -> vector<128x4xf32>
    %61 = arith.addf %53, %60 : vector<128x4xf32>
    %c2_i32_41 = arith.constant 2 : i32
    %62 = arith.addi %4, %c2_i32_41 : i32
    %63 = arith.index_cast %62 : i32 to index
    %c1_42 = arith.constant 1 : index
    %c0_43 = arith.constant 0 : index
    %64 = vector.load %arg8[%63, %c1_42, %c0_43] : memref<18x18x4xbf16, #tpu.memory_space<vmem>>, vector<8x16x4xbf16>
    %65 = vector.shape_cast %64 : vector<8x16x4xbf16> to vector<128x4xbf16>
    %c7 = arith.constant 7 : index
    %c0_44 = arith.constant 0 : index
    %c0_45 = arith.constant 0 : index
    %66 = vector.load %arg4[%c7, %c0_44, %c0_45] : memref<9x4x4xbf16, #tpu.memory_space<vmem>>, vector<1x4x4xbf16>
    %67 = vector.shape_cast %66 : vector<1x4x4xbf16> to vector<4x4xbf16>
    %cst_46 = arith.constant dense<0.000000e+00> : vector<128x4xf32>
    %68 = tpu.matmul %65, %67, %cst_46 {dimension_numbers = #tpu.dot_dimension_numbers<[1], [0], [0], [1], [0, 0, 1, 1], [], []>} : vector<128x4xbf16>, vector<4x4xbf16>, vector<128x4xf32> -> vector<128x4xf32>
    %69 = arith.addf %61, %68 : vector<128x4xf32>
    %c2_i32_47 = arith.constant 2 : i32
    %70 = arith.addi %4, %c2_i32_47 : i32
    %71 = arith.index_cast %70 : i32 to index
    %c2_48 = arith.constant 2 : index
    %c0_49 = arith.constant 0 : index
    %72 = vector.load %arg8[%71, %c2_48, %c0_49] : memref<18x18x4xbf16, #tpu.memory_space<vmem>>, vector<8x16x4xbf16>
    %73 = vector.shape_cast %72 : vector<8x16x4xbf16> to vector<128x4xbf16>
    %c8 = arith.constant 8 : index
    %c0_50 = arith.constant 0 : index
    %c0_51 = arith.constant 0 : index
    %74 = vector.load %arg4[%c8, %c0_50, %c0_51] : memref<9x4x4xbf16, #tpu.memory_space<vmem>>, vector<1x4x4xbf16>
    %75 = vector.shape_cast %74 : vector<1x4x4xbf16> to vector<4x4xbf16>
    %cst_52 = arith.constant dense<0.000000e+00> : vector<128x4xf32>
    %76 = tpu.matmul %73, %75, %cst_52 {dimension_numbers = #tpu.dot_dimension_numbers<[1], [0], [0], [1], [0, 0, 1, 1], [], []>} : vector<128x4xbf16>, vector<4x4xbf16>, vector<128x4xf32> -> vector<128x4xf32>
    %77 = arith.addf %69, %76 : vector<128x4xf32>
    %c0_i32_53 = arith.constant 0 : i32
    %78 = arith.addi %4, %c0_i32_53 : i32
    %79 = arith.index_cast %78 : i32 to index
    %c0_54 = arith.constant 0 : index
    %c0_55 = arith.constant 0 : index
    %80 = vector.load %arg9[%79, %c0_54, %c0_55] : memref<18x18x4xbf16, #tpu.memory_space<vmem>>, vector<8x16x4xbf16>
    %81 = vector.shape_cast %80 : vector<8x16x4xbf16> to vector<128x4xbf16>
    %c0_56 = arith.constant 0 : index
    %c0_57 = arith.constant 0 : index
    %c0_58 = arith.constant 0 : index
    %82 = vector.load %arg5[%c0_56, %c0_57, %c0_58] : memref<9x4x4xbf16, #tpu.memory_space<vmem>>, vector<1x4x4xbf16>
    %83 = vector.shape_cast %82 : vector<1x4x4xbf16> to vector<4x4xbf16>
    %cst_59 = arith.constant dense<0.000000e+00> : vector<128x4xf32>
    %84 = tpu.matmul %81, %83, %cst_59 {dimension_numbers = #tpu.dot_dimension_numbers<[1], [0], [0], [1], [0, 0, 1, 1], [], []>} : vector<128x4xbf16>, vector<4x4xbf16>, vector<128x4xf32> -> vector<128x4xf32>
    %85 = arith.addf %77, %84 : vector<128x4xf32>
    %c0_i32_60 = arith.constant 0 : i32
    %86 = arith.addi %4, %c0_i32_60 : i32
    %87 = arith.index_cast %86 : i32 to index
    %c1_61 = arith.constant 1 : index
    %c0_62 = arith.constant 0 : index
    %88 = vector.load %arg9[%87, %c1_61, %c0_62] : memref<18x18x4xbf16, #tpu.memory_space<vmem>>, vector<8x16x4xbf16>
    %89 = vector.shape_cast %88 : vector<8x16x4xbf16> to vector<128x4xbf16>
    %c1_63 = arith.constant 1 : index
    %c0_64 = arith.constant 0 : index
    %c0_65 = arith.constant 0 : index
    %90 = vector.load %arg5[%c1_63, %c0_64, %c0_65] : memref<9x4x4xbf16, #tpu.memory_space<vmem>>, vector<1x4x4xbf16>
    %91 = vector.shape_cast %90 : vector<1x4x4xbf16> to vector<4x4xbf16>
    %cst_66 = arith.constant dense<0.000000e+00> : vector<128x4xf32>
    %92 = tpu.matmul %89, %91, %cst_66 {dimension_numbers = #tpu.dot_dimension_numbers<[1], [0], [0], [1], [0, 0, 1, 1], [], []>} : vector<128x4xbf16>, vector<4x4xbf16>, vector<128x4xf32> -> vector<128x4xf32>
    %93 = arith.addf %85, %92 : vector<128x4xf32>
    %c0_i32_67 = arith.constant 0 : i32
    %94 = arith.addi %4, %c0_i32_67 : i32
    %95 = arith.index_cast %94 : i32 to index
    %c2_68 = arith.constant 2 : index
    %c0_69 = arith.constant 0 : index
    %96 = vector.load %arg9[%95, %c2_68, %c0_69] : memref<18x18x4xbf16, #tpu.memory_space<vmem>>, vector<8x16x4xbf16>
    %97 = vector.shape_cast %96 : vector<8x16x4xbf16> to vector<128x4xbf16>
    %c2_70 = arith.constant 2 : index
    %c0_71 = arith.constant 0 : index
    %c0_72 = arith.constant 0 : index
    %98 = vector.load %arg5[%c2_70, %c0_71, %c0_72] : memref<9x4x4xbf16, #tpu.memory_space<vmem>>, vector<1x4x4xbf16>
    %99 = vector.shape_cast %98 : vector<1x4x4xbf16> to vector<4x4xbf16>
    %cst_73 = arith.constant dense<0.000000e+00> : vector<128x4xf32>
    %100 = tpu.matmul %97, %99, %cst_73 {dimension_numbers = #tpu.dot_dimension_numbers<[1], [0], [0], [1], [0, 0, 1, 1], [], []>} : vector<128x4xbf16>, vector<4x4xbf16>, vector<128x4xf32> -> vector<128x4xf32>
    %101 = arith.addf %93, %100 : vector<128x4xf32>
    %c1_i32_74 = arith.constant 1 : i32
    %102 = arith.addi %4, %c1_i32_74 : i32
    %103 = arith.index_cast %102 : i32 to index
    %c0_75 = arith.constant 0 : index
    %c0_76 = arith.constant 0 : index
    %104 = vector.load %arg9[%103, %c0_75, %c0_76] : memref<18x18x4xbf16, #tpu.memory_space<vmem>>, vector<8x16x4xbf16>
    %105 = vector.shape_cast %104 : vector<8x16x4xbf16> to vector<128x4xbf16>
    %c3_77 = arith.constant 3 : index
    %c0_78 = arith.constant 0 : index
    %c0_79 = arith.constant 0 : index
    %106 = vector.load %arg5[%c3_77, %c0_78, %c0_79] : memref<9x4x4xbf16, #tpu.memory_space<vmem>>, vector<1x4x4xbf16>
    %107 = vector.shape_cast %106 : vector<1x4x4xbf16> to vector<4x4xbf16>
    %cst_80 = arith.constant dense<0.000000e+00> : vector<128x4xf32>
    %108 = tpu.matmul %105, %107, %cst_80 {dimension_numbers = #tpu.dot_dimension_numbers<[1], [0], [0], [1], [0, 0, 1, 1], [], []>} : vector<128x4xbf16>, vector<4x4xbf16>, vector<128x4xf32> -> vector<128x4xf32>
    %109 = arith.addf %101, %108 : vector<128x4xf32>
    %c1_i32_81 = arith.constant 1 : i32
    %110 = arith.addi %4, %c1_i32_81 : i32
    %111 = arith.index_cast %110 : i32 to index
    %c1_82 = arith.constant 1 : index
    %c0_83 = arith.constant 0 : index
    %112 = vector.load %arg9[%111, %c1_82, %c0_83] : memref<18x18x4xbf16, #tpu.memory_space<vmem>>, vector<8x16x4xbf16>
    %113 = vector.shape_cast %112 : vector<8x16x4xbf16> to vector<128x4xbf16>
    %c4_84 = arith.constant 4 : index
    %c0_85 = arith.constant 0 : index
    %c0_86 = arith.constant 0 : index
    %114 = vector.load %arg5[%c4_84, %c0_85, %c0_86] : memref<9x4x4xbf16, #tpu.memory_space<vmem>>, vector<1x4x4xbf16>
    %115 = vector.shape_cast %114 : vector<1x4x4xbf16> to vector<4x4xbf16>
    %cst_87 = arith.constant dense<0.000000e+00> : vector<128x4xf32>
    %116 = tpu.matmul %113, %115, %cst_87 {dimension_numbers = #tpu.dot_dimension_numbers<[1], [0], [0], [1], [0, 0, 1, 1], [], []>} : vector<128x4xbf16>, vector<4x4xbf16>, vector<128x4xf32> -> vector<128x4xf32>
    %117 = arith.addf %109, %116 : vector<128x4xf32>
    %c1_i32_88 = arith.constant 1 : i32
    %118 = arith.addi %4, %c1_i32_88 : i32
    %119 = arith.index_cast %118 : i32 to index
    %c2_89 = arith.constant 2 : index
    %c0_90 = arith.constant 0 : index
    %120 = vector.load %arg9[%119, %c2_89, %c0_90] : memref<18x18x4xbf16, #tpu.memory_space<vmem>>, vector<8x16x4xbf16>
    %121 = vector.shape_cast %120 : vector<8x16x4xbf16> to vector<128x4xbf16>
    %c5_91 = arith.constant 5 : index
    %c0_92 = arith.constant 0 : index
    %c0_93 = arith.constant 0 : index
    %122 = vector.load %arg5[%c5_91, %c0_92, %c0_93] : memref<9x4x4xbf16, #tpu.memory_space<vmem>>, vector<1x4x4xbf16>
    %123 = vector.shape_cast %122 : vector<1x4x4xbf16> to vector<4x4xbf16>
    %cst_94 = arith.constant dense<0.000000e+00> : vector<128x4xf32>
    %124 = tpu.matmul %121, %123, %cst_94 {dimension_numbers = #tpu.dot_dimension_numbers<[1], [0], [0], [1], [0, 0, 1, 1], [], []>} : vector<128x4xbf16>, vector<4x4xbf16>, vector<128x4xf32> -> vector<128x4xf32>
    %125 = arith.addf %117, %124 : vector<128x4xf32>
    %c2_i32_95 = arith.constant 2 : i32
    %126 = arith.addi %4, %c2_i32_95 : i32
    %127 = arith.index_cast %126 : i32 to index
    %c0_96 = arith.constant 0 : index
    %c0_97 = arith.constant 0 : index
    %128 = vector.load %arg9[%127, %c0_96, %c0_97] : memref<18x18x4xbf16, #tpu.memory_space<vmem>>, vector<8x16x4xbf16>
    %129 = vector.shape_cast %128 : vector<8x16x4xbf16> to vector<128x4xbf16>
    %c6_98 = arith.constant 6 : index
    %c0_99 = arith.constant 0 : index
    %c0_100 = arith.constant 0 : index
    %130 = vector.load %arg5[%c6_98, %c0_99, %c0_100] : memref<9x4x4xbf16, #tpu.memory_space<vmem>>, vector<1x4x4xbf16>
    %131 = vector.shape_cast %130 : vector<1x4x4xbf16> to vector<4x4xbf16>
    %cst_101 = arith.constant dense<0.000000e+00> : vector<128x4xf32>
    %132 = tpu.matmul %129, %131, %cst_101 {dimension_numbers = #tpu.dot_dimension_numbers<[1], [0], [0], [1], [0, 0, 1, 1], [], []>} : vector<128x4xbf16>, vector<4x4xbf16>, vector<128x4xf32> -> vector<128x4xf32>
    %133 = arith.addf %125, %132 : vector<128x4xf32>
    %c2_i32_102 = arith.constant 2 : i32
    %134 = arith.addi %4, %c2_i32_102 : i32
    %135 = arith.index_cast %134 : i32 to index
    %c1_103 = arith.constant 1 : index
    %c0_104 = arith.constant 0 : index
    %136 = vector.load %arg9[%135, %c1_103, %c0_104] : memref<18x18x4xbf16, #tpu.memory_space<vmem>>, vector<8x16x4xbf16>
    %137 = vector.shape_cast %136 : vector<8x16x4xbf16> to vector<128x4xbf16>
    %c7_105 = arith.constant 7 : index
    %c0_106 = arith.constant 0 : index
    %c0_107 = arith.constant 0 : index
    %138 = vector.load %arg5[%c7_105, %c0_106, %c0_107] : memref<9x4x4xbf16, #tpu.memory_space<vmem>>, vector<1x4x4xbf16>
    %139 = vector.shape_cast %138 : vector<1x4x4xbf16> to vector<4x4xbf16>
    %cst_108 = arith.constant dense<0.000000e+00> : vector<128x4xf32>
    %140 = tpu.matmul %137, %139, %cst_108 {dimension_numbers = #tpu.dot_dimension_numbers<[1], [0], [0], [1], [0, 0, 1, 1], [], []>} : vector<128x4xbf16>, vector<4x4xbf16>, vector<128x4xf32> -> vector<128x4xf32>
    %141 = arith.addf %133, %140 : vector<128x4xf32>
    %c2_i32_109 = arith.constant 2 : i32
    %142 = arith.addi %4, %c2_i32_109 : i32
    %143 = arith.index_cast %142 : i32 to index
    %c2_110 = arith.constant 2 : index
    %c0_111 = arith.constant 0 : index
    %144 = vector.load %arg9[%143, %c2_110, %c0_111] : memref<18x18x4xbf16, #tpu.memory_space<vmem>>, vector<8x16x4xbf16>
    %145 = vector.shape_cast %144 : vector<8x16x4xbf16> to vector<128x4xbf16>
    %c8_112 = arith.constant 8 : index
    %c0_113 = arith.constant 0 : index
    %c0_114 = arith.constant 0 : index
    %146 = vector.load %arg5[%c8_112, %c0_113, %c0_114] : memref<9x4x4xbf16, #tpu.memory_space<vmem>>, vector<1x4x4xbf16>
    %147 = vector.shape_cast %146 : vector<1x4x4xbf16> to vector<4x4xbf16>
    %cst_115 = arith.constant dense<0.000000e+00> : vector<128x4xf32>
    %148 = tpu.matmul %145, %147, %cst_115 {dimension_numbers = #tpu.dot_dimension_numbers<[1], [0], [0], [1], [0, 0, 1, 1], [], []>} : vector<128x4xbf16>, vector<4x4xbf16>, vector<128x4xf32> -> vector<128x4xf32>
    %149 = arith.addf %141, %148 : vector<128x4xf32>
    %150 = vector.shape_cast %149 : vector<128x4xf32> to vector<1x8x16x4xf32>
    %151 = arith.truncf %150 : vector<1x8x16x4xf32> to vector<1x8x16x4xbf16>
    %c0_116 = arith.constant 0 : index
    %c0_117 = arith.constant 0 : index
    %c0_118 = arith.constant 0 : index
    %c0_119 = arith.constant 0 : index
    %152 = vector.load %arg6[%c0_116, %c0_117, %c0_118, %c0_119] : memref<1x8x16x4xbf16, #tpu.memory_space<vmem>>, vector<1x8x16x4xbf16>
    tpu.vector_store %arg6[%c0_116, %c0_117, %c0_118, %c0_119], %151 {strides = array<i32>} : memref<1x8x16x4xbf16, #tpu.memory_space<vmem>>, vector<1x8x16x4xbf16>,
    %cst_120 = arith.constant dense<0.000000e+00> : vector<4xf32>
    %153 = vector.multi_reduction <add>, %149, %cst_120 [0] : vector<128x4xf32> to vector<4xf32>
    %cst_121 = arith.constant 1.280000e+02 : f32
    %154 = vector.broadcast %cst_121 : f32 to vector<4xf32>
    %155 = arith.divf %153, %154 : vector<4xf32>
    %156 = vector.shape_cast %155 : vector<4xf32> to vector<1x4xf32>
    %157 = vector.broadcast %156 : vector<1x4xf32> to vector<128x4xf32>
    %158 = arith.subf %149, %157 : vector<128x4xf32>
    %159 = arith.mulf %158, %158 : vector<128x4xf32>
    %cst_122 = arith.constant dense<0.000000e+00> : vector<4xf32>
    %160 = vector.multi_reduction <add>, %159, %cst_122 [0] : vector<128x4xf32> to vector<4xf32>
    %161 = vector.shape_cast %153 : vector<4xf32> to vector<1x1x1x4xf32>
    %c0_123 = arith.constant 0 : index
    %c0_124 = arith.constant 0 : index
    %c0_125 = arith.constant 0 : index
    %c0_126 = arith.constant 0 : index
    %162 = vector.load %arg7[%c0_123, %c0_124, %c0_125, %c0_126] : memref<1x1x2x4xf32, #tpu.memory_space<vmem>>, vector<1x1x1x4xf32>
    tpu.vector_store %arg7[%c0_123, %c0_124, %c0_125, %c0_126], %161 {strides = array<i32>} : memref<1x1x2x4xf32, #tpu.memory_space<vmem>>, vector<1x1x1x4xf32>,
    %163 = vector.shape_cast %160 : vector<4xf32> to vector<1x1x1x4xf32>
    %c0_127 = arith.constant 0 : index
    %c0_128 = arith.constant 0 : index
    %c1_129 = arith.constant 1 : index
    %c0_130 = arith.constant 0 : index
    %164 = vector.load %arg7[%c0_127, %c0_128, %c1_129, %c0_130] : memref<1x1x2x4xf32, #tpu.memory_space<vmem>>, vector<1x1x1x4xf32>
    tpu.vector_store %arg7[%c0_127, %c0_128, %c1_129, %c0_130], %163 {strides = array<i32>} : memref<1x1x2x4xf32, #tpu.memory_space<vmem>>, vector<1x1x1x4xf32>,
    return
  }
  func.func @transform_0(%arg0: i32, %arg1: i32) -> (i32, i32, i32, i32) {
    %c0_i32 = arith.constant 0 : i32
    %c0_i32_0 = arith.constant 0 : i32
    %c0_i32_1 = arith.constant 0 : i32
    %c0_i32_2 = arith.constant 0 : i32
    return %arg0, %c0_i32, %c0_i32_0, %c0_i32_1 : i32, i32, i32, i32
  }
  func.func @transform_1(%arg0: i32, %arg1: i32) -> (i32, i32, i32, i32) {
    %c0_i32 = arith.constant 0 : i32
    %c0_i32_0 = arith.constant 0 : i32
    %c0_i32_1 = arith.constant 0 : i32
    %c0_i32_2 = arith.constant 0 : i32
    return %arg0, %c0_i32, %c0_i32_0, %c0_i32_1 : i32, i32, i32, i32
  }
  func.func @transform_2(%arg0: i32, %arg1: i32) -> (i32, i32, i32) {
    %c0_i32 = arith.constant 0 : i32
    %c0_i32_0 = arith.constant 0 : i32
    %c0_i32_1 = arith.constant 0 : i32
    %c0_i32_2 = arith.constant 0 : i32
    return %c0_i32, %c0_i32_0, %c0_i32_1 : i32, i32, i32
  }
  func.func @transform_3(%arg0: i32, %arg1: i32) -> (i32, i32, i32) {
    %c0_i32 = arith.constant 0 : i32
    %c0_i32_0 = arith.constant 0 : i32
    %c0_i32_1 = arith.constant 0 : i32
    %c0_i32_2 = arith.constant 0 : i32
    return %c0_i32, %c0_i32_0, %c0_i32_1 : i32, i32, i32
  }
  func.func @transform_4(%arg0: i32, %arg1: i32) -> (i32, i32, i32, i32) {
    %c0_i32 = arith.constant 0 : i32
    %c0_i32_0 = arith.constant 0 : i32
    %c0_i32_1 = arith.constant 0 : i32
    return %arg0, %arg1, %c0_i32, %c0_i32_0 : i32, i32, i32, i32
  }
  func.func @transform_5(%arg0: i32, %arg1: i32) -> (i32, i32, i32, i32) {
    %c0_i32 = arith.constant 0 : i32
    %c0_i32_0 = arith.constant 0 : i32
    %c0_i32_1 = arith.constant 0 : i32
    return %arg0, %arg1, %c0_i32, %c0_i32_0 : i32, i32, i32, i32
  }
}

module attributes {stable_mosaic.version = 11 : i64} {
  func.func @_bn_relu_kernel(%arg0: i32, %arg1: i32, %arg2: memref<1x8x16x4xbf16, #tpu.memory_space<vmem>>, %arg3: memref<1x4xf32, #tpu.memory_space<vmem>>, %arg4: memref<1x4xf32, #tpu.memory_space<vmem>>, %arg5: memref<1x8x16x4xbf16, #tpu.memory_space<vmem>>) attributes {dimension_semantics = [#tpu.dimension_semantics<parallel>, #tpu.dimension_semantics<parallel>], iteration_bounds = array<i64: 2, 2>, scalar_prefetch = 0 : i64, scratch_operands = 0 : i64, tpu.core_type = #tpu.core_type<tc>, window_params = [{transform_indices = @transform_0, window_bounds = array<i64: 1, 8, 16, 4>}, {pipeline_mode = #tpu.pipeline_mode<synchronous>, transform_indices = @transform_1, window_bounds = array<i64: 1, 4>}, {pipeline_mode = #tpu.pipeline_mode<synchronous>, transform_indices = @transform_2, window_bounds = array<i64: 1, 4>}, {transform_indices = @transform_3, window_bounds = array<i64: 1, 8, 16, 4>}]} {
    %c0 = arith.constant 0 : index
    %c0_0 = arith.constant 0 : index
    %c0_1 = arith.constant 0 : index
    %c0_2 = arith.constant 0 : index
    %0 = vector.load %arg2[%c0, %c0_0, %c0_1, %c0_2] : memref<1x8x16x4xbf16, #tpu.memory_space<vmem>>, vector<1x8x16x4xbf16>
    %1 = arith.extf %0 : vector<1x8x16x4xbf16> to vector<1x8x16x4xf32>
    %c0_3 = arith.constant 0 : index
    %c0_4 = arith.constant 0 : index
    %2 = vector.load %arg3[%c0_3, %c0_4] : memref<1x4xf32, #tpu.memory_space<vmem>>, vector<1x4xf32>
    %3 = vector.shape_cast %2 : vector<1x4xf32> to vector<4xf32>
    %4 = vector.shape_cast %3 : vector<4xf32> to vector<1x1x1x4xf32>
    %5 = vector.broadcast %4 : vector<1x1x1x4xf32> to vector<1x8x16x4xf32>
    %6 = arith.mulf %1, %5 : vector<1x8x16x4xf32>
    %c0_5 = arith.constant 0 : index
    %c0_6 = arith.constant 0 : index
    %7 = vector.load %arg4[%c0_5, %c0_6] : memref<1x4xf32, #tpu.memory_space<vmem>>, vector<1x4xf32>
    %8 = vector.shape_cast %7 : vector<1x4xf32> to vector<4xf32>
    %9 = vector.shape_cast %8 : vector<4xf32> to vector<1x1x1x4xf32>
    %10 = vector.broadcast %9 : vector<1x1x1x4xf32> to vector<1x8x16x4xf32>
    %11 = arith.addf %6, %10 : vector<1x8x16x4xf32>
    %cst = arith.constant 0.000000e+00 : f32
    %12 = vector.broadcast %cst : f32 to vector<1x8x16x4xf32>
    %13 = arith.maximumf %11, %12 : vector<1x8x16x4xf32>
    %14 = arith.truncf %13 : vector<1x8x16x4xf32> to vector<1x8x16x4xbf16>
    %c0_7 = arith.constant 0 : index
    %c0_8 = arith.constant 0 : index
    %c0_9 = arith.constant 0 : index
    %c0_10 = arith.constant 0 : index
    %15 = vector.load %arg5[%c0_7, %c0_8, %c0_9, %c0_10] : memref<1x8x16x4xbf16, #tpu.memory_space<vmem>>, vector<1x8x16x4xbf16>
    tpu.vector_store %arg5[%c0_7, %c0_8, %c0_9, %c0_10], %14 {strides = array<i32>} : memref<1x8x16x4xbf16, #tpu.memory_space<vmem>>, vector<1x8x16x4xbf16>,
    return
  }
  func.func @transform_0(%arg0: i32, %arg1: i32) -> (i32, i32, i32, i32) {
    %c0_i32 = arith.constant 0 : i32
    %c0_i32_0 = arith.constant 0 : i32
    %c0_i32_1 = arith.constant 0 : i32
    return %arg0, %arg1, %c0_i32, %c0_i32_0 : i32, i32, i32, i32
  }
  func.func @transform_1(%arg0: i32, %arg1: i32) -> (i32, i32) {
    %c0_i32 = arith.constant 0 : i32
    %c0_i32_0 = arith.constant 0 : i32
    %c0_i32_1 = arith.constant 0 : i32
    return %c0_i32, %c0_i32_0 : i32, i32
  }
  func.func @transform_2(%arg0: i32, %arg1: i32) -> (i32, i32) {
    %c0_i32 = arith.constant 0 : i32
    %c0_i32_0 = arith.constant 0 : i32
    %c0_i32_1 = arith.constant 0 : i32
    return %c0_i32, %c0_i32_0 : i32, i32
  }
  func.func @transform_3(%arg0: i32, %arg1: i32) -> (i32, i32, i32, i32) {
    %c0_i32 = arith.constant 0 : i32
    %c0_i32_0 = arith.constant 0 : i32
    %c0_i32_1 = arith.constant 0 : i32
    return %arg0, %arg1, %c0_i32, %c0_i32_0 : i32, i32, i32, i32
  }
}

module attributes {stable_mosaic.version = 11 : i64} {
  func.func @_conv2_kernel(%arg0: i32, %arg1: i32, %arg2: memref<1x16x16x4xbf16, #tpu.memory_space<vmem>>, %arg3: memref<1x4xf32, #tpu.memory_space<vmem>>, %arg4: memref<1x4xf32, #tpu.memory_space<vmem>>, %arg5: memref<9x4x4xbf16, #tpu.memory_space<vmem>>, %arg6: memref<1x8x16x4xbf16, #tpu.memory_space<vmem>>, %arg7: memref<1x1x2x4xf32, #tpu.memory_space<vmem>>, %arg8: memref<18x18x4xbf16, #tpu.memory_space<vmem>>) attributes {dimension_semantics = [#tpu.dimension_semantics<parallel>, #tpu.dimension_semantics<arbitrary>], iteration_bounds = array<i64: 2, 2>, scalar_prefetch = 0 : i64, scratch_operands = 1 : i64, tpu.core_type = #tpu.core_type<tc>, window_params = [{transform_indices = @transform_0, window_bounds = array<i64: 1, 16, 16, 4>}, {pipeline_mode = #tpu.pipeline_mode<synchronous>, transform_indices = @transform_1, window_bounds = array<i64: 1, 4>}, {pipeline_mode = #tpu.pipeline_mode<synchronous>, transform_indices = @transform_2, window_bounds = array<i64: 1, 4>}, {pipeline_mode = #tpu.pipeline_mode<synchronous>, transform_indices = @transform_3, window_bounds = array<i64: 9, 4, 4>}, {transform_indices = @transform_4, window_bounds = array<i64: 1, 8, 16, 4>}, {transform_indices = @transform_5, window_bounds = array<i64: 1, 1, 2, 4>}]} {
    %c0_i32 = arith.constant 0 : i32
    %0 = arith.cmpi eq, %arg1, %c0_i32 : i32
    %1 = arith.extui %0 : i1 to i32
    %c0_i32_0 = arith.constant 0 : i32
    %2 = arith.cmpi ne, %1, %c0_i32_0 : i32
    scf.if %2 {
      %cst_68 = arith.constant 0.000000e+00 : bf16
      %93 = vector.broadcast %cst_68 : bf16 to vector<1x18x4xbf16>
      %c0_69 = arith.constant 0 : index
      %c0_70 = arith.constant 0 : index
      %c0_71 = arith.constant 0 : index
      %94 = vector.load %arg8[%c0_69, %c0_70, %c0_71] : memref<18x18x4xbf16, #tpu.memory_space<vmem>>, vector<1x18x4xbf16>
      tpu.vector_store %arg8[%c0_69, %c0_70, %c0_71], %93 {strides = array<i32>} : memref<18x18x4xbf16, #tpu.memory_space<vmem>>, vector<1x18x4xbf16>,
      %c17 = arith.constant 17 : index
      %c0_72 = arith.constant 0 : index
      %c0_73 = arith.constant 0 : index
      %95 = vector.load %arg8[%c17, %c0_72, %c0_73] : memref<18x18x4xbf16, #tpu.memory_space<vmem>>, vector<1x18x4xbf16>
      tpu.vector_store %arg8[%c17, %c0_72, %c0_73], %93 {strides = array<i32>} : memref<18x18x4xbf16, #tpu.memory_space<vmem>>, vector<1x18x4xbf16>,
      %cst_74 = arith.constant 0.000000e+00 : bf16
      %96 = vector.broadcast %cst_74 : bf16 to vector<18x1x4xbf16>
      %c0_75 = arith.constant 0 : index
      %c0_76 = arith.constant 0 : index
      %c0_77 = arith.constant 0 : index
      %97 = vector.load %arg8[%c0_75, %c0_76, %c0_77] : memref<18x18x4xbf16, #tpu.memory_space<vmem>>, vector<18x1x4xbf16>
      tpu.vector_store %arg8[%c0_75, %c0_76, %c0_77], %96 {strides = array<i32>} : memref<18x18x4xbf16, #tpu.memory_space<vmem>>, vector<18x1x4xbf16>,
      %c0_78 = arith.constant 0 : index
      %c17_79 = arith.constant 17 : index
      %c0_80 = arith.constant 0 : index
      %98 = vector.load %arg8[%c0_78, %c17_79, %c0_80] : memref<18x18x4xbf16, #tpu.memory_space<vmem>>, vector<18x1x4xbf16>
      tpu.vector_store %arg8[%c0_78, %c17_79, %c0_80], %96 {strides = array<i32>} : memref<18x18x4xbf16, #tpu.memory_space<vmem>>, vector<18x1x4xbf16>,
      %c0_81 = arith.constant 0 : index
      %c0_82 = arith.constant 0 : index
      %c0_83 = arith.constant 0 : index
      %c0_84 = arith.constant 0 : index
      %99 = vector.load %arg2[%c0_81, %c0_82, %c0_83, %c0_84] : memref<1x16x16x4xbf16, #tpu.memory_space<vmem>>, vector<1x16x16x4xbf16>
      %100 = vector.shape_cast %99 : vector<1x16x16x4xbf16> to vector<16x16x4xbf16>
      %101 = arith.extf %100 : vector<16x16x4xbf16> to vector<16x16x4xf32>
      %c0_85 = arith.constant 0 : index
      %c0_86 = arith.constant 0 : index
      %102 = vector.load %arg3[%c0_85, %c0_86] : memref<1x4xf32, #tpu.memory_space<vmem>>, vector<1x4xf32>
      %103 = vector.shape_cast %102 : vector<1x4xf32> to vector<4xf32>
      %104 = vector.shape_cast %103 : vector<4xf32> to vector<1x1x4xf32>
      %105 = vector.broadcast %104 : vector<1x1x4xf32> to vector<16x16x4xf32>
      %106 = arith.mulf %101, %105 : vector<16x16x4xf32>
      %c0_87 = arith.constant 0 : index
      %c0_88 = arith.constant 0 : index
      %107 = vector.load %arg4[%c0_87, %c0_88] : memref<1x4xf32, #tpu.memory_space<vmem>>, vector<1x4xf32>
      %108 = vector.shape_cast %107 : vector<1x4xf32> to vector<4xf32>
      %109 = vector.shape_cast %108 : vector<4xf32> to vector<1x1x4xf32>
      %110 = vector.broadcast %109 : vector<1x1x4xf32> to vector<16x16x4xf32>
      %111 = arith.addf %106, %110 : vector<16x16x4xf32>
      %cst_89 = arith.constant 0.000000e+00 : f32
      %112 = vector.broadcast %cst_89 : f32 to vector<16x16x4xf32>
      %113 = arith.maximumf %111, %112 : vector<16x16x4xf32>
      %114 = arith.truncf %113 : vector<16x16x4xf32> to vector<16x16x4xbf16>
      %c1_90 = arith.constant 1 : index
      %c1_91 = arith.constant 1 : index
      %c0_92 = arith.constant 0 : index
      %115 = vector.load %arg8[%c1_90, %c1_91, %c0_92] : memref<18x18x4xbf16, #tpu.memory_space<vmem>>, vector<16x16x4xbf16>
      tpu.vector_store %arg8[%c1_90, %c1_91, %c0_92], %114 {strides = array<i32>} : memref<18x18x4xbf16, #tpu.memory_space<vmem>>, vector<16x16x4xbf16>,
    } else {
    }
    %c8_i32 = arith.constant 8 : i32
    %3 = arith.muli %arg1, %c8_i32 : i32
    %4 = tpu.assume_multiple %3, 8 : i32
    %cst = arith.constant 0.000000e+00 : f32
    %5 = vector.broadcast %cst : f32 to vector<128x4xf32>
    %c0_i32_1 = arith.constant 0 : i32
    %6 = arith.addi %4, %c0_i32_1 : i32
    %7 = arith.index_cast %6 : i32 to index
    %c0 = arith.constant 0 : index
    %c0_2 = arith.constant 0 : index
    %8 = vector.load %arg8[%7, %c0, %c0_2] : memref<18x18x4xbf16, #tpu.memory_space<vmem>>, vector<8x16x4xbf16>
    %9 = vector.shape_cast %8 : vector<8x16x4xbf16> to vector<128x4xbf16>
    %c0_3 = arith.constant 0 : index
    %c0_4 = arith.constant 0 : index
    %c0_5 = arith.constant 0 : index
    %10 = vector.load %arg5[%c0_3, %c0_4, %c0_5] : memref<9x4x4xbf16, #tpu.memory_space<vmem>>, vector<1x4x4xbf16>
    %11 = vector.shape_cast %10 : vector<1x4x4xbf16> to vector<4x4xbf16>
    %cst_6 = arith.constant dense<0.000000e+00> : vector<128x4xf32>
    %12 = tpu.matmul %9, %11, %cst_6 {dimension_numbers = #tpu.dot_dimension_numbers<[1], [0], [0], [1], [0, 0, 1, 1], [], []>} : vector<128x4xbf16>, vector<4x4xbf16>, vector<128x4xf32> -> vector<128x4xf32>
    %13 = arith.addf %5, %12 : vector<128x4xf32>
    %c0_i32_7 = arith.constant 0 : i32
    %14 = arith.addi %4, %c0_i32_7 : i32
    %15 = arith.index_cast %14 : i32 to index
    %c1 = arith.constant 1 : index
    %c0_8 = arith.constant 0 : index
    %16 = vector.load %arg8[%15, %c1, %c0_8] : memref<18x18x4xbf16, #tpu.memory_space<vmem>>, vector<8x16x4xbf16>
    %17 = vector.shape_cast %16 : vector<8x16x4xbf16> to vector<128x4xbf16>
    %c1_9 = arith.constant 1 : index
    %c0_10 = arith.constant 0 : index
    %c0_11 = arith.constant 0 : index
    %18 = vector.load %arg5[%c1_9, %c0_10, %c0_11] : memref<9x4x4xbf16, #tpu.memory_space<vmem>>, vector<1x4x4xbf16>
    %19 = vector.shape_cast %18 : vector<1x4x4xbf16> to vector<4x4xbf16>
    %cst_12 = arith.constant dense<0.000000e+00> : vector<128x4xf32>
    %20 = tpu.matmul %17, %19, %cst_12 {dimension_numbers = #tpu.dot_dimension_numbers<[1], [0], [0], [1], [0, 0, 1, 1], [], []>} : vector<128x4xbf16>, vector<4x4xbf16>, vector<128x4xf32> -> vector<128x4xf32>
    %21 = arith.addf %13, %20 : vector<128x4xf32>
    %c0_i32_13 = arith.constant 0 : i32
    %22 = arith.addi %4, %c0_i32_13 : i32
    %23 = arith.index_cast %22 : i32 to index
    %c2 = arith.constant 2 : index
    %c0_14 = arith.constant 0 : index
    %24 = vector.load %arg8[%23, %c2, %c0_14] : memref<18x18x4xbf16, #tpu.memory_space<vmem>>, vector<8x16x4xbf16>
    %25 = vector.shape_cast %24 : vector<8x16x4xbf16> to vector<128x4xbf16>
    %c2_15 = arith.constant 2 : index
    %c0_16 = arith.constant 0 : index
    %c0_17 = arith.constant 0 : index
    %26 = vector.load %arg5[%c2_15, %c0_16, %c0_17] : memref<9x4x4xbf16, #tpu.memory_space<vmem>>, vector<1x4x4xbf16>
    %27 = vector.shape_cast %26 : vector<1x4x4xbf16> to vector<4x4xbf16>
    %cst_18 = arith.constant dense<0.000000e+00> : vector<128x4xf32>
    %28 = tpu.matmul %25, %27, %cst_18 {dimension_numbers = #tpu.dot_dimension_numbers<[1], [0], [0], [1], [0, 0, 1, 1], [], []>} : vector<128x4xbf16>, vector<4x4xbf16>, vector<128x4xf32> -> vector<128x4xf32>
    %29 = arith.addf %21, %28 : vector<128x4xf32>
    %c1_i32 = arith.constant 1 : i32
    %30 = arith.addi %4, %c1_i32 : i32
    %31 = arith.index_cast %30 : i32 to index
    %c0_19 = arith.constant 0 : index
    %c0_20 = arith.constant 0 : index
    %32 = vector.load %arg8[%31, %c0_19, %c0_20] : memref<18x18x4xbf16, #tpu.memory_space<vmem>>, vector<8x16x4xbf16>
    %33 = vector.shape_cast %32 : vector<8x16x4xbf16> to vector<128x4xbf16>
    %c3 = arith.constant 3 : index
    %c0_21 = arith.constant 0 : index
    %c0_22 = arith.constant 0 : index
    %34 = vector.load %arg5[%c3, %c0_21, %c0_22] : memref<9x4x4xbf16, #tpu.memory_space<vmem>>, vector<1x4x4xbf16>
    %35 = vector.shape_cast %34 : vector<1x4x4xbf16> to vector<4x4xbf16>
    %cst_23 = arith.constant dense<0.000000e+00> : vector<128x4xf32>
    %36 = tpu.matmul %33, %35, %cst_23 {dimension_numbers = #tpu.dot_dimension_numbers<[1], [0], [0], [1], [0, 0, 1, 1], [], []>} : vector<128x4xbf16>, vector<4x4xbf16>, vector<128x4xf32> -> vector<128x4xf32>
    %37 = arith.addf %29, %36 : vector<128x4xf32>
    %c1_i32_24 = arith.constant 1 : i32
    %38 = arith.addi %4, %c1_i32_24 : i32
    %39 = arith.index_cast %38 : i32 to index
    %c1_25 = arith.constant 1 : index
    %c0_26 = arith.constant 0 : index
    %40 = vector.load %arg8[%39, %c1_25, %c0_26] : memref<18x18x4xbf16, #tpu.memory_space<vmem>>, vector<8x16x4xbf16>
    %41 = vector.shape_cast %40 : vector<8x16x4xbf16> to vector<128x4xbf16>
    %c4 = arith.constant 4 : index
    %c0_27 = arith.constant 0 : index
    %c0_28 = arith.constant 0 : index
    %42 = vector.load %arg5[%c4, %c0_27, %c0_28] : memref<9x4x4xbf16, #tpu.memory_space<vmem>>, vector<1x4x4xbf16>
    %43 = vector.shape_cast %42 : vector<1x4x4xbf16> to vector<4x4xbf16>
    %cst_29 = arith.constant dense<0.000000e+00> : vector<128x4xf32>
    %44 = tpu.matmul %41, %43, %cst_29 {dimension_numbers = #tpu.dot_dimension_numbers<[1], [0], [0], [1], [0, 0, 1, 1], [], []>} : vector<128x4xbf16>, vector<4x4xbf16>, vector<128x4xf32> -> vector<128x4xf32>
    %45 = arith.addf %37, %44 : vector<128x4xf32>
    %c1_i32_30 = arith.constant 1 : i32
    %46 = arith.addi %4, %c1_i32_30 : i32
    %47 = arith.index_cast %46 : i32 to index
    %c2_31 = arith.constant 2 : index
    %c0_32 = arith.constant 0 : index
    %48 = vector.load %arg8[%47, %c2_31, %c0_32] : memref<18x18x4xbf16, #tpu.memory_space<vmem>>, vector<8x16x4xbf16>
    %49 = vector.shape_cast %48 : vector<8x16x4xbf16> to vector<128x4xbf16>
    %c5 = arith.constant 5 : index
    %c0_33 = arith.constant 0 : index
    %c0_34 = arith.constant 0 : index
    %50 = vector.load %arg5[%c5, %c0_33, %c0_34] : memref<9x4x4xbf16, #tpu.memory_space<vmem>>, vector<1x4x4xbf16>
    %51 = vector.shape_cast %50 : vector<1x4x4xbf16> to vector<4x4xbf16>
    %cst_35 = arith.constant dense<0.000000e+00> : vector<128x4xf32>
    %52 = tpu.matmul %49, %51, %cst_35 {dimension_numbers = #tpu.dot_dimension_numbers<[1], [0], [0], [1], [0, 0, 1, 1], [], []>} : vector<128x4xbf16>, vector<4x4xbf16>, vector<128x4xf32> -> vector<128x4xf32>
    %53 = arith.addf %45, %52 : vector<128x4xf32>
    %c2_i32 = arith.constant 2 : i32
    %54 = arith.addi %4, %c2_i32 : i32
    %55 = arith.index_cast %54 : i32 to index
    %c0_36 = arith.constant 0 : index
    %c0_37 = arith.constant 0 : index
    %56 = vector.load %arg8[%55, %c0_36, %c0_37] : memref<18x18x4xbf16, #tpu.memory_space<vmem>>, vector<8x16x4xbf16>
    %57 = vector.shape_cast %56 : vector<8x16x4xbf16> to vector<128x4xbf16>
    %c6 = arith.constant 6 : index
    %c0_38 = arith.constant 0 : index
    %c0_39 = arith.constant 0 : index
    %58 = vector.load %arg5[%c6, %c0_38, %c0_39] : memref<9x4x4xbf16, #tpu.memory_space<vmem>>, vector<1x4x4xbf16>
    %59 = vector.shape_cast %58 : vector<1x4x4xbf16> to vector<4x4xbf16>
    %cst_40 = arith.constant dense<0.000000e+00> : vector<128x4xf32>
    %60 = tpu.matmul %57, %59, %cst_40 {dimension_numbers = #tpu.dot_dimension_numbers<[1], [0], [0], [1], [0, 0, 1, 1], [], []>} : vector<128x4xbf16>, vector<4x4xbf16>, vector<128x4xf32> -> vector<128x4xf32>
    %61 = arith.addf %53, %60 : vector<128x4xf32>
    %c2_i32_41 = arith.constant 2 : i32
    %62 = arith.addi %4, %c2_i32_41 : i32
    %63 = arith.index_cast %62 : i32 to index
    %c1_42 = arith.constant 1 : index
    %c0_43 = arith.constant 0 : index
    %64 = vector.load %arg8[%63, %c1_42, %c0_43] : memref<18x18x4xbf16, #tpu.memory_space<vmem>>, vector<8x16x4xbf16>
    %65 = vector.shape_cast %64 : vector<8x16x4xbf16> to vector<128x4xbf16>
    %c7 = arith.constant 7 : index
    %c0_44 = arith.constant 0 : index
    %c0_45 = arith.constant 0 : index
    %66 = vector.load %arg5[%c7, %c0_44, %c0_45] : memref<9x4x4xbf16, #tpu.memory_space<vmem>>, vector<1x4x4xbf16>
    %67 = vector.shape_cast %66 : vector<1x4x4xbf16> to vector<4x4xbf16>
    %cst_46 = arith.constant dense<0.000000e+00> : vector<128x4xf32>
    %68 = tpu.matmul %65, %67, %cst_46 {dimension_numbers = #tpu.dot_dimension_numbers<[1], [0], [0], [1], [0, 0, 1, 1], [], []>} : vector<128x4xbf16>, vector<4x4xbf16>, vector<128x4xf32> -> vector<128x4xf32>
    %69 = arith.addf %61, %68 : vector<128x4xf32>
    %c2_i32_47 = arith.constant 2 : i32
    %70 = arith.addi %4, %c2_i32_47 : i32
    %71 = arith.index_cast %70 : i32 to index
    %c2_48 = arith.constant 2 : index
    %c0_49 = arith.constant 0 : index
    %72 = vector.load %arg8[%71, %c2_48, %c0_49] : memref<18x18x4xbf16, #tpu.memory_space<vmem>>, vector<8x16x4xbf16>
    %73 = vector.shape_cast %72 : vector<8x16x4xbf16> to vector<128x4xbf16>
    %c8 = arith.constant 8 : index
    %c0_50 = arith.constant 0 : index
    %c0_51 = arith.constant 0 : index
    %74 = vector.load %arg5[%c8, %c0_50, %c0_51] : memref<9x4x4xbf16, #tpu.memory_space<vmem>>, vector<1x4x4xbf16>
    %75 = vector.shape_cast %74 : vector<1x4x4xbf16> to vector<4x4xbf16>
    %cst_52 = arith.constant dense<0.000000e+00> : vector<128x4xf32>
    %76 = tpu.matmul %73, %75, %cst_52 {dimension_numbers = #tpu.dot_dimension_numbers<[1], [0], [0], [1], [0, 0, 1, 1], [], []>} : vector<128x4xbf16>, vector<4x4xbf16>, vector<128x4xf32> -> vector<128x4xf32>
    %77 = arith.addf %69, %76 : vector<128x4xf32>
    %78 = vector.shape_cast %77 : vector<128x4xf32> to vector<1x8x16x4xf32>
    %79 = arith.truncf %78 : vector<1x8x16x4xf32> to vector<1x8x16x4xbf16>
    %c0_53 = arith.constant 0 : index
    %c0_54 = arith.constant 0 : index
    %c0_55 = arith.constant 0 : index
    %c0_56 = arith.constant 0 : index
    %80 = vector.load %arg6[%c0_53, %c0_54, %c0_55, %c0_56] : memref<1x8x16x4xbf16, #tpu.memory_space<vmem>>, vector<1x8x16x4xbf16>
    tpu.vector_store %arg6[%c0_53, %c0_54, %c0_55, %c0_56], %79 {strides = array<i32>} : memref<1x8x16x4xbf16, #tpu.memory_space<vmem>>, vector<1x8x16x4xbf16>,
    %cst_57 = arith.constant dense<0.000000e+00> : vector<4xf32>
    %81 = vector.multi_reduction <add>, %77, %cst_57 [0] : vector<128x4xf32> to vector<4xf32>
    %cst_58 = arith.constant 1.280000e+02 : f32
    %82 = vector.broadcast %cst_58 : f32 to vector<4xf32>
    %83 = arith.divf %81, %82 : vector<4xf32>
    %84 = vector.shape_cast %83 : vector<4xf32> to vector<1x4xf32>
    %85 = vector.broadcast %84 : vector<1x4xf32> to vector<128x4xf32>
    %86 = arith.subf %77, %85 : vector<128x4xf32>
    %87 = arith.mulf %86, %86 : vector<128x4xf32>
    %cst_59 = arith.constant dense<0.000000e+00> : vector<4xf32>
    %88 = vector.multi_reduction <add>, %87, %cst_59 [0] : vector<128x4xf32> to vector<4xf32>
    %89 = vector.shape_cast %81 : vector<4xf32> to vector<1x1x1x4xf32>
    %c0_60 = arith.constant 0 : index
    %c0_61 = arith.constant 0 : index
    %c0_62 = arith.constant 0 : index
    %c0_63 = arith.constant 0 : index
    %90 = vector.load %arg7[%c0_60, %c0_61, %c0_62, %c0_63] : memref<1x1x2x4xf32, #tpu.memory_space<vmem>>, vector<1x1x1x4xf32>
    tpu.vector_store %arg7[%c0_60, %c0_61, %c0_62, %c0_63], %89 {strides = array<i32>} : memref<1x1x2x4xf32, #tpu.memory_space<vmem>>, vector<1x1x1x4xf32>,
    %91 = vector.shape_cast %88 : vector<4xf32> to vector<1x1x1x4xf32>
    %c0_64 = arith.constant 0 : index
    %c0_65 = arith.constant 0 : index
    %c1_66 = arith.constant 1 : index
    %c0_67 = arith.constant 0 : index
    %92 = vector.load %arg7[%c0_64, %c0_65, %c1_66, %c0_67] : memref<1x1x2x4xf32, #tpu.memory_space<vmem>>, vector<1x1x1x4xf32>
    tpu.vector_store %arg7[%c0_64, %c0_65, %c1_66, %c0_67], %91 {strides = array<i32>} : memref<1x1x2x4xf32, #tpu.memory_space<vmem>>, vector<1x1x1x4xf32>,
    return
  }
  func.func @transform_0(%arg0: i32, %arg1: i32) -> (i32, i32, i32, i32) {
    %c0_i32 = arith.constant 0 : i32
    %c0_i32_0 = arith.constant 0 : i32
    %c0_i32_1 = arith.constant 0 : i32
    %c0_i32_2 = arith.constant 0 : i32
    return %arg0, %c0_i32, %c0_i32_0, %c0_i32_1 : i32, i32, i32, i32
  }
  func.func @transform_1(%arg0: i32, %arg1: i32) -> (i32, i32) {
    %c0_i32 = arith.constant 0 : i32
    %c0_i32_0 = arith.constant 0 : i32
    %c0_i32_1 = arith.constant 0 : i32
    return %c0_i32, %c0_i32_0 : i32, i32
  }
  func.func @transform_2(%arg0: i32, %arg1: i32) -> (i32, i32) {
    %c0_i32 = arith.constant 0 : i32
    %c0_i32_0 = arith.constant 0 : i32
    %c0_i32_1 = arith.constant 0 : i32
    return %c0_i32, %c0_i32_0 : i32, i32
  }
  func.func @transform_3(%arg0: i32, %arg1: i32) -> (i32, i32, i32) {
    %c0_i32 = arith.constant 0 : i32
    %c0_i32_0 = arith.constant 0 : i32
    %c0_i32_1 = arith.constant 0 : i32
    %c0_i32_2 = arith.constant 0 : i32
    return %c0_i32, %c0_i32_0, %c0_i32_1 : i32, i32, i32
  }
  func.func @transform_4(%arg0: i32, %arg1: i32) -> (i32, i32, i32, i32) {
    %c0_i32 = arith.constant 0 : i32
    %c0_i32_0 = arith.constant 0 : i32
    %c0_i32_1 = arith.constant 0 : i32
    return %arg0, %arg1, %c0_i32, %c0_i32_0 : i32, i32, i32, i32
  }
  func.func @transform_5(%arg0: i32, %arg1: i32) -> (i32, i32, i32, i32) {
    %c0_i32 = arith.constant 0 : i32
    %c0_i32_0 = arith.constant 0 : i32
    %c0_i32_1 = arith.constant 0 : i32
    return %arg0, %arg1, %c0_i32, %c0_i32_0 : i32, i32, i32, i32
  }
}

</mosaic_0001>

<llo_original>
// kernel: up_forward.5
$region0: #{up_forward.5}
  #allocation0 [shape = 'u32[]', space=smem, size = 0x4, offset = 0x4, fixed_abs, tag = 'smem constant byte address 0x4 - core index']
  #allocation1 [shape = 'u32[144,128]{1,0:T(1,128)}', space=vmem, size = 0x12000, scoped, tag = 'internal scratch']
  %s0 = inlined_call_operand.vmem [shape: bf16[2,16,16,4], index: 0, kind: input, shape index: {}, may-alias: {0,3}]
  %s1 = inlined_call_operand.vmem [shape: f32[1,4], index: 1, kind: input, shape index: {}]
  %s2 = inlined_call_operand.vmem [shape: f32[1,4], index: 2, kind: input, shape index: {}]
  %s3 = inlined_call_operand.vmem [shape: bf16[2,16,16,4], index: 3, kind: output, shape index: {}, may-alias: {0,3}]
  %s4 = sld [smem:[#allocation0]]
  $region45: #{up_forward.5} parent=0
    _
  %s6 = ssub.s32 1, %s4
  %s7 = scalar_select 0, %s6, %s4
  loop: start=0, step=1, limit=6
  $region2: #{up_forward.5} parent=0 // loop_pre_header
    _
  $region3: #{up_forward.5} parent=0 // loop_header
    %s9 = sphi 0, %s13
    %p10 = scmp.ge.s32.totalorder %s9, 6
    %s16 = sphi 0, %s28
    %s17 = sphi 0, %s24
    %s18 = sphi 0, %s16
    %s19 = sphi 0, %s17
    %s20 = sphi 0, %s18
    %s21 = sphi 0, %s19
    %s33 = sphi 0, %s35
    %s36 = sphi 0, %s33
    %s37 = sphi 0, %s36
    %s53 = sphi 0, %s37
    %s57 = sphi 0, %s57
    %s59 = sphi 0, %s57
    %s60 = sphi 0, %s59
    %s74 = sphi 0, %s60
    %s78 = sphi 0, %s78
    %s80 = sphi 0, %s78
    %s81 = sphi 0, %s80
    %s95 = sphi 0, %s81
    %s103 = sphi 0, %s105
    %s106 = sphi 0, %s103
    %s107 = sphi 0, %s106
    %s123 = sphi 0, %s107
  $region4: #{up_forward.5} parent=0 // loop_header_branch
    %12 = sbr.rel (%p10) target = $region8
  $region5: #{up_forward.5} parent=0 // loop_body
    %s14 = ssub.s32 %s9, 1
    %s15 = ssub.s32 %s9, 2
    %s22 = sadd.s32 1, %s17
    %p23 = scmp.ge.s32.totalorder %s22, 2
    %s24 = scalar_select %p23, 0, %s22
    %s25 = sadd.s32 1, %s16
    %s26 = scalar_select %p23, %s25, %s16
    %p27 = scmp.ge.s32.totalorder %s26, 2
    %s28 = scalar_select %p27, 0, %s26
    %s29 = ssub.s32 %s16, %s28
    %s30 = ssub.s32 %s17, %s24
    %s31 = sor.u32 %s29, %s30
    %p32 = scmp.eq.s32.totalorder %s31, 0
    %s34 = sadd.s32 %s33, 1
    %s35 = scalar_select %p32, %s33, %s34
    %p38 = pneg %p32
    %p39 = scmp.eq.s32.totalorder %s9, 3
    %p40 = por %p38, %p39
    %p41 = scmp.ne.s32.totalorder %s33, %s36
    %p42 = scmp.eq.s32.totalorder %s9, 0
    %p43 = por %p41, %p42
    %p44 = scmp.ne.s32.totalorder %s33, %s36
    %p45 = scmp.eq.s32.totalorder %s14, 3
    %p46 = por %p44, %p45
    %p47 = scmp.ne.s32.totalorder %s36, %s37
    %p48 = scmp.eq.s32.totalorder %s14, 0
    %p49 = por %p47, %p48
    %p50 = scmp.ne.s32.totalorder %s36, %s37
    %p51 = scmp.eq.s32.totalorder %s15, 3
    %p52 = por %p50, %p51
    %p54 = scmp.ne.s32.totalorder %s37, %s53
    %p55 = scmp.eq.s32.totalorder %s15, 0
    %p56 = por %p54, %p55
    %s58 = sadd.s32 %s57, 1
    %p61 = scmp.eq.s32.totalorder %s9, 3
    %p62 = scmp.ne.s32.totalorder %s57, %s59
    %p63 = scmp.eq.s32.totalorder %s9, 0
    %p64 = por %p62, %p63
    %p65 = scmp.ne.s32.totalorder %s57, %s59
    %p66 = scmp.eq.s32.totalorder %s14, 3
    %p67 = por %p65, %p66
    %p68 = scmp.ne.s32.totalorder %s59, %s60
    %p69 = scmp.eq.s32.totalorder %s14, 0
    %p70 = por %p68, %p69
    %p71 = scmp.ne.s32.totalorder %s59, %s60
    %p72 = scmp.eq.s32.totalorder %s15, 3
    %p73 = por %p71, %p72
    %p75 = scmp.ne.s32.totalorder %s60, %s74
    %p76 = scmp.eq.s32.totalorder %s15, 0
    %p77 = por %p75, %p76
    %s79 = sadd.s32 %s78, 1
    %p82 = scmp.eq.s32.totalorder %s9, 3
    %p83 = scmp.ne.s32.totalorder %s78, %s80
    %p84 = scmp.eq.s32.totalorder %s9, 0
    %p85 = por %p83, %p84
    %p86 = scmp.ne.s32.totalorder %s78, %s80
    %p87 = scmp.eq.s32.totalorder %s14, 3
    %p88 = por %p86, %p87
    %p89 = scmp.ne.s32.totalorder %s80, %s81
    %p90 = scmp.eq.s32.totalorder %s14, 0
    %p91 = por %p89, %p90
    %p92 = scmp.ne.s32.totalorder %s80, %s81
    %p93 = scmp.eq.s32.totalorder %s15, 3
    %p94 = por %p92, %p93
    %p96 = scmp.ne.s32.totalorder %s81, %s95
    %p97 = scmp.eq.s32.totalorder %s15, 0
    %p98 = por %p96, %p97
    %s99 = ssub.s32 %s16, %s28
    %s100 = ssub.s32 %s17, %s24
    %s101 = sor.u32 %s99, %s100
    %p102 = scmp.eq.s32.totalorder %s101, 0
    %s104 = sadd.s32 %s103, 1
    %s105 = scalar_select %p102, %s103, %s104
    %p108 = pneg %p102
    %p109 = scmp.eq.s32.totalorder %s9, 3
    %p110 = por %p108, %p109
    %p111 = scmp.ne.s32.totalorder %s103, %s106
    %p112 = scmp.eq.s32.totalorder %s9, 0
    %p113 = por %p111, %p112
    %p114 = scmp.ne.s32.totalorder %s103, %s106
    %p115 = scmp.eq.s32.totalorder %s14, 3
    %p116 = por %p114, %p115
    %p117 = scmp.ne.s32.totalorder %s106, %s107
    %p118 = scmp.eq.s32.totalorder %s14, 0
    %p119 = por %p117, %p118
    %p120 = scmp.ne.s32.totalorder %s106, %s107
    %p121 = scmp.eq.s32.totalorder %s15, 3
    %p122 = por %p120, %p121
    %p124 = scmp.ne.s32.totalorder %s107, %s123
    %p125 = scmp.eq.s32.totalorder %s15, 0
    %p126 = por %p124, %p125
    %p127 = scmp.le.s32.totalorder 1, %s9
    %p128 = scmp.lt.s32.totalorder %s9, 5
    %p129 = pnand %p127, %p128
    %p130 = pneg %p129
    // Predicated region
    $region9: #{up_forward.5} parent=5 // pred_check
      _
    $region10: #{up_forward.5} parent=5 // pred_check_branch
      %132 = sbr.rel (%p129) target = $region12
    $region11: #{up_forward.5} parent=5 // pred_region
      %s133 = ssub.s32 %s9, 1
      // Predicated region
      $region13: #{up_forward.5} parent=11 // pred_check
        %p134 = pneg %p70
      $region14: #{up_forward.5} parent=11 // pred_check_branch
        %136 = sbr.rel (%p134) target = $region16
      $region15: #{up_forward.5} parent=11 // pred_region
        _
      $region16: #{up_forward.5} parent=11 // pred_fallthru
        _
      // Predicated region
      $region17: #{up_forward.5} parent=11 // pred_check
        %p137 = pneg %p91
      $region18: #{up_forward.5} parent=11 // pred_check_branch
        %139 = sbr.rel (%p137) target = $region20
      $region19: #{up_forward.5} parent=11 // pred_region
        _
      $region20: #{up_forward.5} parent=11 // pred_fallthru
        _
    $region12: #{up_forward.5} parent=5 // pred_fallthru
      _
    %p140 = scmp.lt.s32.totalorder %s9, 4
    // Predicated region
    $region21: #{up_forward.5} parent=5 // pred_check
      %p141 = pneg %p140
    $region22: #{up_forward.5} parent=5 // pred_check_branch
      %143 = sbr.rel (%p141) target = $region24
    $region23: #{up_forward.5} parent=5 // pred_region
      // Predicated region
      $region25: #{up_forward.5} parent=23 // pred_check
        %p144 = pneg %p43
      $region26: #{up_forward.5} parent=23 // pred_check_branch
        %146 = sbr.rel (%p144) target = $region28
      $region27: #{up_forward.5} parent=23 // pred_region
        %s147 = smul.u32 8, %s17
        %p148 = scmp.lt.s32.totalorder %s16, 1
        %s149 = scalar_select %p148, %s16, 1
        %p150 = scmp.lt.s32.totalorder %s147, 15
        %s151 = scalar_select %p150, %s147, 15
        %s152 = smul.addr %s151, 2
        %s153 = smul.addr %s149, 32
        %s154 = sadd.s32 %s152, %s153
        %s155 = smul.addr %s154, 4
        %s156 = scalar_lea.vmem %s0, %s155
        %s157 = smul.u32 8, %s17
      $region28: #{up_forward.5} parent=23 // pred_fallthru
        _
    $region24: #{up_forward.5} parent=5 // pred_fallthru
      _
    %p158 = scmp.le.s32.totalorder 1, %s9
    %p159 = scmp.lt.s32.totalorder %s9, 5
    %p160 = pnand %p158, %p159
    %p161 = pneg %p160
    // Predicated region
    $region29: #{up_forward.5} parent=5 // pred_check
      _
    $region30: #{up_forward.5} parent=5 // pred_check_branch
      %163 = sbr.rel (%p160) target = $region32
    $region31: #{up_forward.5} parent=5 // pred_region
      %s164 = ssub.s32 %s9, 1
      %s165 = smul.u32 8, %s19
      %p166 = scmp.lt.s32.totalorder %s18, 1
      %s167 = scalar_select %p166, %s18, 1
      %p168 = scmp.lt.s32.totalorder %s165, 15
      %s169 = scalar_select %p168, %s165, 15
      %s170 = smul.addr %s169, 2
      %s171 = smul.addr %s167, 32
      %s172 = sadd.s32 %s170, %s171
      %s173 = smul.addr %s172, 4
      %s174 = scalar_lea.vmem %s0, %s173
      %p175 = pneg %p49
      %p176 = pneg %p46
      %p177 = pneg %p70
      %p178 = pneg %p67
      %p179 = pneg %p91
      %p180 = pneg %p88
      %p181 = pneg %p119
      %p182 = pneg %p116
      %s183 = smul.u32 8, %s19
      %p184 = scmp.lt.s32.totalorder %s18, 1
      %s185 = scalar_select %p184, %s18, 1
      %p186 = scmp.lt.s32.totalorder %s183, 15
      %s187 = scalar_select %p186, %s183, 15
      %s188 = smul.addr %s187, 2
      %s189 = smul.addr %s185, 32
      %s190 = sadd.s32 %s188, %s189
      %s191 = smul.addr %s190, 4
      %s192 = scalar_lea.vmem %s3, %s191
      %s193 = smul.u32 8, %s19
      %p194 = scmp.lt.s32.totalorder %s18, 1
      %s195 = scalar_select %p194, %s18, 1
      %p196 = scmp.lt.s32.totalorder %s193, 15
      %s197 = scalar_select %p196, %s193, 15
      %s198 = smul.addr %s197, 2
      %s199 = smul.addr %s195, 32
      %s200 = sadd.s32 %s198, %s199
      %s201 = smul.addr %s200, 4
      %s202 = scalar_lea.vmem %s0, %s201
      %s203 = smul.u32 8, %s19
      %s204 = smul.u32 8, %s19
      %p205 = scmp.lt.s32.totalorder %s18, 1
      %s206 = scalar_select %p205, %s18, 1
      %p207 = scmp.lt.s32.totalorder %s204, 15
      %s208 = scalar_select %p207, %s204, 15
      %s209 = smul.addr %s208, 2
      %s210 = smul.addr %s206, 32
      %s211 = sadd.s32 %s209, %s210
      %s212 = smul.addr %s211, 4
      %s213 = scalar_lea.vmem %s3, %s212
      %s214 = smul.u32 8, %s19
      %v215 = vld [vmem:[%s202] sm:$0xf]
      %v216 = vld [vmem:[%s202 + $0x4] sm:$0xf]
      %v217 = vld [vmem:[%s202 + $0x8] sm:$0xf]
      %v218 = vld [vmem:[%s202 + $0xc] sm:$0xf]
      %v219 = vld [vmem:[%s202 + $0x10] sm:$0xf]
      %v220 = vld [vmem:[%s202 + $0x14] sm:$0xf]
      %v221 = vld [vmem:[%s202 + $0x18] sm:$0xf]
      %v222 = vld [vmem:[%s202 + $0x1c] sm:$0xf]
      %v223 = vld [vmem:[%s202 + $0x20] sm:$0xf]
      %v224 = vld [vmem:[%s202 + $0x24] sm:$0xf]
      %v225 = vld [vmem:[%s202 + $0x28] sm:$0xf]
      %v226 = vld [vmem:[%s202 + $0x2c] sm:$0xf]
      %v227 = vld [vmem:[%s202 + $0x30] sm:$0xf]
      %v228 = vld [vmem:[%s202 + $0x34] sm:$0xf]
      %v229 = vld [vmem:[%s202 + $0x38] sm:$0xf]
      %v230 = vld [vmem:[%s202 + $0x3c] sm:$0xf]
      %v231 = vunpack.c.l.bf16 %v215
      %v232 = vunpack.c.l.bf16 %v216
      %v233 = vunpack.c.l.bf16 %v217
      %v234 = vunpack.c.l.bf16 %v218
      %v235 = vunpack.c.l.bf16 %v219
      %v236 = vunpack.c.l.bf16 %v220
      %v237 = vunpack.c.l.bf16 %v221
      %v238 = vunpack.c.l.bf16 %v222
      %v239 = vunpack.c.l.bf16 %v223
      %v240 = vunpack.c.l.bf16 %v224
      %v241 = vunpack.c.l.bf16 %v225
      %v242 = vunpack.c.l.bf16 %v226
      %v243 = vunpack.c.l.bf16 %v227
      %v244 = vunpack.c.l.bf16 %v228
      %v245 = vunpack.c.l.bf16 %v229
      %v246 = vunpack.c.l.bf16 %v230
      %v247 = vld [vmem:[%s1] sm:$0x1]
      %v249 = vlaneseq
      %v250 = vshrl.u32 %v249, 7
      %v251 = vsub.s32 0, %v250
      %v252 = vrot.slane %v247, %v251
      %v254 = vmul.f32 %v231, %v252
      %v255 = vmul.f32 %v232, %v252
      %v256 = vmul.f32 %v233, %v252
      %v257 = vmul.f32 %v234, %v252
      %v258 = vmul.f32 %v235, %v252
      %v259 = vmul.f32 %v236, %v252
      %v260 = vmul.f32 %v237, %v252
      %v261 = vmul.f32 %v238, %v252
      %v262 = vmul.f32 %v239, %v252
      %v263 = vmul.f32 %v240, %v252
      %v264 = vmul.f32 %v241, %v252
      %v265 = vmul.f32 %v242, %v252
      %v266 = vmul.f32 %v243, %v252
      %v267 = vmul.f32 %v244, %v252
      %v268 = vmul.f32 %v245, %v252
      %v269 = vmul.f32 %v246, %v252
      %v270 = vld [vmem:[%s2] sm:$0x1]
      %v272 = vlaneseq
      %v273 = vshrl.u32 %v272, 7
      %v274 = vsub.s32 0, %v273
      %v275 = vrot.slane %v270, %v274
      %v277 = vadd.f32 %v254, %v275
      %v278 = vadd.f32 %v255, %v275
      %v279 = vadd.f32 %v256, %v275
      %v280 = vadd.f32 %v257, %v275
      %v281 = vadd.f32 %v258, %v275
      %v282 = vadd.f32 %v259, %v275
      %v283 = vadd.f32 %v260, %v275
      %v284 = vadd.f32 %v261, %v275
      %v285 = vadd.f32 %v262, %v275
      %v286 = vadd.f32 %v263, %v275
      %v287 = vadd.f32 %v264, %v275
      %v288 = vadd.f32 %v265, %v275
      %v289 = vadd.f32 %v266, %v275
      %v290 = vadd.f32 %v267, %v275
      %v291 = vadd.f32 %v268, %v275
      %v292 = vadd.f32 %v269, %v275
      %v293 = vmax.f32 %v277, 0.0
      %v294 = vmax.f32 %v278, 0.0
      %v295 = vmax.f32 %v279, 0.0
      %v296 = vmax.f32 %v280, 0.0
      %v297 = vmax.f32 %v281, 0.0
      %v298 = vmax.f32 %v282, 0.0
      %v299 = vmax.f32 %v283, 0.0
      %v300 = vmax.f32 %v284, 0.0
      %v301 = vmax.f32 %v285, 0.0
      %v302 = vmax.f32 %v286, 0.0
      %v303 = vmax.f32 %v287, 0.0
      %v304 = vmax.f32 %v288, 0.0
      %v305 = vmax.f32 %v289, 0.0
      %v306 = vmax.f32 %v290, 0.0
      %v307 = vmax.f32 %v291, 0.0
      %v308 = vmax.f32 %v292, 0.0
      %v309 = vpack.c.bf16 %v294, %v293
      %v310 = vpack.c.bf16 %v296, %v295
      %v311 = vpack.c.bf16 %v298, %v297
      %v312 = vpack.c.bf16 %v300, %v299
      %v313 = vpack.c.bf16 %v302, %v301
      %v314 = vpack.c.bf16 %v304, %v303
      %v315 = vpack.c.bf16 %v306, %v305
      %v316 = vpack.c.bf16 %v308, %v307
      %v325 = vunpack.c.l.b16 %v309
      %v326 = vunpack.c.h.b16 %v309
      %v327 = vunpack.c.l.b16 %v310
      %v328 = vunpack.c.h.b16 %v310
      %v329 = vunpack.c.l.b16 %v311
      %v330 = vunpack.c.h.b16 %v311
      %v331 = vunpack.c.l.b16 %v312
      %v332 = vunpack.c.h.b16 %v312
      %v333 = vunpack.c.l.b16 %v313
      %v334 = vunpack.c.h.b16 %v313
      %v335 = vunpack.c.l.b16 %v314
      %v336 = vunpack.c.h.b16 %v314
      %v337 = vunpack.c.l.b16 %v315
      %v338 = vunpack.c.h.b16 %v315
      %v339 = vunpack.c.l.b16 %v316
      %v340 = vunpack.c.h.b16 %v316
      %v341 = vpack.c.b16 %v325, %v325
      %v342 = vpack.c.b16 %v326, %v326
      %v343 = vpack.c.b16 %v327, %v327
      %v344 = vpack.c.b16 %v328, %v328
      %v345 = vpack.c.b16 %v329, %v329
      %v346 = vpack.c.b16 %v330, %v330
      %v347 = vpack.c.b16 %v331, %v331
      %v348 = vpack.c.b16 %v332, %v332
      %v349 = vpack.c.b16 %v333, %v333
      %v350 = vpack.c.b16 %v334, %v334
      %v351 = vpack.c.b16 %v335, %v335
      %v352 = vpack.c.b16 %v336, %v336
      %v353 = vpack.c.b16 %v337, %v337
      %v354 = vpack.c.b16 %v338, %v338
      %v355 = vpack.c.b16 %v339, %v339
      %v356 = vpack.c.b16 %v340, %v340
      %vm373 = vcmask 27648
      %374 = vst.msk [vmem:[%s213] sm:$0xf] %vm373, %v341
      %375 = vst.msk [vmem:[%s213 + $0x4] sm:$0xf] %vm373, %v342
      %376 = vst.msk [vmem:[%s213 + $0x8] sm:$0xf] %vm373, %v343
      %377 = vst.msk [vmem:[%s213 + $0xc] sm:$0xf] %vm373, %v344
      %378 = vst.msk [vmem:[%s213 + $0x10] sm:$0xf] %vm373, %v345
      %379 = vst.msk [vmem:[%s213 + $0x14] sm:$0xf] %vm373, %v346
      %380 = vst.msk [vmem:[%s213 + $0x18] sm:$0xf] %vm373, %v347
      %381 = vst.msk [vmem:[%s213 + $0x1c] sm:$0xf] %vm373, %v348
      %382 = vst.msk [vmem:[%s213 + $0x20] sm:$0xf] %vm373, %v349
      %383 = vst.msk [vmem:[%s213 + $0x24] sm:$0xf] %vm373, %v350
      %384 = vst.msk [vmem:[%s213 + $0x28] sm:$0xf] %vm373, %v351
      %385 = vst.msk [vmem:[%s213 + $0x2c] sm:$0xf] %vm373, %v352
      %386 = vst.msk [vmem:[%s213 + $0x30] sm:$0xf] %vm373, %v353
      %387 = vst.msk [vmem:[%s213 + $0x34] sm:$0xf] %vm373, %v354
      %388 = vst.msk [vmem:[%s213 + $0x38] sm:$0xf] %vm373, %v355
      %389 = vst.msk [vmem:[%s213 + $0x3c] sm:$0xf] %vm373, %v356
      %s390 = smul.u32 8, %s19
      %p391 = scmp.lt.s32.totalorder %s18, 1
      %s392 = scalar_select %p391, %s18, 1
      %p393 = scmp.lt.s32.totalorder %s390, 15
      %s394 = scalar_select %p393, %s390, 15
      %s395 = smul.addr %s394, 2
      %s396 = smul.addr %s392, 32
      %s397 = sadd.s32 %s395, %s396
      %s398 = smul.addr %s397, 4
      %s399 = scalar_lea.vmem %s3, %s398
      // Predicated region
      $region33: #{up_forward.5} parent=31 // pred_check
        %p400 = pneg %p116
      $region34: #{up_forward.5} parent=31 // pred_check_branch
        %402 = sbr.rel (%p400) target = $region36
      $region35: #{up_forward.5} parent=31 // pred_region
        %s403 = smul.u32 8, %s19
      $region36: #{up_forward.5} parent=31 // pred_fallthru
        _
    $region32: #{up_forward.5} parent=5 // pred_fallthru
      _
    %p404 = scmp.le.s32.totalorder 2, %s9
    // Predicated region
    $region37: #{up_forward.5} parent=5 // pred_check
      %p405 = pneg %p404
    $region38: #{up_forward.5} parent=5 // pred_check_branch
      %407 = sbr.rel (%p405) target = $region40
    $region39: #{up_forward.5} parent=5 // pred_region
      %s408 = ssub.s32 %s9, 2
      // Predicated region
      $region41: #{up_forward.5} parent=39 // pred_check
        %p409 = pneg %p122
      $region42: #{up_forward.5} parent=39 // pred_check_branch
        %411 = sbr.rel (%p409) target = $region44
      $region43: #{up_forward.5} parent=39 // pred_region
        %s412 = smul.u32 8, %s21
        %p413 = scmp.lt.s32.totalorder %s20, 1
        %s414 = scalar_select %p413, %s20, 1
        %p415 = scmp.lt.s32.totalorder %s412, 15
        %s416 = scalar_select %p415, %s412, 15
        %s417 = smul.addr %s416, 2
        %s418 = smul.addr %s414, 32
        %s419 = sadd.s32 %s417, %s418
        %s420 = smul.addr %s419, 4
        %s421 = scalar_lea.vmem %s3, %s420
      $region44: #{up_forward.5} parent=39 // pred_fallthru
        _
    $region40: #{up_forward.5} parent=5 // pred_fallthru
      _
  $region6: #{up_forward.5} parent=0 // loop_footer
    %s13 = sadd.s32 1, %s9
  $region7: #{up_forward.5} parent=0 // loop_footer_branch
    %8 = sbr.rel target = $region3
  $region8: #{up_forward.5} parent=0 // loop_exit
    _

// kernel: up_forward.4
$region0: #{up_forward.4}
  #allocation0 [shape = 'u32[]', space=smem, size = 0x4, offset = 0x4, fixed_abs, tag = 'smem constant byte address 0x4 - core index']
  #allocation1 [shape = 'u32[144,128]{1,0:T(1,128)}', space=vmem, size = 0x12000, scoped, tag = 'internal scratch']
  #allocation2 [shape = 'bf16[18,18,4]{2,1,0:T(8,128)(2,1)}', space=vmem, size = 0x1b000, scoped, tag = 'scratch operand']
  %s0 = inlined_call_operand.vmem [shape: bf16[2,16,16,4], index: 0, kind: input, shape index: {}]
  %s1 = inlined_call_operand.vmem [shape: f32[1,4], index: 1, kind: input, shape index: {}]
  %s2 = inlined_call_operand.vmem [shape: f32[1,4], index: 2, kind: input, shape index: {}]
  %s3 = inlined_call_operand.vmem [shape: bf16[9,4,4], index: 3, kind: input, shape index: {}]
  %s4 = inlined_call_operand.vmem [shape: bf16[2,16,16,4], index: 4, kind: output, shape index: {0}]
  %s5 = inlined_call_operand.vmem [shape: f32[2,2,2,4], index: 5, kind: output, shape index: {1}]
  %6 = xla_tuple %s4, %s5
  %s7 = sld [smem:[#allocation0]]
  $region61: #{up_forward.4} parent=0
    _
  %s9 = ssub.s32 1, %s7
  %s10 = scalar_select 0, %s9, %s7
  loop: start=0, step=1, limit=6
  $region2: #{up_forward.4} parent=0 // loop_pre_header
    _
  $region3: #{up_forward.4} parent=0 // loop_header
    %s12 = sphi 0, %s16
    %p13 = scmp.ge.s32.totalorder %s12, 6
    %s19 = sphi 0, %s31
    %s20 = sphi 0, %s27
    %s21 = sphi 0, %s19
    %s22 = sphi 0, %s20
    %s23 = sphi 0, %s21
    %s24 = sphi 0, %s22
    %s34 = sphi 0, %s36
    %s37 = sphi 0, %s34
    %s38 = sphi 0, %s37
    %s54 = sphi 0, %s38
    %s58 = sphi 0, %s58
    %s60 = sphi 0, %s58
    %s61 = sphi 0, %s60
    %s75 = sphi 0, %s61
    %s79 = sphi 0, %s79
    %s81 = sphi 0, %s79
    %s82 = sphi 0, %s81
    %s96 = sphi 0, %s82
    %s100 = sphi 0, %s100
    %s102 = sphi 0, %s100
    %s103 = sphi 0, %s102
    %s117 = sphi 0, %s103
    %s125 = sphi 0, %s127
    %s128 = sphi 0, %s125
    %s129 = sphi 0, %s128
    %s145 = sphi 0, %s129
    %s153 = sphi 0, %s155
    %s156 = sphi 0, %s153
    %s157 = sphi 0, %s156
    %s173 = sphi 0, %s157
  $region4: #{up_forward.4} parent=0 // loop_header_branch
    %15 = sbr.rel (%p13) target = $region8
  $region5: #{up_forward.4} parent=0 // loop_body
    %s17 = ssub.s32 %s12, 1
    %s18 = ssub.s32 %s12, 2
    %s25 = sadd.s32 1, %s20
    %p26 = scmp.ge.s32.totalorder %s25, 2
    %s27 = scalar_select %p26, 0, %s25
    %s28 = sadd.s32 1, %s19
    %s29 = scalar_select %p26, %s28, %s19
    %p30 = scmp.ge.s32.totalorder %s29, 2
    %s31 = scalar_select %p30, 0, %s29
    %s32 = ssub.s32 %s19, %s31
    %p33 = scmp.eq.s32.totalorder %s32, 0
    %s35 = sadd.s32 %s34, 1
    %s36 = scalar_select %p33, %s34, %s35
    %p39 = pneg %p33
    %p40 = scmp.eq.s32.totalorder %s12, 3
    %p41 = por %p39, %p40
    %p42 = scmp.ne.s32.totalorder %s34, %s37
    %p43 = scmp.eq.s32.totalorder %s12, 0
    %p44 = por %p42, %p43
    %p45 = scmp.ne.s32.totalorder %s34, %s37
    %p46 = scmp.eq.s32.totalorder %s17, 3
    %p47 = por %p45, %p46
    %p48 = scmp.ne.s32.totalorder %s37, %s38
    %p49 = scmp.eq.s32.totalorder %s17, 0
    %p50 = por %p48, %p49
    %p51 = scmp.ne.s32.totalorder %s37, %s38
    %p52 = scmp.eq.s32.totalorder %s18, 3
    %p53 = por %p51, %p52
    %p55 = scmp.ne.s32.totalorder %s38, %s54
    %p56 = scmp.eq.s32.totalorder %s18, 0
    %p57 = por %p55, %p56
    %s59 = sadd.s32 %s58, 1
    %p62 = scmp.eq.s32.totalorder %s12, 3
    %p63 = scmp.ne.s32.totalorder %s58, %s60
    %p64 = scmp.eq.s32.totalorder %s12, 0
    %p65 = por %p63, %p64
    %p66 = scmp.ne.s32.totalorder %s58, %s60
    %p67 = scmp.eq.s32.totalorder %s17, 3
    %p68 = por %p66, %p67
    %p69 = scmp.ne.s32.totalorder %s60, %s61
    %p70 = scmp.eq.s32.totalorder %s17, 0
    %p71 = por %p69, %p70
    %p72 = scmp.ne.s32.totalorder %s60, %s61
    %p73 = scmp.eq.s32.totalorder %s18, 3
    %p74 = por %p72, %p73
    %p76 = scmp.ne.s32.totalorder %s61, %s75
    %p77 = scmp.eq.s32.totalorder %s18, 0
    %p78 = por %p76, %p77
    %s80 = sadd.s32 %s79, 1
    %p83 = scmp.eq.s32.totalorder %s12, 3
    %p84 = scmp.ne.s32.totalorder %s79, %s81
    %p85 = scmp.eq.s32.totalorder %s12, 0
    %p86 = por %p84, %p85
    %p87 = scmp.ne.s32.totalorder %s79, %s81
    %p88 = scmp.eq.s32.totalorder %s17, 3
    %p89 = por %p87, %p88
    %p90 = scmp.ne.s32.totalorder %s81, %s82
    %p91 = scmp.eq.s32.totalorder %s17, 0
    %p92 = por %p90, %p91
    %p93 = scmp.ne.s32.totalorder %s81, %s82
    %p94 = scmp.eq.s32.totalorder %s18, 3
    %p95 = por %p93, %p94
    %p97 = scmp.ne.s32.totalorder %s82, %s96
    %p98 = scmp.eq.s32.totalorder %s18, 0
    %p99 = por %p97, %p98
    %s101 = sadd.s32 %s100, 1
    %p104 = scmp.eq.s32.totalorder %s12, 3
    %p105 = scmp.ne.s32.totalorder %s100, %s102
    %p106 = scmp.eq.s32.totalorder %s12, 0
    %p107 = por %p105, %p106
    %p108 = scmp.ne.s32.totalorder %s100, %s102
    %p109 = scmp.eq.s32.totalorder %s17, 3
    %p110 = por %p108, %p109
    %p111 = scmp.ne.s32.totalorder %s102, %s103
    %p112 = scmp.eq.s32.totalorder %s17, 0
    %p113 = por %p111, %p112
    %p114 = scmp.ne.s32.totalorder %s102, %s103
    %p115 = scmp.eq.s32.totalorder %s18, 3
    %p116 = por %p114, %p115
    %p118 = scmp.ne.s32.totalorder %s103, %s117
    %p119 = scmp.eq.s32.totalorder %s18, 0
    %p120 = por %p118, %p119
    %s121 = ssub.s32 %s19, %s31
    %s122 = ssub.s32 %s20, %s27
    %s123 = sor.u32 %s121, %s122
    %p124 = scmp.eq.s32.totalorder %s123, 0
    %s126 = sadd.s32 %s125, 1
    %s127 = scalar_select %p124, %s125, %s126
    %p130 = pneg %p124
    %p131 = scmp.eq.s32.totalorder %s12, 3
    %p132 = por %p130, %p131
    %p133 = scmp.ne.s32.totalorder %s125, %s128
    %p134 = scmp.eq.s32.totalorder %s12, 0
    %p135 = por %p133, %p134
    %p136 = scmp.ne.s32.totalorder %s125, %s128
    %p137 = scmp.eq.s32.totalorder %s17, 3
    %p138 = por %p136, %p137
    %p139 = scmp.ne.s32.totalorder %s128, %s129
    %p140 = scmp.eq.s32.totalorder %s17, 0
    %p141 = por %p139, %p140
    %p142 = scmp.ne.s32.totalorder %s128, %s129
    %p143 = scmp.eq.s32.totalorder %s18, 3
    %p144 = por %p142, %p143
    %p146 = scmp.ne.s32.totalorder %s129, %s145
    %p147 = scmp.eq.s32.totalorder %s18, 0
    %p148 = por %p146, %p147
    %s149 = ssub.s32 %s19, %s31
    %s150 = ssub.s32 %s20, %s27
    %s151 = sor.u32 %s149, %s150
    %p152 = scmp.eq.s32.totalorder %s151, 0
    %s154 = sadd.s32 %s153, 1
    %s155 = scalar_select %p152, %s153, %s154
    %p158 = pneg %p152
    %p159 = scmp.eq.s32.totalorder %s12, 3
    %p160 = por %p158, %p159
    %p161 = scmp.ne.s32.totalorder %s153, %s156
    %p162 = scmp.eq.s32.totalorder %s12, 0
    %p163 = por %p161, %p162
    %p164 = scmp.ne.s32.totalorder %s153, %s156
    %p165 = scmp.eq.s32.totalorder %s17, 3
    %p166 = por %p164, %p165
    %p167 = scmp.ne.s32.totalorder %s156, %s157
    %p168 = scmp.eq.s32.totalorder %s17, 0
    %p169 = por %p167, %p168
    %p170 = scmp.ne.s32.totalorder %s156, %s157
    %p171 = scmp.eq.s32.totalorder %s18, 3
    %p172 = por %p170, %p171
    %p174 = scmp.ne.s32.totalorder %s157, %s173
    %p175 = scmp.eq.s32.totalorder %s18, 0
    %p176 = por %p174, %p175
    %p177 = scmp.le.s32.totalorder 1, %s12
    %p178 = scmp.lt.s32.totalorder %s12, 5
    %p179 = pnand %p177, %p178
    %p180 = pneg %p179
    // Predicated region
    $region9: #{up_forward.4} parent=5 // pred_check
      _
    $region10: #{up_forward.4} parent=5 // pred_check_branch
      %182 = sbr.rel (%p179) target = $region12
    $region11: #{up_forward.4} parent=5 // pred_region
      %s183 = ssub.s32 %s12, 1
      // Predicated region
      $region13: #{up_forward.4} parent=11 // pred_check
        %p184 = pneg %p71
      $region14: #{up_forward.4} parent=11 // pred_check_branch
        %186 = sbr.rel (%p184) target = $region16
      $region15: #{up_forward.4} parent=11 // pred_region
        _
      $region16: #{up_forward.4} parent=11 // pred_fallthru
        _
      // Predicated region
      $region17: #{up_forward.4} parent=11 // pred_check
        %p187 = pneg %p92
      $region18: #{up_forward.4} parent=11 // pred_check_branch
        %189 = sbr.rel (%p187) target = $region20
      $region19: #{up_forward.4} parent=11 // pred_region
        _
      $region20: #{up_forward.4} parent=11 // pred_fallthru
        _
      // Predicated region
      $region21: #{up_forward.4} parent=11 // pred_check
        %p190 = pneg %p113
      $region22: #{up_forward.4} parent=11 // pred_check_branch
        %192 = sbr.rel (%p190) target = $region24
      $region23: #{up_forward.4} parent=11 // pred_region
        _
      $region24: #{up_forward.4} parent=11 // pred_fallthru
        _
    $region12: #{up_forward.4} parent=5 // pred_fallthru
      _
    %p193 = scmp.lt.s32.totalorder %s12, 4
    // Predicated region
    $region25: #{up_forward.4} parent=5 // pred_check
      %p194 = pneg %p193
    $region26: #{up_forward.4} parent=5 // pred_check_branch
      %196 = sbr.rel (%p194) target = $region28
    $region27: #{up_forward.4} parent=5 // pred_region
      // Predicated region
      $region29: #{up_forward.4} parent=27 // pred_check
        %p197 = pneg %p44
      $region30: #{up_forward.4} parent=27 // pred_check_branch
        %199 = sbr.rel (%p197) target = $region32
      $region31: #{up_forward.4} parent=27 // pred_region
        %p200 = scmp.lt.s32.totalorder %s19, 1
        %s201 = scalar_select %p200, %s19, 1
        %s202 = smul.addr %s201, 32
        %s203 = smul.addr %s202, 4
        %s204 = scalar_lea.vmem %s0, %s203
      $region32: #{up_forward.4} parent=27 // pred_fallthru
        _
    $region28: #{up_forward.4} parent=5 // pred_fallthru
      _
    %p205 = scmp.le.s32.totalorder 1, %s12
    %p206 = scmp.lt.s32.totalorder %s12, 5
    %p207 = pnand %p205, %p206
    %p208 = pneg %p207
    // Predicated region
    $region33: #{up_forward.4} parent=5 // pred_check
      _
    $region34: #{up_forward.4} parent=5 // pred_check_branch
      %210 = sbr.rel (%p207) target = $region36
    $region35: #{up_forward.4} parent=5 // pred_region
      %s211 = ssub.s32 %s12, 1
      %p212 = scmp.lt.s32.totalorder %s21, 1
      %s213 = scalar_select %p212, %s21, 1
      %s214 = smul.addr %s213, 32
      %s215 = smul.addr %s214, 4
      %s216 = scalar_lea.vmem %s0, %s215
      %p217 = pneg %p50
      %p218 = pneg %p47
      %p219 = pneg %p71
      %p220 = pneg %p68
      %p221 = pneg %p92
      %p222 = pneg %p89
      %p223 = pneg %p113
      %p224 = pneg %p110
      %p225 = pneg %p141
      %p226 = pneg %p138
      %s227 = smul.u32 8, %s22
      %p228 = scmp.lt.s32.totalorder %s21, 1
      %s229 = scalar_select %p228, %s21, 1
      %p230 = scmp.lt.s32.totalorder %s227, 15
      %s231 = scalar_select %p230, %s227, 15
      %s232 = smul.addr %s231, 2
      %s233 = smul.addr %s229, 32
      %s234 = sadd.s32 %s232, %s233
      %s235 = smul.addr %s234, 4
      %s236 = scalar_lea.vmem %s4, %s235
      %p237 = pneg %p169
      %p238 = pneg %p166
      %p239 = scmp.lt.s32.totalorder %s21, 1
      %s240 = scalar_select %p239, %s21, 1
      %p241 = scmp.lt.s32.totalorder %s22, 1
      %s242 = scalar_select %p241, %s22, 1
      %s243 = smul.addr %s240, 2
      %s244 = sadd.s32 %s242, %s243
      %s245 = smul.addr %s244, 2
      %s246 = scalar_lea.vmem %s5, %s245
      %p247 = scmp.lt.s32.totalorder %s21, 1
      %s248 = scalar_select %p247, %s21, 1
      %s249 = smul.addr %s248, 32
      %s250 = smul.addr %s249, 4
      %s251 = scalar_lea.vmem %s0, %s250
      %s252 = smul.u32 8, %s22
      %p253 = scmp.lt.s32.totalorder %s21, 1
      %s254 = scalar_select %p253, %s21, 1
      %p255 = scmp.lt.s32.totalorder %s252, 15
      %s256 = scalar_select %p255, %s252, 15
      %s257 = smul.addr %s256, 2
      %s258 = smul.addr %s254, 32
      %s259 = sadd.s32 %s257, %s258
      %s260 = smul.addr %s259, 4
      %s261 = scalar_lea.vmem %s4, %s260
      %s262 = smul.u32 8, %s22
      %p263 = scmp.lt.s32.totalorder %s21, 1
      %s264 = scalar_select %p263, %s21, 1
      %p265 = scmp.lt.s32.totalorder %s22, 1
      %s266 = scalar_select %p265, %s22, 1
      %s267 = smul.addr %s264, 2
      %s268 = sadd.s32 %s266, %s267
      %s269 = smul.addr %s268, 2
      %s270 = scalar_lea.vmem %s5, %s269
      %p272 = scmp.eq.s32.totalorder %s22, 0
      // Predicated region
      $region37: #{up_forward.4} parent=35 // pred_check
        %p273 = pneg %p272
      $region38: #{up_forward.4} parent=35 // pred_check_branch
        %275 = sbr.rel (%p273) target = $region40
      $region39: #{up_forward.4} parent=35 // pred_region
        %vm276 = vcmask 27648
        %277 = vst.msk [vmem:[#allocation2] sm:$0xf] %vm276, 0
        %278 = vst.msk [vmem:[#allocation2 + $0x4] sm:$0xf] %vm276, 0
        %vm279 = vcmask 24576
        %280 = vst.msk [vmem:[#allocation2 + $0x8] sm:$0x1] %vm279, 0
        %s281 = scalar_lea.vmem [#allocation2], 204
        %282 = vst.msk [vmem:[%s281] sm:$0xf] %vm276, 0
        %283 = vst.msk [vmem:[%s281 + $0x4] sm:$0xf] %vm276, 0
        %284 = vst.msk [vmem:[%s281 + $0x8] sm:$0x1] %vm279, 0
        %vm285 = vcmask 24576
        %vm286 = vsmask.f32 256
        %vm287 = vmand %vm285, %vm286
        %v288 = vld [vmem:[#allocation2] sm:$0x1]
        %v289 = vsel %vm287, 0, %v288
        %290 = vst [vmem:[#allocation2] sm:$0x1] %v289
        %v291 = vld [vmem:[#allocation2 + $0xc] sm:$0x1]
        %v292 = vsel %vm287, 0, %v291
        %293 = vst [vmem:[#allocation2 + $0xc] sm:$0x1] %v292
        %v294 = vld [vmem:[#allocation2 + $0x18] sm:$0x1]
        %v295 = vsel %vm287, 0, %v294
        %296 = vst [vmem:[#allocation2 + $0x18] sm:$0x1] %v295
        %v297 = vld [vmem:[#allocation2 + $0x24] sm:$0x1]
        %v298 = vsel %vm287, 0, %v297
        %299 = vst [vmem:[#allocation2 + $0x24] sm:$0x1] %v298
        %v300 = vld [vmem:[#allocation2 + $0x30] sm:$0x1]
        %v301 = vsel %vm287, 0, %v300
        %302 = vst [vmem:[#allocation2 + $0x30] sm:$0x1] %v301
        %v303 = vld [vmem:[#allocation2 + $0x3c] sm:$0x1]
        %v304 = vsel %vm287, 0, %v303
        %305 = vst [vmem:[#allocation2 + $0x3c] sm:$0x1] %v304
        %v306 = vld [vmem:[#allocation2 + $0x48] sm:$0x1]
        %v307 = vsel %vm287, 0, %v306
        %308 = vst [vmem:[#allocation2 + $0x48] sm:$0x1] %v307
        %v309 = vld [vmem:[#allocation2 + $0x54] sm:$0x1]
        %v310 = vsel %vm287, 0, %v309
        %311 = vst [vmem:[#allocation2 + $0x54] sm:$0x1] %v310
        %v312 = vld [vmem:[#allocation2 + $0x60] sm:$0x1]
        %v313 = vsel %vm287, 0, %v312
        %314 = vst [vmem:[#allocation2 + $0x60] sm:$0x1] %v313
        %v315 = vld [vmem:[#allocation2 + $0x6c] sm:$0x1]
        %v316 = vsel %vm287, 0, %v315
        %317 = vst [vmem:[#allocation2 + $0x6c] sm:$0x1] %v316
        %v318 = vld [vmem:[#allocation2 + $0x78] sm:$0x1]
        %v319 = vsel %vm287, 0, %v318
        %320 = vst [vmem:[#allocation2 + $0x78] sm:$0x1] %v319
        %v321 = vld [vmem:[#allocation2 + $0x84] sm:$0x1]
        %v322 = vsel %vm287, 0, %v321
        %323 = vst [vmem:[#allocation2 + $0x84] sm:$0x1] %v322
        %v324 = vld [vmem:[#allocation2 + $0x90] sm:$0x1]
        %v325 = vsel %vm287, 0, %v324
        %326 = vst [vmem:[#allocation2 + $0x90] sm:$0x1] %v325
        %v327 = vld [vmem:[#allocation2 + $0x9c] sm:$0x1]
        %v328 = vsel %vm287, 0, %v327
        %329 = vst [vmem:[#allocation2 + $0x9c] sm:$0x1] %v328
        %v330 = vld [vmem:[#allocation2 + $0xa8] sm:$0x1]
        %v331 = vsel %vm287, 0, %v330
        %332 = vst [vmem:[#allocation2 + $0xa8] sm:$0x1] %v331
        %v333 = vld [vmem:[#allocation2 + $0xb4] sm:$0x1]
        %v334 = vsel %vm287, 0, %v333
        %335 = vst [vmem:[#allocation2 + $0xb4] sm:$0x1] %v334
        %v336 = vld [vmem:[#allocation2 + $0xc0] sm:$0x1]
        %v337 = vsel %vm287, 0, %v336
        %338 = vst [vmem:[#allocation2 + $0xc0] sm:$0x1] %v337
        %v339 = vld [vmem:[#allocation2 + $0xcc] sm:$0x1]
        %v340 = vsel %vm287, 0, %v339
        %341 = vst [vmem:[#allocation2 + $0xcc] sm:$0x1] %v340
        %vm342 = vsmask.f32 7938
        %vm343 = vmand %vm285, %vm342
        %v344 = vld [vmem:[#allocation2 + $0x8] sm:$0x1]
        %v345 = vsel %vm343, 0, %v344
        %346 = vst [vmem:[#allocation2 + $0x8] sm:$0x1] %v345
        %v347 = vld [vmem:[#allocation2 + $0x14] sm:$0x1]
        %v348 = vsel %vm343, 0, %v347
        %349 = vst [vmem:[#allocation2 + $0x14] sm:$0x1] %v348
        %v350 = vld [vmem:[#allocation2 + $0x20] sm:$0x1]
        %v351 = vsel %vm343, 0, %v350
        %352 = vst [vmem:[#allocation2 + $0x20] sm:$0x1] %v351
        %v353 = vld [vmem:[#allocation2 + $0x2c] sm:$0x1]
        %v354 = vsel %vm343, 0, %v353
        %355 = vst [vmem:[#allocation2 + $0x2c] sm:$0x1] %v354
        %v356 = vld [vmem:[#allocation2 + $0x38] sm:$0x1]
        %v357 = vsel %vm343, 0, %v356
        %358 = vst [vmem:[#allocation2 + $0x38] sm:$0x1] %v357
        %v359 = vld [vmem:[#allocation2 + $0x44] sm:$0x1]
        %v360 = vsel %vm343, 0, %v359
        %361 = vst [vmem:[#allocation2 + $0x44] sm:$0x1] %v360
        %v362 = vld [vmem:[#allocation2 + $0x50] sm:$0x1]
        %v363 = vsel %vm343, 0, %v362
        %364 = vst [vmem:[#allocation2 + $0x50] sm:$0x1] %v363
        %v365 = vld [vmem:[#allocation2 + $0x5c] sm:$0x1]
        %v366 = vsel %vm343, 0, %v365
        %367 = vst [vmem:[#allocation2 + $0x5c] sm:$0x1] %v366
        %v368 = vld [vmem:[#allocation2 + $0x68] sm:$0x1]
        %v369 = vsel %vm343, 0, %v368
        %370 = vst [vmem:[#allocation2 + $0x68] sm:$0x1] %v369
        %v371 = vld [vmem:[#allocation2 + $0x74] sm:$0x1]
        %v372 = vsel %vm343, 0, %v371
        %373 = vst [vmem:[#allocation2 + $0x74] sm:$0x1] %v372
        %v374 = vld [vmem:[#allocation2 + $0x80] sm:$0x1]
        %v375 = vsel %vm343, 0, %v374
        %376 = vst [vmem:[#allocation2 + $0x80] sm:$0x1] %v375
        %v377 = vld [vmem:[#allocation2 + $0x8c] sm:$0x1]
        %v378 = vsel %vm343, 0, %v377
        %379 = vst [vmem:[#allocation2 + $0x8c] sm:$0x1] %v378
        %v380 = vld [vmem:[#allocation2 + $0x98] sm:$0x1]
        %v381 = vsel %vm343, 0, %v380
        %382 = vst [vmem:[#allocation2 + $0x98] sm:$0x1] %v381
        %v383 = vld [vmem:[#allocation2 + $0xa4] sm:$0x1]
        %v384 = vsel %vm343, 0, %v383
        %385 = vst [vmem:[#allocation2 + $0xa4] sm:$0x1] %v384
        %v386 = vld [vmem:[#allocation2 + $0xb0] sm:$0x1]
        %v387 = vsel %vm343, 0, %v386
        %388 = vst [vmem:[#allocation2 + $0xb0] sm:$0x1] %v387
        %v389 = vld [vmem:[#allocation2 + $0xbc] sm:$0x1]
        %v390 = vsel %vm343, 0, %v389
        %391 = vst [vmem:[#allocation2 + $0xbc] sm:$0x1] %v390
        %v392 = vld [vmem:[#allocation2 + $0xc8] sm:$0x1]
        %v393 = vsel %vm343, 0, %v392
        %394 = vst [vmem:[#allocation2 + $0xc8] sm:$0x1] %v393
        %v395 = vld [vmem:[#allocation2 + $0xd4] sm:$0x1]
        %v396 = vsel %vm343, 0, %v395
        %397 = vst [vmem:[#allocation2 + $0xd4] sm:$0x1] %v396
        %v398 = vld [vmem:[%s251] sm:$0xf]
        %v399 = vld [vmem:[%s251 + $0x4] sm:$0xf]
        %v400 = vld [vmem:[%s251 + $0x8] sm:$0xf]
        %v401 = vld [vmem:[%s251 + $0xc] sm:$0xf]
        %v402 = vld [vmem:[%s251 + $0x10] sm:$0xf]
        %v403 = vld [vmem:[%s251 + $0x14] sm:$0xf]
        %v404 = vld [vmem:[%s251 + $0x18] sm:$0xf]
        %v405 = vld [vmem:[%s251 + $0x1c] sm:$0xf]
        %v406 = vld [vmem:[%s251 + $0x20] sm:$0xf]
        %v407 = vld [vmem:[%s251 + $0x24] sm:$0xf]
        %v408 = vld [vmem:[%s251 + $0x28] sm:$0xf]
        %v409 = vld [vmem:[%s251 + $0x2c] sm:$0xf]
        %v410 = vld [vmem:[%s251 + $0x30] sm:$0xf]
        %v411 = vld [vmem:[%s251 + $0x34] sm:$0xf]
        %v412 = vld [vmem:[%s251 + $0x38] sm:$0xf]
        %v413 = vld [vmem:[%s251 + $0x3c] sm:$0xf]
        %v414 = vld [vmem:[%s251 + $0x40] sm:$0xf]
        %v415 = vld [vmem:[%s251 + $0x44] sm:$0xf]
        %v416 = vld [vmem:[%s251 + $0x48] sm:$0xf]
        %v417 = vld [vmem:[%s251 + $0x4c] sm:$0xf]
        %v418 = vld [vmem:[%s251 + $0x50] sm:$0xf]
        %v419 = vld [vmem:[%s251 + $0x54] sm:$0xf]
        %v420 = vld [vmem:[%s251 + $0x58] sm:$0xf]
        %v421 = vld [vmem:[%s251 + $0x5c] sm:$0xf]
        %v422 = vld [vmem:[%s251 + $0x60] sm:$0xf]
        %v423 = vld [vmem:[%s251 + $0x64] sm:$0xf]
        %v424 = vld [vmem:[%s251 + $0x68] sm:$0xf]
        %v425 = vld [vmem:[%s251 + $0x6c] sm:$0xf]
        %v426 = vld [vmem:[%s251 + $0x70] sm:$0xf]
        %v427 = vld [vmem:[%s251 + $0x74] sm:$0xf]
        %v428 = vld [vmem:[%s251 + $0x78] sm:$0xf]
        %v429 = vld [vmem:[%s251 + $0x7c] sm:$0xf]
        %v430 = vunpack.c.l.bf16 %v398
        %v431 = vunpack.c.l.bf16 %v399
        %v432 = vunpack.c.l.bf16 %v400
        %v433 = vunpack.c.l.bf16 %v401
        %v434 = vunpack.c.l.bf16 %v402
        %v435 = vunpack.c.l.bf16 %v403
        %v436 = vunpack.c.l.bf16 %v404
        %v437 = vunpack.c.l.bf16 %v405
        %v438 = vunpack.c.l.bf16 %v406
        %v439 = vunpack.c.l.bf16 %v407
        %v440 = vunpack.c.l.bf16 %v408
        %v441 = vunpack.c.l.bf16 %v409
        %v442 = vunpack.c.l.bf16 %v410
        %v443 = vunpack.c.l.bf16 %v411
        %v444 = vunpack.c.l.bf16 %v412
        %v445 = vunpack.c.l.bf16 %v413
        %v446 = vunpack.c.l.bf16 %v414
        %v447 = vunpack.c.l.bf16 %v415
        %v448 = vunpack.c.l.bf16 %v416
        %v449 = vunpack.c.l.bf16 %v417
        %v450 = vunpack.c.l.bf16 %v418
        %v451 = vunpack.c.l.bf16 %v419
        %v452 = vunpack.c.l.bf16 %v420
        %v453 = vunpack.c.l.bf16 %v421
        %v454 = vunpack.c.l.bf16 %v422
        %v455 = vunpack.c.l.bf16 %v423
        %v456 = vunpack.c.l.bf16 %v424
        %v457 = vunpack.c.l.bf16 %v425
        %v458 = vunpack.c.l.bf16 %v426
        %v459 = vunpack.c.l.bf16 %v427
        %v460 = vunpack.c.l.bf16 %v428
        %v461 = vunpack.c.l.bf16 %v429
        %v462 = vld [vmem:[%s1] sm:$0x1]
        %v464 = vlaneseq
        %v465 = vshrl.u32 %v464, 7
        %v466 = vsub.s32 0, %v465
        %v467 = vrot.slane %v462, %v466
        %v469 = vmul.f32 %v430, %v467
        %v470 = vmul.f32 %v431, %v467
        %v471 = vmul.f32 %v432, %v467
        %v472 = vmul.f32 %v433, %v467
        %v473 = vmul.f32 %v434, %v467
        %v474 = vmul.f32 %v435, %v467
        %v475 = vmul.f32 %v436, %v467
        %v476 = vmul.f32 %v437, %v467
        %v477 = vmul.f32 %v438, %v467
        %v478 = vmul.f32 %v439, %v467
        %v479 = vmul.f32 %v440, %v467
        %v480 = vmul.f32 %v441, %v467
        %v481 = vmul.f32 %v442, %v467
        %v482 = vmul.f32 %v443, %v467
        %v483 = vmul.f32 %v444, %v467
        %v484 = vmul.f32 %v445, %v467
        %v485 = vmul.f32 %v446, %v467
        %v486 = vmul.f32 %v447, %v467
        %v487 = vmul.f32 %v448, %v467
        %v488 = vmul.f32 %v449, %v467
        %v489 = vmul.f32 %v450, %v467
        %v490 = vmul.f32 %v451, %v467
        %v491 = vmul.f32 %v452, %v467
        %v492 = vmul.f32 %v453, %v467
        %v493 = vmul.f32 %v454, %v467
        %v494 = vmul.f32 %v455, %v467
        %v495 = vmul.f32 %v456, %v467
        %v496 = vmul.f32 %v457, %v467
        %v497 = vmul.f32 %v458, %v467
        %v498 = vmul.f32 %v459, %v467
        %v499 = vmul.f32 %v460, %v467
        %v500 = vmul.f32 %v461, %v467
        %v501 = vld [vmem:[%s2] sm:$0x1]
        %v503 = vlaneseq
        %v504 = vshrl.u32 %v503, 7
        %v505 = vsub.s32 0, %v504
        %v506 = vrot.slane %v501, %v505
        %v508 = vadd.f32 %v469, %v506
        %v509 = vadd.f32 %v470, %v506
        %v510 = vadd.f32 %v471, %v506
        %v511 = vadd.f32 %v472, %v506
        %v512 = vadd.f32 %v473, %v506
        %v513 = vadd.f32 %v474, %v506
        %v514 = vadd.f32 %v475, %v506
        %v515 = vadd.f32 %v476, %v506
        %v516 = vadd.f32 %v477, %v506
        %v517 = vadd.f32 %v478, %v506
        %v518 = vadd.f32 %v479, %v506
        %v519 = vadd.f32 %v480, %v506
        %v520 = vadd.f32 %v481, %v506
        %v521 = vadd.f32 %v482, %v506
        %v522 = vadd.f32 %v483, %v506
        %v523 = vadd.f32 %v484, %v506
        %v524 = vadd.f32 %v485, %v506
        %v525 = vadd.f32 %v486, %v506
        %v526 = vadd.f32 %v487, %v506
        %v527 = vadd.f32 %v488, %v506
        %v528 = vadd.f32 %v489, %v506
        %v529 = vadd.f32 %v490, %v506
        %v530 = vadd.f32 %v491, %v506
        %v531 = vadd.f32 %v492, %v506
        %v532 = vadd.f32 %v493, %v506
        %v533 = vadd.f32 %v494, %v506
        %v534 = vadd.f32 %v495, %v506
        %v535 = vadd.f32 %v496, %v506
        %v536 = vadd.f32 %v497, %v506
        %v537 = vadd.f32 %v498, %v506
        %v538 = vadd.f32 %v499, %v506
        %v539 = vadd.f32 %v500, %v506
        %v540 = vmax.f32 %v508, 0.0
        %v541 = vmax.f32 %v509, 0.0
        %v542 = vmax.f32 %v510, 0.0
        %v543 = vmax.f32 %v511, 0.0
        %v544 = vmax.f32 %v512, 0.0
        %v545 = vmax.f32 %v513, 0.0
        %v546 = vmax.f32 %v514, 0.0
        %v547 = vmax.f32 %v515, 0.0
        %v548 = vmax.f32 %v516, 0.0
        %v549 = vmax.f32 %v517, 0.0
        %v550 = vmax.f32 %v518, 0.0
        %v551 = vmax.f32 %v519, 0.0
        %v552 = vmax.f32 %v520, 0.0
        %v553 = vmax.f32 %v521, 0.0
        %v554 = vmax.f32 %v522, 0.0
        %v555 = vmax.f32 %v523, 0.0
        %v556 = vmax.f32 %v524, 0.0
        %v557 = vmax.f32 %v525, 0.0
        %v558 = vmax.f32 %v526, 0.0
        %v559 = vmax.f32 %v527, 0.0
        %v560 = vmax.f32 %v528, 0.0
        %v561 = vmax.f32 %v529, 0.0
        %v562 = vmax.f32 %v530, 0.0
        %v563 = vmax.f32 %v531, 0.0
        %v564 = vmax.f32 %v532, 0.0
        %v565 = vmax.f32 %v533, 0.0
        %v566 = vmax.f32 %v534, 0.0
        %v567 = vmax.f32 %v535, 0.0
        %v568 = vmax.f32 %v536, 0.0
        %v569 = vmax.f32 %v537, 0.0
        %v570 = vmax.f32 %v538, 0.0
        %v571 = vmax.f32 %v539, 0.0
        %v572 = vpack.c.bf16 %v541, %v540
        %v573 = vpack.c.bf16 %v543, %v542
        %v574 = vpack.c.bf16 %v545, %v544
        %v575 = vpack.c.bf16 %v547, %v546
        %v576 = vpack.c.bf16 %v549, %v548
        %v577 = vpack.c.bf16 %v551, %v550
        %v578 = vpack.c.bf16 %v553, %v552
        %v579 = vpack.c.bf16 %v555, %v554
        %v580 = vpack.c.bf16 %v557, %v556
        %v581 = vpack.c.bf16 %v559, %v558
        %v582 = vpack.c.bf16 %v561, %v560
        %v583 = vpack.c.bf16 %v563, %v562
        %v584 = vpack.c.bf16 %v565, %v564
        %v585 = vpack.c.bf16 %v567, %v566
        %v586 = vpack.c.bf16 %v569, %v568
        %v587 = vpack.c.bf16 %v571, %v570
        %v604 = vunpack.c.l.b16 %v572
        %v605 = vunpack.c.h.b16 %v572
        %v606 = vunpack.c.l.b16 %v573
        %v607 = vunpack.c.h.b16 %v573
        %v608 = vunpack.c.l.b16 %v574
        %v609 = vunpack.c.h.b16 %v574
        %v610 = vunpack.c.l.b16 %v575
        %v611 = vunpack.c.h.b16 %v575
        %v612 = vunpack.c.l.b16 %v576
        %v613 = vunpack.c.h.b16 %v576
        %v614 = vunpack.c.l.b16 %v577
        %v615 = vunpack.c.h.b16 %v577
        %v616 = vunpack.c.l.b16 %v578
        %v617 = vunpack.c.h.b16 %v578
        %v618 = vunpack.c.l.b16 %v579
        %v619 = vunpack.c.h.b16 %v579
        %v620 = vunpack.c.l.b16 %v580
        %v621 = vunpack.c.h.b16 %v580
        %v622 = vunpack.c.l.b16 %v581
        %v623 = vunpack.c.h.b16 %v581
        %v624 = vunpack.c.l.b16 %v582
        %v625 = vunpack.c.h.b16 %v582
        %v626 = vunpack.c.l.b16 %v583
        %v627 = vunpack.c.h.b16 %v583
        %v628 = vunpack.c.l.b16 %v584
        %v629 = vunpack.c.h.b16 %v584
        %v630 = vunpack.c.l.b16 %v585
        %v631 = vunpack.c.h.b16 %v585
        %v632 = vunpack.c.l.b16 %v586
        %v633 = vunpack.c.h.b16 %v586
        %v634 = vunpack.c.l.b16 %v587
        %v635 = vunpack.c.h.b16 %v587
        %v636 = vpack.c.b16 %v604, %v604
        %v637 = vpack.c.b16 %v605, %v605
        %v638 = vpack.c.b16 %v606, %v606
        %v639 = vpack.c.b16 %v607, %v607
        %v640 = vpack.c.b16 %v608, %v608
        %v641 = vpack.c.b16 %v609, %v609
        %v642 = vpack.c.b16 %v610, %v610
        %v643 = vpack.c.b16 %v611, %v611
        %v644 = vpack.c.b16 %v612, %v612
        %v645 = vpack.c.b16 %v613, %v613
        %v646 = vpack.c.b16 %v614, %v614
        %v647 = vpack.c.b16 %v615, %v615
        %v648 = vpack.c.b16 %v616, %v616
        %v649 = vpack.c.b16 %v617, %v617
        %v650 = vpack.c.b16 %v618, %v618
        %v651 = vpack.c.b16 %v619, %v619
        %v652 = vpack.c.b16 %v620, %v620
        %v653 = vpack.c.b16 %v621, %v621
        %v654 = vpack.c.b16 %v622, %v622
        %v655 = vpack.c.b16 %v623, %v623
        %v656 = vpack.c.b16 %v624, %v624
        %v657 = vpack.c.b16 %v625, %v625
        %v658 = vpack.c.b16 %v626, %v626
        %v659 = vpack.c.b16 %v627, %v627
        %v660 = vpack.c.b16 %v628, %v628
        %v661 = vpack.c.b16 %v629, %v629
        %v662 = vpack.c.b16 %v630, %v630
        %v663 = vpack.c.b16 %v631, %v631
        %v664 = vpack.c.b16 %v632, %v632
        %v665 = vpack.c.b16 %v633, %v633
        %v666 = vpack.c.b16 %v634, %v634
        %v667 = vpack.c.b16 %v635, %v635
        %vm668 = vsmask.f32 4368
        %vm669 = vmor %vm286, %vm668
        %v671 = vshrl.u32 %v636, 16
        %v673 = vrot.slane %v671, 7
        %v674 = vshll.u32 %v636, 16
        %v676 = vor.u32 %v673, %v674
        %v677 = vrot.slane %v673, 4
        %v679 = vshrl.u32 %v637, 16
        %v681 = vrot.slane %v679, 7
        %v682 = vshll.u32 %v637, 16
        %v684 = vor.u32 %v681, %v682
        %v685 = vsel %vm669, %v677, %v684
        %v686 = vrot.slane %v681, 4
        %v688 = vshrl.u32 %v638, 16
        %v690 = vrot.slane %v688, 7
        %v691 = vshll.u32 %v638, 16
        %v693 = vor.u32 %v690, %v691
        %v694 = vrot.slane %v690, 4
        %v696 = vshrl.u32 %v639, 16
        %v698 = vrot.slane %v696, 7
        %v699 = vshll.u32 %v639, 16
        %v701 = vor.u32 %v698, %v699
        %v702 = vsel %vm669, %v694, %v701
        %v703 = vrot.slane %v698, 4
        %v705 = vshrl.u32 %v640, 16
        %v707 = vrot.slane %v705, 7
        %v708 = vshll.u32 %v640, 16
        %v710 = vor.u32 %v707, %v708
        %v711 = vrot.slane %v707, 4
        %v713 = vshrl.u32 %v641, 16
        %v715 = vrot.slane %v713, 7
        %v716 = vshll.u32 %v641, 16
        %v718 = vor.u32 %v715, %v716
        %v719 = vsel %vm669, %v711, %v718
        %v720 = vrot.slane %v715, 4
        %v722 = vshrl.u32 %v642, 16
        %v724 = vrot.slane %v722, 7
        %v725 = vshll.u32 %v642, 16
        %v727 = vor.u32 %v724, %v725
        %v728 = vrot.slane %v724, 4
        %v730 = vshrl.u32 %v643, 16
        %v732 = vrot.slane %v730, 7
        %v733 = vshll.u32 %v643, 16
        %v735 = vor.u32 %v732, %v733
        %v736 = vsel %vm669, %v728, %v735
        %v737 = vrot.slane %v732, 4
        %v739 = vshrl.u32 %v644, 16
        %v741 = vrot.slane %v739, 7
        %v742 = vshll.u32 %v644, 16
        %v744 = vor.u32 %v741, %v742
        %v745 = vrot.slane %v741, 4
        %v747 = vshrl.u32 %v645, 16
        %v749 = vrot.slane %v747, 7
        %v750 = vshll.u32 %v645, 16
        %v752 = vor.u32 %v749, %v750
        %v753 = vsel %vm669, %v745, %v752
        %v754 = vrot.slane %v749, 4
        %v756 = vshrl.u32 %v646, 16
        %v758 = vrot.slane %v756, 7
        %v759 = vshll.u32 %v646, 16
        %v761 = vor.u32 %v758, %v759
        %v762 = vrot.slane %v758, 4
        %v764 = vshrl.u32 %v647, 16
        %v766 = vrot.slane %v764, 7
        %v767 = vshll.u32 %v647, 16
        %v769 = vor.u32 %v766, %v767
        %v770 = vsel %vm669, %v762, %v769
        %v771 = vrot.slane %v766, 4
        %v773 = vshrl.u32 %v648, 16
        %v775 = vrot.slane %v773, 7
        %v776 = vshll.u32 %v648, 16
        %v778 = vor.u32 %v775, %v776
        %v779 = vrot.slane %v775, 4
        %v781 = vshrl.u32 %v649, 16
        %v783 = vrot.slane %v781, 7
        %v784 = vshll.u32 %v649, 16
        %v786 = vor.u32 %v783, %v784
        %v787 = vsel %vm669, %v779, %v786
        %v788 = vrot.slane %v783, 4
        %v790 = vshrl.u32 %v650, 16
        %v792 = vrot.slane %v790, 7
        %v793 = vshll.u32 %v650, 16
        %v795 = vor.u32 %v792, %v793
        %v796 = vrot.slane %v792, 4
        %v798 = vshrl.u32 %v651, 16
        %v800 = vrot.slane %v798, 7
        %v801 = vshll.u32 %v651, 16
        %v803 = vor.u32 %v800, %v801
        %v804 = vsel %vm669, %v796, %v803
        %v805 = vrot.slane %v800, 4
        %v807 = vshrl.u32 %v652, 16
        %v809 = vrot.slane %v807, 7
        %v810 = vshll.u32 %v652, 16
        %v812 = vor.u32 %v809, %v810
        %v813 = vrot.slane %v809, 4
        %v815 = vshrl.u32 %v653, 16
        %v817 = vrot.slane %v815, 7
        %v818 = vshll.u32 %v653, 16
        %v820 = vor.u32 %v817, %v818
        %v821 = vsel %vm669, %v813, %v820
        %v822 = vrot.slane %v817, 4
        %v824 = vshrl.u32 %v654, 16
        %v826 = vrot.slane %v824, 7
        %v827 = vshll.u32 %v654, 16
        %v829 = vor.u32 %v826, %v827
        %v830 = vrot.slane %v826, 4
        %v832 = vshrl.u32 %v655, 16
        %v834 = vrot.slane %v832, 7
        %v835 = vshll.u32 %v655, 16
        %v837 = vor.u32 %v834, %v835
        %v838 = vsel %vm669, %v830, %v837
        %v839 = vrot.slane %v834, 4
        %v841 = vshrl.u32 %v656, 16
        %v843 = vrot.slane %v841, 7
        %v844 = vshll.u32 %v656, 16
        %v846 = vor.u32 %v843, %v844
        %v847 = vrot.slane %v843, 4
        %v849 = vshrl.u32 %v657, 16
        %v851 = vrot.slane %v849, 7
        %v852 = vshll.u32 %v657, 16
        %v854 = vor.u32 %v851, %v852
        %v855 = vsel %vm669, %v847, %v854
        %v856 = vrot.slane %v851, 4
        %v858 = vshrl.u32 %v658, 16
        %v860 = vrot.slane %v858, 7
        %v861 = vshll.u32 %v658, 16
        %v863 = vor.u32 %v860, %v861
        %v864 = vrot.slane %v860, 4
        %v866 = vshrl.u32 %v659, 16
        %v868 = vrot.slane %v866, 7
        %v869 = vshll.u32 %v659, 16
        %v871 = vor.u32 %v868, %v869
        %v872 = vsel %vm669, %v864, %v871
        %v873 = vrot.slane %v868, 4
        %v875 = vshrl.u32 %v660, 16
        %v877 = vrot.slane %v875, 7
        %v878 = vshll.u32 %v660, 16
        %v880 = vor.u32 %v877, %v878
        %v881 = vrot.slane %v877, 4
        %v883 = vshrl.u32 %v661, 16
        %v885 = vrot.slane %v883, 7
        %v886 = vshll.u32 %v661, 16
        %v888 = vor.u32 %v885, %v886
        %v889 = vsel %vm669, %v881, %v888
        %v890 = vrot.slane %v885, 4
        %v892 = vshrl.u32 %v662, 16
        %v894 = vrot.slane %v892, 7
        %v895 = vshll.u32 %v662, 16
        %v897 = vor.u32 %v894, %v895
        %v898 = vrot.slane %v894, 4
        %v900 = vshrl.u32 %v663, 16
        %v902 = vrot.slane %v900, 7
        %v903 = vshll.u32 %v663, 16
        %v905 = vor.u32 %v902, %v903
        %v906 = vsel %vm669, %v898, %v905
        %v907 = vrot.slane %v902, 4
        %v909 = vshrl.u32 %v664, 16
        %v911 = vrot.slane %v909, 7
        %v912 = vshll.u32 %v664, 16
        %v914 = vor.u32 %v911, %v912
        %v915 = vrot.slane %v911, 4
        %v917 = vshrl.u32 %v665, 16
        %v919 = vrot.slane %v917, 7
        %v920 = vshll.u32 %v665, 16
        %v922 = vor.u32 %v919, %v920
        %v923 = vsel %vm669, %v915, %v922
        %v924 = vrot.slane %v919, 4
        %v926 = vshrl.u32 %v666, 16
        %v928 = vrot.slane %v926, 7
        %v929 = vshll.u32 %v666, 16
        %v931 = vor.u32 %v928, %v929
        %v932 = vrot.slane %v928, 4
        %v934 = vshrl.u32 %v667, 16
        %v936 = vrot.slane %v934, 7
        %v937 = vshll.u32 %v667, 16
        %v939 = vor.u32 %v936, %v937
        %v940 = vsel %vm669, %v932, %v939
        %v941 = vrot.slane %v936, 4
        %s990 = scalar_lea.vmem [#allocation2], 12
        %vm991 = vcmask 27648
        %vm992 = vmand %vm991, %vm342
        %v993 = vld [vmem:[%s990] sm:$0xf]
        %v994 = vsel %vm992, %v676, %v993
        %995 = vst [vmem:[%s990] sm:$0xf] %v994
        %996 = vst.msk [vmem:[%s990 + $0x4] sm:$0xf] %vm276, %v685
        %v997 = vld [vmem:[%s990 + $0x8] sm:$0x1]
        %v998 = vsel %vm287, %v686, %v997
        %999 = vst [vmem:[%s990 + $0x8] sm:$0x1] %v998
        %v1000 = vld [vmem:[%s990 + $0xc] sm:$0xf]
        %v1001 = vsel %vm992, %v693, %v1000
        %1002 = vst [vmem:[%s990 + $0xc] sm:$0xf] %v1001
        %1003 = vst.msk [vmem:[%s990 + $0x10] sm:$0xf] %vm276, %v702
        %v1004 = vld [vmem:[%s990 + $0x14] sm:$0x1]
        %v1005 = vsel %vm287, %v703, %v1004
        %1006 = vst [vmem:[%s990 + $0x14] sm:$0x1] %v1005
        %v1007 = vld [vmem:[%s990 + $0x18] sm:$0xf]
        %v1008 = vsel %vm992, %v710, %v1007
        %1009 = vst [vmem:[%s990 + $0x18] sm:$0xf] %v1008
        %1010 = vst.msk [vmem:[%s990 + $0x1c] sm:$0xf] %vm276, %v719
        %v1011 = vld [vmem:[%s990 + $0x20] sm:$0x1]
        %v1012 = vsel %vm287, %v720, %v1011
        %1013 = vst [vmem:[%s990 + $0x20] sm:$0x1] %v1012
        %v1014 = vld [vmem:[%s990 + $0x24] sm:$0xf]
        %v1015 = vsel %vm992, %v727, %v1014
        %1016 = vst [vmem:[%s990 + $0x24] sm:$0xf] %v1015
        %1017 = vst.msk [vmem:[%s990 + $0x28] sm:$0xf] %vm276, %v736
        %v1018 = vld [vmem:[%s990 + $0x2c] sm:$0x1]
        %v1019 = vsel %vm287, %v737, %v1018
        %1020 = vst [vmem:[%s990 + $0x2c] sm:$0x1] %v1019
        %v1021 = vld [vmem:[%s990 + $0x30] sm:$0xf]
        %v1022 = vsel %vm992, %v744, %v1021
        %1023 = vst [vmem:[%s990 + $0x30] sm:$0xf] %v1022
        %1024 = vst.msk [vmem:[%s990 + $0x34] sm:$0xf] %vm276, %v753
        %v1025 = vld [vmem:[%s990 + $0x38] sm:$0x1]
        %v1026 = vsel %vm287, %v754, %v1025
        %1027 = vst [vmem:[%s990 + $0x38] sm:$0x1] %v1026
        %v1028 = vld [vmem:[%s990 + $0x3c] sm:$0xf]
        %v1029 = vsel %vm992, %v761, %v1028
        %1030 = vst [vmem:[%s990 + $0x3c] sm:$0xf] %v1029
        %1031 = vst.msk [vmem:[%s990 + $0x40] sm:$0xf] %vm276, %v770
        %v1032 = vld [vmem:[%s990 + $0x44] sm:$0x1]
        %v1033 = vsel %vm287, %v771, %v1032
        %1034 = vst [vmem:[%s990 + $0x44] sm:$0x1] %v1033
        %v1035 = vld [vmem:[%s990 + $0x48] sm:$0xf]
        %v1036 = vsel %vm992, %v778, %v1035
        %1037 = vst [vmem:[%s990 + $0x48] sm:$0xf] %v1036
        %1038 = vst.msk [vmem:[%s990 + $0x4c] sm:$0xf] %vm276, %v787
        %v1039 = vld [vmem:[%s990 + $0x50] sm:$0x1]
        %v1040 = vsel %vm287, %v788, %v1039
        %1041 = vst [vmem:[%s990 + $0x50] sm:$0x1] %v1040
        %v1042 = vld [vmem:[%s990 + $0x54] sm:$0xf]
        %v1043 = vsel %vm992, %v795, %v1042
        %1044 = vst [vmem:[%s990 + $0x54] sm:$0xf] %v1043
        %1045 = vst.msk [vmem:[%s990 + $0x58] sm:$0xf] %vm276, %v804
        %v1046 = vld [vmem:[%s990 + $0x5c] sm:$0x1]
        %v1047 = vsel %vm287, %v805, %v1046
        %1048 = vst [vmem:[%s990 + $0x5c] sm:$0x1] %v1047
        %v1049 = vld [vmem:[%s990 + $0x60] sm:$0xf]
        %v1050 = vsel %vm992, %v812, %v1049
        %1051 = vst [vmem:[%s990 + $0x60] sm:$0xf] %v1050
        %1052 = vst.msk [vmem:[%s990 + $0x64] sm:$0xf] %vm276, %v821
        %v1053 = vld [vmem:[%s990 + $0x68] sm:$0x1]
        %v1054 = vsel %vm287, %v822, %v1053
        %1055 = vst [vmem:[%s990 + $0x68] sm:$0x1] %v1054
        %v1056 = vld [vmem:[%s990 + $0x6c] sm:$0xf]
        %v1057 = vsel %vm992, %v829, %v1056
        %1058 = vst [vmem:[%s990 + $0x6c] sm:$0xf] %v1057
        %1059 = vst.msk [vmem:[%s990 + $0x70] sm:$0xf] %vm276, %v838
        %v1060 = vld [vmem:[%s990 + $0x74] sm:$0x1]
        %v1061 = vsel %vm287, %v839, %v1060
        %1062 = vst [vmem:[%s990 + $0x74] sm:$0x1] %v1061
        %v1063 = vld [vmem:[%s990 + $0x78] sm:$0xf]
        %v1064 = vsel %vm992, %v846, %v1063
        %1065 = vst [vmem:[%s990 + $0x78] sm:$0xf] %v1064
        %1066 = vst.msk [vmem:[%s990 + $0x7c] sm:$0xf] %vm276, %v855
        %v1067 = vld [vmem:[%s990 + $0x80] sm:$0x1]
        %v1068 = vsel %vm287, %v856, %v1067
        %1069 = vst [vmem:[%s990 + $0x80] sm:$0x1] %v1068
        %v1070 = vld [vmem:[%s990 + $0x84] sm:$0xf]
        %v1071 = vsel %vm992, %v863, %v1070
        %1072 = vst [vmem:[%s990 + $0x84] sm:$0xf] %v1071
        %1073 = vst.msk [vmem:[%s990 + $0x88] sm:$0xf] %vm276, %v872
        %v1074 = vld [vmem:[%s990 + $0x8c] sm:$0x1]
        %v1075 = vsel %vm287, %v873, %v1074
        %1076 = vst [vmem:[%s990 + $0x8c] sm:$0x1] %v1075
        %v1077 = vld [vmem:[%s990 + $0x90] sm:$0xf]
        %v1078 = vsel %vm992, %v880, %v1077
        %1079 = vst [vmem:[%s990 + $0x90] sm:$0xf] %v1078
        %1080 = vst.msk [vmem:[%s990 + $0x94] sm:$0xf] %vm276, %v889
        %v1081 = vld [vmem:[%s990 + $0x98] sm:$0x1]
        %v1082 = vsel %vm287, %v890, %v1081
        %1083 = vst [vmem:[%s990 + $0x98] sm:$0x1] %v1082
        %v1084 = vld [vmem:[%s990 + $0x9c] sm:$0xf]
        %v1085 = vsel %vm992, %v897, %v1084
        %1086 = vst [vmem:[%s990 + $0x9c] sm:$0xf] %v1085
        %1087 = vst.msk [vmem:[%s990 + $0xa0] sm:$0xf] %vm276, %v906
        %v1088 = vld [vmem:[%s990 + $0xa4] sm:$0x1]
        %v1089 = vsel %vm287, %v907, %v1088
        %1090 = vst [vmem:[%s990 + $0xa4] sm:$0x1] %v1089
        %v1091 = vld [vmem:[%s990 + $0xa8] sm:$0xf]
        %v1092 = vsel %vm992, %v914, %v1091
        %1093 = vst [vmem:[%s990 + $0xa8] sm:$0xf] %v1092
        %1094 = vst.msk [vmem:[%s990 + $0xac] sm:$0xf] %vm276, %v923
        %v1095 = vld [vmem:[%s990 + $0xb0] sm:$0x1]
        %v1096 = vsel %vm287, %v924, %v1095
        %1097 = vst [vmem:[%s990 + $0xb0] sm:$0x1] %v1096
        %v1098 = vld [vmem:[%s990 + $0xb4] sm:$0xf]
        %v1099 = vsel %vm992, %v931, %v1098
        %1100 = vst [vmem:[%s990 + $0xb4] sm:$0xf] %v1099
        %1101 = vst.msk [vmem:[%s990 + $0xb8] sm:$0xf] %vm276, %v940
        %v1102 = vld [vmem:[%s990 + $0xbc] sm:$0x1]
        %v1103 = vsel %vm287, %v941, %v1102
        %1104 = vst [vmem:[%s990 + $0xbc] sm:$0x1] %v1103
      $region40: #{up_forward.4} parent=35 // pred_fallthru
        _
      %s1105 = smul.u32 %s22, 8
      %s1106 = smul.u32 %s1105, 3
      %s1107 = smul.addr %s1106, 4
      %s1108 = scalar_lea.vmem [#allocation2], %s1107
      %v1109 = vld [vmem:[%s1108] sm:$0xf]
      %v1110 = vld [vmem:[%s1108 + $0x4] sm:$0xf]
      %v1111 = vld [vmem:[%s1108 + $0xc] sm:$0xf]
      %v1112 = vld [vmem:[%s1108 + $0x10] sm:$0xf]
      %v1113 = vld [vmem:[%s1108 + $0x18] sm:$0xf]
      %v1114 = vld [vmem:[%s1108 + $0x1c] sm:$0xf]
      %v1115 = vld [vmem:[%s1108 + $0x24] sm:$0xf]
      %v1116 = vld [vmem:[%s1108 + $0x28] sm:$0xf]
      %v1117 = vld [vmem:[%s1108 + $0x30] sm:$0xf]
      %v1118 = vld [vmem:[%s1108 + $0x34] sm:$0xf]
      %v1119 = vld [vmem:[%s1108 + $0x3c] sm:$0xf]
      %v1120 = vld [vmem:[%s1108 + $0x40] sm:$0xf]
      %v1121 = vld [vmem:[%s1108 + $0x48] sm:$0xf]
      %v1122 = vld [vmem:[%s1108 + $0x4c] sm:$0xf]
      %v1123 = vld [vmem:[%s1108 + $0x54] sm:$0xf]
      %v1124 = vld [vmem:[%s1108 + $0x58] sm:$0xf]
      %v1125 = vld [vmem:[%s3] sm:$0x3]
      %v1126 = vld [vmem:[%s1108 + $0x8] sm:$0x1]
      %v1127 = vld [vmem:[%s1108 + $0x14] sm:$0x1]
      %v1128 = vld [vmem:[%s1108 + $0x20] sm:$0x1]
      %v1129 = vld [vmem:[%s1108 + $0x2c] sm:$0x1]
      %v1130 = vld [vmem:[%s1108 + $0x38] sm:$0x1]
      %v1131 = vld [vmem:[%s1108 + $0x44] sm:$0x1]
      %v1132 = vld [vmem:[%s1108 + $0x50] sm:$0x1]
      %v1133 = vld [vmem:[%s1108 + $0x5c] sm:$0x1]
      %vm1134 = vsmask.f32 3328
      %vm1135 = vsmask.f32 7440
      %vm1136 = vmor %vm1134, %vm1135
      %v1138 = vshrl.u32 %v1109, 16
      %v1140 = vrot.slane %v1138, 4
      %v1141 = vshll.u32 %v1109, 16
      %v1143 = vrot.slane %v1141, 5
      %v1144 = vor.u32 %v1140, %v1143
      %v1145 = vrot.slane %v1144, 4
      %v1147 = vshll.u32 %v1110, 16
      %v1149 = vrot.slane %v1147, 5
      %v1150 = vsel %vm1136, %v1145, %v1149
      %v1151 = vshrl.u32 %v1110, 16
      %v1153 = vrot.slane %v1151, 4
      %v1154 = vor.u32 %v1153, %v1149
      %v1155 = vrot.slane %v1154, 4
      %v1157 = vshll.u32 %v1126, 16
      %v1159 = vrot.slane %v1157, 5
      %v1160 = vsel %vm1136, %v1155, %v1159
      %v1162 = vshrl.u32 %v1111, 16
      %v1164 = vrot.slane %v1162, 4
      %v1165 = vshll.u32 %v1111, 16
      %v1167 = vrot.slane %v1165, 5
      %v1168 = vor.u32 %v1164, %v1167
      %v1169 = vrot.slane %v1168, 4
      %v1171 = vshll.u32 %v1112, 16
      %v1173 = vrot.slane %v1171, 5
      %v1174 = vsel %vm1136, %v1169, %v1173
      %v1175 = vshrl.u32 %v1112, 16
      %v1177 = vrot.slane %v1175, 4
      %v1178 = vor.u32 %v1177, %v1173
      %v1179 = vrot.slane %v1178, 4
      %v1181 = vshll.u32 %v1127, 16
      %v1183 = vrot.slane %v1181, 5
      %v1184 = vsel %vm1136, %v1179, %v1183
      %v1186 = vshrl.u32 %v1113, 16
      %v1188 = vrot.slane %v1186, 4
      %v1189 = vshll.u32 %v1113, 16
      %v1191 = vrot.slane %v1189, 5
      %v1192 = vor.u32 %v1188, %v1191
      %v1193 = vrot.slane %v1192, 4
      %v1195 = vshll.u32 %v1114, 16
      %v1197 = vrot.slane %v1195, 5
      %v1198 = vsel %vm1136, %v1193, %v1197
      %v1199 = vshrl.u32 %v1114, 16
      %v1201 = vrot.slane %v1199, 4
      %v1202 = vor.u32 %v1201, %v1197
      %v1203 = vrot.slane %v1202, 4
      %v1205 = vshll.u32 %v1128, 16
      %v1207 = vrot.slane %v1205, 5
      %v1208 = vsel %vm1136, %v1203, %v1207
      %v1210 = vshrl.u32 %v1115, 16
      %v1212 = vrot.slane %v1210, 4
      %v1213 = vshll.u32 %v1115, 16
      %v1215 = vrot.slane %v1213, 5
      %v1216 = vor.u32 %v1212, %v1215
      %v1217 = vrot.slane %v1216, 4
      %v1219 = vshll.u32 %v1116, 16
      %v1221 = vrot.slane %v1219, 5
      %v1222 = vsel %vm1136, %v1217, %v1221
      %v1223 = vshrl.u32 %v1116, 16
      %v1225 = vrot.slane %v1223, 4
      %v1226 = vor.u32 %v1225, %v1221
      %v1227 = vrot.slane %v1226, 4
      %v1229 = vshll.u32 %v1129, 16
      %v1231 = vrot.slane %v1229, 5
      %v1232 = vsel %vm1136, %v1227, %v1231
      %v1234 = vshrl.u32 %v1117, 16
      %v1236 = vrot.slane %v1234, 4
      %v1237 = vshll.u32 %v1117, 16
      %v1239 = vrot.slane %v1237, 5
      %v1240 = vor.u32 %v1236, %v1239
      %v1241 = vrot.slane %v1240, 4
      %v1243 = vshll.u32 %v1118, 16
      %v1245 = vrot.slane %v1243, 5
      %v1246 = vsel %vm1136, %v1241, %v1245
      %v1247 = vshrl.u32 %v1118, 16
      %v1249 = vrot.slane %v1247, 4
      %v1250 = vor.u32 %v1249, %v1245
      %v1251 = vrot.slane %v1250, 4
      %v1253 = vshll.u32 %v1130, 16
      %v1255 = vrot.slane %v1253, 5
      %v1256 = vsel %vm1136, %v1251, %v1255
      %v1258 = vshrl.u32 %v1119, 16
      %v1260 = vrot.slane %v1258, 4
      %v1261 = vshll.u32 %v1119, 16
      %v1263 = vrot.slane %v1261, 5
      %v1264 = vor.u32 %v1260, %v1263
      %v1265 = vrot.slane %v1264, 4
      %v1267 = vshll.u32 %v1120, 16
      %v1269 = vrot.slane %v1267, 5
      %v1270 = vsel %vm1136, %v1265, %v1269
      %v1271 = vshrl.u32 %v1120, 16
      %v1273 = vrot.slane %v1271, 4
      %v1274 = vor.u32 %v1273, %v1269
      %v1275 = vrot.slane %v1274, 4
      %v1277 = vshll.u32 %v1131, 16
      %v1279 = vrot.slane %v1277, 5
      %v1280 = vsel %vm1136, %v1275, %v1279
      %v1282 = vshrl.u32 %v1121, 16
      %v1284 = vrot.slane %v1282, 4
      %v1285 = vshll.u32 %v1121, 16
      %v1287 = vrot.slane %v1285, 5
      %v1288 = vor.u32 %v1284, %v1287
      %v1289 = vrot.slane %v1288, 4
      %v1291 = vshll.u32 %v1122, 16
      %v1293 = vrot.slane %v1291, 5
      %v1294 = vsel %vm1136, %v1289, %v1293
      %v1295 = vshrl.u32 %v1122, 16
      %v1297 = vrot.slane %v1295, 4
      %v1298 = vor.u32 %v1297, %v1293
      %v1299 = vrot.slane %v1298, 4
      %v1301 = vshll.u32 %v1132, 16
      %v1303 = vrot.slane %v1301, 5
      %v1304 = vsel %vm1136, %v1299, %v1303
      %v1306 = vshrl.u32 %v1123, 16
      %v1308 = vrot.slane %v1306, 4
      %v1309 = vshll.u32 %v1123, 16
      %v1311 = vrot.slane %v1309, 5
      %v1312 = vor.u32 %v1308, %v1311
      %v1313 = vrot.slane %v1312, 4
      %v1315 = vshll.u32 %v1124, 16
      %v1317 = vrot.slane %v1315, 5
      %v1318 = vsel %vm1136, %v1313, %v1317
      %v1319 = vshrl.u32 %v1124, 16
      %v1321 = vrot.slane %v1319, 4
      %v1322 = vor.u32 %v1321, %v1317
      %v1323 = vrot.slane %v1322, 4
      %v1325 = vshll.u32 %v1133, 16
      %v1327 = vrot.slane %v1325, 5
      %v1328 = vsel %vm1136, %v1323, %v1327
      %s1329 = scalar_lea.vmem %s3, 2
      %v1330 = vld [vmem:[%s1329] sm:$0x3]
      %v1331 = vunpack.c.l.b16 %v1150
      %v1332 = vunpack.c.l.b16 %v1160
      %v1333 = vunpack.c.l.b16 %v1174
      %v1334 = vunpack.c.l.b16 %v1184
      %v1335 = vunpack.c.l.b16 %v1198
      %v1336 = vunpack.c.l.b16 %v1208
      %v1337 = vunpack.c.l.b16 %v1222
      %v1338 = vunpack.c.l.b16 %v1232
      %v1339 = vunpack.c.l.b16 %v1246
      %v1340 = vunpack.c.l.b16 %v1256
      %v1341 = vunpack.c.l.b16 %v1270
      %v1342 = vunpack.c.l.b16 %v1280
      %v1343 = vunpack.c.l.b16 %v1294
      %v1344 = vunpack.c.l.b16 %v1304
      %v1345 = vunpack.c.l.b16 %v1318
      %v1346 = vunpack.c.l.b16 %v1328
      %v1347 = vpack.c.b16 %v1332, %v1331
      %v1348 = vpack.c.b16 %v1334, %v1333
      %v1349 = vpack.c.b16 %v1336, %v1335
      %v1350 = vpack.c.b16 %v1338, %v1337
      %v1351 = vpack.c.b16 %v1340, %v1339
      %v1352 = vpack.c.b16 %v1342, %v1341
      %v1353 = vpack.c.b16 %v1344, %v1343
      %v1354 = vpack.c.b16 %v1346, %v1345
      %vm1355 = vcmask 31744
      %v1357 = vsel %vm1355, %v1347, 0
      %v1360 = vsel %vm1355, %v1348, 0
      %v1363 = vsel %vm1355, %v1349, 0
      %v1366 = vsel %vm1355, %v1350, 0
      %v1369 = vsel %vm1355, %v1351, 0
      %v1372 = vsel %vm1355, %v1352, 0
      %v1375 = vsel %vm1355, %v1353, 0
      %v1378 = vsel %vm1355, %v1354, 0
      %vm1380 = vcmask 1041408
      %v1382 = vsel %vm1380, %v1330, 0
      %1384 = vmatprep.subr.bf16.mxu0 0
      %1385 = vmatpush1.bf16.msra.mxu0 0
      %1386 = vmatprep.subr.bf16.mxu0 0
      %1387 = vmatpush1.bf16.msra.mxu0 0
      %1388 = vmatprep.subr.bf16.mxu0 0
      %1389 = vmatpush1.bf16.msra.mxu0 0
      %1390 = vmatprep.subr.bf16.mxu0 0
      %1391 = vmatpush1.bf16.msra.mxu0 0
      %1392 = vmatprep.subr.bf16.mxu0 0
      %1393 = vmatpush1.bf16.msra.mxu0 0
      %1394 = vmatprep.subr.bf16.mxu0 0
      %1395 = vmatpush1.bf16.msra.mxu0 0
      %1396 = vmatprep.subr.bf16.mxu0 0
      %1397 = vmatpush1.bf16.msra.mxu0 0
      %1398 = vmatprep.subr.bf16.mxu0 0
      %1399 = vmatpush1.bf16.msra.mxu0 %v1382
      %1400 = vmatprep.subr.bf16.mxu0 0
      %1401 = vmatpush2.bf16.msra.mxu0 0
      %1402 = vmatprep.subr.bf16.mxu0 0
      %1403 = vmatpush2.bf16.msra.mxu0 0
      %1404 = vmatprep.subr.bf16.mxu0 0
      %1405 = vmatpush2.bf16.msra.mxu0 0
      %1406 = vmatprep.subr.bf16.mxu0 0
      %1407 = vmatpush2.bf16.msra.mxu0 0
      %1408 = vmatprep.subr.bf16.mxu0 0
      %1409 = vmatpush2.bf16.msra.mxu0 0
      %1410 = vmatprep.subr.bf16.mxu0 0
      %1411 = vmatpush2.bf16.msra.mxu0 0
      %1412 = vmatprep.subr.bf16.mxu0 0
      %1413 = vmatpush2.bf16.msra.mxu0 0
      %1414 = vmatprep.subr.bf16.mxu0 0
      %1415 = vmatpush2.bf16.msra.mxu0 0
      %1416 = vmatprep.mubr.bf16.mxu0 0
      %1417 = vmatmul.mubr.bf16.gmra.mxu0 %v1357
      %v1418 = vpop.f32.mrf.mxu0
      %v1419 = vadd.f32 0.0, %v1418
      %v1420 = vpop.f32.mrf.mxu0
      %v1421 = vpop.f32.mrf.mxu0
      %v1422 = vadd.f32 0.0, %v1421
      %v1423 = vpop.f32.mrf.mxu0
      %1424 = vmatprep.mubr.bf16.mxu0 0
      %1425 = vmatmul.mubr.bf16.gmra.mxu0 %v1360
      %v1426 = vpop.f32.mrf.mxu0
      %v1427 = vadd.f32 0.0, %v1426
      %v1428 = vpop.f32.mrf.mxu0
      %v1429 = vpop.f32.mrf.mxu0
      %v1430 = vadd.f32 0.0, %v1429
      %v1431 = vpop.f32.mrf.mxu0
      %1432 = vmatprep.mubr.bf16.mxu0 0
      %1433 = vmatmul.mubr.bf16.gmra.mxu0 %v1363
      %v1434 = vpop.f32.mrf.mxu0
      %v1435 = vadd.f32 0.0, %v1434
      %v1436 = vpop.f32.mrf.mxu0
      %v1437 = vpop.f32.mrf.mxu0
      %v1438 = vadd.f32 0.0, %v1437
      %v1439 = vpop.f32.mrf.mxu0
      %1440 = vmatprep.mubr.bf16.mxu0 0
      %1441 = vmatmul.mubr.bf16.gmra.mxu0 %v1366
      %v1442 = vpop.f32.mrf.mxu0
      %v1443 = vadd.f32 0.0, %v1442
      %v1444 = vpop.f32.mrf.mxu0
      %v1445 = vpop.f32.mrf.mxu0
      %v1446 = vadd.f32 0.0, %v1445
      %v1447 = vpop.f32.mrf.mxu0
      %1448 = vmatprep.mubr.bf16.mxu0 0
      %1449 = vmatmul.mubr.bf16.gmra.mxu0 %v1369
      %v1450 = vpop.f32.mrf.mxu0
      %v1451 = vadd.f32 0.0, %v1450
      %v1452 = vpop.f32.mrf.mxu0
      %v1453 = vpop.f32.mrf.mxu0
      %v1454 = vadd.f32 0.0, %v1453
      %v1455 = vpop.f32.mrf.mxu0
      %1456 = vmatprep.mubr.bf16.mxu0 0
      %1457 = vmatmul.mubr.bf16.gmra.mxu0 %v1372
      %v1458 = vpop.f32.mrf.mxu0
      %v1459 = vadd.f32 0.0, %v1458
      %v1460 = vpop.f32.mrf.mxu0
      %v1461 = vpop.f32.mrf.mxu0
      %v1462 = vadd.f32 0.0, %v1461
      %v1463 = vpop.f32.mrf.mxu0
      %1464 = vmatprep.mubr.bf16.mxu0 0
      %1465 = vmatmul.mubr.bf16.gmra.mxu0 %v1375
      %v1466 = vpop.f32.mrf.mxu0
      %v1467 = vadd.f32 0.0, %v1466
      %v1468 = vpop.f32.mrf.mxu0
      %v1469 = vpop.f32.mrf.mxu0
      %v1470 = vadd.f32 0.0, %v1469
      %v1471 = vpop.f32.mrf.mxu0
      %1472 = vmatprep.mubr.bf16.mxu0 0
      %1473 = vmatmul.mubr.bf16.gmra.mxu0 %v1378
      %v1474 = vpop.f32.mrf.mxu0
      %v1475 = vadd.f32 0.0, %v1474
      %v1476 = vpop.f32.mrf.mxu0
      %v1477 = vpop.f32.mrf.mxu0
      %v1478 = vadd.f32 0.0, %v1477
      %v1479 = vpop.f32.mrf.mxu0
      %1480 = vdwg.mxu0
      %v1497 = vunpack.c.l.b16 %v1109
      %v1498 = vunpack.c.l.b16 %v1110
      %v1499 = vunpack.c.l.b16 %v1111
      %v1500 = vunpack.c.l.b16 %v1112
      %v1501 = vunpack.c.l.b16 %v1113
      %v1502 = vunpack.c.l.b16 %v1114
      %v1503 = vunpack.c.l.b16 %v1115
      %v1504 = vunpack.c.l.b16 %v1116
      %v1505 = vunpack.c.l.b16 %v1117
      %v1506 = vunpack.c.l.b16 %v1118
      %v1507 = vunpack.c.l.b16 %v1119
      %v1508 = vunpack.c.l.b16 %v1120
      %v1509 = vunpack.c.l.b16 %v1121
      %v1510 = vunpack.c.l.b16 %v1122
      %v1511 = vunpack.c.l.b16 %v1123
      %v1512 = vunpack.c.l.b16 %v1124
      %v1513 = vpack.c.b16 %v1498, %v1497
      %v1514 = vpack.c.b16 %v1500, %v1499
      %v1515 = vpack.c.b16 %v1502, %v1501
      %v1516 = vpack.c.b16 %v1504, %v1503
      %v1517 = vpack.c.b16 %v1506, %v1505
      %v1518 = vpack.c.b16 %v1508, %v1507
      %v1519 = vpack.c.b16 %v1510, %v1509
      %v1520 = vpack.c.b16 %v1512, %v1511
      %v1522 = vsel %vm1355, %v1513, 0
      %v1525 = vsel %vm1355, %v1514, 0
      %v1528 = vsel %vm1355, %v1515, 0
      %v1531 = vsel %vm1355, %v1516, 0
      %v1534 = vsel %vm1355, %v1517, 0
      %v1537 = vsel %vm1355, %v1518, 0
      %v1540 = vsel %vm1355, %v1519, 0
      %v1543 = vsel %vm1355, %v1520, 0
      %v1546 = vsel %vm1380, %v1125, 0
      %1548 = vmatprep.subr.bf16.mxu0 0
      %1549 = vmatpush1.bf16.msra.mxu0 0
      %1550 = vmatprep.subr.bf16.mxu0 0
      %1551 = vmatpush1.bf16.msra.mxu0 0
      %1552 = vmatprep.subr.bf16.mxu0 0
      %1553 = vmatpush1.bf16.msra.mxu0 0
      %1554 = vmatprep.subr.bf16.mxu0 0
      %1555 = vmatpush1.bf16.msra.mxu0 0
      %1556 = vmatprep.subr.bf16.mxu0 0
      %1557 = vmatpush1.bf16.msra.mxu0 0
      %1558 = vmatprep.subr.bf16.mxu0 0
      %1559 = vmatpush1.bf16.msra.mxu0 0
      %1560 = vmatprep.subr.bf16.mxu0 0
      %1561 = vmatpush1.bf16.msra.mxu0 0
      %1562 = vmatprep.subr.bf16.mxu0 0
      %1563 = vmatpush1.bf16.msra.mxu0 %v1546
      %1564 = vmatprep.subr.bf16.mxu0 0
      %1565 = vmatpush2.bf16.msra.mxu0 0
      %1566 = vmatprep.subr.bf16.mxu0 0
      %1567 = vmatpush2.bf16.msra.mxu0 0
      %1568 = vmatprep.subr.bf16.mxu0 0
      %1569 = vmatpush2.bf16.msra.mxu0 0
      %1570 = vmatprep.subr.bf16.mxu0 0
      %1571 = vmatpush2.bf16.msra.mxu0 0
      %1572 = vmatprep.subr.bf16.mxu0 0
      %1573 = vmatpush2.bf16.msra.mxu0 0
      %1574 = vmatprep.subr.bf16.mxu0 0
      %1575 = vmatpush2.bf16.msra.mxu0 0
      %1576 = vmatprep.subr.bf16.mxu0 0
      %1577 = vmatpush2.bf16.msra.mxu0 0
      %1578 = vmatprep.subr.bf16.mxu0 0
      %1579 = vmatpush2.bf16.msra.mxu0 0
      %1580 = vmatprep.mubr.bf16.mxu0 0
      %1581 = vmatmul.mubr.bf16.gmra.mxu0 %v1522
      %v1582 = vpop.f32.mrf.mxu0
      %v1583 = vadd.f32 %v1419, %v1582
      %v1584 = vpop.f32.mrf.mxu0
      %v1585 = vpop.f32.mrf.mxu0
      %v1586 = vadd.f32 %v1422, %v1585
      %v1587 = vpop.f32.mrf.mxu0
      %1588 = vmatprep.mubr.bf16.mxu0 0
      %1589 = vmatmul.mubr.bf16.gmra.mxu0 %v1525
      %v1590 = vpop.f32.mrf.mxu0
      %v1591 = vadd.f32 %v1427, %v1590
      %v1592 = vpop.f32.mrf.mxu0
      %v1593 = vpop.f32.mrf.mxu0
      %v1594 = vadd.f32 %v1430, %v1593
      %v1595 = vpop.f32.mrf.mxu0
      %1596 = vmatprep.mubr.bf16.mxu0 0
      %1597 = vmatmul.mubr.bf16.gmra.mxu0 %v1528
      %v1598 = vpop.f32.mrf.mxu0
      %v1599 = vadd.f32 %v1435, %v1598
      %v1600 = vpop.f32.mrf.mxu0
      %v1601 = vpop.f32.mrf.mxu0
      %v1602 = vadd.f32 %v1438, %v1601
      %v1603 = vpop.f32.mrf.mxu0
      %1604 = vmatprep.mubr.bf16.mxu0 0
      %1605 = vmatmul.mubr.bf16.gmra.mxu0 %v1531
      %v1606 = vpop.f32.mrf.mxu0
      %v1607 = vadd.f32 %v1443, %v1606
      %v1608 = vpop.f32.mrf.mxu0
      %v1609 = vpop.f32.mrf.mxu0
      %v1610 = vadd.f32 %v1446, %v1609
      %v1611 = vpop.f32.mrf.mxu0
      %1612 = vmatprep.mubr.bf16.mxu0 0
      %1613 = vmatmul.mubr.bf16.gmra.mxu0 %v1534
      %v1614 = vpop.f32.mrf.mxu0
      %v1615 = vadd.f32 %v1451, %v1614
      %v1616 = vpop.f32.mrf.mxu0
      %v1617 = vpop.f32.mrf.mxu0
      %v1618 = vadd.f32 %v1454, %v1617
      %v1619 = vpop.f32.mrf.mxu0
      %1620 = vmatprep.mubr.bf16.mxu0 0
      %1621 = vmatmul.mubr.bf16.gmra.mxu0 %v1537
      %v1622 = vpop.f32.mrf.mxu0
      %v1623 = vadd.f32 %v1459, %v1622
      %v1624 = vpop.f32.mrf.mxu0
      %v1625 = vpop.f32.mrf.mxu0
      %v1626 = vadd.f32 %v1462, %v1625
      %v1627 = vpop.f32.mrf.mxu0
      %1628 = vmatprep.mubr.bf16.mxu0 0
      %1629 = vmatmul.mubr.bf16.gmra.mxu0 %v1540
      %v1630 = vpop.f32.mrf.mxu0
      %v1631 = vadd.f32 %v1467, %v1630
      %v1632 = vpop.f32.mrf.mxu0
      %v1633 = vpop.f32.mrf.mxu0
      %v1634 = vadd.f32 %v1470, %v1633
      %v1635 = vpop.f32.mrf.mxu0
      %1636 = vmatprep.mubr.bf16.mxu0 0
      %1637 = vmatmul.mubr.bf16.gmra.mxu0 %v1543
      %v1638 = vpop.f32.mrf.mxu0
      %v1639 = vadd.f32 %v1475, %v1638
      %v1640 = vpop.f32.mrf.mxu0
      %v1641 = vpop.f32.mrf.mxu0
      %v1642 = vadd.f32 %v1478, %v1641
      %v1643 = vpop.f32.mrf.mxu0
      %1644 = vdwg.mxu0
      %v1645 = vld [vmem:[%s1108] sm:$0xe]
      %v1646 = vld [vmem:[%s1108 + $0xc] sm:$0xe]
      %v1647 = vld [vmem:[%s1108 + $0x18] sm:$0xe]
      %v1648 = vld [vmem:[%s1108 + $0x24] sm:$0xe]
      %v1649 = vld [vmem:[%s1108 + $0x30] sm:$0xe]
      %v1650 = vld [vmem:[%s1108 + $0x3c] sm:$0xe]
      %v1651 = vld [vmem:[%s1108 + $0x48] sm:$0xe]
      %v1652 = vld [vmem:[%s1108 + $0x54] sm:$0xe]
      %vm1669 = vcmask 1042432
      %vm1670 = vcmask 1046532
      %vm1671 = vmor %vm1669, %vm1670
      %v1672 = vrot.slane %v1645, 5
      %v1673 = vrot.slane %v1672, 4
      %v1674 = vrot.slane %v1110, 5
      %v1675 = vsel %vm1671, %v1673, %v1674
      %v1676 = vrot.slane %v1674, 4
      %v1677 = vrot.slane %v1126, 5
      %v1678 = vsel %vm1671, %v1676, %v1677
      %v1679 = vrot.slane %v1646, 5
      %v1680 = vrot.slane %v1679, 4
      %v1681 = vrot.slane %v1112, 5
      %v1682 = vsel %vm1671, %v1680, %v1681
      %v1683 = vrot.slane %v1681, 4
      %v1684 = vrot.slane %v1127, 5
      %v1685 = vsel %vm1671, %v1683, %v1684
      %v1686 = vrot.slane %v1647, 5
      %v1687 = vrot.slane %v1686, 4
      %v1688 = vrot.slane %v1114, 5
      %v1689 = vsel %vm1671, %v1687, %v1688
      %v1690 = vrot.slane %v1688, 4
      %v1691 = vrot.slane %v1128, 5
      %v1692 = vsel %vm1671, %v1690, %v1691
      %v1693 = vrot.slane %v1648, 5
      %v1694 = vrot.slane %v1693, 4
      %v1695 = vrot.slane %v1116, 5
      %v1696 = vsel %vm1671, %v1694, %v1695
      %v1697 = vrot.slane %v1695, 4
      %v1698 = vrot.slane %v1129, 5
      %v1699 = vsel %vm1671, %v1697, %v1698
      %v1700 = vrot.slane %v1649, 5
      %v1701 = vrot.slane %v1700, 4
      %v1702 = vrot.slane %v1118, 5
      %v1703 = vsel %vm1671, %v1701, %v1702
      %v1704 = vrot.slane %v1702, 4
      %v1705 = vrot.slane %v1130, 5
      %v1706 = vsel %vm1671, %v1704, %v1705
      %v1707 = vrot.slane %v1650, 5
      %v1708 = vrot.slane %v1707, 4
      %v1709 = vrot.slane %v1120, 5
      %v1710 = vsel %vm1671, %v1708, %v1709
      %v1711 = vrot.slane %v1709, 4
      %v1712 = vrot.slane %v1131, 5
      %v1713 = vsel %vm1671, %v1711, %v1712
      %v1714 = vrot.slane %v1651, 5
      %v1715 = vrot.slane %v1714, 4
      %v1716 = vrot.slane %v1122, 5
      %v1717 = vsel %vm1671, %v1715, %v1716
      %v1718 = vrot.slane %v1716, 4
      %v1719 = vrot.slane %v1132, 5
      %v1720 = vsel %vm1671, %v1718, %v1719
      %v1721 = vrot.slane %v1652, 5
      %v1722 = vrot.slane %v1721, 4
      %v1723 = vrot.slane %v1124, 5
      %v1724 = vsel %vm1671, %v1722, %v1723
      %v1725 = vrot.slane %v1723, 4
      %v1726 = vrot.slane %v1133, 5
      %v1727 = vsel %vm1671, %v1725, %v1726
      %s1728 = scalar_lea.vmem %s3, 4
      %v1729 = vld [vmem:[%s1728] sm:$0x3]
      %v1730 = vunpack.c.l.b16 %v1675
      %v1731 = vunpack.c.l.b16 %v1678
      %v1732 = vunpack.c.l.b16 %v1682
      %v1733 = vunpack.c.l.b16 %v1685
      %v1734 = vunpack.c.l.b16 %v1689
      %v1735 = vunpack.c.l.b16 %v1692
      %v1736 = vunpack.c.l.b16 %v1696
      %v1737 = vunpack.c.l.b16 %v1699
      %v1738 = vunpack.c.l.b16 %v1703
      %v1739 = vunpack.c.l.b16 %v1706
      %v1740 = vunpack.c.l.b16 %v1710
      %v1741 = vunpack.c.l.b16 %v1713
      %v1742 = vunpack.c.l.b16 %v1717
      %v1743 = vunpack.c.l.b16 %v1720
      %v1744 = vunpack.c.l.b16 %v1724
      %v1745 = vunpack.c.l.b16 %v1727
      %v1746 = vpack.c.b16 %v1731, %v1730
      %v1747 = vpack.c.b16 %v1733, %v1732
      %v1748 = vpack.c.b16 %v1735, %v1734
      %v1749 = vpack.c.b16 %v1737, %v1736
      %v1750 = vpack.c.b16 %v1739, %v1738
      %v1751 = vpack.c.b16 %v1741, %v1740
      %v1752 = vpack.c.b16 %v1743, %v1742
      %v1753 = vpack.c.b16 %v1745, %v1744
      %v1755 = vsel %vm1355, %v1746, 0
      %v1758 = vsel %vm1355, %v1747, 0
      %v1761 = vsel %vm1355, %v1748, 0
      %v1764 = vsel %vm1355, %v1749, 0
      %v1767 = vsel %vm1355, %v1750, 0
      %v1770 = vsel %vm1355, %v1751, 0
      %v1773 = vsel %vm1355, %v1752, 0
      %v1776 = vsel %vm1355, %v1753, 0
      %v1779 = vsel %vm1380, %v1729, 0
      %1781 = vmatprep.subr.bf16.mxu0 0
      %1782 = vmatpush1.bf16.msra.mxu0 0
      %1783 = vmatprep.subr.bf16.mxu0 0
      %1784 = vmatpush1.bf16.msra.mxu0 0
      %1785 = vmatprep.subr.bf16.mxu0 0
      %1786 = vmatpush1.bf16.msra.mxu0 0
      %1787 = vmatprep.subr.bf16.mxu0 0
      %1788 = vmatpush1.bf16.msra.mxu0 0
      %1789 = vmatprep.subr.bf16.mxu0 0
      %1790 = vmatpush1.bf16.msra.mxu0 0
      %1791 = vmatprep.subr.bf16.mxu0 0
      %1792 = vmatpush1.bf16.msra.mxu0 0
      %1793 = vmatprep.subr.bf16.mxu0 0
      %1794 = vmatpush1.bf16.msra.mxu0 0
      %1795 = vmatprep.subr.bf16.mxu0 0
      %1796 = vmatpush1.bf16.msra.mxu0 %v1779
      %1797 = vmatprep.subr.bf16.mxu0 0
      %1798 = vmatpush2.bf16.msra.mxu0 0
      %1799 = vmatprep.subr.bf16.mxu0 0
      %1800 = vmatpush2.bf16.msra.mxu0 0
      %1801 = vmatprep.subr.bf16.mxu0 0
      %1802 = vmatpush2.bf16.msra.mxu0 0
      %1803 = vmatprep.subr.bf16.mxu0 0
      %1804 = vmatpush2.bf16.msra.mxu0 0
      %1805 = vmatprep.subr.bf16.mxu0 0
      %1806 = vmatpush2.bf16.msra.mxu0 0
      %1807 = vmatprep.subr.bf16.mxu0 0
      %1808 = vmatpush2.bf16.msra.mxu0 0
      %1809 = vmatprep.subr.bf16.mxu0 0
      %1810 = vmatpush2.bf16.msra.mxu0 0
      %1811 = vmatprep.subr.bf16.mxu0 0
      %1812 = vmatpush2.bf16.msra.mxu0 0
      %1813 = vmatprep.mubr.bf16.mxu0 0
      %1814 = vmatmul.mubr.bf16.gmra.mxu0 %v1755
      %v1815 = vpop.f32.mrf.mxu0
      %v1816 = vadd.f32 0.0, %v1815
      %v1817 = vpop.f32.mrf.mxu0
      %v1818 = vpop.f32.mrf.mxu0
      %v1819 = vadd.f32 0.0, %v1818
      %v1820 = vpop.f32.mrf.mxu0
      %1821 = vmatprep.mubr.bf16.mxu0 0
      %1822 = vmatmul.mubr.bf16.gmra.mxu0 %v1758
      %v1823 = vpop.f32.mrf.mxu0
      %v1824 = vadd.f32 0.0, %v1823
      %v1825 = vpop.f32.mrf.mxu0
      %v1826 = vpop.f32.mrf.mxu0
      %v1827 = vadd.f32 0.0, %v1826
      %v1828 = vpop.f32.mrf.mxu0
      %1829 = vmatprep.mubr.bf16.mxu0 0
      %1830 = vmatmul.mubr.bf16.gmra.mxu0 %v1761
      %v1831 = vpop.f32.mrf.mxu0
      %v1832 = vadd.f32 0.0, %v1831
      %v1833 = vpop.f32.mrf.mxu0
      %v1834 = vpop.f32.mrf.mxu0
      %v1835 = vadd.f32 0.0, %v1834
      %v1836 = vpop.f32.mrf.mxu0
      %1837 = vmatprep.mubr.bf16.mxu0 0
      %1838 = vmatmul.mubr.bf16.gmra.mxu0 %v1764
      %v1839 = vpop.f32.mrf.mxu0
      %v1840 = vadd.f32 0.0, %v1839
      %v1841 = vpop.f32.mrf.mxu0
      %v1842 = vpop.f32.mrf.mxu0
      %v1843 = vadd.f32 0.0, %v1842
      %v1844 = vpop.f32.mrf.mxu0
      %1845 = vmatprep.mubr.bf16.mxu0 0
      %1846 = vmatmul.mubr.bf16.gmra.mxu0 %v1767
      %v1847 = vpop.f32.mrf.mxu0
      %v1848 = vadd.f32 0.0, %v1847
      %v1849 = vpop.f32.mrf.mxu0
      %v1850 = vpop.f32.mrf.mxu0
      %v1851 = vadd.f32 0.0, %v1850
      %v1852 = vpop.f32.mrf.mxu0
      %1853 = vmatprep.mubr.bf16.mxu0 0
      %1854 = vmatmul.mubr.bf16.gmra.mxu0 %v1770
      %v1855 = vpop.f32.mrf.mxu0
      %v1856 = vadd.f32 0.0, %v1855
      %v1857 = vpop.f32.mrf.mxu0
      %v1858 = vpop.f32.mrf.mxu0
      %v1859 = vadd.f32 0.0, %v1858
      %v1860 = vpop.f32.mrf.mxu0
      %1861 = vmatprep.mubr.bf16.mxu0 0
      %1862 = vmatmul.mubr.bf16.gmra.mxu0 %v1773
      %v1863 = vpop.f32.mrf.mxu0
      %v1864 = vadd.f32 0.0, %v1863
      %v1865 = vpop.f32.mrf.mxu0
      %v1866 = vpop.f32.mrf.mxu0
      %v1867 = vadd.f32 0.0, %v1866
      %v1868 = vpop.f32.mrf.mxu0
      %1869 = vmatprep.mubr.bf16.mxu0 0
      %1870 = vmatmul.mubr.bf16.gmra.mxu0 %v1776
      %v1871 = vpop.f32.mrf.mxu0
      %v1872 = vadd.f32 0.0, %v1871
      %v1873 = vpop.f32.mrf.mxu0
      %v1874 = vpop.f32.mrf.mxu0
      %v1875 = vadd.f32 0.0, %v1874
      %v1876 = vpop.f32.mrf.mxu0
      %1877 = vdwg.mxu0
      %v1878 = vadd.f32 %v1583, %v1816
      %v1879 = vadd.f32 %v1586, %v1819
      %v1880 = vadd.f32 %v1591, %v1824
      %v1881 = vadd.f32 %v1594, %v1827
      %v1882 = vadd.f32 %v1599, %v1832
      %v1883 = vadd.f32 %v1602, %v1835
      %v1884 = vadd.f32 %v1607, %v1840
      %v1885 = vadd.f32 %v1610, %v1843
      %v1886 = vadd.f32 %v1615, %v1848
      %v1887 = vadd.f32 %v1618, %v1851
      %v1888 = vadd.f32 %v1623, %v1856
      %v1889 = vadd.f32 %v1626, %v1859
      %v1890 = vadd.f32 %v1631, %v1864
      %v1891 = vadd.f32 %v1634, %v1867
      %v1892 = vadd.f32 %v1639, %v1872
      %v1893 = vadd.f32 %v1642, %v1875
      %s1894 = sadd.s32 %s1105, 1
      %s1895 = smul.u32 %s1894, 3
      %s1896 = smul.addr %s1895, 4
      %s1897 = scalar_lea.vmem [#allocation2], %s1896
      %v1898 = vld [vmem:[%s1897] sm:$0xf]
      %v1899 = vld [vmem:[%s1897 + $0x4] sm:$0xf]
      %v1900 = vld [vmem:[%s1897 + $0xc] sm:$0xf]
      %v1901 = vld [vmem:[%s1897 + $0x10] sm:$0xf]
      %v1902 = vld [vmem:[%s1897 + $0x18] sm:$0xf]
      %v1903 = vld [vmem:[%s1897 + $0x1c] sm:$0xf]
      %v1904 = vld [vmem:[%s1897 + $0x24] sm:$0xf]
      %v1905 = vld [vmem:[%s1897 + $0x28] sm:$0xf]
      %v1906 = vld [vmem:[%s1897 + $0x30] sm:$0xf]
      %v1907 = vld [vmem:[%s1897 + $0x34] sm:$0xf]
      %v1908 = vld [vmem:[%s1897 + $0x3c] sm:$0xf]
      %v1909 = vld [vmem:[%s1897 + $0x40] sm:$0xf]
      %v1910 = vld [vmem:[%s1897 + $0x48] sm:$0xf]
      %v1911 = vld [vmem:[%s1897 + $0x4c] sm:$0xf]
      %v1912 = vld [vmem:[%s1897 + $0x54] sm:$0xf]
      %v1913 = vld [vmem:[%s1897 + $0x58] sm:$0xf]
      %s1914 = scalar_lea.vmem %s3, 6
      %v1915 = vld [vmem:[%s1914] sm:$0x3]
      %v1932 = vunpack.c.l.b16 %v1898
      %v1933 = vunpack.c.l.b16 %v1899
      %v1934 = vunpack.c.l.b16 %v1900
      %v1935 = vunpack.c.l.b16 %v1901
      %v1936 = vunpack.c.l.b16 %v1902
      %v1937 = vunpack.c.l.b16 %v1903
      %v1938 = vunpack.c.l.b16 %v1904
      %v1939 = vunpack.c.l.b16 %v1905
      %v1940 = vunpack.c.l.b16 %v1906
      %v1941 = vunpack.c.l.b16 %v1907
      %v1942 = vunpack.c.l.b16 %v1908
      %v1943 = vunpack.c.l.b16 %v1909
      %v1944 = vunpack.c.l.b16 %v1910
      %v1945 = vunpack.c.l.b16 %v1911
      %v1946 = vunpack.c.l.b16 %v1912
      %v1947 = vunpack.c.l.b16 %v1913
      %v1948 = vpack.c.b16 %v1933, %v1932
      %v1949 = vpack.c.b16 %v1935, %v1934
      %v1950 = vpack.c.b16 %v1937, %v1936
      %v1951 = vpack.c.b16 %v1939, %v1938
      %v1952 = vpack.c.b16 %v1941, %v1940
      %v1953 = vpack.c.b16 %v1943, %v1942
      %v1954 = vpack.c.b16 %v1945, %v1944
      %v1955 = vpack.c.b16 %v1947, %v1946
      %v1957 = vsel %vm1355, %v1948, 0
      %v1960 = vsel %vm1355, %v1949, 0
      %v1963 = vsel %vm1355, %v1950, 0
      %v1966 = vsel %vm1355, %v1951, 0
      %v1969 = vsel %vm1355, %v1952, 0
      %v1972 = vsel %vm1355, %v1953, 0
      %v1975 = vsel %vm1355, %v1954, 0
      %v1978 = vsel %vm1355, %v1955, 0
      %v1981 = vsel %vm1380, %v1915, 0
      %1983 = vmatprep.subr.bf16.mxu0 0
      %1984 = vmatpush1.bf16.msra.mxu0 0
      %1985 = vmatprep.subr.bf16.mxu0 0
      %1986 = vmatpush1.bf16.msra.mxu0 0
      %1987 = vmatprep.subr.bf16.mxu0 0
      %1988 = vmatpush1.bf16.msra.mxu0 0
      %1989 = vmatprep.subr.bf16.mxu0 0
      %1990 = vmatpush1.bf16.msra.mxu0 0
      %1991 = vmatprep.subr.bf16.mxu0 0
      %1992 = vmatpush1.bf16.msra.mxu0 0
      %1993 = vmatprep.subr.bf16.mxu0 0
      %1994 = vmatpush1.bf16.msra.mxu0 0
      %1995 = vmatprep.subr.bf16.mxu0 0
      %1996 = vmatpush1.bf16.msra.mxu0 0
      %1997 = vmatprep.subr.bf16.mxu0 0
      %1998 = vmatpush1.bf16.msra.mxu0 %v1981
      %1999 = vmatprep.subr.bf16.mxu0 0
      %2000 = vmatpush2.bf16.msra.mxu0 0
      %2001 = vmatprep.subr.bf16.mxu0 0
      %2002 = vmatpush2.bf16.msra.mxu0 0
      %2003 = vmatprep.subr.bf16.mxu0 0
      %2004 = vmatpush2.bf16.msra.mxu0 0
      %2005 = vmatprep.subr.bf16.mxu0 0
      %2006 = vmatpush2.bf16.msra.mxu0 0
      %2007 = vmatprep.subr.bf16.mxu0 0
      %2008 = vmatpush2.bf16.msra.mxu0 0
      %2009 = vmatprep.subr.bf16.mxu0 0
      %2010 = vmatpush2.bf16.msra.mxu0 0
      %2011 = vmatprep.subr.bf16.mxu0 0
      %2012 = vmatpush2.bf16.msra.mxu0 0
      %2013 = vmatprep.subr.bf16.mxu0 0
      %2014 = vmatpush2.bf16.msra.mxu0 0
      %2015 = vmatprep.mubr.bf16.mxu0 0
      %2016 = vmatmul.mubr.bf16.gmra.mxu0 %v1957
      %v2017 = vpop.f32.mrf.mxu0
      %v2018 = vadd.f32 0.0, %v2017
      %v2019 = vpop.f32.mrf.mxu0
      %v2020 = vpop.f32.mrf.mxu0
      %v2021 = vadd.f32 0.0, %v2020
      %v2022 = vpop.f32.mrf.mxu0
      %2023 = vmatprep.mubr.bf16.mxu0 0
      %2024 = vmatmul.mubr.bf16.gmra.mxu0 %v1960
      %v2025 = vpop.f32.mrf.mxu0
      %v2026 = vadd.f32 0.0, %v2025
      %v2027 = vpop.f32.mrf.mxu0
      %v2028 = vpop.f32.mrf.mxu0
      %v2029 = vadd.f32 0.0, %v2028
      %v2030 = vpop.f32.mrf.mxu0
      %2031 = vmatprep.mubr.bf16.mxu0 0
      %2032 = vmatmul.mubr.bf16.gmra.mxu0 %v1963
      %v2033 = vpop.f32.mrf.mxu0
      %v2034 = vadd.f32 0.0, %v2033
      %v2035 = vpop.f32.mrf.mxu0
      %v2036 = vpop.f32.mrf.mxu0
      %v2037 = vadd.f32 0.0, %v2036
      %v2038 = vpop.f32.mrf.mxu0
      %2039 = vmatprep.mubr.bf16.mxu0 0
      %2040 = vmatmul.mubr.bf16.gmra.mxu0 %v1966
      %v2041 = vpop.f32.mrf.mxu0
      %v2042 = vadd.f32 0.0, %v2041
      %v2043 = vpop.f32.mrf.mxu0
      %v2044 = vpop.f32.mrf.mxu0
      %v2045 = vadd.f32 0.0, %v2044
      %v2046 = vpop.f32.mrf.mxu0
      %2047 = vmatprep.mubr.bf16.mxu0 0
      %2048 = vmatmul.mubr.bf16.gmra.mxu0 %v1969
      %v2049 = vpop.f32.mrf.mxu0
      %v2050 = vadd.f32 0.0, %v2049
      %v2051 = vpop.f32.mrf.mxu0
      %v2052 = vpop.f32.mrf.mxu0
      %v2053 = vadd.f32 0.0, %v2052
      %v2054 = vpop.f32.mrf.mxu0
      %2055 = vmatprep.mubr.bf16.mxu0 0
      %2056 = vmatmul.mubr.bf16.gmra.mxu0 %v1972
      %v2057 = vpop.f32.mrf.mxu0
      %v2058 = vadd.f32 0.0, %v2057
      %v2059 = vpop.f32.mrf.mxu0
      %v2060 = vpop.f32.mrf.mxu0
      %v2061 = vadd.f32 0.0, %v2060
      %v2062 = vpop.f32.mrf.mxu0
      %2063 = vmatprep.mubr.bf16.mxu0 0
      %2064 = vmatmul.mubr.bf16.gmra.mxu0 %v1975
      %v2065 = vpop.f32.mrf.mxu0
      %v2066 = vadd.f32 0.0, %v2065
      %v2067 = vpop.f32.mrf.mxu0
      %v2068 = vpop.f32.mrf.mxu0
      %v2069 = vadd.f32 0.0, %v2068
      %v2070 = vpop.f32.mrf.mxu0
      %2071 = vmatprep.mubr.bf16.mxu0 0
      %2072 = vmatmul.mubr.bf16.gmra.mxu0 %v1978
      %v2073 = vpop.f32.mrf.mxu0
      %v2074 = vadd.f32 0.0, %v2073
      %v2075 = vpop.f32.mrf.mxu0
      %v2076 = vpop.f32.mrf.mxu0
      %v2077 = vadd.f32 0.0, %v2076
      %v2078 = vpop.f32.mrf.mxu0
      %2079 = vdwg.mxu0
      %v2080 = vadd.f32 %v1878, %v2018
      %v2081 = vadd.f32 %v1879, %v2021
      %v2082 = vadd.f32 %v1880, %v2026
      %v2083 = vadd.f32 %v1881, %v2029
      %v2084 = vadd.f32 %v1882, %v2034
      %v2085 = vadd.f32 %v1883, %v2037
      %v2086 = vadd.f32 %v1884, %v2042
      %v2087 = vadd.f32 %v1885, %v2045
      %v2088 = vadd.f32 %v1886, %v2050
      %v2089 = vadd.f32 %v1887, %v2053
      %v2090 = vadd.f32 %v1888, %v2058
      %v2091 = vadd.f32 %v1889, %v2061
      %v2092 = vadd.f32 %v1890, %v2066
      %v2093 = vadd.f32 %v1891, %v2069
      %v2094 = vadd.f32 %v1892, %v2074
      %v2095 = vadd.f32 %v1893, %v2077
      %v2096 = vld [vmem:[%s1897] sm:$0xf]
      %v2097 = vld [vmem:[%s1897 + $0x4] sm:$0xf]
      %v2098 = vld [vmem:[%s1897 + $0x8] sm:$0x1]
      %v2099 = vld [vmem:[%s1897 + $0xc] sm:$0xf]
      %v2100 = vld [vmem:[%s1897 + $0x10] sm:$0xf]
      %v2101 = vld [vmem:[%s1897 + $0x14] sm:$0x1]
      %v2102 = vld [vmem:[%s1897 + $0x18] sm:$0xf]
      %v2103 = vld [vmem:[%s1897 + $0x1c] sm:$0xf]
      %v2104 = vld [vmem:[%s1897 + $0x20] sm:$0x1]
      %v2105 = vld [vmem:[%s1897 + $0x24] sm:$0xf]
      %v2106 = vld [vmem:[%s1897 + $0x28] sm:$0xf]
      %v2107 = vld [vmem:[%s1897 + $0x2c] sm:$0x1]
      %v2108 = vld [vmem:[%s1897 + $0x30] sm:$0xf]
      %v2109 = vld [vmem:[%s1897 + $0x34] sm:$0xf]
      %v2110 = vld [vmem:[%s1897 + $0x38] sm:$0x1]
      %v2111 = vld [vmem:[%s1897 + $0x3c] sm:$0xf]
      %v2112 = vld [vmem:[%s1897 + $0x40] sm:$0xf]
      %v2113 = vld [vmem:[%s1897 + $0x44] sm:$0x1]
      %v2114 = vld [vmem:[%s1897 + $0x48] sm:$0xf]
      %v2115 = vld [vmem:[%s1897 + $0x4c] sm:$0xf]
      %v2116 = vld [vmem:[%s1897 + $0x50] sm:$0x1]
      %v2117 = vld [vmem:[%s1897 + $0x54] sm:$0xf]
      %v2118 = vld [vmem:[%s1897 + $0x58] sm:$0xf]
      %v2119 = vld [vmem:[%s1897 + $0x5c] sm:$0x1]
      %v2121 = vshrl.u32 %v2096, 16
      %v2123 = vrot.slane %v2121, 4
      %v2124 = vshll.u32 %v2096, 16
      %v2126 = vrot.slane %v2124, 5
      %v2127 = vor.u32 %v2123, %v2126
      %v2128 = vrot.slane %v2127, 4
      %v2130 = vshll.u32 %v2097, 16
      %v2132 = vrot.slane %v2130, 5
      %v2133 = vsel %vm1136, %v2128, %v2132
      %v2134 = vshrl.u32 %v2097, 16
      %v2136 = vrot.slane %v2134, 4
      %v2137 = vor.u32 %v2136, %v2132
      %v2138 = vrot.slane %v2137, 4
      %v2140 = vshll.u32 %v2098, 16
      %v2142 = vrot.slane %v2140, 5
      %v2143 = vsel %vm1136, %v2138, %v2142
      %v2145 = vshrl.u32 %v2099, 16
      %v2147 = vrot.slane %v2145, 4
      %v2148 = vshll.u32 %v2099, 16
      %v2150 = vrot.slane %v2148, 5
      %v2151 = vor.u32 %v2147, %v2150
      %v2152 = vrot.slane %v2151, 4
      %v2154 = vshll.u32 %v2100, 16
      %v2156 = vrot.slane %v2154, 5
      %v2157 = vsel %vm1136, %v2152, %v2156
      %v2158 = vshrl.u32 %v2100, 16
      %v2160 = vrot.slane %v2158, 4
      %v2161 = vor.u32 %v2160, %v2156
      %v2162 = vrot.slane %v2161, 4
      %v2164 = vshll.u32 %v2101, 16
      %v2166 = vrot.slane %v2164, 5
      %v2167 = vsel %vm1136, %v2162, %v2166
      %v2169 = vshrl.u32 %v2102, 16
      %v2171 = vrot.slane %v2169, 4
      %v2172 = vshll.u32 %v2102, 16
      %v2174 = vrot.slane %v2172, 5
      %v2175 = vor.u32 %v2171, %v2174
      %v2176 = vrot.slane %v2175, 4
      %v2178 = vshll.u32 %v2103, 16
      %v2180 = vrot.slane %v2178, 5
      %v2181 = vsel %vm1136, %v2176, %v2180
      %v2182 = vshrl.u32 %v2103, 16
      %v2184 = vrot.slane %v2182, 4
      %v2185 = vor.u32 %v2184, %v2180
      %v2186 = vrot.slane %v2185, 4
      %v2188 = vshll.u32 %v2104, 16
      %v2190 = vrot.slane %v2188, 5
      %v2191 = vsel %vm1136, %v2186, %v2190
      %v2193 = vshrl.u32 %v2105, 16
      %v2195 = vrot.slane %v2193, 4
      %v2196 = vshll.u32 %v2105, 16
      %v2198 = vrot.slane %v2196, 5
      %v2199 = vor.u32 %v2195, %v2198
      %v2200 = vrot.slane %v2199, 4
      %v2202 = vshll.u32 %v2106, 16
      %v2204 = vrot.slane %v2202, 5
      %v2205 = vsel %vm1136, %v2200, %v2204
      %v2206 = vshrl.u32 %v2106, 16
      %v2208 = vrot.slane %v2206, 4
      %v2209 = vor.u32 %v2208, %v2204
      %v2210 = vrot.slane %v2209, 4
      %v2212 = vshll.u32 %v2107, 16
      %v2214 = vrot.slane %v2212, 5
      %v2215 = vsel %vm1136, %v2210, %v2214
      %v2217 = vshrl.u32 %v2108, 16
      %v2219 = vrot.slane %v2217, 4
      %v2220 = vshll.u32 %v2108, 16
      %v2222 = vrot.slane %v2220, 5
      %v2223 = vor.u32 %v2219, %v2222
      %v2224 = vrot.slane %v2223, 4
      %v2226 = vshll.u32 %v2109, 16
      %v2228 = vrot.slane %v2226, 5
      %v2229 = vsel %vm1136, %v2224, %v2228
      %v2230 = vshrl.u32 %v2109, 16
      %v2232 = vrot.slane %v2230, 4
      %v2233 = vor.u32 %v2232, %v2228
      %v2234 = vrot.slane %v2233, 4
      %v2236 = vshll.u32 %v2110, 16
      %v2238 = vrot.slane %v2236, 5
      %v2239 = vsel %vm1136, %v2234, %v2238
      %v2241 = vshrl.u32 %v2111, 16
      %v2243 = vrot.slane %v2241, 4
      %v2244 = vshll.u32 %v2111, 16
      %v2246 = vrot.slane %v2244, 5
      %v2247 = vor.u32 %v2243, %v2246
      %v2248 = vrot.slane %v2247, 4
      %v2250 = vshll.u32 %v2112, 16
      %v2252 = vrot.slane %v2250, 5
      %v2253 = vsel %vm1136, %v2248, %v2252
      %v2254 = vshrl.u32 %v2112, 16
      %v2256 = vrot.slane %v2254, 4
      %v2257 = vor.u32 %v2256, %v2252
      %v2258 = vrot.slane %v2257, 4
      %v2260 = vshll.u32 %v2113, 16
      %v2262 = vrot.slane %v2260, 5
      %v2263 = vsel %vm1136, %v2258, %v2262
      %v2265 = vshrl.u32 %v2114, 16
      %v2267 = vrot.slane %v2265, 4
      %v2268 = vshll.u32 %v2114, 16
      %v2270 = vrot.slane %v2268, 5
      %v2271 = vor.u32 %v2267, %v2270
      %v2272 = vrot.slane %v2271, 4
      %v2274 = vshll.u32 %v2115, 16
      %v2276 = vrot.slane %v2274, 5
      %v2277 = vsel %vm1136, %v2272, %v2276
      %v2278 = vshrl.u32 %v2115, 16
      %v2280 = vrot.slane %v2278, 4
      %v2281 = vor.u32 %v2280, %v2276
      %v2282 = vrot.slane %v2281, 4
      %v2284 = vshll.u32 %v2116, 16
      %v2286 = vrot.slane %v2284, 5
      %v2287 = vsel %vm1136, %v2282, %v2286
      %v2289 = vshrl.u32 %v2117, 16
      %v2291 = vrot.slane %v2289, 4
      %v2292 = vshll.u32 %v2117, 16
      %v2294 = vrot.slane %v2292, 5
      %v2295 = vor.u32 %v2291, %v2294
      %v2296 = vrot.slane %v2295, 4
      %v2298 = vshll.u32 %v2118, 16
      %v2300 = vrot.slane %v2298, 5
      %v2301 = vsel %vm1136, %v2296, %v2300
      %v2302 = vshrl.u32 %v2118, 16
      %v2304 = vrot.slane %v2302, 4
      %v2305 = vor.u32 %v2304, %v2300
      %v2306 = vrot.slane %v2305, 4
      %v2308 = vshll.u32 %v2119, 16
      %v2310 = vrot.slane %v2308, 5
      %v2311 = vsel %vm1136, %v2306, %v2310
      %s2312 = scalar_lea.vmem %s3, 8
      %v2313 = vld [vmem:[%s2312] sm:$0x3]
      %v2314 = vunpack.c.l.b16 %v2133
      %v2315 = vunpack.c.l.b16 %v2143
      %v2316 = vunpack.c.l.b16 %v2157
      %v2317 = vunpack.c.l.b16 %v2167
      %v2318 = vunpack.c.l.b16 %v2181
      %v2319 = vunpack.c.l.b16 %v2191
      %v2320 = vunpack.c.l.b16 %v2205
      %v2321 = vunpack.c.l.b16 %v2215
      %v2322 = vunpack.c.l.b16 %v2229
      %v2323 = vunpack.c.l.b16 %v2239
      %v2324 = vunpack.c.l.b16 %v2253
      %v2325 = vunpack.c.l.b16 %v2263
      %v2326 = vunpack.c.l.b16 %v2277
      %v2327 = vunpack.c.l.b16 %v2287
      %v2328 = vunpack.c.l.b16 %v2301
      %v2329 = vunpack.c.l.b16 %v2311
      %v2330 = vpack.c.b16 %v2315, %v2314
      %v2331 = vpack.c.b16 %v2317, %v2316
      %v2332 = vpack.c.b16 %v2319, %v2318
      %v2333 = vpack.c.b16 %v2321, %v2320
      %v2334 = vpack.c.b16 %v2323, %v2322
      %v2335 = vpack.c.b16 %v2325, %v2324
      %v2336 = vpack.c.b16 %v2327, %v2326
      %v2337 = vpack.c.b16 %v2329, %v2328
      %v2339 = vsel %vm1355, %v2330, 0
      %v2342 = vsel %vm1355, %v2331, 0
      %v2345 = vsel %vm1355, %v2332, 0
      %v2348 = vsel %vm1355, %v2333, 0
      %v2351 = vsel %vm1355, %v2334, 0
      %v2354 = vsel %vm1355, %v2335, 0
      %v2357 = vsel %vm1355, %v2336, 0
      %v2360 = vsel %vm1355, %v2337, 0
      %v2363 = vsel %vm1380, %v2313, 0
      %2365 = vmatprep.subr.bf16.mxu0 0
      %2366 = vmatpush1.bf16.msra.mxu0 0
      %2367 = vmatprep.subr.bf16.mxu0 0
      %2368 = vmatpush1.bf16.msra.mxu0 0
      %2369 = vmatprep.subr.bf16.mxu0 0
      %2370 = vmatpush1.bf16.msra.mxu0 0
      %2371 = vmatprep.subr.bf16.mxu0 0
      %2372 = vmatpush1.bf16.msra.mxu0 0
      %2373 = vmatprep.subr.bf16.mxu0 0
      %2374 = vmatpush1.bf16.msra.mxu0 0
      %2375 = vmatprep.subr.bf16.mxu0 0
      %2376 = vmatpush1.bf16.msra.mxu0 0
      %2377 = vmatprep.subr.bf16.mxu0 0
      %2378 = vmatpush1.bf16.msra.mxu0 0
      %2379 = vmatprep.subr.bf16.mxu0 0
      %2380 = vmatpush1.bf16.msra.mxu0 %v2363
      %2381 = vmatprep.subr.bf16.mxu0 0
      %2382 = vmatpush2.bf16.msra.mxu0 0
      %2383 = vmatprep.subr.bf16.mxu0 0
      %2384 = vmatpush2.bf16.msra.mxu0 0
      %2385 = vmatprep.subr.bf16.mxu0 0
      %2386 = vmatpush2.bf16.msra.mxu0 0
      %2387 = vmatprep.subr.bf16.mxu0 0
      %2388 = vmatpush2.bf16.msra.mxu0 0
      %2389 = vmatprep.subr.bf16.mxu0 0
      %2390 = vmatpush2.bf16.msra.mxu0 0
      %2391 = vmatprep.subr.bf16.mxu0 0
      %2392 = vmatpush2.bf16.msra.mxu0 0
      %2393 = vmatprep.subr.bf16.mxu0 0
      %2394 = vmatpush2.bf16.msra.mxu0 0
      %2395 = vmatprep.subr.bf16.mxu0 0
      %2396 = vmatpush2.bf16.msra.mxu0 0
      %2397 = vmatprep.mubr.bf16.mxu0 0
      %2398 = vmatmul.mubr.bf16.gmra.mxu0 %v2339
      %v2399 = vpop.f32.mrf.mxu0
      %v2400 = vadd.f32 0.0, %v2399
      %v2401 = vpop.f32.mrf.mxu0
      %v2402 = vpop.f32.mrf.mxu0
      %v2403 = vadd.f32 0.0, %v2402
      %v2404 = vpop.f32.mrf.mxu0
      %2405 = vmatprep.mubr.bf16.mxu0 0
      %2406 = vmatmul.mubr.bf16.gmra.mxu0 %v2342
      %v2407 = vpop.f32.mrf.mxu0
      %v2408 = vadd.f32 0.0, %v2407
      %v2409 = vpop.f32.mrf.mxu0
      %v2410 = vpop.f32.mrf.mxu0
      %v2411 = vadd.f32 0.0, %v2410
      %v2412 = vpop.f32.mrf.mxu0
      %2413 = vmatprep.mubr.bf16.mxu0 0
      %2414 = vmatmul.mubr.bf16.gmra.mxu0 %v2345
      %v2415 = vpop.f32.mrf.mxu0
      %v2416 = vadd.f32 0.0, %v2415
      %v2417 = vpop.f32.mrf.mxu0
      %v2418 = vpop.f32.mrf.mxu0
      %v2419 = vadd.f32 0.0, %v2418
      %v2420 = vpop.f32.mrf.mxu0
      %2421 = vmatprep.mubr.bf16.mxu0 0
      %2422 = vmatmul.mubr.bf16.gmra.mxu0 %v2348
      %v2423 = vpop.f32.mrf.mxu0
      %v2424 = vadd.f32 0.0, %v2423
      %v2425 = vpop.f32.mrf.mxu0
      %v2426 = vpop.f32.mrf.mxu0
      %v2427 = vadd.f32 0.0, %v2426
      %v2428 = vpop.f32.mrf.mxu0
      %2429 = vmatprep.mubr.bf16.mxu0 0
      %2430 = vmatmul.mubr.bf16.gmra.mxu0 %v2351
      %v2431 = vpop.f32.mrf.mxu0
      %v2432 = vadd.f32 0.0, %v2431
      %v2433 = vpop.f32.mrf.mxu0
      %v2434 = vpop.f32.mrf.mxu0
      %v2435 = vadd.f32 0.0, %v2434
      %v2436 = vpop.f32.mrf.mxu0
      %2437 = vmatprep.mubr.bf16.mxu0 0
      %2438 = vmatmul.mubr.bf16.gmra.mxu0 %v2354
      %v2439 = vpop.f32.mrf.mxu0
      %v2440 = vadd.f32 0.0, %v2439
      %v2441 = vpop.f32.mrf.mxu0
      %v2442 = vpop.f32.mrf.mxu0
      %v2443 = vadd.f32 0.0, %v2442
      %v2444 = vpop.f32.mrf.mxu0
      %2445 = vmatprep.mubr.bf16.mxu0 0
      %2446 = vmatmul.mubr.bf16.gmra.mxu0 %v2357
      %v2447 = vpop.f32.mrf.mxu0
      %v2448 = vadd.f32 0.0, %v2447
      %v2449 = vpop.f32.mrf.mxu0
      %v2450 = vpop.f32.mrf.mxu0
      %v2451 = vadd.f32 0.0, %v2450
      %v2452 = vpop.f32.mrf.mxu0
      %2453 = vmatprep.mubr.bf16.mxu0 0
      %2454 = vmatmul.mubr.bf16.gmra.mxu0 %v2360
      %v2455 = vpop.f32.mrf.mxu0
      %v2456 = vadd.f32 0.0, %v2455
      %v2457 = vpop.f32.mrf.mxu0
      %v2458 = vpop.f32.mrf.mxu0
      %v2459 = vadd.f32 0.0, %v2458
      %v2460 = vpop.f32.mrf.mxu0
      %2461 = vdwg.mxu0
      %v2462 = vadd.f32 %v2080, %v2400
      %v2463 = vadd.f32 %v2081, %v2403
      %v2464 = vadd.f32 %v2082, %v2408
      %v2465 = vadd.f32 %v2083, %v2411
      %v2466 = vadd.f32 %v2084, %v2416
      %v2467 = vadd.f32 %v2085, %v2419
      %v2468 = vadd.f32 %v2086, %v2424
      %v2469 = vadd.f32 %v2087, %v2427
      %v2470 = vadd.f32 %v2088, %v2432
      %v2471 = vadd.f32 %v2089, %v2435
      %v2472 = vadd.f32 %v2090, %v2440
      %v2473 = vadd.f32 %v2091, %v2443
      %v2474 = vadd.f32 %v2092, %v2448
      %v2475 = vadd.f32 %v2093, %v2451
      %v2476 = vadd.f32 %v2094, %v2456
      %v2477 = vadd.f32 %v2095, %v2459
      %v2478 = vld [vmem:[%s1897] sm:$0xe]
      %v2479 = vld [vmem:[%s1897 + $0xc] sm:$0xe]
      %v2480 = vld [vmem:[%s1897 + $0x18] sm:$0xe]
      %v2481 = vld [vmem:[%s1897 + $0x24] sm:$0xe]
      %v2482 = vld [vmem:[%s1897 + $0x30] sm:$0xe]
      %v2483 = vld [vmem:[%s1897 + $0x3c] sm:$0xe]
      %v2484 = vld [vmem:[%s1897 + $0x48] sm:$0xe]
      %v2485 = vld [vmem:[%s1897 + $0x54] sm:$0xe]
      %v2510 = vrot.slane %v2478, 5
      %v2511 = vrot.slane %v2510, 4
      %v2512 = vrot.slane %v2097, 5
      %v2513 = vsel %vm1671, %v2511, %v2512
      %v2514 = vrot.slane %v2512, 4
      %v2515 = vrot.slane %v2098, 5
      %v2516 = vsel %vm1671, %v2514, %v2515
      %v2517 = vrot.slane %v2479, 5
      %v2518 = vrot.slane %v2517, 4
      %v2519 = vrot.slane %v2100, 5
      %v2520 = vsel %vm1671, %v2518, %v2519
      %v2521 = vrot.slane %v2519, 4
      %v2522 = vrot.slane %v2101, 5
      %v2523 = vsel %vm1671, %v2521, %v2522
      %v2524 = vrot.slane %v2480, 5
      %v2525 = vrot.slane %v2524, 4
      %v2526 = vrot.slane %v2103, 5
      %v2527 = vsel %vm1671, %v2525, %v2526
      %v2528 = vrot.slane %v2526, 4
      %v2529 = vrot.slane %v2104, 5
      %v2530 = vsel %vm1671, %v2528, %v2529
      %v2531 = vrot.slane %v2481, 5
      %v2532 = vrot.slane %v2531, 4
      %v2533 = vrot.slane %v2106, 5
      %v2534 = vsel %vm1671, %v2532, %v2533
      %v2535 = vrot.slane %v2533, 4
      %v2536 = vrot.slane %v2107, 5
      %v2537 = vsel %vm1671, %v2535, %v2536
      %v2538 = vrot.slane %v2482, 5
      %v2539 = vrot.slane %v2538, 4
      %v2540 = vrot.slane %v2109, 5
      %v2541 = vsel %vm1671, %v2539, %v2540
      %v2542 = vrot.slane %v2540, 4
      %v2543 = vrot.slane %v2110, 5
      %v2544 = vsel %vm1671, %v2542, %v2543
      %v2545 = vrot.slane %v2483, 5
      %v2546 = vrot.slane %v2545, 4
      %v2547 = vrot.slane %v2112, 5
      %v2548 = vsel %vm1671, %v2546, %v2547
      %v2549 = vrot.slane %v2547, 4
      %v2550 = vrot.slane %v2113, 5
      %v2551 = vsel %vm1671, %v2549, %v2550
      %v2552 = vrot.slane %v2484, 5
      %v2553 = vrot.slane %v2552, 4
      %v2554 = vrot.slane %v2115, 5
      %v2555 = vsel %vm1671, %v2553, %v2554
      %v2556 = vrot.slane %v2554, 4
      %v2557 = vrot.slane %v2116, 5
      %v2558 = vsel %vm1671, %v2556, %v2557
      %v2559 = vrot.slane %v2485, 5
      %v2560 = vrot.slane %v2559, 4
      %v2561 = vrot.slane %v2118, 5
      %v2562 = vsel %vm1671, %v2560, %v2561
      %v2563 = vrot.slane %v2561, 4
      %v2564 = vrot.slane %v2119, 5
      %v2565 = vsel %vm1671, %v2563, %v2564
      %s2566 = scalar_lea.vmem %s3, 10
      %v2567 = vld [vmem:[%s2566] sm:$0x3]
      %v2568 = vunpack.c.l.b16 %v2513
      %v2569 = vunpack.c.l.b16 %v2516
      %v2570 = vunpack.c.l.b16 %v2520
      %v2571 = vunpack.c.l.b16 %v2523
      %v2572 = vunpack.c.l.b16 %v2527
      %v2573 = vunpack.c.l.b16 %v2530
      %v2574 = vunpack.c.l.b16 %v2534
      %v2575 = vunpack.c.l.b16 %v2537
      %v2576 = vunpack.c.l.b16 %v2541
      %v2577 = vunpack.c.l.b16 %v2544
      %v2578 = vunpack.c.l.b16 %v2548
      %v2579 = vunpack.c.l.b16 %v2551
      %v2580 = vunpack.c.l.b16 %v2555
      %v2581 = vunpack.c.l.b16 %v2558
      %v2582 = vunpack.c.l.b16 %v2562
      %v2583 = vunpack.c.l.b16 %v2565
      %v2584 = vpack.c.b16 %v2569, %v2568
      %v2585 = vpack.c.b16 %v2571, %v2570
      %v2586 = vpack.c.b16 %v2573, %v2572
      %v2587 = vpack.c.b16 %v2575, %v2574
      %v2588 = vpack.c.b16 %v2577, %v2576
      %v2589 = vpack.c.b16 %v2579, %v2578
      %v2590 = vpack.c.b16 %v2581, %v2580
      %v2591 = vpack.c.b16 %v2583, %v2582
      %v2593 = vsel %vm1355, %v2584, 0
      %v2596 = vsel %vm1355, %v2585, 0
      %v2599 = vsel %vm1355, %v2586, 0
      %v2602 = vsel %vm1355, %v2587, 0
      %v2605 = vsel %vm1355, %v2588, 0
      %v2608 = vsel %vm1355, %v2589, 0
      %v2611 = vsel %vm1355, %v2590, 0
      %v2614 = vsel %vm1355, %v2591, 0
      %v2617 = vsel %vm1380, %v2567, 0
      %2619 = vmatprep.subr.bf16.mxu0 0
      %2620 = vmatpush1.bf16.msra.mxu0 0
      %2621 = vmatprep.subr.bf16.mxu0 0
      %2622 = vmatpush1.bf16.msra.mxu0 0
      %2623 = vmatprep.subr.bf16.mxu0 0
      %2624 = vmatpush1.bf16.msra.mxu0 0
      %2625 = vmatprep.subr.bf16.mxu0 0
      %2626 = vmatpush1.bf16.msra.mxu0 0
      %2627 = vmatprep.subr.bf16.mxu0 0
      %2628 = vmatpush1.bf16.msra.mxu0 0
      %2629 = vmatprep.subr.bf16.mxu0 0
      %2630 = vmatpush1.bf16.msra.mxu0 0
      %2631 = vmatprep.subr.bf16.mxu0 0
      %2632 = vmatpush1.bf16.msra.mxu0 0
      %2633 = vmatprep.subr.bf16.mxu0 0
      %2634 = vmatpush1.bf16.msra.mxu0 %v2617
      %2635 = vmatprep.subr.bf16.mxu0 0
      %2636 = vmatpush2.bf16.msra.mxu0 0
      %2637 = vmatprep.subr.bf16.mxu0 0
      %2638 = vmatpush2.bf16.msra.mxu0 0
      %2639 = vmatprep.subr.bf16.mxu0 0
      %2640 = vmatpush2.bf16.msra.mxu0 0
      %2641 = vmatprep.subr.bf16.mxu0 0
      %2642 = vmatpush2.bf16.msra.mxu0 0
      %2643 = vmatprep.subr.bf16.mxu0 0
      %2644 = vmatpush2.bf16.msra.mxu0 0
      %2645 = vmatprep.subr.bf16.mxu0 0
      %2646 = vmatpush2.bf16.msra.mxu0 0
      %2647 = vmatprep.subr.bf16.mxu0 0
      %2648 = vmatpush2.bf16.msra.mxu0 0
      %2649 = vmatprep.subr.bf16.mxu0 0
      %2650 = vmatpush2.bf16.msra.mxu0 0
      %2651 = vmatprep.mubr.bf16.mxu0 0
      %2652 = vmatmul.mubr.bf16.gmra.mxu0 %v2593
      %v2653 = vpop.f32.mrf.mxu0
      %v2654 = vadd.f32 0.0, %v2653
      %v2655 = vpop.f32.mrf.mxu0
      %v2656 = vpop.f32.mrf.mxu0
      %v2657 = vadd.f32 0.0, %v2656
      %v2658 = vpop.f32.mrf.mxu0
      %2659 = vmatprep.mubr.bf16.mxu0 0
      %2660 = vmatmul.mubr.bf16.gmra.mxu0 %v2596
      %v2661 = vpop.f32.mrf.mxu0
      %v2662 = vadd.f32 0.0, %v2661
      %v2663 = vpop.f32.mrf.mxu0
      %v2664 = vpop.f32.mrf.mxu0
      %v2665 = vadd.f32 0.0, %v2664
      %v2666 = vpop.f32.mrf.mxu0
      %2667 = vmatprep.mubr.bf16.mxu0 0
      %2668 = vmatmul.mubr.bf16.gmra.mxu0 %v2599
      %v2669 = vpop.f32.mrf.mxu0
      %v2670 = vadd.f32 0.0, %v2669
      %v2671 = vpop.f32.mrf.mxu0
      %v2672 = vpop.f32.mrf.mxu0
      %v2673 = vadd.f32 0.0, %v2672
      %v2674 = vpop.f32.mrf.mxu0
      %2675 = vmatprep.mubr.bf16.mxu0 0
      %2676 = vmatmul.mubr.bf16.gmra.mxu0 %v2602
      %v2677 = vpop.f32.mrf.mxu0
      %v2678 = vadd.f32 0.0, %v2677
      %v2679 = vpop.f32.mrf.mxu0
      %v2680 = vpop.f32.mrf.mxu0
      %v2681 = vadd.f32 0.0, %v2680
      %v2682 = vpop.f32.mrf.mxu0
      %2683 = vmatprep.mubr.bf16.mxu0 0
      %2684 = vmatmul.mubr.bf16.gmra.mxu0 %v2605
      %v2685 = vpop.f32.mrf.mxu0
      %v2686 = vadd.f32 0.0, %v2685
      %v2687 = vpop.f32.mrf.mxu0
      %v2688 = vpop.f32.mrf.mxu0
      %v2689 = vadd.f32 0.0, %v2688
      %v2690 = vpop.f32.mrf.mxu0
      %2691 = vmatprep.mubr.bf16.mxu0 0
      %2692 = vmatmul.mubr.bf16.gmra.mxu0 %v2608
      %v2693 = vpop.f32.mrf.mxu0
      %v2694 = vadd.f32 0.0, %v2693
      %v2695 = vpop.f32.mrf.mxu0
      %v2696 = vpop.f32.mrf.mxu0
      %v2697 = vadd.f32 0.0, %v2696
      %v2698 = vpop.f32.mrf.mxu0
      %2699 = vmatprep.mubr.bf16.mxu0 0
      %2700 = vmatmul.mubr.bf16.gmra.mxu0 %v2611
      %v2701 = vpop.f32.mrf.mxu0
      %v2702 = vadd.f32 0.0, %v2701
      %v2703 = vpop.f32.mrf.mxu0
      %v2704 = vpop.f32.mrf.mxu0
      %v2705 = vadd.f32 0.0, %v2704
      %v2706 = vpop.f32.mrf.mxu0
      %2707 = vmatprep.mubr.bf16.mxu0 0
      %2708 = vmatmul.mubr.bf16.gmra.mxu0 %v2614
      %v2709 = vpop.f32.mrf.mxu0
      %v2710 = vadd.f32 0.0, %v2709
      %v2711 = vpop.f32.mrf.mxu0
      %v2712 = vpop.f32.mrf.mxu0
      %v2713 = vadd.f32 0.0, %v2712
      %v2714 = vpop.f32.mrf.mxu0
      %2715 = vdwg.mxu0
      %v2716 = vadd.f32 %v2462, %v2654
      %v2717 = vadd.f32 %v2463, %v2657
      %v2718 = vadd.f32 %v2464, %v2662
      %v2719 = vadd.f32 %v2465, %v2665
      %v2720 = vadd.f32 %v2466, %v2670
      %v2721 = vadd.f32 %v2467, %v2673
      %v2722 = vadd.f32 %v2468, %v2678
      %v2723 = vadd.f32 %v2469, %v2681
      %v2724 = vadd.f32 %v2470, %v2686
      %v2725 = vadd.f32 %v2471, %v2689
      %v2726 = vadd.f32 %v2472, %v2694
      %v2727 = vadd.f32 %v2473, %v2697
      %v2728 = vadd.f32 %v2474, %v2702
      %v2729 = vadd.f32 %v2475, %v2705
      %v2730 = vadd.f32 %v2476, %v2710
      %v2731 = vadd.f32 %v2477, %v2713
      %s2732 = sadd.s32 %s1105, 2
      %s2733 = smul.u32 %s2732, 3
      %s2734 = smul.addr %s2733, 4
      %s2735 = scalar_lea.vmem [#allocation2], %s2734
      %v2736 = vld [vmem:[%s2735] sm:$0xf]
      %v2737 = vld [vmem:[%s2735 + $0x4] sm:$0xf]
      %v2738 = vld [vmem:[%s2735 + $0xc] sm:$0xf]
      %v2739 = vld [vmem:[%s2735 + $0x10] sm:$0xf]
      %v2740 = vld [vmem:[%s2735 + $0x18] sm:$0xf]
      %v2741 = vld [vmem:[%s2735 + $0x1c] sm:$0xf]
      %v2742 = vld [vmem:[%s2735 + $0x24] sm:$0xf]
      %v2743 = vld [vmem:[%s2735 + $0x28] sm:$0xf]
      %v2744 = vld [vmem:[%s2735 + $0x30] sm:$0xf]
      %v2745 = vld [vmem:[%s2735 + $0x34] sm:$0xf]
      %v2746 = vld [vmem:[%s2735 + $0x3c] sm:$0xf]
      %v2747 = vld [vmem:[%s2735 + $0x40] sm:$0xf]
      %v2748 = vld [vmem:[%s2735 + $0x48] sm:$0xf]
      %v2749 = vld [vmem:[%s2735 + $0x4c] sm:$0xf]
      %v2750 = vld [vmem:[%s2735 + $0x54] sm:$0xf]
      %v2751 = vld [vmem:[%s2735 + $0x58] sm:$0xf]
      %s2752 = scalar_lea.vmem %s3, 12
      %v2753 = vld [vmem:[%s2752] sm:$0x3]
      %v2770 = vunpack.c.l.b16 %v2736
      %v2771 = vunpack.c.l.b16 %v2737
      %v2772 = vunpack.c.l.b16 %v2738
      %v2773 = vunpack.c.l.b16 %v2739
      %v2774 = vunpack.c.l.b16 %v2740
      %v2775 = vunpack.c.l.b16 %v2741
      %v2776 = vunpack.c.l.b16 %v2742
      %v2777 = vunpack.c.l.b16 %v2743
      %v2778 = vunpack.c.l.b16 %v2744
      %v2779 = vunpack.c.l.b16 %v2745
      %v2780 = vunpack.c.l.b16 %v2746
      %v2781 = vunpack.c.l.b16 %v2747
      %v2782 = vunpack.c.l.b16 %v2748
      %v2783 = vunpack.c.l.b16 %v2749
      %v2784 = vunpack.c.l.b16 %v2750
      %v2785 = vunpack.c.l.b16 %v2751
      %v2786 = vpack.c.b16 %v2771, %v2770
      %v2787 = vpack.c.b16 %v2773, %v2772
      %v2788 = vpack.c.b16 %v2775, %v2774
      %v2789 = vpack.c.b16 %v2777, %v2776
      %v2790 = vpack.c.b16 %v2779, %v2778
      %v2791 = vpack.c.b16 %v2781, %v2780
      %v2792 = vpack.c.b16 %v2783, %v2782
      %v2793 = vpack.c.b16 %v2785, %v2784
      %v2795 = vsel %vm1355, %v2786, 0
      %v2798 = vsel %vm1355, %v2787, 0
      %v2801 = vsel %vm1355, %v2788, 0
      %v2804 = vsel %vm1355, %v2789, 0
      %v2807 = vsel %vm1355, %v2790, 0
      %v2810 = vsel %vm1355, %v2791, 0
      %v2813 = vsel %vm1355, %v2792, 0
      %v2816 = vsel %vm1355, %v2793, 0
      %v2819 = vsel %vm1380, %v2753, 0
      %2821 = vmatprep.subr.bf16.mxu0 0
      %2822 = vmatpush1.bf16.msra.mxu0 0
      %2823 = vmatprep.subr.bf16.mxu0 0
      %2824 = vmatpush1.bf16.msra.mxu0 0
      %2825 = vmatprep.subr.bf16.mxu0 0
      %2826 = vmatpush1.bf16.msra.mxu0 0
      %2827 = vmatprep.subr.bf16.mxu0 0
      %2828 = vmatpush1.bf16.msra.mxu0 0
      %2829 = vmatprep.subr.bf16.mxu0 0
      %2830 = vmatpush1.bf16.msra.mxu0 0
      %2831 = vmatprep.subr.bf16.mxu0 0
      %2832 = vmatpush1.bf16.msra.mxu0 0
      %2833 = vmatprep.subr.bf16.mxu0 0
      %2834 = vmatpush1.bf16.msra.mxu0 0
      %2835 = vmatprep.subr.bf16.mxu0 0
      %2836 = vmatpush1.bf16.msra.mxu0 %v2819
      %2837 = vmatprep.subr.bf16.mxu0 0
      %2838 = vmatpush2.bf16.msra.mxu0 0
      %2839 = vmatprep.subr.bf16.mxu0 0
      %2840 = vmatpush2.bf16.msra.mxu0 0
      %2841 = vmatprep.subr.bf16.mxu0 0
      %2842 = vmatpush2.bf16.msra.mxu0 0
      %2843 = vmatprep.subr.bf16.mxu0 0
      %2844 = vmatpush2.bf16.msra.mxu0 0
      %2845 = vmatprep.subr.bf16.mxu0 0
      %2846 = vmatpush2.bf16.msra.mxu0 0
      %2847 = vmatprep.subr.bf16.mxu0 0
      %2848 = vmatpush2.bf16.msra.mxu0 0
      %2849 = vmatprep.subr.bf16.mxu0 0
      %2850 = vmatpush2.bf16.msra.mxu0 0
      %2851 = vmatprep.subr.bf16.mxu0 0
      %2852 = vmatpush2.bf16.msra.mxu0 0
      %2853 = vmatprep.mubr.bf16.mxu0 0
      %2854 = vmatmul.mubr.bf16.gmra.mxu0 %v2795
      %v2855 = vpop.f32.mrf.mxu0
      %v2856 = vadd.f32 0.0, %v2855
      %v2857 = vpop.f32.mrf.mxu0
      %v2858 = vpop.f32.mrf.mxu0
      %v2859 = vadd.f32 0.0, %v2858
      %v2860 = vpop.f32.mrf.mxu0
      %2861 = vmatprep.mubr.bf16.mxu0 0
      %2862 = vmatmul.mubr.bf16.gmra.mxu0 %v2798
      %v2863 = vpop.f32.mrf.mxu0
      %v2864 = vadd.f32 0.0, %v2863
      %v2865 = vpop.f32.mrf.mxu0
      %v2866 = vpop.f32.mrf.mxu0
      %v2867 = vadd.f32 0.0, %v2866
      %v2868 = vpop.f32.mrf.mxu0
      %2869 = vmatprep.mubr.bf16.mxu0 0
      %2870 = vmatmul.mubr.bf16.gmra.mxu0 %v2801
      %v2871 = vpop.f32.mrf.mxu0
      %v2872 = vadd.f32 0.0, %v2871
      %v2873 = vpop.f32.mrf.mxu0
      %v2874 = vpop.f32.mrf.mxu0
      %v2875 = vadd.f32 0.0, %v2874
      %v2876 = vpop.f32.mrf.mxu0
      %2877 = vmatprep.mubr.bf16.mxu0 0
      %2878 = vmatmul.mubr.bf16.gmra.mxu0 %v2804
      %v2879 = vpop.f32.mrf.mxu0
      %v2880 = vadd.f32 0.0, %v2879
      %v2881 = vpop.f32.mrf.mxu0
      %v2882 = vpop.f32.mrf.mxu0
      %v2883 = vadd.f32 0.0, %v2882
      %v2884 = vpop.f32.mrf.mxu0
      %2885 = vmatprep.mubr.bf16.mxu0 0
      %2886 = vmatmul.mubr.bf16.gmra.mxu0 %v2807
      %v2887 = vpop.f32.mrf.mxu0
      %v2888 = vadd.f32 0.0, %v2887
      %v2889 = vpop.f32.mrf.mxu0
      %v2890 = vpop.f32.mrf.mxu0
      %v2891 = vadd.f32 0.0, %v2890
      %v2892 = vpop.f32.mrf.mxu0
      %2893 = vmatprep.mubr.bf16.mxu0 0
      %2894 = vmatmul.mubr.bf16.gmra.mxu0 %v2810
      %v2895 = vpop.f32.mrf.mxu0
      %v2896 = vadd.f32 0.0, %v2895
      %v2897 = vpop.f32.mrf.mxu0
      %v2898 = vpop.f32.mrf.mxu0
      %v2899 = vadd.f32 0.0, %v2898
      %v2900 = vpop.f32.mrf.mxu0
      %2901 = vmatprep.mubr.bf16.mxu0 0
      %2902 = vmatmul.mubr.bf16.gmra.mxu0 %v2813
      %v2903 = vpop.f32.mrf.mxu0
      %v2904 = vadd.f32 0.0, %v2903
      %v2905 = vpop.f32.mrf.mxu0
      %v2906 = vpop.f32.mrf.mxu0
      %v2907 = vadd.f32 0.0, %v2906
      %v2908 = vpop.f32.mrf.mxu0
      %2909 = vmatprep.mubr.bf16.mxu0 0
      %2910 = vmatmul.mubr.bf16.gmra.mxu0 %v2816
      %v2911 = vpop.f32.mrf.mxu0
      %v2912 = vadd.f32 0.0, %v2911
      %v2913 = vpop.f32.mrf.mxu0
      %v2914 = vpop.f32.mrf.mxu0
      %v2915 = vadd.f32 0.0, %v2914
      %v2916 = vpop.f32.mrf.mxu0
      %2917 = vdwg.mxu0
      %v2918 = vadd.f32 %v2716, %v2856
      %v2919 = vadd.f32 %v2717, %v2859
      %v2920 = vadd.f32 %v2718, %v2864
      %v2921 = vadd.f32 %v2719, %v2867
      %v2922 = vadd.f32 %v2720, %v2872
      %v2923 = vadd.f32 %v2721, %v2875
      %v2924 = vadd.f32 %v2722, %v2880
      %v2925 = vadd.f32 %v2723, %v2883
      %v2926 = vadd.f32 %v2724, %v2888
      %v2927 = vadd.f32 %v2725, %v2891
      %v2928 = vadd.f32 %v2726, %v2896
      %v2929 = vadd.f32 %v2727, %v2899
      %v2930 = vadd.f32 %v2728, %v2904
      %v2931 = vadd.f32 %v2729, %v2907
      %v2932 = vadd.f32 %v2730, %v2912
      %v2933 = vadd.f32 %v2731, %v2915
      %v2934 = vld [vmem:[%s2735] sm:$0xf]
      %v2935 = vld [vmem:[%s2735 + $0x4] sm:$0xf]
      %v2936 = vld [vmem:[%s2735 + $0x8] sm:$0x1]
      %v2937 = vld [vmem:[%s2735 + $0xc] sm:$0xf]
      %v2938 = vld [vmem:[%s2735 + $0x10] sm:$0xf]
      %v2939 = vld [vmem:[%s2735 + $0x14] sm:$0x1]
      %v2940 = vld [vmem:[%s2735 + $0x18] sm:$0xf]
      %v2941 = vld [vmem:[%s2735 + $0x1c] sm:$0xf]
      %v2942 = vld [vmem:[%s2735 + $0x20] sm:$0x1]
      %v2943 = vld [vmem:[%s2735 + $0x24] sm:$0xf]
      %v2944 = vld [vmem:[%s2735 + $0x28] sm:$0xf]
      %v2945 = vld [vmem:[%s2735 + $0x2c] sm:$0x1]
      %v2946 = vld [vmem:[%s2735 + $0x30] sm:$0xf]
      %v2947 = vld [vmem:[%s2735 + $0x34] sm:$0xf]
      %v2948 = vld [vmem:[%s2735 + $0x38] sm:$0x1]
      %v2949 = vld [vmem:[%s2735 + $0x3c] sm:$0xf]
      %v2950 = vld [vmem:[%s2735 + $0x40] sm:$0xf]
      %v2951 = vld [vmem:[%s2735 + $0x44] sm:$0x1]
      %v2952 = vld [vmem:[%s2735 + $0x48] sm:$0xf]
      %v2953 = vld [vmem:[%s2735 + $0x4c] sm:$0xf]
      %v2954 = vld [vmem:[%s2735 + $0x50] sm:$0x1]
      %v2955 = vld [vmem:[%s2735 + $0x54] sm:$0xf]
      %v2956 = vld [vmem:[%s2735 + $0x58] sm:$0xf]
      %v2957 = vld [vmem:[%s2735 + $0x5c] sm:$0x1]
      %v2959 = vshrl.u32 %v2934, 16
      %v2961 = vrot.slane %v2959, 4
      %v2962 = vshll.u32 %v2934, 16
      %v2964 = vrot.slane %v2962, 5
      %v2965 = vor.u32 %v2961, %v2964
      %v2966 = vrot.slane %v2965, 4
      %v2968 = vshll.u32 %v2935, 16
      %v2970 = vrot.slane %v2968, 5
      %v2971 = vsel %vm1136, %v2966, %v2970
      %v2972 = vshrl.u32 %v2935, 16
      %v2974 = vrot.slane %v2972, 4
      %v2975 = vor.u32 %v2974, %v2970
      %v2976 = vrot.slane %v2975, 4
      %v2978 = vshll.u32 %v2936, 16
      %v2980 = vrot.slane %v2978, 5
      %v2981 = vsel %vm1136, %v2976, %v2980
      %v2983 = vshrl.u32 %v2937, 16
      %v2985 = vrot.slane %v2983, 4
      %v2986 = vshll.u32 %v2937, 16
      %v2988 = vrot.slane %v2986, 5
      %v2989 = vor.u32 %v2985, %v2988
      %v2990 = vrot.slane %v2989, 4
      %v2992 = vshll.u32 %v2938, 16
      %v2994 = vrot.slane %v2992, 5
      %v2995 = vsel %vm1136, %v2990, %v2994
      %v2996 = vshrl.u32 %v2938, 16
      %v2998 = vrot.slane %v2996, 4
      %v2999 = vor.u32 %v2998, %v2994
      %v3000 = vrot.slane %v2999, 4
      %v3002 = vshll.u32 %v2939, 16
      %v3004 = vrot.slane %v3002, 5
      %v3005 = vsel %vm1136, %v3000, %v3004
      %v3007 = vshrl.u32 %v2940, 16
      %v3009 = vrot.slane %v3007, 4
      %v3010 = vshll.u32 %v2940, 16
      %v3012 = vrot.slane %v3010, 5
      %v3013 = vor.u32 %v3009, %v3012
      %v3014 = vrot.slane %v3013, 4
      %v3016 = vshll.u32 %v2941, 16
      %v3018 = vrot.slane %v3016, 5
      %v3019 = vsel %vm1136, %v3014, %v3018
      %v3020 = vshrl.u32 %v2941, 16
      %v3022 = vrot.slane %v3020, 4
      %v3023 = vor.u32 %v3022, %v3018
      %v3024 = vrot.slane %v3023, 4
      %v3026 = vshll.u32 %v2942, 16
      %v3028 = vrot.slane %v3026, 5
      %v3029 = vsel %vm1136, %v3024, %v3028
      %v3031 = vshrl.u32 %v2943, 16
      %v3033 = vrot.slane %v3031, 4
      %v3034 = vshll.u32 %v2943, 16
      %v3036 = vrot.slane %v3034, 5
      %v3037 = vor.u32 %v3033, %v3036
      %v3038 = vrot.slane %v3037, 4
      %v3040 = vshll.u32 %v2944, 16
      %v3042 = vrot.slane %v3040, 5
      %v3043 = vsel %vm1136, %v3038, %v3042
      %v3044 = vshrl.u32 %v2944, 16
      %v3046 = vrot.slane %v3044, 4
      %v3047 = vor.u32 %v3046, %v3042
      %v3048 = vrot.slane %v3047, 4
      %v3050 = vshll.u32 %v2945, 16
      %v3052 = vrot.slane %v3050, 5
      %v3053 = vsel %vm1136, %v3048, %v3052
      %v3055 = vshrl.u32 %v2946, 16
      %v3057 = vrot.slane %v3055, 4
      %v3058 = vshll.u32 %v2946, 16
      %v3060 = vrot.slane %v3058, 5
      %v3061 = vor.u32 %v3057, %v3060
      %v3062 = vrot.slane %v3061, 4
      %v3064 = vshll.u32 %v2947, 16
      %v3066 = vrot.slane %v3064, 5
      %v3067 = vsel %vm1136, %v3062, %v3066
      %v3068 = vshrl.u32 %v2947, 16
      %v3070 = vrot.slane %v3068, 4
      %v3071 = vor.u32 %v3070, %v3066
      %v3072 = vrot.slane %v3071, 4
      %v3074 = vshll.u32 %v2948, 16
      %v3076 = vrot.slane %v3074, 5
      %v3077 = vsel %vm1136, %v3072, %v3076
      %v3079 = vshrl.u32 %v2949, 16
      %v3081 = vrot.slane %v3079, 4
      %v3082 = vshll.u32 %v2949, 16
      %v3084 = vrot.slane %v3082, 5
      %v3085 = vor.u32 %v3081, %v3084
      %v3086 = vrot.slane %v3085, 4
      %v3088 = vshll.u32 %v2950, 16
      %v3090 = vrot.slane %v3088, 5
      %v3091 = vsel %vm1136, %v3086, %v3090
      %v3092 = vshrl.u32 %v2950, 16
      %v3094 = vrot.slane %v3092, 4
      %v3095 = vor.u32 %v3094, %v3090
      %v3096 = vrot.slane %v3095, 4
      %v3098 = vshll.u32 %v2951, 16
      %v3100 = vrot.slane %v3098, 5
      %v3101 = vsel %vm1136, %v3096, %v3100
      %v3103 = vshrl.u32 %v2952, 16
      %v3105 = vrot.slane %v3103, 4
      %v3106 = vshll.u32 %v2952, 16
      %v3108 = vrot.slane %v3106, 5
      %v3109 = vor.u32 %v3105, %v3108
      %v3110 = vrot.slane %v3109, 4
      %v3112 = vshll.u32 %v2953, 16
      %v3114 = vrot.slane %v3112, 5
      %v3115 = vsel %vm1136, %v3110, %v3114
      %v3116 = vshrl.u32 %v2953, 16
      %v3118 = vrot.slane %v3116, 4
      %v3119 = vor.u32 %v3118, %v3114
      %v3120 = vrot.slane %v3119, 4
      %v3122 = vshll.u32 %v2954, 16
      %v3124 = vrot.slane %v3122, 5
      %v3125 = vsel %vm1136, %v3120, %v3124
      %v3127 = vshrl.u32 %v2955, 16
      %v3129 = vrot.slane %v3127, 4
      %v3130 = vshll.u32 %v2955, 16
      %v3132 = vrot.slane %v3130, 5
      %v3133 = vor.u32 %v3129, %v3132
      %v3134 = vrot.slane %v3133, 4
      %v3136 = vshll.u32 %v2956, 16
      %v3138 = vrot.slane %v3136, 5
      %v3139 = vsel %vm1136, %v3134, %v3138
      %v3140 = vshrl.u32 %v2956, 16
      %v3142 = vrot.slane %v3140, 4
      %v3143 = vor.u32 %v3142, %v3138
      %v3144 = vrot.slane %v3143, 4
      %v3146 = vshll.u32 %v2957, 16
      %v3148 = vrot.slane %v3146, 5
      %v3149 = vsel %vm1136, %v3144, %v3148
      %s3150 = scalar_lea.vmem %s3, 14
      %v3151 = vld [vmem:[%s3150] sm:$0x3]
      %v3152 = vunpack.c.l.b16 %v2971
      %v3153 = vunpack.c.l.b16 %v2981
      %v3154 = vunpack.c.l.b16 %v2995
      %v3155 = vunpack.c.l.b16 %v3005
      %v3156 = vunpack.c.l.b16 %v3019
      %v3157 = vunpack.c.l.b16 %v3029
      %v3158 = vunpack.c.l.b16 %v3043
      %v3159 = vunpack.c.l.b16 %v3053
      %v3160 = vunpack.c.l.b16 %v3067
      %v3161 = vunpack.c.l.b16 %v3077
      %v3162 = vunpack.c.l.b16 %v3091
      %v3163 = vunpack.c.l.b16 %v3101
      %v3164 = vunpack.c.l.b16 %v3115
      %v3165 = vunpack.c.l.b16 %v3125
      %v3166 = vunpack.c.l.b16 %v3139
      %v3167 = vunpack.c.l.b16 %v3149
      %v3168 = vpack.c.b16 %v3153, %v3152
      %v3169 = vpack.c.b16 %v3155, %v3154
      %v3170 = vpack.c.b16 %v3157, %v3156
      %v3171 = vpack.c.b16 %v3159, %v3158
      %v3172 = vpack.c.b16 %v3161, %v3160
      %v3173 = vpack.c.b16 %v3163, %v3162
      %v3174 = vpack.c.b16 %v3165, %v3164
      %v3175 = vpack.c.b16 %v3167, %v3166
      %v3177 = vsel %vm1355, %v3168, 0
      %v3180 = vsel %vm1355, %v3169, 0
      %v3183 = vsel %vm1355, %v3170, 0
      %v3186 = vsel %vm1355, %v3171, 0
      %v3189 = vsel %vm1355, %v3172, 0
      %v3192 = vsel %vm1355, %v3173, 0
      %v3195 = vsel %vm1355, %v3174, 0
      %v3198 = vsel %vm1355, %v3175, 0
      %v3201 = vsel %vm1380, %v3151, 0
      %3203 = vmatprep.subr.bf16.mxu0 0
      %3204 = vmatpush1.bf16.msra.mxu0 0
      %3205 = vmatprep.subr.bf16.mxu0 0
      %3206 = vmatpush1.bf16.msra.mxu0 0
      %3207 = vmatprep.subr.bf16.mxu0 0
      %3208 = vmatpush1.bf16.msra.mxu0 0
      %3209 = vmatprep.subr.bf16.mxu0 0
      %3210 = vmatpush1.bf16.msra.mxu0 0
      %3211 = vmatprep.subr.bf16.mxu0 0
      %3212 = vmatpush1.bf16.msra.mxu0 0
      %3213 = vmatprep.subr.bf16.mxu0 0
      %3214 = vmatpush1.bf16.msra.mxu0 0
      %3215 = vmatprep.subr.bf16.mxu0 0
      %3216 = vmatpush1.bf16.msra.mxu0 0
      %3217 = vmatprep.subr.bf16.mxu0 0
      %3218 = vmatpush1.bf16.msra.mxu0 %v3201
      %3219 = vmatprep.subr.bf16.mxu0 0
      %3220 = vmatpush2.bf16.msra.mxu0 0
      %3221 = vmatprep.subr.bf16.mxu0 0
      %3222 = vmatpush2.bf16.msra.mxu0 0
      %3223 = vmatprep.subr.bf16.mxu0 0
      %3224 = vmatpush2.bf16.msra.mxu0 0
      %3225 = vmatprep.subr.bf16.mxu0 0
      %3226 = vmatpush2.bf16.msra.mxu0 0
      %3227 = vmatprep.subr.bf16.mxu0 0
      %3228 = vmatpush2.bf16.msra.mxu0 0
      %3229 = vmatprep.subr.bf16.mxu0 0
      %3230 = vmatpush2.bf16.msra.mxu0 0
      %3231 = vmatprep.subr.bf16.mxu0 0
      %3232 = vmatpush2.bf16.msra.mxu0 0
      %3233 = vmatprep.subr.bf16.mxu0 0
      %3234 = vmatpush2.bf16.msra.mxu0 0
      %3235 = vmatprep.mubr.bf16.mxu0 0
      %3236 = vmatmul.mubr.bf16.gmra.mxu0 %v3177
      %v3237 = vpop.f32.mrf.mxu0
      %v3238 = vadd.f32 0.0, %v3237
      %v3239 = vpop.f32.mrf.mxu0
      %v3240 = vpop.f32.mrf.mxu0
      %v3241 = vadd.f32 0.0, %v3240
      %v3242 = vpop.f32.mrf.mxu0
      %3243 = vmatprep.mubr.bf16.mxu0 0
      %3244 = vmatmul.mubr.bf16.gmra.mxu0 %v3180
      %v3245 = vpop.f32.mrf.mxu0
      %v3246 = vadd.f32 0.0, %v3245
      %v3247 = vpop.f32.mrf.mxu0
      %v3248 = vpop.f32.mrf.mxu0
      %v3249 = vadd.f32 0.0, %v3248
      %v3250 = vpop.f32.mrf.mxu0
      %3251 = vmatprep.mubr.bf16.mxu0 0
      %3252 = vmatmul.mubr.bf16.gmra.mxu0 %v3183
      %v3253 = vpop.f32.mrf.mxu0
      %v3254 = vadd.f32 0.0, %v3253
      %v3255 = vpop.f32.mrf.mxu0
      %v3256 = vpop.f32.mrf.mxu0
      %v3257 = vadd.f32 0.0, %v3256
      %v3258 = vpop.f32.mrf.mxu0
      %3259 = vmatprep.mubr.bf16.mxu0 0
      %3260 = vmatmul.mubr.bf16.gmra.mxu0 %v3186
      %v3261 = vpop.f32.mrf.mxu0
      %v3262 = vadd.f32 0.0, %v3261
      %v3263 = vpop.f32.mrf.mxu0
      %v3264 = vpop.f32.mrf.mxu0
      %v3265 = vadd.f32 0.0, %v3264
      %v3266 = vpop.f32.mrf.mxu0
      %3267 = vmatprep.mubr.bf16.mxu0 0
      %3268 = vmatmul.mubr.bf16.gmra.mxu0 %v3189
      %v3269 = vpop.f32.mrf.mxu0
      %v3270 = vadd.f32 0.0, %v3269
      %v3271 = vpop.f32.mrf.mxu0
      %v3272 = vpop.f32.mrf.mxu0
      %v3273 = vadd.f32 0.0, %v3272
      %v3274 = vpop.f32.mrf.mxu0
      %3275 = vmatprep.mubr.bf16.mxu0 0
      %3276 = vmatmul.mubr.bf16.gmra.mxu0 %v3192
      %v3277 = vpop.f32.mrf.mxu0
      %v3278 = vadd.f32 0.0, %v3277
      %v3279 = vpop.f32.mrf.mxu0
      %v3280 = vpop.f32.mrf.mxu0
      %v3281 = vadd.f32 0.0, %v3280
      %v3282 = vpop.f32.mrf.mxu0
      %3283 = vmatprep.mubr.bf16.mxu0 0
      %3284 = vmatmul.mubr.bf16.gmra.mxu0 %v3195
      %v3285 = vpop.f32.mrf.mxu0
      %v3286 = vadd.f32 0.0, %v3285
      %v3287 = vpop.f32.mrf.mxu0
      %v3288 = vpop.f32.mrf.mxu0
      %v3289 = vadd.f32 0.0, %v3288
      %v3290 = vpop.f32.mrf.mxu0
      %3291 = vmatprep.mubr.bf16.mxu0 0
      %3292 = vmatmul.mubr.bf16.gmra.mxu0 %v3198
      %v3293 = vpop.f32.mrf.mxu0
      %v3294 = vadd.f32 0.0, %v3293
      %v3295 = vpop.f32.mrf.mxu0
      %v3296 = vpop.f32.mrf.mxu0
      %v3297 = vadd.f32 0.0, %v3296
      %v3298 = vpop.f32.mrf.mxu0
      %3299 = vdwg.mxu0
      %v3300 = vadd.f32 %v2918, %v3238
      %v3301 = vadd.f32 %v2919, %v3241
      %v3302 = vadd.f32 %v2920, %v3246
      %v3303 = vadd.f32 %v2921, %v3249
      %v3304 = vadd.f32 %v2922, %v3254
      %v3305 = vadd.f32 %v2923, %v3257
      %v3306 = vadd.f32 %v2924, %v3262
      %v3307 = vadd.f32 %v2925, %v3265
      %v3308 = vadd.f32 %v2926, %v3270
      %v3309 = vadd.f32 %v2927, %v3273
      %v3310 = vadd.f32 %v2928, %v3278
      %v3311 = vadd.f32 %v2929, %v3281
      %v3312 = vadd.f32 %v2930, %v3286
      %v3313 = vadd.f32 %v2931, %v3289
      %v3314 = vadd.f32 %v2932, %v3294
      %v3315 = vadd.f32 %v2933, %v3297
      %v3316 = vld [vmem:[%s2735] sm:$0xe]
      %v3317 = vld [vmem:[%s2735 + $0xc] sm:$0xe]
      %v3318 = vld [vmem:[%s2735 + $0x18] sm:$0xe]
      %v3319 = vld [vmem:[%s2735 + $0x24] sm:$0xe]
      %v3320 = vld [vmem:[%s2735 + $0x30] sm:$0xe]
      %v3321 = vld [vmem:[%s2735 + $0x3c] sm:$0xe]
      %v3322 = vld [vmem:[%s2735 + $0x48] sm:$0xe]
      %v3323 = vld [vmem:[%s2735 + $0x54] sm:$0xe]
      %v3348 = vrot.slane %v3316, 5
      %v3349 = vrot.slane %v3348, 4
      %v3350 = vrot.slane %v2935, 5
      %v3351 = vsel %vm1671, %v3349, %v3350
      %v3352 = vrot.slane %v3350, 4
      %v3353 = vrot.slane %v2936, 5
      %v3354 = vsel %vm1671, %v3352, %v3353
      %v3355 = vrot.slane %v3317, 5
      %v3356 = vrot.slane %v3355, 4
      %v3357 = vrot.slane %v2938, 5
      %v3358 = vsel %vm1671, %v3356, %v3357
      %v3359 = vrot.slane %v3357, 4
      %v3360 = vrot.slane %v2939, 5
      %v3361 = vsel %vm1671, %v3359, %v3360
      %v3362 = vrot.slane %v3318, 5
      %v3363 = vrot.slane %v3362, 4
      %v3364 = vrot.slane %v2941, 5
      %v3365 = vsel %vm1671, %v3363, %v3364
      %v3366 = vrot.slane %v3364, 4
      %v3367 = vrot.slane %v2942, 5
      %v3368 = vsel %vm1671, %v3366, %v3367
      %v3369 = vrot.slane %v3319, 5
      %v3370 = vrot.slane %v3369, 4
      %v3371 = vrot.slane %v2944, 5
      %v3372 = vsel %vm1671, %v3370, %v3371
      %v3373 = vrot.slane %v3371, 4
      %v3374 = vrot.slane %v2945, 5
      %v3375 = vsel %vm1671, %v3373, %v3374
      %v3376 = vrot.slane %v3320, 5
      %v3377 = vrot.slane %v3376, 4
      %v3378 = vrot.slane %v2947, 5
      %v3379 = vsel %vm1671, %v3377, %v3378
      %v3380 = vrot.slane %v3378, 4
      %v3381 = vrot.slane %v2948, 5
      %v3382 = vsel %vm1671, %v3380, %v3381
      %v3383 = vrot.slane %v3321, 5
      %v3384 = vrot.slane %v3383, 4
      %v3385 = vrot.slane %v2950, 5
      %v3386 = vsel %vm1671, %v3384, %v3385
      %v3387 = vrot.slane %v3385, 4
      %v3388 = vrot.slane %v2951, 5
      %v3389 = vsel %vm1671, %v3387, %v3388
      %v3390 = vrot.slane %v3322, 5
      %v3391 = vrot.slane %v3390, 4
      %v3392 = vrot.slane %v2953, 5
      %v3393 = vsel %vm1671, %v3391, %v3392
      %v3394 = vrot.slane %v3392, 4
      %v3395 = vrot.slane %v2954, 5
      %v3396 = vsel %vm1671, %v3394, %v3395
      %v3397 = vrot.slane %v3323, 5
      %v3398 = vrot.slane %v3397, 4
      %v3399 = vrot.slane %v2956, 5
      %v3400 = vsel %vm1671, %v3398, %v3399
      %v3401 = vrot.slane %v3399, 4
      %v3402 = vrot.slane %v2957, 5
      %v3403 = vsel %vm1671, %v3401, %v3402
      %s3404 = scalar_lea.vmem %s3, 16
      %v3405 = vld [vmem:[%s3404] sm:$0x3]
      %v3406 = vunpack.c.l.b16 %v3351
      %v3407 = vunpack.c.l.b16 %v3354
      %v3408 = vunpack.c.l.b16 %v3358
      %v3409 = vunpack.c.l.b16 %v3361
      %v3410 = vunpack.c.l.b16 %v3365
      %v3411 = vunpack.c.l.b16 %v3368
      %v3412 = vunpack.c.l.b16 %v3372
      %v3413 = vunpack.c.l.b16 %v3375
      %v3414 = vunpack.c.l.b16 %v3379
      %v3415 = vunpack.c.l.b16 %v3382
      %v3416 = vunpack.c.l.b16 %v3386
      %v3417 = vunpack.c.l.b16 %v3389
      %v3418 = vunpack.c.l.b16 %v3393
      %v3419 = vunpack.c.l.b16 %v3396
      %v3420 = vunpack.c.l.b16 %v3400
      %v3421 = vunpack.c.l.b16 %v3403
      %v3422 = vpack.c.b16 %v3407, %v3406
      %v3423 = vpack.c.b16 %v3409, %v3408
      %v3424 = vpack.c.b16 %v3411, %v3410
      %v3425 = vpack.c.b16 %v3413, %v3412
      %v3426 = vpack.c.b16 %v3415, %v3414
      %v3427 = vpack.c.b16 %v3417, %v3416
      %v3428 = vpack.c.b16 %v3419, %v3418
      %v3429 = vpack.c.b16 %v3421, %v3420
      %v3431 = vsel %vm1355, %v3422, 0
      %v3434 = vsel %vm1355, %v3423, 0
      %v3437 = vsel %vm1355, %v3424, 0
      %v3440 = vsel %vm1355, %v3425, 0
      %v3443 = vsel %vm1355, %v3426, 0
      %v3446 = vsel %vm1355, %v3427, 0
      %v3449 = vsel %vm1355, %v3428, 0
      %v3452 = vsel %vm1355, %v3429, 0
      %v3455 = vsel %vm1380, %v3405, 0
      %3457 = vmatprep.subr.bf16.mxu0 0
      %3458 = vmatpush1.bf16.msra.mxu0 0
      %3459 = vmatprep.subr.bf16.mxu0 0
      %3460 = vmatpush1.bf16.msra.mxu0 0
      %3461 = vmatprep.subr.bf16.mxu0 0
      %3462 = vmatpush1.bf16.msra.mxu0 0
      %3463 = vmatprep.subr.bf16.mxu0 0
      %3464 = vmatpush1.bf16.msra.mxu0 0
      %3465 = vmatprep.subr.bf16.mxu0 0
      %3466 = vmatpush1.bf16.msra.mxu0 0
      %3467 = vmatprep.subr.bf16.mxu0 0
      %3468 = vmatpush1.bf16.msra.mxu0 0
      %3469 = vmatprep.subr.bf16.mxu0 0
      %3470 = vmatpush1.bf16.msra.mxu0 0
      %3471 = vmatprep.subr.bf16.mxu0 0
      %3472 = vmatpush1.bf16.msra.mxu0 %v3455
      %3473 = vmatprep.subr.bf16.mxu0 0
      %3474 = vmatpush2.bf16.msra.mxu0 0
      %3475 = vmatprep.subr.bf16.mxu0 0
      %3476 = vmatpush2.bf16.msra.mxu0 0
      %3477 = vmatprep.subr.bf16.mxu0 0
      %3478 = vmatpush2.bf16.msra.mxu0 0
      %3479 = vmatprep.subr.bf16.mxu0 0
      %3480 = vmatpush2.bf16.msra.mxu0 0
      %3481 = vmatprep.subr.bf16.mxu0 0
      %3482 = vmatpush2.bf16.msra.mxu0 0
      %3483 = vmatprep.subr.bf16.mxu0 0
      %3484 = vmatpush2.bf16.msra.mxu0 0
      %3485 = vmatprep.subr.bf16.mxu0 0
      %3486 = vmatpush2.bf16.msra.mxu0 0
      %3487 = vmatprep.subr.bf16.mxu0 0
      %3488 = vmatpush2.bf16.msra.mxu0 0
      %3489 = vmatprep.mubr.bf16.mxu0 0
      %3490 = vmatmul.mubr.bf16.gmra.mxu0 %v3431
      %v3491 = vpop.f32.mrf.mxu0
      %v3492 = vadd.f32 0.0, %v3491
      %v3493 = vpop.f32.mrf.mxu0
      %v3494 = vpop.f32.mrf.mxu0
      %v3495 = vadd.f32 0.0, %v3494
      %v3496 = vpop.f32.mrf.mxu0
      %3497 = vmatprep.mubr.bf16.mxu0 0
      %3498 = vmatmul.mubr.bf16.gmra.mxu0 %v3434
      %v3499 = vpop.f32.mrf.mxu0
      %v3500 = vadd.f32 0.0, %v3499
      %v3501 = vpop.f32.mrf.mxu0
      %v3502 = vpop.f32.mrf.mxu0
      %v3503 = vadd.f32 0.0, %v3502
      %v3504 = vpop.f32.mrf.mxu0
      %3505 = vmatprep.mubr.bf16.mxu0 0
      %3506 = vmatmul.mubr.bf16.gmra.mxu0 %v3437
      %v3507 = vpop.f32.mrf.mxu0
      %v3508 = vadd.f32 0.0, %v3507
      %v3509 = vpop.f32.mrf.mxu0
      %v3510 = vpop.f32.mrf.mxu0
      %v3511 = vadd.f32 0.0, %v3510
      %v3512 = vpop.f32.mrf.mxu0
      %3513 = vmatprep.mubr.bf16.mxu0 0
      %3514 = vmatmul.mubr.bf16.gmra.mxu0 %v3440
      %v3515 = vpop.f32.mrf.mxu0
      %v3516 = vadd.f32 0.0, %v3515
      %v3517 = vpop.f32.mrf.mxu0
      %v3518 = vpop.f32.mrf.mxu0
      %v3519 = vadd.f32 0.0, %v3518
      %v3520 = vpop.f32.mrf.mxu0
      %3521 = vmatprep.mubr.bf16.mxu0 0
      %3522 = vmatmul.mubr.bf16.gmra.mxu0 %v3443
      %v3523 = vpop.f32.mrf.mxu0
      %v3524 = vadd.f32 0.0, %v3523
      %v3525 = vpop.f32.mrf.mxu0
      %v3526 = vpop.f32.mrf.mxu0
      %v3527 = vadd.f32 0.0, %v3526
      %v3528 = vpop.f32.mrf.mxu0
      %3529 = vmatprep.mubr.bf16.mxu0 0
      %3530 = vmatmul.mubr.bf16.gmra.mxu0 %v3446
      %v3531 = vpop.f32.mrf.mxu0
      %v3532 = vadd.f32 0.0, %v3531
      %v3533 = vpop.f32.mrf.mxu0
      %v3534 = vpop.f32.mrf.mxu0
      %v3535 = vadd.f32 0.0, %v3534
      %v3536 = vpop.f32.mrf.mxu0
      %3537 = vmatprep.mubr.bf16.mxu0 0
      %3538 = vmatmul.mubr.bf16.gmra.mxu0 %v3449
      %v3539 = vpop.f32.mrf.mxu0
      %v3540 = vadd.f32 0.0, %v3539
      %v3541 = vpop.f32.mrf.mxu0
      %v3542 = vpop.f32.mrf.mxu0
      %v3543 = vadd.f32 0.0, %v3542
      %v3544 = vpop.f32.mrf.mxu0
      %3545 = vmatprep.mubr.bf16.mxu0 0
      %3546 = vmatmul.mubr.bf16.gmra.mxu0 %v3452
      %v3547 = vpop.f32.mrf.mxu0
      %v3548 = vadd.f32 0.0, %v3547
      %v3549 = vpop.f32.mrf.mxu0
      %v3550 = vpop.f32.mrf.mxu0
      %v3551 = vadd.f32 0.0, %v3550
      %v3552 = vpop.f32.mrf.mxu0
      %3553 = vdwg.mxu0
      %v3554 = vadd.f32 %v3300, %v3492
      %v3555 = vadd.f32 %v3301, %v3495
      %v3556 = vadd.f32 %v3302, %v3500
      %v3557 = vadd.f32 %v3303, %v3503
      %v3558 = vadd.f32 %v3304, %v3508
      %v3559 = vadd.f32 %v3305, %v3511
      %v3560 = vadd.f32 %v3306, %v3516
      %v3561 = vadd.f32 %v3307, %v3519
      %v3562 = vadd.f32 %v3308, %v3524
      %v3563 = vadd.f32 %v3309, %v3527
      %v3564 = vadd.f32 %v3310, %v3532
      %v3565 = vadd.f32 %v3311, %v3535
      %v3566 = vadd.f32 %v3312, %v3540
      %v3567 = vadd.f32 %v3313, %v3543
      %v3568 = vadd.f32 %v3314, %v3548
      %v3569 = vadd.f32 %v3315, %v3551
      %v3570 = vpack.c.bf16 %v3555, %v3554
      %v3571 = vpack.c.bf16 %v3557, %v3556
      %v3572 = vpack.c.bf16 %v3559, %v3558
      %v3573 = vpack.c.bf16 %v3561, %v3560
      %v3574 = vpack.c.bf16 %v3563, %v3562
      %v3575 = vpack.c.bf16 %v3565, %v3564
      %v3576 = vpack.c.bf16 %v3567, %v3566
      %v3577 = vpack.c.bf16 %v3569, %v3568
      %v3586 = vunpack.c.l.b16 %v3570
      %v3587 = vunpack.c.h.b16 %v3570
      %v3588 = vunpack.c.l.b16 %v3571
      %v3589 = vunpack.c.h.b16 %v3571
      %v3590 = vunpack.c.l.b16 %v3572
      %v3591 = vunpack.c.h.b16 %v3572
      %v3592 = vunpack.c.l.b16 %v3573
      %v3593 = vunpack.c.h.b16 %v3573
      %v3594 = vunpack.c.l.b16 %v3574
      %v3595 = vunpack.c.h.b16 %v3574
      %v3596 = vunpack.c.l.b16 %v3575
      %v3597 = vunpack.c.h.b16 %v3575
      %v3598 = vunpack.c.l.b16 %v3576
      %v3599 = vunpack.c.h.b16 %v3576
      %v3600 = vunpack.c.l.b16 %v3577
      %v3601 = vunpack.c.h.b16 %v3577
      %v3602 = vpack.c.b16 %v3586, %v3586
      %v3603 = vpack.c.b16 %v3587, %v3587
      %v3604 = vpack.c.b16 %v3588, %v3588
      %v3605 = vpack.c.b16 %v3589, %v3589
      %v3606 = vpack.c.b16 %v3590, %v3590
      %v3607 = vpack.c.b16 %v3591, %v3591
      %v3608 = vpack.c.b16 %v3592, %v3592
      %v3609 = vpack.c.b16 %v3593, %v3593
      %v3610 = vpack.c.b16 %v3594, %v3594
      %v3611 = vpack.c.b16 %v3595, %v3595
      %v3612 = vpack.c.b16 %v3596, %v3596
      %v3613 = vpack.c.b16 %v3597, %v3597
      %v3614 = vpack.c.b16 %v3598, %v3598
      %v3615 = vpack.c.b16 %v3599, %v3599
      %v3616 = vpack.c.b16 %v3600, %v3600
      %v3617 = vpack.c.b16 %v3601, %v3601
      %vm3634 = vcmask 27648
      %3635 = vst.msk [vmem:[%s261] sm:$0xf] %vm3634, %v3602
      %3636 = vst.msk [vmem:[%s261 + $0x4] sm:$0xf] %vm3634, %v3603
      %3637 = vst.msk [vmem:[%s261 + $0x8] sm:$0xf] %vm3634, %v3604
      %3638 = vst.msk [vmem:[%s261 + $0xc] sm:$0xf] %vm3634, %v3605
      %3639 = vst.msk [vmem:[%s261 + $0x10] sm:$0xf] %vm3634, %v3606
      %3640 = vst.msk [vmem:[%s261 + $0x14] sm:$0xf] %vm3634, %v3607
      %3641 = vst.msk [vmem:[%s261 + $0x18] sm:$0xf] %vm3634, %v3608
      %3642 = vst.msk [vmem:[%s261 + $0x1c] sm:$0xf] %vm3634, %v3609
      %3643 = vst.msk [vmem:[%s261 + $0x20] sm:$0xf] %vm3634, %v3610
      %3644 = vst.msk [vmem:[%s261 + $0x24] sm:$0xf] %vm3634, %v3611
      %3645 = vst.msk [vmem:[%s261 + $0x28] sm:$0xf] %vm3634, %v3612
      %3646 = vst.msk [vmem:[%s261 + $0x2c] sm:$0xf] %vm3634, %v3613
      %3647 = vst.msk [vmem:[%s261 + $0x30] sm:$0xf] %vm3634, %v3614
      %3648 = vst.msk [vmem:[%s261 + $0x34] sm:$0xf] %vm3634, %v3615
      %3649 = vst.msk [vmem:[%s261 + $0x38] sm:$0xf] %vm3634, %v3616
      %3650 = vst.msk [vmem:[%s261 + $0x3c] sm:$0xf] %vm3634, %v3617
      %v3651 = vsel %vm1355, %v3554, 0.0
      %v3652 = vsel %vm1355, %v3555, 0.0
      %v3653 = vadd.f32 %v3651, %v3652
      %v3654 = vsel %vm1355, %v3556, 0.0
      %v3655 = vadd.f32 %v3653, %v3654
      %v3656 = vsel %vm1355, %v3557, 0.0
      %v3657 = vadd.f32 %v3655, %v3656
      %v3658 = vsel %vm1355, %v3558, 0.0
      %v3659 = vadd.f32 %v3657, %v3658
      %v3660 = vsel %vm1355, %v3559, 0.0
      %v3661 = vadd.f32 %v3659, %v3660
      %v3662 = vsel %vm1355, %v3560, 0.0
      %v3663 = vadd.f32 %v3661, %v3662
      %v3664 = vsel %vm1355, %v3561, 0.0
      %v3665 = vadd.f32 %v3663, %v3664
      %v3666 = vsel %vm1355, %v3562, 0.0
      %v3667 = vadd.f32 %v3665, %v3666
      %v3668 = vsel %vm1355, %v3563, 0.0
      %v3669 = vadd.f32 %v3667, %v3668
      %v3670 = vsel %vm1355, %v3564, 0.0
      %v3671 = vadd.f32 %v3669, %v3670
      %v3672 = vsel %vm1355, %v3565, 0.0
      %v3673 = vadd.f32 %v3671, %v3672
      %v3674 = vsel %vm1355, %v3566, 0.0
      %v3675 = vadd.f32 %v3673, %v3674
      %v3676 = vsel %vm1355, %v3567, 0.0
      %v3677 = vadd.f32 %v3675, %v3676
      %v3678 = vsel %vm1355, %v3568, 0.0
      %v3679 = vadd.f32 %v3677, %v3678
      %v3680 = vsel %vm1355, %v3569, 0.0
      %v3681 = vadd.f32 %v3679, %v3680
      %v3682 = vrot.slane %v3681, 4
      %v3683 = vadd.f32 %v3681, %v3682
      %v3684 = vrot.slane %v3683, 2
      %v3685 = vadd.f32 %v3683, %v3684
      %v3686 = vrot.slane %v3685, 1
      %v3687 = vadd.f32 %v3685, %v3686
      %v3688 = vrcp.pop 128.0
      %v3689 = vmul.f32 %v3687, %v3688
      %v3690 = vsub.f32 %v3554, %v3689
      %v3691 = vsub.f32 %v3555, %v3689
      %v3692 = vsub.f32 %v3556, %v3689
      %v3693 = vsub.f32 %v3557, %v3689
      %v3694 = vsub.f32 %v3558, %v3689
      %v3695 = vsub.f32 %v3559, %v3689
      %v3696 = vsub.f32 %v3560, %v3689
      %v3697 = vsub.f32 %v3561, %v3689
      %v3698 = vsub.f32 %v3562, %v3689
      %v3699 = vsub.f32 %v3563, %v3689
      %v3700 = vsub.f32 %v3564, %v3689
      %v3701 = vsub.f32 %v3565, %v3689
      %v3702 = vsub.f32 %v3566, %v3689
      %v3703 = vsub.f32 %v3567, %v3689
      %v3704 = vsub.f32 %v3568, %v3689
      %v3705 = vsub.f32 %v3569, %v3689
      %v3706 = vmul.f32 %v3690, %v3690
      %v3707 = vmul.f32 %v3691, %v3691
      %v3708 = vmul.f32 %v3692, %v3692
      %v3709 = vmul.f32 %v3693, %v3693
      %v3710 = vmul.f32 %v3694, %v3694
      %v3711 = vmul.f32 %v3695, %v3695
      %v3712 = vmul.f32 %v3696, %v3696
      %v3713 = vmul.f32 %v3697, %v3697
      %v3714 = vmul.f32 %v3698, %v3698
      %v3715 = vmul.f32 %v3699, %v3699
      %v3716 = vmul.f32 %v3700, %v3700
      %v3717 = vmul.f32 %v3701, %v3701
      %v3718 = vmul.f32 %v3702, %v3702
      %v3719 = vmul.f32 %v3703, %v3703
      %v3720 = vmul.f32 %v3704, %v3704
      %v3721 = vmul.f32 %v3705, %v3705
      %v3722 = vsel %vm1355, %v3706, 0.0
      %v3723 = vsel %vm1355, %v3707, 0.0
      %v3724 = vadd.f32 %v3722, %v3723
      %v3725 = vsel %vm1355, %v3708, 0.0
      %v3726 = vadd.f32 %v3724, %v3725
      %v3727 = vsel %vm1355, %v3709, 0.0
      %v3728 = vadd.f32 %v3726, %v3727
      %v3729 = vsel %vm1355, %v3710, 0.0
      %v3730 = vadd.f32 %v3728, %v3729
      %v3731 = vsel %vm1355, %v3711, 0.0
      %v3732 = vadd.f32 %v3730, %v3731
      %v3733 = vsel %vm1355, %v3712, 0.0
      %v3734 = vadd.f32 %v3732, %v3733
      %v3735 = vsel %vm1355, %v3713, 0.0
      %v3736 = vadd.f32 %v3734, %v3735
      %v3737 = vsel %vm1355, %v3714, 0.0
      %v3738 = vadd.f32 %v3736, %v3737
      %v3739 = vsel %vm1355, %v3715, 0.0
      %v3740 = vadd.f32 %v3738, %v3739
      %v3741 = vsel %vm1355, %v3716, 0.0
      %v3742 = vadd.f32 %v3740, %v3741
      %v3743 = vsel %vm1355, %v3717, 0.0
      %v3744 = vadd.f32 %v3742, %v3743
      %v3745 = vsel %vm1355, %v3718, 0.0
      %v3746 = vadd.f32 %v3744, %v3745
      %v3747 = vsel %vm1355, %v3719, 0.0
      %v3748 = vadd.f32 %v3746, %v3747
      %v3749 = vsel %vm1355, %v3720, 0.0
      %v3750 = vadd.f32 %v3748, %v3749
      %v3751 = vsel %vm1355, %v3721, 0.0
      %v3752 = vadd.f32 %v3750, %v3751
      %v3753 = vrot.slane %v3752, 4
      %v3754 = vadd.f32 %v3752, %v3753
      %v3755 = vrot.slane %v3754, 2
      %v3756 = vadd.f32 %v3754, %v3755
      %v3757 = vrot.slane %v3756, 1
      %v3758 = vadd.f32 %v3756, %v3757
      %vm3759 = vcmask 24576
      %3760 = vst.msk [vmem:[%s270] sm:$0x1] %vm3759, %v3687
      %3761 = vst.msk [vmem:[%s270 + $0x1] sm:$0x1] %vm3759, %v3758
      %s3762 = smul.u32 8, %s22
      %p3763 = scmp.lt.s32.totalorder %s21, 1
      %s3764 = scalar_select %p3763, %s21, 1
      %p3765 = scmp.lt.s32.totalorder %s3762, 15
      %s3766 = scalar_select %p3765, %s3762, 15
      %s3767 = smul.addr %s3766, 2
      %s3768 = smul.addr %s3764, 32
      %s3769 = sadd.s32 %s3767, %s3768
      %s3770 = smul.addr %s3769, 4
      %s3771 = scalar_lea.vmem %s4, %s3770
      %p3772 = scmp.lt.s32.totalorder %s21, 1
      %s3773 = scalar_select %p3772, %s21, 1
      %p3774 = scmp.lt.s32.totalorder %s22, 1
      %s3775 = scalar_select %p3774, %s22, 1
      %s3776 = smul.addr %s3773, 2
      %s3777 = sadd.s32 %s3775, %s3776
      %s3778 = smul.addr %s3777, 2
      %s3779 = scalar_lea.vmem %s5, %s3778
      // Predicated region
      $region41: #{up_forward.4} parent=35 // pred_check
        %p3780 = pneg %p138
      $region42: #{up_forward.4} parent=35 // pred_check_branch
        %3782 = sbr.rel (%p3780) target = $region44
      $region43: #{up_forward.4} parent=35 // pred_region
        %s3783 = smul.u32 8, %s22
      $region44: #{up_forward.4} parent=35 // pred_fallthru
        _
      // Predicated region
      $region45: #{up_forward.4} parent=35 // pred_check
        %p3784 = pneg %p166
      $region46: #{up_forward.4} parent=35 // pred_check_branch
        %3786 = sbr.rel (%p3784) target = $region48
      $region47: #{up_forward.4} parent=35 // pred_region
        _
      $region48: #{up_forward.4} parent=35 // pred_fallthru
        _
    $region36: #{up_forward.4} parent=5 // pred_fallthru
      _
    %p3787 = scmp.le.s32.totalorder 2, %s12
    // Predicated region
    $region49: #{up_forward.4} parent=5 // pred_check
      %p3788 = pneg %p3787
    $region50: #{up_forward.4} parent=5 // pred_check_branch
      %3790 = sbr.rel (%p3788) target = $region52
    $region51: #{up_forward.4} parent=5 // pred_region
      %s3791 = ssub.s32 %s12, 2
      // Predicated region
      $region53: #{up_forward.4} parent=51 // pred_check
        %p3792 = pneg %p144
      $region54: #{up_forward.4} parent=51 // pred_check_branch
        %3794 = sbr.rel (%p3792) target = $region56
      $region55: #{up_forward.4} parent=51 // pred_region
        %s3795 = smul.u32 8, %s24
        %p3796 = scmp.lt.s32.totalorder %s23, 1
        %s3797 = scalar_select %p3796, %s23, 1
        %p3798 = scmp.lt.s32.totalorder %s3795, 15
        %s3799 = scalar_select %p3798, %s3795, 15
        %s3800 = smul.addr %s3799, 2
        %s3801 = smul.addr %s3797, 32
        %s3802 = sadd.s32 %s3800, %s3801
        %s3803 = smul.addr %s3802, 4
        %s3804 = scalar_lea.vmem %s4, %s3803
      $region56: #{up_forward.4} parent=51 // pred_fallthru
        _
      // Predicated region
      $region57: #{up_forward.4} parent=51 // pred_check
        %p3805 = pneg %p172
      $region58: #{up_forward.4} parent=51 // pred_check_branch
        %3807 = sbr.rel (%p3805) target = $region60
      $region59: #{up_forward.4} parent=51 // pred_region
        %p3808 = scmp.lt.s32.totalorder %s23, 1
        %s3809 = scalar_select %p3808, %s23, 1
        %p3810 = scmp.lt.s32.totalorder %s24, 1
        %s3811 = scalar_select %p3810, %s24, 1
        %s3812 = smul.addr %s3809, 2
        %s3813 = sadd.s32 %s3811, %s3812
        %s3814 = smul.addr %s3813, 2
        %s3815 = scalar_lea.vmem %s5, %s3814
      $region60: #{up_forward.4} parent=51 // pred_fallthru
        _
    $region52: #{up_forward.4} parent=5 // pred_fallthru
      _
  $region6: #{up_forward.4} parent=0 // loop_footer
    %s16 = sadd.s32 1, %s12
  $region7: #{up_forward.4} parent=0 // loop_footer_branch
    %11 = sbr.rel target = $region3
  $region8: #{up_forward.4} parent=0 // loop_exit
    _

// kernel: up_forward.3
$region0: #{up_forward.3}
  #allocation0 [shape = 'u32[]', space=smem, size = 0x4, offset = 0x4, fixed_abs, tag = 'smem constant byte address 0x4 - core index']
  #allocation1 [shape = 'u32[144,128]{1,0:T(1,128)}', space=vmem, size = 0x12000, scoped, tag = 'internal scratch']
  #allocation2 [shape = 'bf16[18,18,4]{2,1,0:T(8,128)(2,1)}', space=vmem, size = 0x1b000, scoped, tag = 'scratch operand']
  #allocation3 [shape = 'bf16[18,18,4]{2,1,0:T(8,128)(2,1)}', space=vmem, size = 0x1b000, scoped, tag = 'scratch operand']
  %s0 = inlined_call_operand.vmem [shape: bf16[2,16,16,4], index: 0, kind: input, shape index: {}]
  %s1 = inlined_call_operand.vmem [shape: bf16[2,16,16,4], index: 1, kind: input, shape index: {}]
  %s2 = inlined_call_operand.vmem [shape: bf16[9,4,4], index: 2, kind: input, shape index: {}]
  %s3 = inlined_call_operand.vmem [shape: bf16[9,4,4], index: 3, kind: input, shape index: {}]
  %s4 = inlined_call_operand.vmem [shape: bf16[2,16,16,4], index: 4, kind: output, shape index: {0}]
  %s5 = inlined_call_operand.vmem [shape: f32[2,2,2,4], index: 5, kind: output, shape index: {1}]
  %6 = xla_tuple %s4, %s5
  %s7 = sld [smem:[#allocation0]]
  $region61: #{up_forward.3} parent=0
    _
  %s9 = ssub.s32 1, %s7
  %s10 = scalar_select 0, %s9, %s7
  loop: start=0, step=1, limit=6
  $region2: #{up_forward.3} parent=0 // loop_pre_header
    _
  $region3: #{up_forward.3} parent=0 // loop_header
    %s12 = sphi 0, %s16
    %p13 = scmp.ge.s32.totalorder %s12, 6
    %s19 = sphi 0, %s31
    %s20 = sphi 0, %s27
    %s21 = sphi 0, %s19
    %s22 = sphi 0, %s20
    %s23 = sphi 0, %s21
    %s24 = sphi 0, %s22
    %s34 = sphi 0, %s36
    %s37 = sphi 0, %s34
    %s38 = sphi 0, %s37
    %s54 = sphi 0, %s38
    %s60 = sphi 0, %s62
    %s63 = sphi 0, %s60
    %s64 = sphi 0, %s63
    %s80 = sphi 0, %s64
    %s84 = sphi 0, %s84
    %s86 = sphi 0, %s84
    %s87 = sphi 0, %s86
    %s101 = sphi 0, %s87
    %s105 = sphi 0, %s105
    %s107 = sphi 0, %s105
    %s108 = sphi 0, %s107
    %s122 = sphi 0, %s108
    %s130 = sphi 0, %s132
    %s133 = sphi 0, %s130
    %s134 = sphi 0, %s133
    %s150 = sphi 0, %s134
    %s158 = sphi 0, %s160
    %s161 = sphi 0, %s158
    %s162 = sphi 0, %s161
    %s178 = sphi 0, %s162
  $region4: #{up_forward.3} parent=0 // loop_header_branch
    %15 = sbr.rel (%p13) target = $region8
  $region5: #{up_forward.3} parent=0 // loop_body
    %s17 = ssub.s32 %s12, 1
    %s18 = ssub.s32 %s12, 2
    %s25 = sadd.s32 1, %s20
    %p26 = scmp.ge.s32.totalorder %s25, 2
    %s27 = scalar_select %p26, 0, %s25
    %s28 = sadd.s32 1, %s19
    %s29 = scalar_select %p26, %s28, %s19
    %p30 = scmp.ge.s32.totalorder %s29, 2
    %s31 = scalar_select %p30, 0, %s29
    %s32 = ssub.s32 %s19, %s31
    %p33 = scmp.eq.s32.totalorder %s32, 0
    %s35 = sadd.s32 %s34, 1
    %s36 = scalar_select %p33, %s34, %s35
    %p39 = pneg %p33
    %p40 = scmp.eq.s32.totalorder %s12, 3
    %p41 = por %p39, %p40
    %p42 = scmp.ne.s32.totalorder %s34, %s37
    %p43 = scmp.eq.s32.totalorder %s12, 0
    %p44 = por %p42, %p43
    %p45 = scmp.ne.s32.totalorder %s34, %s37
    %p46 = scmp.eq.s32.totalorder %s17, 3
    %p47 = por %p45, %p46
    %p48 = scmp.ne.s32.totalorder %s37, %s38
    %p49 = scmp.eq.s32.totalorder %s17, 0
    %p50 = por %p48, %p49
    %p51 = scmp.ne.s32.totalorder %s37, %s38
    %p52 = scmp.eq.s32.totalorder %s18, 3
    %p53 = por %p51, %p52
    %p55 = scmp.ne.s32.totalorder %s38, %s54
    %p56 = scmp.eq.s32.totalorder %s18, 0
    %p57 = por %p55, %p56
    %s58 = ssub.s32 %s19, %s31
    %p59 = scmp.eq.s32.totalorder %s58, 0
    %s61 = sadd.s32 %s60, 1
    %s62 = scalar_select %p59, %s60, %s61
    %p65 = pneg %p59
    %p66 = scmp.eq.s32.totalorder %s12, 3
    %p67 = por %p65, %p66
    %p68 = scmp.ne.s32.totalorder %s60, %s63
    %p69 = scmp.eq.s32.totalorder %s12, 0
    %p70 = por %p68, %p69
    %p71 = scmp.ne.s32.totalorder %s60, %s63
    %p72 = scmp.eq.s32.totalorder %s17, 3
    %p73 = por %p71, %p72
    %p74 = scmp.ne.s32.totalorder %s63, %s64
    %p75 = scmp.eq.s32.totalorder %s17, 0
    %p76 = por %p74, %p75
    %p77 = scmp.ne.s32.totalorder %s63, %s64
    %p78 = scmp.eq.s32.totalorder %s18, 3
    %p79 = por %p77, %p78
    %p81 = scmp.ne.s32.totalorder %s64, %s80
    %p82 = scmp.eq.s32.totalorder %s18, 0
    %p83 = por %p81, %p82
    %s85 = sadd.s32 %s84, 1
    %p88 = scmp.eq.s32.totalorder %s12, 3
    %p89 = scmp.ne.s32.totalorder %s84, %s86
    %p90 = scmp.eq.s32.totalorder %s12, 0
    %p91 = por %p89, %p90
    %p92 = scmp.ne.s32.totalorder %s84, %s86
    %p93 = scmp.eq.s32.totalorder %s17, 3
    %p94 = por %p92, %p93
    %p95 = scmp.ne.s32.totalorder %s86, %s87
    %p96 = scmp.eq.s32.totalorder %s17, 0
    %p97 = por %p95, %p96
    %p98 = scmp.ne.s32.totalorder %s86, %s87
    %p99 = scmp.eq.s32.totalorder %s18, 3
    %p100 = por %p98, %p99
    %p102 = scmp.ne.s32.totalorder %s87, %s101
    %p103 = scmp.eq.s32.totalorder %s18, 0
    %p104 = por %p102, %p103
    %s106 = sadd.s32 %s105, 1
    %p109 = scmp.eq.s32.totalorder %s12, 3
    %p110 = scmp.ne.s32.totalorder %s105, %s107
    %p111 = scmp.eq.s32.totalorder %s12, 0
    %p112 = por %p110, %p111
    %p113 = scmp.ne.s32.totalorder %s105, %s107
    %p114 = scmp.eq.s32.totalorder %s17, 3
    %p115 = por %p113, %p114
    %p116 = scmp.ne.s32.totalorder %s107, %s108
    %p117 = scmp.eq.s32.totalorder %s17, 0
    %p118 = por %p116, %p117
    %p119 = scmp.ne.s32.totalorder %s107, %s108
    %p120 = scmp.eq.s32.totalorder %s18, 3
    %p121 = por %p119, %p120
    %p123 = scmp.ne.s32.totalorder %s108, %s122
    %p124 = scmp.eq.s32.totalorder %s18, 0
    %p125 = por %p123, %p124
    %s126 = ssub.s32 %s19, %s31
    %s127 = ssub.s32 %s20, %s27
    %s128 = sor.u32 %s126, %s127
    %p129 = scmp.eq.s32.totalorder %s128, 0
    %s131 = sadd.s32 %s130, 1
    %s132 = scalar_select %p129, %s130, %s131
    %p135 = pneg %p129
    %p136 = scmp.eq.s32.totalorder %s12, 3
    %p137 = por %p135, %p136
    %p138 = scmp.ne.s32.totalorder %s130, %s133
    %p139 = scmp.eq.s32.totalorder %s12, 0
    %p140 = por %p138, %p139
    %p141 = scmp.ne.s32.totalorder %s130, %s133
    %p142 = scmp.eq.s32.totalorder %s17, 3
    %p143 = por %p141, %p142
    %p144 = scmp.ne.s32.totalorder %s133, %s134
    %p145 = scmp.eq.s32.totalorder %s17, 0
    %p146 = por %p144, %p145
    %p147 = scmp.ne.s32.totalorder %s133, %s134
    %p148 = scmp.eq.s32.totalorder %s18, 3
    %p149 = por %p147, %p148
    %p151 = scmp.ne.s32.totalorder %s134, %s150
    %p152 = scmp.eq.s32.totalorder %s18, 0
    %p153 = por %p151, %p152
    %s154 = ssub.s32 %s19, %s31
    %s155 = ssub.s32 %s20, %s27
    %s156 = sor.u32 %s154, %s155
    %p157 = scmp.eq.s32.totalorder %s156, 0
    %s159 = sadd.s32 %s158, 1
    %s160 = scalar_select %p157, %s158, %s159
    %p163 = pneg %p157
    %p164 = scmp.eq.s32.totalorder %s12, 3
    %p165 = por %p163, %p164
    %p166 = scmp.ne.s32.totalorder %s158, %s161
    %p167 = scmp.eq.s32.totalorder %s12, 0
    %p168 = por %p166, %p167
    %p169 = scmp.ne.s32.totalorder %s158, %s161
    %p170 = scmp.eq.s32.totalorder %s17, 3
    %p171 = por %p169, %p170
    %p172 = scmp.ne.s32.totalorder %s161, %s162
    %p173 = scmp.eq.s32.totalorder %s17, 0
    %p174 = por %p172, %p173
    %p175 = scmp.ne.s32.totalorder %s161, %s162
    %p176 = scmp.eq.s32.totalorder %s18, 3
    %p177 = por %p175, %p176
    %p179 = scmp.ne.s32.totalorder %s162, %s178
    %p180 = scmp.eq.s32.totalorder %s18, 0
    %p181 = por %p179, %p180
    %p182 = scmp.le.s32.totalorder 1, %s12
    %p183 = scmp.lt.s32.totalorder %s12, 5
    %p184 = pnand %p182, %p183
    %p185 = pneg %p184
    // Predicated region
    $region9: #{up_forward.3} parent=5 // pred_check
      _
    $region10: #{up_forward.3} parent=5 // pred_check_branch
      %187 = sbr.rel (%p184) target = $region12
    $region11: #{up_forward.3} parent=5 // pred_region
      %s188 = ssub.s32 %s12, 1
      // Predicated region
      $region13: #{up_forward.3} parent=11 // pred_check
        %p189 = pneg %p97
      $region14: #{up_forward.3} parent=11 // pred_check_branch
        %191 = sbr.rel (%p189) target = $region16
      $region15: #{up_forward.3} parent=11 // pred_region
        _
      $region16: #{up_forward.3} parent=11 // pred_fallthru
        _
      // Predicated region
      $region17: #{up_forward.3} parent=11 // pred_check
        %p192 = pneg %p118
      $region18: #{up_forward.3} parent=11 // pred_check_branch
        %194 = sbr.rel (%p192) target = $region20
      $region19: #{up_forward.3} parent=11 // pred_region
        _
      $region20: #{up_forward.3} parent=11 // pred_fallthru
        _
    $region12: #{up_forward.3} parent=5 // pred_fallthru
      _
    %p195 = scmp.lt.s32.totalorder %s12, 4
    // Predicated region
    $region21: #{up_forward.3} parent=5 // pred_check
      %p196 = pneg %p195
    $region22: #{up_forward.3} parent=5 // pred_check_branch
      %198 = sbr.rel (%p196) target = $region24
    $region23: #{up_forward.3} parent=5 // pred_region
      // Predicated region
      $region25: #{up_forward.3} parent=23 // pred_check
        %p199 = pneg %p44
      $region26: #{up_forward.3} parent=23 // pred_check_branch
        %201 = sbr.rel (%p199) target = $region28
      $region27: #{up_forward.3} parent=23 // pred_region
        %p202 = scmp.lt.s32.totalorder %s19, 1
        %s203 = scalar_select %p202, %s19, 1
        %s204 = smul.addr %s203, 32
        %s205 = smul.addr %s204, 4
        %s206 = scalar_lea.vmem %s0, %s205
      $region28: #{up_forward.3} parent=23 // pred_fallthru
        _
      // Predicated region
      $region29: #{up_forward.3} parent=23 // pred_check
        %p207 = pneg %p70
      $region30: #{up_forward.3} parent=23 // pred_check_branch
        %209 = sbr.rel (%p207) target = $region32
      $region31: #{up_forward.3} parent=23 // pred_region
        %p210 = scmp.lt.s32.totalorder %s19, 1
        %s211 = scalar_select %p210, %s19, 1
        %s212 = smul.addr %s211, 32
        %s213 = smul.addr %s212, 4
        %s214 = scalar_lea.vmem %s1, %s213
      $region32: #{up_forward.3} parent=23 // pred_fallthru
        _
    $region24: #{up_forward.3} parent=5 // pred_fallthru
      _
    %p215 = scmp.le.s32.totalorder 1, %s12
    %p216 = scmp.lt.s32.totalorder %s12, 5
    %p217 = pnand %p215, %p216
    %p218 = pneg %p217
    // Predicated region
    $region33: #{up_forward.3} parent=5 // pred_check
      _
    $region34: #{up_forward.3} parent=5 // pred_check_branch
      %220 = sbr.rel (%p217) target = $region36
    $region35: #{up_forward.3} parent=5 // pred_region
      %s221 = ssub.s32 %s12, 1
      %p222 = scmp.lt.s32.totalorder %s21, 1
      %s223 = scalar_select %p222, %s21, 1
      %s224 = smul.addr %s223, 32
      %s225 = smul.addr %s224, 4
      %s226 = scalar_lea.vmem %s0, %s225
      %p227 = pneg %p50
      %p228 = pneg %p47
      %p229 = scmp.lt.s32.totalorder %s21, 1
      %s230 = scalar_select %p229, %s21, 1
      %s231 = smul.addr %s230, 32
      %s232 = smul.addr %s231, 4
      %s233 = scalar_lea.vmem %s1, %s232
      %p234 = pneg %p76
      %p235 = pneg %p73
      %p236 = pneg %p97
      %p237 = pneg %p94
      %p238 = pneg %p118
      %p239 = pneg %p115
      %p240 = pneg %p146
      %p241 = pneg %p143
      %s242 = smul.u32 8, %s22
      %p243 = scmp.lt.s32.totalorder %s21, 1
      %s244 = scalar_select %p243, %s21, 1
      %p245 = scmp.lt.s32.totalorder %s242, 15
      %s246 = scalar_select %p245, %s242, 15
      %s247 = smul.addr %s246, 2
      %s248 = smul.addr %s244, 32
      %s249 = sadd.s32 %s247, %s248
      %s250 = smul.addr %s249, 4
      %s251 = scalar_lea.vmem %s4, %s250
      %p252 = pneg %p174
      %p253 = pneg %p171
      %p254 = scmp.lt.s32.totalorder %s21, 1
      %s255 = scalar_select %p254, %s21, 1
      %p256 = scmp.lt.s32.totalorder %s22, 1
      %s257 = scalar_select %p256, %s22, 1
      %s258 = smul.addr %s255, 2
      %s259 = sadd.s32 %s257, %s258
      %s260 = smul.addr %s259, 2
      %s261 = scalar_lea.vmem %s5, %s260
      %p262 = scmp.lt.s32.totalorder %s21, 1
      %s263 = scalar_select %p262, %s21, 1
      %s264 = smul.addr %s263, 32
      %s265 = smul.addr %s264, 4
      %s266 = scalar_lea.vmem %s0, %s265
      %p267 = scmp.lt.s32.totalorder %s21, 1
      %s268 = scalar_select %p267, %s21, 1
      %s269 = smul.addr %s268, 32
      %s270 = smul.addr %s269, 4
      %s271 = scalar_lea.vmem %s1, %s270
      %s272 = smul.u32 8, %s22
      %p273 = scmp.lt.s32.totalorder %s21, 1
      %s274 = scalar_select %p273, %s21, 1
      %p275 = scmp.lt.s32.totalorder %s272, 15
      %s276 = scalar_select %p275, %s272, 15
      %s277 = smul.addr %s276, 2
      %s278 = smul.addr %s274, 32
      %s279 = sadd.s32 %s277, %s278
      %s280 = smul.addr %s279, 4
      %s281 = scalar_lea.vmem %s4, %s280
      %s282 = smul.u32 8, %s22
      %p283 = scmp.lt.s32.totalorder %s21, 1
      %s284 = scalar_select %p283, %s21, 1
      %p285 = scmp.lt.s32.totalorder %s22, 1
      %s286 = scalar_select %p285, %s22, 1
      %s287 = smul.addr %s284, 2
      %s288 = sadd.s32 %s286, %s287
      %s289 = smul.addr %s288, 2
      %s290 = scalar_lea.vmem %s5, %s289
      %p292 = scmp.eq.s32.totalorder %s22, 0
      // Predicated region
      $region37: #{up_forward.3} parent=35 // pred_check
        %p293 = pneg %p292
      $region38: #{up_forward.3} parent=35 // pred_check_branch
        %295 = sbr.rel (%p293) target = $region40
      $region39: #{up_forward.3} parent=35 // pred_region
        %vm296 = vcmask 27648
        %297 = vst.msk [vmem:[#allocation2] sm:$0xf] %vm296, 0
        %298 = vst.msk [vmem:[#allocation2 + $0x4] sm:$0xf] %vm296, 0
        %vm299 = vcmask 24576
        %300 = vst.msk [vmem:[#allocation2 + $0x8] sm:$0x1] %vm299, 0
        %s301 = scalar_lea.vmem [#allocation2], 204
        %302 = vst.msk [vmem:[%s301] sm:$0xf] %vm296, 0
        %303 = vst.msk [vmem:[%s301 + $0x4] sm:$0xf] %vm296, 0
        %304 = vst.msk [vmem:[%s301 + $0x8] sm:$0x1] %vm299, 0
        %vm305 = vcmask 24576
        %vm306 = vsmask.f32 256
        %vm307 = vmand %vm305, %vm306
        %v308 = vld [vmem:[#allocation2] sm:$0x1]
        %v309 = vsel %vm307, 0, %v308
        %310 = vst [vmem:[#allocation2] sm:$0x1] %v309
        %v311 = vld [vmem:[#allocation2 + $0xc] sm:$0x1]
        %v312 = vsel %vm307, 0, %v311
        %313 = vst [vmem:[#allocation2 + $0xc] sm:$0x1] %v312
        %v314 = vld [vmem:[#allocation2 + $0x18] sm:$0x1]
        %v315 = vsel %vm307, 0, %v314
        %316 = vst [vmem:[#allocation2 + $0x18] sm:$0x1] %v315
        %v317 = vld [vmem:[#allocation2 + $0x24] sm:$0x1]
        %v318 = vsel %vm307, 0, %v317
        %319 = vst [vmem:[#allocation2 + $0x24] sm:$0x1] %v318
        %v320 = vld [vmem:[#allocation2 + $0x30] sm:$0x1]
        %v321 = vsel %vm307, 0, %v320
        %322 = vst [vmem:[#allocation2 + $0x30] sm:$0x1] %v321
        %v323 = vld [vmem:[#allocation2 + $0x3c] sm:$0x1]
        %v324 = vsel %vm307, 0, %v323
        %325 = vst [vmem:[#allocation2 + $0x3c] sm:$0x1] %v324
        %v326 = vld [vmem:[#allocation2 + $0x48] sm:$0x1]
        %v327 = vsel %vm307, 0, %v326
        %328 = vst [vmem:[#allocation2 + $0x48] sm:$0x1] %v327
        %v329 = vld [vmem:[#allocation2 + $0x54] sm:$0x1]
        %v330 = vsel %vm307, 0, %v329
        %331 = vst [vmem:[#allocation2 + $0x54] sm:$0x1] %v330
        %v332 = vld [vmem:[#allocation2 + $0x60] sm:$0x1]
        %v333 = vsel %vm307, 0, %v332
        %334 = vst [vmem:[#allocation2 + $0x60] sm:$0x1] %v333
        %v335 = vld [vmem:[#allocation2 + $0x6c] sm:$0x1]
        %v336 = vsel %vm307, 0, %v335
        %337 = vst [vmem:[#allocation2 + $0x6c] sm:$0x1] %v336
        %v338 = vld [vmem:[#allocation2 + $0x78] sm:$0x1]
        %v339 = vsel %vm307, 0, %v338
        %340 = vst [vmem:[#allocation2 + $0x78] sm:$0x1] %v339
        %v341 = vld [vmem:[#allocation2 + $0x84] sm:$0x1]
        %v342 = vsel %vm307, 0, %v341
        %343 = vst [vmem:[#allocation2 + $0x84] sm:$0x1] %v342
        %v344 = vld [vmem:[#allocation2 + $0x90] sm:$0x1]
        %v345 = vsel %vm307, 0, %v344
        %346 = vst [vmem:[#allocation2 + $0x90] sm:$0x1] %v345
        %v347 = vld [vmem:[#allocation2 + $0x9c] sm:$0x1]
        %v348 = vsel %vm307, 0, %v347
        %349 = vst [vmem:[#allocation2 + $0x9c] sm:$0x1] %v348
        %v350 = vld [vmem:[#allocation2 + $0xa8] sm:$0x1]
        %v351 = vsel %vm307, 0, %v350
        %352 = vst [vmem:[#allocation2 + $0xa8] sm:$0x1] %v351
        %v353 = vld [vmem:[#allocation2 + $0xb4] sm:$0x1]
        %v354 = vsel %vm307, 0, %v353
        %355 = vst [vmem:[#allocation2 + $0xb4] sm:$0x1] %v354
        %v356 = vld [vmem:[#allocation2 + $0xc0] sm:$0x1]
        %v357 = vsel %vm307, 0, %v356
        %358 = vst [vmem:[#allocation2 + $0xc0] sm:$0x1] %v357
        %v359 = vld [vmem:[#allocation2 + $0xcc] sm:$0x1]
        %v360 = vsel %vm307, 0, %v359
        %361 = vst [vmem:[#allocation2 + $0xcc] sm:$0x1] %v360
        %vm362 = vsmask.f32 7938
        %vm363 = vmand %vm305, %vm362
        %v364 = vld [vmem:[#allocation2 + $0x8] sm:$0x1]
        %v365 = vsel %vm363, 0, %v364
        %366 = vst [vmem:[#allocation2 + $0x8] sm:$0x1] %v365
        %v367 = vld [vmem:[#allocation2 + $0x14] sm:$0x1]
        %v368 = vsel %vm363, 0, %v367
        %369 = vst [vmem:[#allocation2 + $0x14] sm:$0x1] %v368
        %v370 = vld [vmem:[#allocation2 + $0x20] sm:$0x1]
        %v371 = vsel %vm363, 0, %v370
        %372 = vst [vmem:[#allocation2 + $0x20] sm:$0x1] %v371
        %v373 = vld [vmem:[#allocation2 + $0x2c] sm:$0x1]
        %v374 = vsel %vm363, 0, %v373
        %375 = vst [vmem:[#allocation2 + $0x2c] sm:$0x1] %v374
        %v376 = vld [vmem:[#allocation2 + $0x38] sm:$0x1]
        %v377 = vsel %vm363, 0, %v376
        %378 = vst [vmem:[#allocation2 + $0x38] sm:$0x1] %v377
        %v379 = vld [vmem:[#allocation2 + $0x44] sm:$0x1]
        %v380 = vsel %vm363, 0, %v379
        %381 = vst [vmem:[#allocation2 + $0x44] sm:$0x1] %v380
        %v382 = vld [vmem:[#allocation2 + $0x50] sm:$0x1]
        %v383 = vsel %vm363, 0, %v382
        %384 = vst [vmem:[#allocation2 + $0x50] sm:$0x1] %v383
        %v385 = vld [vmem:[#allocation2 + $0x5c] sm:$0x1]
        %v386 = vsel %vm363, 0, %v385
        %387 = vst [vmem:[#allocation2 + $0x5c] sm:$0x1] %v386
        %v388 = vld [vmem:[#allocation2 + $0x68] sm:$0x1]
        %v389 = vsel %vm363, 0, %v388
        %390 = vst [vmem:[#allocation2 + $0x68] sm:$0x1] %v389
        %v391 = vld [vmem:[#allocation2 + $0x74] sm:$0x1]
        %v392 = vsel %vm363, 0, %v391
        %393 = vst [vmem:[#allocation2 + $0x74] sm:$0x1] %v392
        %v394 = vld [vmem:[#allocation2 + $0x80] sm:$0x1]
        %v395 = vsel %vm363, 0, %v394
        %396 = vst [vmem:[#allocation2 + $0x80] sm:$0x1] %v395
        %v397 = vld [vmem:[#allocation2 + $0x8c] sm:$0x1]
        %v398 = vsel %vm363, 0, %v397
        %399 = vst [vmem:[#allocation2 + $0x8c] sm:$0x1] %v398
        %v400 = vld [vmem:[#allocation2 + $0x98] sm:$0x1]
        %v401 = vsel %vm363, 0, %v400
        %402 = vst [vmem:[#allocation2 + $0x98] sm:$0x1] %v401
        %v403 = vld [vmem:[#allocation2 + $0xa4] sm:$0x1]
        %v404 = vsel %vm363, 0, %v403
        %405 = vst [vmem:[#allocation2 + $0xa4] sm:$0x1] %v404
        %v406 = vld [vmem:[#allocation2 + $0xb0] sm:$0x1]
        %v407 = vsel %vm363, 0, %v406
        %408 = vst [vmem:[#allocation2 + $0xb0] sm:$0x1] %v407
        %v409 = vld [vmem:[#allocation2 + $0xbc] sm:$0x1]
        %v410 = vsel %vm363, 0, %v409
        %411 = vst [vmem:[#allocation2 + $0xbc] sm:$0x1] %v410
        %v412 = vld [vmem:[#allocation2 + $0xc8] sm:$0x1]
        %v413 = vsel %vm363, 0, %v412
        %414 = vst [vmem:[#allocation2 + $0xc8] sm:$0x1] %v413
        %v415 = vld [vmem:[#allocation2 + $0xd4] sm:$0x1]
        %v416 = vsel %vm363, 0, %v415
        %417 = vst [vmem:[#allocation2 + $0xd4] sm:$0x1] %v416
        %418 = vst.msk [vmem:[#allocation3] sm:$0xf] %vm296, 0
        %419 = vst.msk [vmem:[#allocation3 + $0x4] sm:$0xf] %vm296, 0
        %420 = vst.msk [vmem:[#allocation3 + $0x8] sm:$0x1] %vm299, 0
        %s421 = scalar_lea.vmem [#allocation3], 204
        %422 = vst.msk [vmem:[%s421] sm:$0xf] %vm296, 0
        %423 = vst.msk [vmem:[%s421 + $0x4] sm:$0xf] %vm296, 0
        %424 = vst.msk [vmem:[%s421 + $0x8] sm:$0x1] %vm299, 0
        %v425 = vld [vmem:[#allocation3] sm:$0x1]
        %v426 = vsel %vm307, 0, %v425
        %427 = vst [vmem:[#allocation3] sm:$0x1] %v426
        %v428 = vld [vmem:[#allocation3 + $0xc] sm:$0x1]
        %v429 = vsel %vm307, 0, %v428
        %430 = vst [vmem:[#allocation3 + $0xc] sm:$0x1] %v429
        %v431 = vld [vmem:[#allocation3 + $0x18] sm:$0x1]
        %v432 = vsel %vm307, 0, %v431
        %433 = vst [vmem:[#allocation3 + $0x18] sm:$0x1] %v432
        %v434 = vld [vmem:[#allocation3 + $0x24] sm:$0x1]
        %v435 = vsel %vm307, 0, %v434
        %436 = vst [vmem:[#allocation3 + $0x24] sm:$0x1] %v435
        %v437 = vld [vmem:[#allocation3 + $0x30] sm:$0x1]
        %v438 = vsel %vm307, 0, %v437
        %439 = vst [vmem:[#allocation3 + $0x30] sm:$0x1] %v438
        %v440 = vld [vmem:[#allocation3 + $0x3c] sm:$0x1]
        %v441 = vsel %vm307, 0, %v440
        %442 = vst [vmem:[#allocation3 + $0x3c] sm:$0x1] %v441
        %v443 = vld [vmem:[#allocation3 + $0x48] sm:$0x1]
        %v444 = vsel %vm307, 0, %v443
        %445 = vst [vmem:[#allocation3 + $0x48] sm:$0x1] %v444
        %v446 = vld [vmem:[#allocation3 + $0x54] sm:$0x1]
        %v447 = vsel %vm307, 0, %v446
        %448 = vst [vmem:[#allocation3 + $0x54] sm:$0x1] %v447
        %v449 = vld [vmem:[#allocation3 + $0x60] sm:$0x1]
        %v450 = vsel %vm307, 0, %v449
        %451 = vst [vmem:[#allocation3 + $0x60] sm:$0x1] %v450
        %v452 = vld [vmem:[#allocation3 + $0x6c] sm:$0x1]
        %v453 = vsel %vm307, 0, %v452
        %454 = vst [vmem:[#allocation3 + $0x6c] sm:$0x1] %v453
        %v455 = vld [vmem:[#allocation3 + $0x78] sm:$0x1]
        %v456 = vsel %vm307, 0, %v455
        %457 = vst [vmem:[#allocation3 + $0x78] sm:$0x1] %v456
        %v458 = vld [vmem:[#allocation3 + $0x84] sm:$0x1]
        %v459 = vsel %vm307, 0, %v458
        %460 = vst [vmem:[#allocation3 + $0x84] sm:$0x1] %v459
        %v461 = vld [vmem:[#allocation3 + $0x90] sm:$0x1]
        %v462 = vsel %vm307, 0, %v461
        %463 = vst [vmem:[#allocation3 + $0x90] sm:$0x1] %v462
        %v464 = vld [vmem:[#allocation3 + $0x9c] sm:$0x1]
        %v465 = vsel %vm307, 0, %v464
        %466 = vst [vmem:[#allocation3 + $0x9c] sm:$0x1] %v465
        %v467 = vld [vmem:[#allocation3 + $0xa8] sm:$0x1]
        %v468 = vsel %vm307, 0, %v467
        %469 = vst [vmem:[#allocation3 + $0xa8] sm:$0x1] %v468
        %v470 = vld [vmem:[#allocation3 + $0xb4] sm:$0x1]
        %v471 = vsel %vm307, 0, %v470
        %472 = vst [vmem:[#allocation3 + $0xb4] sm:$0x1] %v471
        %v473 = vld [vmem:[#allocation3 + $0xc0] sm:$0x1]
        %v474 = vsel %vm307, 0, %v473
        %475 = vst [vmem:[#allocation3 + $0xc0] sm:$0x1] %v474
        %v476 = vld [vmem:[#allocation3 + $0xcc] sm:$0x1]
        %v477 = vsel %vm307, 0, %v476
        %478 = vst [vmem:[#allocation3 + $0xcc] sm:$0x1] %v477
        %v479 = vld [vmem:[#allocation3 + $0x8] sm:$0x1]
        %v480 = vsel %vm363, 0, %v479
        %481 = vst [vmem:[#allocation3 + $0x8] sm:$0x1] %v480
        %v482 = vld [vmem:[#allocation3 + $0x14] sm:$0x1]
        %v483 = vsel %vm363, 0, %v482
        %484 = vst [vmem:[#allocation3 + $0x14] sm:$0x1] %v483
        %v485 = vld [vmem:[#allocation3 + $0x20] sm:$0x1]
        %v486 = vsel %vm363, 0, %v485
        %487 = vst [vmem:[#allocation3 + $0x20] sm:$0x1] %v486
        %v488 = vld [vmem:[#allocation3 + $0x2c] sm:$0x1]
        %v489 = vsel %vm363, 0, %v488
        %490 = vst [vmem:[#allocation3 + $0x2c] sm:$0x1] %v489
        %v491 = vld [vmem:[#allocation3 + $0x38] sm:$0x1]
        %v492 = vsel %vm363, 0, %v491
        %493 = vst [vmem:[#allocation3 + $0x38] sm:$0x1] %v492
        %v494 = vld [vmem:[#allocation3 + $0x44] sm:$0x1]
        %v495 = vsel %vm363, 0, %v494
        %496 = vst [vmem:[#allocation3 + $0x44] sm:$0x1] %v495
        %v497 = vld [vmem:[#allocation3 + $0x50] sm:$0x1]
        %v498 = vsel %vm363, 0, %v497
        %499 = vst [vmem:[#allocation3 + $0x50] sm:$0x1] %v498
        %v500 = vld [vmem:[#allocation3 + $0x5c] sm:$0x1]
        %v501 = vsel %vm363, 0, %v500
        %502 = vst [vmem:[#allocation3 + $0x5c] sm:$0x1] %v501
        %v503 = vld [vmem:[#allocation3 + $0x68] sm:$0x1]
        %v504 = vsel %vm363, 0, %v503
        %505 = vst [vmem:[#allocation3 + $0x68] sm:$0x1] %v504
        %v506 = vld [vmem:[#allocation3 + $0x74] sm:$0x1]
        %v507 = vsel %vm363, 0, %v506
        %508 = vst [vmem:[#allocation3 + $0x74] sm:$0x1] %v507
        %v509 = vld [vmem:[#allocation3 + $0x80] sm:$0x1]
        %v510 = vsel %vm363, 0, %v509
        %511 = vst [vmem:[#allocation3 + $0x80] sm:$0x1] %v510
        %v512 = vld [vmem:[#allocation3 + $0x8c] sm:$0x1]
        %v513 = vsel %vm363, 0, %v512
        %514 = vst [vmem:[#allocation3 + $0x8c] sm:$0x1] %v513
        %v515 = vld [vmem:[#allocation3 + $0x98] sm:$0x1]
        %v516 = vsel %vm363, 0, %v515
        %517 = vst [vmem:[#allocation3 + $0x98] sm:$0x1] %v516
        %v518 = vld [vmem:[#allocation3 + $0xa4] sm:$0x1]
        %v519 = vsel %vm363, 0, %v518
        %520 = vst [vmem:[#allocation3 + $0xa4] sm:$0x1] %v519
        %v521 = vld [vmem:[#allocation3 + $0xb0] sm:$0x1]
        %v522 = vsel %vm363, 0, %v521
        %523 = vst [vmem:[#allocation3 + $0xb0] sm:$0x1] %v522
        %v524 = vld [vmem:[#allocation3 + $0xbc] sm:$0x1]
        %v525 = vsel %vm363, 0, %v524
        %526 = vst [vmem:[#allocation3 + $0xbc] sm:$0x1] %v525
        %v527 = vld [vmem:[#allocation3 + $0xc8] sm:$0x1]
        %v528 = vsel %vm363, 0, %v527
        %529 = vst [vmem:[#allocation3 + $0xc8] sm:$0x1] %v528
        %v530 = vld [vmem:[#allocation3 + $0xd4] sm:$0x1]
        %v531 = vsel %vm363, 0, %v530
        %532 = vst [vmem:[#allocation3 + $0xd4] sm:$0x1] %v531
        %v533 = vld [vmem:[%s266] sm:$0xf]
        %v534 = vld [vmem:[%s266 + $0x4] sm:$0xf]
        %v535 = vld [vmem:[%s266 + $0x8] sm:$0xf]
        %v536 = vld [vmem:[%s266 + $0xc] sm:$0xf]
        %v537 = vld [vmem:[%s266 + $0x10] sm:$0xf]
        %v538 = vld [vmem:[%s266 + $0x14] sm:$0xf]
        %v539 = vld [vmem:[%s266 + $0x18] sm:$0xf]
        %v540 = vld [vmem:[%s266 + $0x1c] sm:$0xf]
        %v541 = vld [vmem:[%s266 + $0x20] sm:$0xf]
        %v542 = vld [vmem:[%s266 + $0x24] sm:$0xf]
        %v543 = vld [vmem:[%s266 + $0x28] sm:$0xf]
        %v544 = vld [vmem:[%s266 + $0x2c] sm:$0xf]
        %v545 = vld [vmem:[%s266 + $0x30] sm:$0xf]
        %v546 = vld [vmem:[%s266 + $0x34] sm:$0xf]
        %v547 = vld [vmem:[%s266 + $0x38] sm:$0xf]
        %v548 = vld [vmem:[%s266 + $0x3c] sm:$0xf]
        %v549 = vld [vmem:[%s266 + $0x40] sm:$0xf]
        %v550 = vld [vmem:[%s266 + $0x44] sm:$0xf]
        %v551 = vld [vmem:[%s266 + $0x48] sm:$0xf]
        %v552 = vld [vmem:[%s266 + $0x4c] sm:$0xf]
        %v553 = vld [vmem:[%s266 + $0x50] sm:$0xf]
        %v554 = vld [vmem:[%s266 + $0x54] sm:$0xf]
        %v555 = vld [vmem:[%s266 + $0x58] sm:$0xf]
        %v556 = vld [vmem:[%s266 + $0x5c] sm:$0xf]
        %v557 = vld [vmem:[%s266 + $0x60] sm:$0xf]
        %v558 = vld [vmem:[%s266 + $0x64] sm:$0xf]
        %v559 = vld [vmem:[%s266 + $0x68] sm:$0xf]
        %v560 = vld [vmem:[%s266 + $0x6c] sm:$0xf]
        %v561 = vld [vmem:[%s266 + $0x70] sm:$0xf]
        %v562 = vld [vmem:[%s266 + $0x74] sm:$0xf]
        %v563 = vld [vmem:[%s266 + $0x78] sm:$0xf]
        %v564 = vld [vmem:[%s266 + $0x7c] sm:$0xf]
        %vm565 = vsmask.f32 4368
        %vm566 = vmor %vm306, %vm565
        %v568 = vshrl.u32 %v533, 16
        %v570 = vrot.slane %v568, 7
        %v571 = vshll.u32 %v533, 16
        %v573 = vor.u32 %v570, %v571
        %v574 = vrot.slane %v570, 4
        %v576 = vshrl.u32 %v534, 16
        %v578 = vrot.slane %v576, 7
        %v579 = vshll.u32 %v534, 16
        %v581 = vor.u32 %v578, %v579
        %v582 = vsel %vm566, %v574, %v581
        %v583 = vrot.slane %v578, 4
        %v585 = vshrl.u32 %v535, 16
        %v587 = vrot.slane %v585, 7
        %v588 = vshll.u32 %v535, 16
        %v590 = vor.u32 %v587, %v588
        %v591 = vrot.slane %v587, 4
        %v593 = vshrl.u32 %v536, 16
        %v595 = vrot.slane %v593, 7
        %v596 = vshll.u32 %v536, 16
        %v598 = vor.u32 %v595, %v596
        %v599 = vsel %vm566, %v591, %v598
        %v600 = vrot.slane %v595, 4
        %v602 = vshrl.u32 %v537, 16
        %v604 = vrot.slane %v602, 7
        %v605 = vshll.u32 %v537, 16
        %v607 = vor.u32 %v604, %v605
        %v608 = vrot.slane %v604, 4
        %v610 = vshrl.u32 %v538, 16
        %v612 = vrot.slane %v610, 7
        %v613 = vshll.u32 %v538, 16
        %v615 = vor.u32 %v612, %v613
        %v616 = vsel %vm566, %v608, %v615
        %v617 = vrot.slane %v612, 4
        %v619 = vshrl.u32 %v539, 16
        %v621 = vrot.slane %v619, 7
        %v622 = vshll.u32 %v539, 16
        %v624 = vor.u32 %v621, %v622
        %v625 = vrot.slane %v621, 4
        %v627 = vshrl.u32 %v540, 16
        %v629 = vrot.slane %v627, 7
        %v630 = vshll.u32 %v540, 16
        %v632 = vor.u32 %v629, %v630
        %v633 = vsel %vm566, %v625, %v632
        %v634 = vrot.slane %v629, 4
        %v636 = vshrl.u32 %v541, 16
        %v638 = vrot.slane %v636, 7
        %v639 = vshll.u32 %v541, 16
        %v641 = vor.u32 %v638, %v639
        %v642 = vrot.slane %v638, 4
        %v644 = vshrl.u32 %v542, 16
        %v646 = vrot.slane %v644, 7
        %v647 = vshll.u32 %v542, 16
        %v649 = vor.u32 %v646, %v647
        %v650 = vsel %vm566, %v642, %v649
        %v651 = vrot.slane %v646, 4
        %v653 = vshrl.u32 %v543, 16
        %v655 = vrot.slane %v653, 7
        %v656 = vshll.u32 %v543, 16
        %v658 = vor.u32 %v655, %v656
        %v659 = vrot.slane %v655, 4
        %v661 = vshrl.u32 %v544, 16
        %v663 = vrot.slane %v661, 7
        %v664 = vshll.u32 %v544, 16
        %v666 = vor.u32 %v663, %v664
        %v667 = vsel %vm566, %v659, %v666
        %v668 = vrot.slane %v663, 4
        %v670 = vshrl.u32 %v545, 16
        %v672 = vrot.slane %v670, 7
        %v673 = vshll.u32 %v545, 16
        %v675 = vor.u32 %v672, %v673
        %v676 = vrot.slane %v672, 4
        %v678 = vshrl.u32 %v546, 16
        %v680 = vrot.slane %v678, 7
        %v681 = vshll.u32 %v546, 16
        %v683 = vor.u32 %v680, %v681
        %v684 = vsel %vm566, %v676, %v683
        %v685 = vrot.slane %v680, 4
        %v687 = vshrl.u32 %v547, 16
        %v689 = vrot.slane %v687, 7
        %v690 = vshll.u32 %v547, 16
        %v692 = vor.u32 %v689, %v690
        %v693 = vrot.slane %v689, 4
        %v695 = vshrl.u32 %v548, 16
        %v697 = vrot.slane %v695, 7
        %v698 = vshll.u32 %v548, 16
        %v700 = vor.u32 %v697, %v698
        %v701 = vsel %vm566, %v693, %v700
        %v702 = vrot.slane %v697, 4
        %v704 = vshrl.u32 %v549, 16
        %v706 = vrot.slane %v704, 7
        %v707 = vshll.u32 %v549, 16
        %v709 = vor.u32 %v706, %v707
        %v710 = vrot.slane %v706, 4
        %v712 = vshrl.u32 %v550, 16
        %v714 = vrot.slane %v712, 7
        %v715 = vshll.u32 %v550, 16
        %v717 = vor.u32 %v714, %v715
        %v718 = vsel %vm566, %v710, %v717
        %v719 = vrot.slane %v714, 4
        %v721 = vshrl.u32 %v551, 16
        %v723 = vrot.slane %v721, 7
        %v724 = vshll.u32 %v551, 16
        %v726 = vor.u32 %v723, %v724
        %v727 = vrot.slane %v723, 4
        %v729 = vshrl.u32 %v552, 16
        %v731 = vrot.slane %v729, 7
        %v732 = vshll.u32 %v552, 16
        %v734 = vor.u32 %v731, %v732
        %v735 = vsel %vm566, %v727, %v734
        %v736 = vrot.slane %v731, 4
        %v738 = vshrl.u32 %v553, 16
        %v740 = vrot.slane %v738, 7
        %v741 = vshll.u32 %v553, 16
        %v743 = vor.u32 %v740, %v741
        %v744 = vrot.slane %v740, 4
        %v746 = vshrl.u32 %v554, 16
        %v748 = vrot.slane %v746, 7
        %v749 = vshll.u32 %v554, 16
        %v751 = vor.u32 %v748, %v749
        %v752 = vsel %vm566, %v744, %v751
        %v753 = vrot.slane %v748, 4
        %v755 = vshrl.u32 %v555, 16
        %v757 = vrot.slane %v755, 7
        %v758 = vshll.u32 %v555, 16
        %v760 = vor.u32 %v757, %v758
        %v761 = vrot.slane %v757, 4
        %v763 = vshrl.u32 %v556, 16
        %v765 = vrot.slane %v763, 7
        %v766 = vshll.u32 %v556, 16
        %v768 = vor.u32 %v765, %v766
        %v769 = vsel %vm566, %v761, %v768
        %v770 = vrot.slane %v765, 4
        %v772 = vshrl.u32 %v557, 16
        %v774 = vrot.slane %v772, 7
        %v775 = vshll.u32 %v557, 16
        %v777 = vor.u32 %v774, %v775
        %v778 = vrot.slane %v774, 4
        %v780 = vshrl.u32 %v558, 16
        %v782 = vrot.slane %v780, 7
        %v783 = vshll.u32 %v558, 16
        %v785 = vor.u32 %v782, %v783
        %v786 = vsel %vm566, %v778, %v785
        %v787 = vrot.slane %v782, 4
        %v789 = vshrl.u32 %v559, 16
        %v791 = vrot.slane %v789, 7
        %v792 = vshll.u32 %v559, 16
        %v794 = vor.u32 %v791, %v792
        %v795 = vrot.slane %v791, 4
        %v797 = vshrl.u32 %v560, 16
        %v799 = vrot.slane %v797, 7
        %v800 = vshll.u32 %v560, 16
        %v802 = vor.u32 %v799, %v800
        %v803 = vsel %vm566, %v795, %v802
        %v804 = vrot.slane %v799, 4
        %v806 = vshrl.u32 %v561, 16
        %v808 = vrot.slane %v806, 7
        %v809 = vshll.u32 %v561, 16
        %v811 = vor.u32 %v808, %v809
        %v812 = vrot.slane %v808, 4
        %v814 = vshrl.u32 %v562, 16
        %v816 = vrot.slane %v814, 7
        %v817 = vshll.u32 %v562, 16
        %v819 = vor.u32 %v816, %v817
        %v820 = vsel %vm566, %v812, %v819
        %v821 = vrot.slane %v816, 4
        %v823 = vshrl.u32 %v563, 16
        %v825 = vrot.slane %v823, 7
        %v826 = vshll.u32 %v563, 16
        %v828 = vor.u32 %v825, %v826
        %v829 = vrot.slane %v825, 4
        %v831 = vshrl.u32 %v564, 16
        %v833 = vrot.slane %v831, 7
        %v834 = vshll.u32 %v564, 16
        %v836 = vor.u32 %v833, %v834
        %v837 = vsel %vm566, %v829, %v836
        %v838 = vrot.slane %v833, 4
        %s887 = scalar_lea.vmem [#allocation2], 12
        %vm888 = vcmask 27648
        %vm889 = vmand %vm888, %vm362
        %v890 = vld [vmem:[%s887] sm:$0xf]
        %v891 = vsel %vm889, %v573, %v890
        %892 = vst [vmem:[%s887] sm:$0xf] %v891
        %893 = vst.msk [vmem:[%s887 + $0x4] sm:$0xf] %vm296, %v582
        %v894 = vld [vmem:[%s887 + $0x8] sm:$0x1]
        %v895 = vsel %vm307, %v583, %v894
        %896 = vst [vmem:[%s887 + $0x8] sm:$0x1] %v895
        %v897 = vld [vmem:[%s887 + $0xc] sm:$0xf]
        %v898 = vsel %vm889, %v590, %v897
        %899 = vst [vmem:[%s887 + $0xc] sm:$0xf] %v898
        %900 = vst.msk [vmem:[%s887 + $0x10] sm:$0xf] %vm296, %v599
        %v901 = vld [vmem:[%s887 + $0x14] sm:$0x1]
        %v902 = vsel %vm307, %v600, %v901
        %903 = vst [vmem:[%s887 + $0x14] sm:$0x1] %v902
        %v904 = vld [vmem:[%s887 + $0x18] sm:$0xf]
        %v905 = vsel %vm889, %v607, %v904
        %906 = vst [vmem:[%s887 + $0x18] sm:$0xf] %v905
        %907 = vst.msk [vmem:[%s887 + $0x1c] sm:$0xf] %vm296, %v616
        %v908 = vld [vmem:[%s887 + $0x20] sm:$0x1]
        %v909 = vsel %vm307, %v617, %v908
        %910 = vst [vmem:[%s887 + $0x20] sm:$0x1] %v909
        %v911 = vld [vmem:[%s887 + $0x24] sm:$0xf]
        %v912 = vsel %vm889, %v624, %v911
        %913 = vst [vmem:[%s887 + $0x24] sm:$0xf] %v912
        %914 = vst.msk [vmem:[%s887 + $0x28] sm:$0xf] %vm296, %v633
        %v915 = vld [vmem:[%s887 + $0x2c] sm:$0x1]
        %v916 = vsel %vm307, %v634, %v915
        %917 = vst [vmem:[%s887 + $0x2c] sm:$0x1] %v916
        %v918 = vld [vmem:[%s887 + $0x30] sm:$0xf]
        %v919 = vsel %vm889, %v641, %v918
        %920 = vst [vmem:[%s887 + $0x30] sm:$0xf] %v919
        %921 = vst.msk [vmem:[%s887 + $0x34] sm:$0xf] %vm296, %v650
        %v922 = vld [vmem:[%s887 + $0x38] sm:$0x1]
        %v923 = vsel %vm307, %v651, %v922
        %924 = vst [vmem:[%s887 + $0x38] sm:$0x1] %v923
        %v925 = vld [vmem:[%s887 + $0x3c] sm:$0xf]
        %v926 = vsel %vm889, %v658, %v925
        %927 = vst [vmem:[%s887 + $0x3c] sm:$0xf] %v926
        %928 = vst.msk [vmem:[%s887 + $0x40] sm:$0xf] %vm296, %v667
        %v929 = vld [vmem:[%s887 + $0x44] sm:$0x1]
        %v930 = vsel %vm307, %v668, %v929
        %931 = vst [vmem:[%s887 + $0x44] sm:$0x1] %v930
        %v932 = vld [vmem:[%s887 + $0x48] sm:$0xf]
        %v933 = vsel %vm889, %v675, %v932
        %934 = vst [vmem:[%s887 + $0x48] sm:$0xf] %v933
        %935 = vst.msk [vmem:[%s887 + $0x4c] sm:$0xf] %vm296, %v684
        %v936 = vld [vmem:[%s887 + $0x50] sm:$0x1]
        %v937 = vsel %vm307, %v685, %v936
        %938 = vst [vmem:[%s887 + $0x50] sm:$0x1] %v937
        %v939 = vld [vmem:[%s887 + $0x54] sm:$0xf]
        %v940 = vsel %vm889, %v692, %v939
        %941 = vst [vmem:[%s887 + $0x54] sm:$0xf] %v940
        %942 = vst.msk [vmem:[%s887 + $0x58] sm:$0xf] %vm296, %v701
        %v943 = vld [vmem:[%s887 + $0x5c] sm:$0x1]
        %v944 = vsel %vm307, %v702, %v943
        %945 = vst [vmem:[%s887 + $0x5c] sm:$0x1] %v944
        %v946 = vld [vmem:[%s887 + $0x60] sm:$0xf]
        %v947 = vsel %vm889, %v709, %v946
        %948 = vst [vmem:[%s887 + $0x60] sm:$0xf] %v947
        %949 = vst.msk [vmem:[%s887 + $0x64] sm:$0xf] %vm296, %v718
        %v950 = vld [vmem:[%s887 + $0x68] sm:$0x1]
        %v951 = vsel %vm307, %v719, %v950
        %952 = vst [vmem:[%s887 + $0x68] sm:$0x1] %v951
        %v953 = vld [vmem:[%s887 + $0x6c] sm:$0xf]
        %v954 = vsel %vm889, %v726, %v953
        %955 = vst [vmem:[%s887 + $0x6c] sm:$0xf] %v954
        %956 = vst.msk [vmem:[%s887 + $0x70] sm:$0xf] %vm296, %v735
        %v957 = vld [vmem:[%s887 + $0x74] sm:$0x1]
        %v958 = vsel %vm307, %v736, %v957
        %959 = vst [vmem:[%s887 + $0x74] sm:$0x1] %v958
        %v960 = vld [vmem:[%s887 + $0x78] sm:$0xf]
        %v961 = vsel %vm889, %v743, %v960
        %962 = vst [vmem:[%s887 + $0x78] sm:$0xf] %v961
        %963 = vst.msk [vmem:[%s887 + $0x7c] sm:$0xf] %vm296, %v752
        %v964 = vld [vmem:[%s887 + $0x80] sm:$0x1]
        %v965 = vsel %vm307, %v753, %v964
        %966 = vst [vmem:[%s887 + $0x80] sm:$0x1] %v965
        %v967 = vld [vmem:[%s887 + $0x84] sm:$0xf]
        %v968 = vsel %vm889, %v760, %v967
        %969 = vst [vmem:[%s887 + $0x84] sm:$0xf] %v968
        %970 = vst.msk [vmem:[%s887 + $0x88] sm:$0xf] %vm296, %v769
        %v971 = vld [vmem:[%s887 + $0x8c] sm:$0x1]
        %v972 = vsel %vm307, %v770, %v971
        %973 = vst [vmem:[%s887 + $0x8c] sm:$0x1] %v972
        %v974 = vld [vmem:[%s887 + $0x90] sm:$0xf]
        %v975 = vsel %vm889, %v777, %v974
        %976 = vst [vmem:[%s887 + $0x90] sm:$0xf] %v975
        %977 = vst.msk [vmem:[%s887 + $0x94] sm:$0xf] %vm296, %v786
        %v978 = vld [vmem:[%s887 + $0x98] sm:$0x1]
        %v979 = vsel %vm307, %v787, %v978
        %980 = vst [vmem:[%s887 + $0x98] sm:$0x1] %v979
        %v981 = vld [vmem:[%s887 + $0x9c] sm:$0xf]
        %v982 = vsel %vm889, %v794, %v981
        %983 = vst [vmem:[%s887 + $0x9c] sm:$0xf] %v982
        %984 = vst.msk [vmem:[%s887 + $0xa0] sm:$0xf] %vm296, %v803
        %v985 = vld [vmem:[%s887 + $0xa4] sm:$0x1]
        %v986 = vsel %vm307, %v804, %v985
        %987 = vst [vmem:[%s887 + $0xa4] sm:$0x1] %v986
        %v988 = vld [vmem:[%s887 + $0xa8] sm:$0xf]
        %v989 = vsel %vm889, %v811, %v988
        %990 = vst [vmem:[%s887 + $0xa8] sm:$0xf] %v989
        %991 = vst.msk [vmem:[%s887 + $0xac] sm:$0xf] %vm296, %v820
        %v992 = vld [vmem:[%s887 + $0xb0] sm:$0x1]
        %v993 = vsel %vm307, %v821, %v992
        %994 = vst [vmem:[%s887 + $0xb0] sm:$0x1] %v993
        %v995 = vld [vmem:[%s887 + $0xb4] sm:$0xf]
        %v996 = vsel %vm889, %v828, %v995
        %997 = vst [vmem:[%s887 + $0xb4] sm:$0xf] %v996
        %998 = vst.msk [vmem:[%s887 + $0xb8] sm:$0xf] %vm296, %v837
        %v999 = vld [vmem:[%s887 + $0xbc] sm:$0x1]
        %v1000 = vsel %vm307, %v838, %v999
        %1001 = vst [vmem:[%s887 + $0xbc] sm:$0x1] %v1000
        %v1002 = vld [vmem:[%s271] sm:$0xf]
        %v1003 = vld [vmem:[%s271 + $0x4] sm:$0xf]
        %v1004 = vld [vmem:[%s271 + $0x8] sm:$0xf]
        %v1005 = vld [vmem:[%s271 + $0xc] sm:$0xf]
        %v1006 = vld [vmem:[%s271 + $0x10] sm:$0xf]
        %v1007 = vld [vmem:[%s271 + $0x14] sm:$0xf]
        %v1008 = vld [vmem:[%s271 + $0x18] sm:$0xf]
        %v1009 = vld [vmem:[%s271 + $0x1c] sm:$0xf]
        %v1010 = vld [vmem:[%s271 + $0x20] sm:$0xf]
        %v1011 = vld [vmem:[%s271 + $0x24] sm:$0xf]
        %v1012 = vld [vmem:[%s271 + $0x28] sm:$0xf]
        %v1013 = vld [vmem:[%s271 + $0x2c] sm:$0xf]
        %v1014 = vld [vmem:[%s271 + $0x30] sm:$0xf]
        %v1015 = vld [vmem:[%s271 + $0x34] sm:$0xf]
        %v1016 = vld [vmem:[%s271 + $0x38] sm:$0xf]
        %v1017 = vld [vmem:[%s271 + $0x3c] sm:$0xf]
        %v1018 = vld [vmem:[%s271 + $0x40] sm:$0xf]
        %v1019 = vld [vmem:[%s271 + $0x44] sm:$0xf]
        %v1020 = vld [vmem:[%s271 + $0x48] sm:$0xf]
        %v1021 = vld [vmem:[%s271 + $0x4c] sm:$0xf]
        %v1022 = vld [vmem:[%s271 + $0x50] sm:$0xf]
        %v1023 = vld [vmem:[%s271 + $0x54] sm:$0xf]
        %v1024 = vld [vmem:[%s271 + $0x58] sm:$0xf]
        %v1025 = vld [vmem:[%s271 + $0x5c] sm:$0xf]
        %v1026 = vld [vmem:[%s271 + $0x60] sm:$0xf]
        %v1027 = vld [vmem:[%s271 + $0x64] sm:$0xf]
        %v1028 = vld [vmem:[%s271 + $0x68] sm:$0xf]
        %v1029 = vld [vmem:[%s271 + $0x6c] sm:$0xf]
        %v1030 = vld [vmem:[%s271 + $0x70] sm:$0xf]
        %v1031 = vld [vmem:[%s271 + $0x74] sm:$0xf]
        %v1032 = vld [vmem:[%s271 + $0x78] sm:$0xf]
        %v1033 = vld [vmem:[%s271 + $0x7c] sm:$0xf]
        %v1035 = vshrl.u32 %v1002, 16
        %v1037 = vrot.slane %v1035, 7
        %v1038 = vshll.u32 %v1002, 16
        %v1040 = vor.u32 %v1037, %v1038
        %v1041 = vrot.slane %v1037, 4
        %v1043 = vshrl.u32 %v1003, 16
        %v1045 = vrot.slane %v1043, 7
        %v1046 = vshll.u32 %v1003, 16
        %v1048 = vor.u32 %v1045, %v1046
        %v1049 = vsel %vm566, %v1041, %v1048
        %v1050 = vrot.slane %v1045, 4
        %v1052 = vshrl.u32 %v1004, 16
        %v1054 = vrot.slane %v1052, 7
        %v1055 = vshll.u32 %v1004, 16
        %v1057 = vor.u32 %v1054, %v1055
        %v1058 = vrot.slane %v1054, 4
        %v1060 = vshrl.u32 %v1005, 16
        %v1062 = vrot.slane %v1060, 7
        %v1063 = vshll.u32 %v1005, 16
        %v1065 = vor.u32 %v1062, %v1063
        %v1066 = vsel %vm566, %v1058, %v1065
        %v1067 = vrot.slane %v1062, 4
        %v1069 = vshrl.u32 %v1006, 16
        %v1071 = vrot.slane %v1069, 7
        %v1072 = vshll.u32 %v1006, 16
        %v1074 = vor.u32 %v1071, %v1072
        %v1075 = vrot.slane %v1071, 4
        %v1077 = vshrl.u32 %v1007, 16
        %v1079 = vrot.slane %v1077, 7
        %v1080 = vshll.u32 %v1007, 16
        %v1082 = vor.u32 %v1079, %v1080
        %v1083 = vsel %vm566, %v1075, %v1082
        %v1084 = vrot.slane %v1079, 4
        %v1086 = vshrl.u32 %v1008, 16
        %v1088 = vrot.slane %v1086, 7
        %v1089 = vshll.u32 %v1008, 16
        %v1091 = vor.u32 %v1088, %v1089
        %v1092 = vrot.slane %v1088, 4
        %v1094 = vshrl.u32 %v1009, 16
        %v1096 = vrot.slane %v1094, 7
        %v1097 = vshll.u32 %v1009, 16
        %v1099 = vor.u32 %v1096, %v1097
        %v1100 = vsel %vm566, %v1092, %v1099
        %v1101 = vrot.slane %v1096, 4
        %v1103 = vshrl.u32 %v1010, 16
        %v1105 = vrot.slane %v1103, 7
        %v1106 = vshll.u32 %v1010, 16
        %v1108 = vor.u32 %v1105, %v1106
        %v1109 = vrot.slane %v1105, 4
        %v1111 = vshrl.u32 %v1011, 16
        %v1113 = vrot.slane %v1111, 7
        %v1114 = vshll.u32 %v1011, 16
        %v1116 = vor.u32 %v1113, %v1114
        %v1117 = vsel %vm566, %v1109, %v1116
        %v1118 = vrot.slane %v1113, 4
        %v1120 = vshrl.u32 %v1012, 16
        %v1122 = vrot.slane %v1120, 7
        %v1123 = vshll.u32 %v1012, 16
        %v1125 = vor.u32 %v1122, %v1123
        %v1126 = vrot.slane %v1122, 4
        %v1128 = vshrl.u32 %v1013, 16
        %v1130 = vrot.slane %v1128, 7
        %v1131 = vshll.u32 %v1013, 16
        %v1133 = vor.u32 %v1130, %v1131
        %v1134 = vsel %vm566, %v1126, %v1133
        %v1135 = vrot.slane %v1130, 4
        %v1137 = vshrl.u32 %v1014, 16
        %v1139 = vrot.slane %v1137, 7
        %v1140 = vshll.u32 %v1014, 16
        %v1142 = vor.u32 %v1139, %v1140
        %v1143 = vrot.slane %v1139, 4
        %v1145 = vshrl.u32 %v1015, 16
        %v1147 = vrot.slane %v1145, 7
        %v1148 = vshll.u32 %v1015, 16
        %v1150 = vor.u32 %v1147, %v1148
        %v1151 = vsel %vm566, %v1143, %v1150
        %v1152 = vrot.slane %v1147, 4
        %v1154 = vshrl.u32 %v1016, 16
        %v1156 = vrot.slane %v1154, 7
        %v1157 = vshll.u32 %v1016, 16
        %v1159 = vor.u32 %v1156, %v1157
        %v1160 = vrot.slane %v1156, 4
        %v1162 = vshrl.u32 %v1017, 16
        %v1164 = vrot.slane %v1162, 7
        %v1165 = vshll.u32 %v1017, 16
        %v1167 = vor.u32 %v1164, %v1165
        %v1168 = vsel %vm566, %v1160, %v1167
        %v1169 = vrot.slane %v1164, 4
        %v1171 = vshrl.u32 %v1018, 16
        %v1173 = vrot.slane %v1171, 7
        %v1174 = vshll.u32 %v1018, 16
        %v1176 = vor.u32 %v1173, %v1174
        %v1177 = vrot.slane %v1173, 4
        %v1179 = vshrl.u32 %v1019, 16
        %v1181 = vrot.slane %v1179, 7
        %v1182 = vshll.u32 %v1019, 16
        %v1184 = vor.u32 %v1181, %v1182
        %v1185 = vsel %vm566, %v1177, %v1184
        %v1186 = vrot.slane %v1181, 4
        %v1188 = vshrl.u32 %v1020, 16
        %v1190 = vrot.slane %v1188, 7
        %v1191 = vshll.u32 %v1020, 16
        %v1193 = vor.u32 %v1190, %v1191
        %v1194 = vrot.slane %v1190, 4
        %v1196 = vshrl.u32 %v1021, 16
        %v1198 = vrot.slane %v1196, 7
        %v1199 = vshll.u32 %v1021, 16
        %v1201 = vor.u32 %v1198, %v1199
        %v1202 = vsel %vm566, %v1194, %v1201
        %v1203 = vrot.slane %v1198, 4
        %v1205 = vshrl.u32 %v1022, 16
        %v1207 = vrot.slane %v1205, 7
        %v1208 = vshll.u32 %v1022, 16
        %v1210 = vor.u32 %v1207, %v1208
        %v1211 = vrot.slane %v1207, 4
        %v1213 = vshrl.u32 %v1023, 16
        %v1215 = vrot.slane %v1213, 7
        %v1216 = vshll.u32 %v1023, 16
        %v1218 = vor.u32 %v1215, %v1216
        %v1219 = vsel %vm566, %v1211, %v1218
        %v1220 = vrot.slane %v1215, 4
        %v1222 = vshrl.u32 %v1024, 16
        %v1224 = vrot.slane %v1222, 7
        %v1225 = vshll.u32 %v1024, 16
        %v1227 = vor.u32 %v1224, %v1225
        %v1228 = vrot.slane %v1224, 4
        %v1230 = vshrl.u32 %v1025, 16
        %v1232 = vrot.slane %v1230, 7
        %v1233 = vshll.u32 %v1025, 16
        %v1235 = vor.u32 %v1232, %v1233
        %v1236 = vsel %vm566, %v1228, %v1235
        %v1237 = vrot.slane %v1232, 4
        %v1239 = vshrl.u32 %v1026, 16
        %v1241 = vrot.slane %v1239, 7
        %v1242 = vshll.u32 %v1026, 16
        %v1244 = vor.u32 %v1241, %v1242
        %v1245 = vrot.slane %v1241, 4
        %v1247 = vshrl.u32 %v1027, 16
        %v1249 = vrot.slane %v1247, 7
        %v1250 = vshll.u32 %v1027, 16
        %v1252 = vor.u32 %v1249, %v1250
        %v1253 = vsel %vm566, %v1245, %v1252
        %v1254 = vrot.slane %v1249, 4
        %v1256 = vshrl.u32 %v1028, 16
        %v1258 = vrot.slane %v1256, 7
        %v1259 = vshll.u32 %v1028, 16
        %v1261 = vor.u32 %v1258, %v1259
        %v1262 = vrot.slane %v1258, 4
        %v1264 = vshrl.u32 %v1029, 16
        %v1266 = vrot.slane %v1264, 7
        %v1267 = vshll.u32 %v1029, 16
        %v1269 = vor.u32 %v1266, %v1267
        %v1270 = vsel %vm566, %v1262, %v1269
        %v1271 = vrot.slane %v1266, 4
        %v1273 = vshrl.u32 %v1030, 16
        %v1275 = vrot.slane %v1273, 7
        %v1276 = vshll.u32 %v1030, 16
        %v1278 = vor.u32 %v1275, %v1276
        %v1279 = vrot.slane %v1275, 4
        %v1281 = vshrl.u32 %v1031, 16
        %v1283 = vrot.slane %v1281, 7
        %v1284 = vshll.u32 %v1031, 16
        %v1286 = vor.u32 %v1283, %v1284
        %v1287 = vsel %vm566, %v1279, %v1286
        %v1288 = vrot.slane %v1283, 4
        %v1290 = vshrl.u32 %v1032, 16
        %v1292 = vrot.slane %v1290, 7
        %v1293 = vshll.u32 %v1032, 16
        %v1295 = vor.u32 %v1292, %v1293
        %v1296 = vrot.slane %v1292, 4
        %v1298 = vshrl.u32 %v1033, 16
        %v1300 = vrot.slane %v1298, 7
        %v1301 = vshll.u32 %v1033, 16
        %v1303 = vor.u32 %v1300, %v1301
        %v1304 = vsel %vm566, %v1296, %v1303
        %v1305 = vrot.slane %v1300, 4
        %s1354 = scalar_lea.vmem [#allocation3], 12
        %v1355 = vld [vmem:[%s1354] sm:$0xf]
        %v1356 = vsel %vm889, %v1040, %v1355
        %1357 = vst [vmem:[%s1354] sm:$0xf] %v1356
        %1358 = vst.msk [vmem:[%s1354 + $0x4] sm:$0xf] %vm296, %v1049
        %v1359 = vld [vmem:[%s1354 + $0x8] sm:$0x1]
        %v1360 = vsel %vm307, %v1050, %v1359
        %1361 = vst [vmem:[%s1354 + $0x8] sm:$0x1] %v1360
        %v1362 = vld [vmem:[%s1354 + $0xc] sm:$0xf]
        %v1363 = vsel %vm889, %v1057, %v1362
        %1364 = vst [vmem:[%s1354 + $0xc] sm:$0xf] %v1363
        %1365 = vst.msk [vmem:[%s1354 + $0x10] sm:$0xf] %vm296, %v1066
        %v1366 = vld [vmem:[%s1354 + $0x14] sm:$0x1]
        %v1367 = vsel %vm307, %v1067, %v1366
        %1368 = vst [vmem:[%s1354 + $0x14] sm:$0x1] %v1367
        %v1369 = vld [vmem:[%s1354 + $0x18] sm:$0xf]
        %v1370 = vsel %vm889, %v1074, %v1369
        %1371 = vst [vmem:[%s1354 + $0x18] sm:$0xf] %v1370
        %1372 = vst.msk [vmem:[%s1354 + $0x1c] sm:$0xf] %vm296, %v1083
        %v1373 = vld [vmem:[%s1354 + $0x20] sm:$0x1]
        %v1374 = vsel %vm307, %v1084, %v1373
        %1375 = vst [vmem:[%s1354 + $0x20] sm:$0x1] %v1374
        %v1376 = vld [vmem:[%s1354 + $0x24] sm:$0xf]
        %v1377 = vsel %vm889, %v1091, %v1376
        %1378 = vst [vmem:[%s1354 + $0x24] sm:$0xf] %v1377
        %1379 = vst.msk [vmem:[%s1354 + $0x28] sm:$0xf] %vm296, %v1100
        %v1380 = vld [vmem:[%s1354 + $0x2c] sm:$0x1]
        %v1381 = vsel %vm307, %v1101, %v1380
        %1382 = vst [vmem:[%s1354 + $0x2c] sm:$0x1] %v1381
        %v1383 = vld [vmem:[%s1354 + $0x30] sm:$0xf]
        %v1384 = vsel %vm889, %v1108, %v1383
        %1385 = vst [vmem:[%s1354 + $0x30] sm:$0xf] %v1384
        %1386 = vst.msk [vmem:[%s1354 + $0x34] sm:$0xf] %vm296, %v1117
        %v1387 = vld [vmem:[%s1354 + $0x38] sm:$0x1]
        %v1388 = vsel %vm307, %v1118, %v1387
        %1389 = vst [vmem:[%s1354 + $0x38] sm:$0x1] %v1388
        %v1390 = vld [vmem:[%s1354 + $0x3c] sm:$0xf]
        %v1391 = vsel %vm889, %v1125, %v1390
        %1392 = vst [vmem:[%s1354 + $0x3c] sm:$0xf] %v1391
        %1393 = vst.msk [vmem:[%s1354 + $0x40] sm:$0xf] %vm296, %v1134
        %v1394 = vld [vmem:[%s1354 + $0x44] sm:$0x1]
        %v1395 = vsel %vm307, %v1135, %v1394
        %1396 = vst [vmem:[%s1354 + $0x44] sm:$0x1] %v1395
        %v1397 = vld [vmem:[%s1354 + $0x48] sm:$0xf]
        %v1398 = vsel %vm889, %v1142, %v1397
        %1399 = vst [vmem:[%s1354 + $0x48] sm:$0xf] %v1398
        %1400 = vst.msk [vmem:[%s1354 + $0x4c] sm:$0xf] %vm296, %v1151
        %v1401 = vld [vmem:[%s1354 + $0x50] sm:$0x1]
        %v1402 = vsel %vm307, %v1152, %v1401
        %1403 = vst [vmem:[%s1354 + $0x50] sm:$0x1] %v1402
        %v1404 = vld [vmem:[%s1354 + $0x54] sm:$0xf]
        %v1405 = vsel %vm889, %v1159, %v1404
        %1406 = vst [vmem:[%s1354 + $0x54] sm:$0xf] %v1405
        %1407 = vst.msk [vmem:[%s1354 + $0x58] sm:$0xf] %vm296, %v1168
        %v1408 = vld [vmem:[%s1354 + $0x5c] sm:$0x1]
        %v1409 = vsel %vm307, %v1169, %v1408
        %1410 = vst [vmem:[%s1354 + $0x5c] sm:$0x1] %v1409
        %v1411 = vld [vmem:[%s1354 + $0x60] sm:$0xf]
        %v1412 = vsel %vm889, %v1176, %v1411
        %1413 = vst [vmem:[%s1354 + $0x60] sm:$0xf] %v1412
        %1414 = vst.msk [vmem:[%s1354 + $0x64] sm:$0xf] %vm296, %v1185
        %v1415 = vld [vmem:[%s1354 + $0x68] sm:$0x1]
        %v1416 = vsel %vm307, %v1186, %v1415
        %1417 = vst [vmem:[%s1354 + $0x68] sm:$0x1] %v1416
        %v1418 = vld [vmem:[%s1354 + $0x6c] sm:$0xf]
        %v1419 = vsel %vm889, %v1193, %v1418
        %1420 = vst [vmem:[%s1354 + $0x6c] sm:$0xf] %v1419
        %1421 = vst.msk [vmem:[%s1354 + $0x70] sm:$0xf] %vm296, %v1202
        %v1422 = vld [vmem:[%s1354 + $0x74] sm:$0x1]
        %v1423 = vsel %vm307, %v1203, %v1422
        %1424 = vst [vmem:[%s1354 + $0x74] sm:$0x1] %v1423
        %v1425 = vld [vmem:[%s1354 + $0x78] sm:$0xf]
        %v1426 = vsel %vm889, %v1210, %v1425
        %1427 = vst [vmem:[%s1354 + $0x78] sm:$0xf] %v1426
        %1428 = vst.msk [vmem:[%s1354 + $0x7c] sm:$0xf] %vm296, %v1219
        %v1429 = vld [vmem:[%s1354 + $0x80] sm:$0x1]
        %v1430 = vsel %vm307, %v1220, %v1429
        %1431 = vst [vmem:[%s1354 + $0x80] sm:$0x1] %v1430
        %v1432 = vld [vmem:[%s1354 + $0x84] sm:$0xf]
        %v1433 = vsel %vm889, %v1227, %v1432
        %1434 = vst [vmem:[%s1354 + $0x84] sm:$0xf] %v1433
        %1435 = vst.msk [vmem:[%s1354 + $0x88] sm:$0xf] %vm296, %v1236
        %v1436 = vld [vmem:[%s1354 + $0x8c] sm:$0x1]
        %v1437 = vsel %vm307, %v1237, %v1436
        %1438 = vst [vmem:[%s1354 + $0x8c] sm:$0x1] %v1437
        %v1439 = vld [vmem:[%s1354 + $0x90] sm:$0xf]
        %v1440 = vsel %vm889, %v1244, %v1439
        %1441 = vst [vmem:[%s1354 + $0x90] sm:$0xf] %v1440
        %1442 = vst.msk [vmem:[%s1354 + $0x94] sm:$0xf] %vm296, %v1253
        %v1443 = vld [vmem:[%s1354 + $0x98] sm:$0x1]
        %v1444 = vsel %vm307, %v1254, %v1443
        %1445 = vst [vmem:[%s1354 + $0x98] sm:$0x1] %v1444
        %v1446 = vld [vmem:[%s1354 + $0x9c] sm:$0xf]
        %v1447 = vsel %vm889, %v1261, %v1446
        %1448 = vst [vmem:[%s1354 + $0x9c] sm:$0xf] %v1447
        %1449 = vst.msk [vmem:[%s1354 + $0xa0] sm:$0xf] %vm296, %v1270
        %v1450 = vld [vmem:[%s1354 + $0xa4] sm:$0x1]
        %v1451 = vsel %vm307, %v1271, %v1450
        %1452 = vst [vmem:[%s1354 + $0xa4] sm:$0x1] %v1451
        %v1453 = vld [vmem:[%s1354 + $0xa8] sm:$0xf]
        %v1454 = vsel %vm889, %v1278, %v1453
        %1455 = vst [vmem:[%s1354 + $0xa8] sm:$0xf] %v1454
        %1456 = vst.msk [vmem:[%s1354 + $0xac] sm:$0xf] %vm296, %v1287
        %v1457 = vld [vmem:[%s1354 + $0xb0] sm:$0x1]
        %v1458 = vsel %vm307, %v1288, %v1457
        %1459 = vst [vmem:[%s1354 + $0xb0] sm:$0x1] %v1458
        %v1460 = vld [vmem:[%s1354 + $0xb4] sm:$0xf]
        %v1461 = vsel %vm889, %v1295, %v1460
        %1462 = vst [vmem:[%s1354 + $0xb4] sm:$0xf] %v1461
        %1463 = vst.msk [vmem:[%s1354 + $0xb8] sm:$0xf] %vm296, %v1304
        %v1464 = vld [vmem:[%s1354 + $0xbc] sm:$0x1]
        %v1465 = vsel %vm307, %v1305, %v1464
        %1466 = vst [vmem:[%s1354 + $0xbc] sm:$0x1] %v1465
      $region40: #{up_forward.3} parent=35 // pred_fallthru
        _
      %s1467 = smul.u32 %s22, 8
      %s1468 = smul.u32 %s1467, 3
      %s1469 = smul.addr %s1468, 4
      %s1470 = scalar_lea.vmem [#allocation2], %s1469
      %v1471 = vld [vmem:[%s1470] sm:$0xf]
      %v1472 = vld [vmem:[%s1470 + $0x4] sm:$0xf]
      %v1473 = vld [vmem:[%s1470 + $0xc] sm:$0xf]
      %v1474 = vld [vmem:[%s1470 + $0x10] sm:$0xf]
      %v1475 = vld [vmem:[%s1470 + $0x18] sm:$0xf]
      %v1476 = vld [vmem:[%s1470 + $0x1c] sm:$0xf]
      %v1477 = vld [vmem:[%s1470 + $0x24] sm:$0xf]
      %v1478 = vld [vmem:[%s1470 + $0x28] sm:$0xf]
      %v1479 = vld [vmem:[%s1470 + $0x30] sm:$0xf]
      %v1480 = vld [vmem:[%s1470 + $0x34] sm:$0xf]
      %v1481 = vld [vmem:[%s1470 + $0x3c] sm:$0xf]
      %v1482 = vld [vmem:[%s1470 + $0x40] sm:$0xf]
      %v1483 = vld [vmem:[%s1470 + $0x48] sm:$0xf]
      %v1484 = vld [vmem:[%s1470 + $0x4c] sm:$0xf]
      %v1485 = vld [vmem:[%s1470 + $0x54] sm:$0xf]
      %v1486 = vld [vmem:[%s1470 + $0x58] sm:$0xf]
      %v1487 = vld [vmem:[%s2] sm:$0x3]
      %v1488 = vld [vmem:[%s1470 + $0x8] sm:$0x1]
      %v1489 = vld [vmem:[%s1470 + $0x14] sm:$0x1]
      %v1490 = vld [vmem:[%s1470 + $0x20] sm:$0x1]
      %v1491 = vld [vmem:[%s1470 + $0x2c] sm:$0x1]
      %v1492 = vld [vmem:[%s1470 + $0x38] sm:$0x1]
      %v1493 = vld [vmem:[%s1470 + $0x44] sm:$0x1]
      %v1494 = vld [vmem:[%s1470 + $0x50] sm:$0x1]
      %v1495 = vld [vmem:[%s1470 + $0x5c] sm:$0x1]
      %vm1496 = vsmask.f32 3328
      %vm1497 = vsmask.f32 7440
      %vm1498 = vmor %vm1496, %vm1497
      %v1500 = vshrl.u32 %v1471, 16
      %v1502 = vrot.slane %v1500, 4
      %v1503 = vshll.u32 %v1471, 16
      %v1505 = vrot.slane %v1503, 5
      %v1506 = vor.u32 %v1502, %v1505
      %v1507 = vrot.slane %v1506, 4
      %v1509 = vshll.u32 %v1472, 16
      %v1511 = vrot.slane %v1509, 5
      %v1512 = vsel %vm1498, %v1507, %v1511
      %v1513 = vshrl.u32 %v1472, 16
      %v1515 = vrot.slane %v1513, 4
      %v1516 = vor.u32 %v1515, %v1511
      %v1517 = vrot.slane %v1516, 4
      %v1519 = vshll.u32 %v1488, 16
      %v1521 = vrot.slane %v1519, 5
      %v1522 = vsel %vm1498, %v1517, %v1521
      %v1524 = vshrl.u32 %v1473, 16
      %v1526 = vrot.slane %v1524, 4
      %v1527 = vshll.u32 %v1473, 16
      %v1529 = vrot.slane %v1527, 5
      %v1530 = vor.u32 %v1526, %v1529
      %v1531 = vrot.slane %v1530, 4
      %v1533 = vshll.u32 %v1474, 16
      %v1535 = vrot.slane %v1533, 5
      %v1536 = vsel %vm1498, %v1531, %v1535
      %v1537 = vshrl.u32 %v1474, 16
      %v1539 = vrot.slane %v1537, 4
      %v1540 = vor.u32 %v1539, %v1535
      %v1541 = vrot.slane %v1540, 4
      %v1543 = vshll.u32 %v1489, 16
      %v1545 = vrot.slane %v1543, 5
      %v1546 = vsel %vm1498, %v1541, %v1545
      %v1548 = vshrl.u32 %v1475, 16
      %v1550 = vrot.slane %v1548, 4
      %v1551 = vshll.u32 %v1475, 16
      %v1553 = vrot.slane %v1551, 5
      %v1554 = vor.u32 %v1550, %v1553
      %v1555 = vrot.slane %v1554, 4
      %v1557 = vshll.u32 %v1476, 16
      %v1559 = vrot.slane %v1557, 5
      %v1560 = vsel %vm1498, %v1555, %v1559
      %v1561 = vshrl.u32 %v1476, 16
      %v1563 = vrot.slane %v1561, 4
      %v1564 = vor.u32 %v1563, %v1559
      %v1565 = vrot.slane %v1564, 4
      %v1567 = vshll.u32 %v1490, 16
      %v1569 = vrot.slane %v1567, 5
      %v1570 = vsel %vm1498, %v1565, %v1569
      %v1572 = vshrl.u32 %v1477, 16
      %v1574 = vrot.slane %v1572, 4
      %v1575 = vshll.u32 %v1477, 16
      %v1577 = vrot.slane %v1575, 5
      %v1578 = vor.u32 %v1574, %v1577
      %v1579 = vrot.slane %v1578, 4
      %v1581 = vshll.u32 %v1478, 16
      %v1583 = vrot.slane %v1581, 5
      %v1584 = vsel %vm1498, %v1579, %v1583
      %v1585 = vshrl.u32 %v1478, 16
      %v1587 = vrot.slane %v1585, 4
      %v1588 = vor.u32 %v1587, %v1583
      %v1589 = vrot.slane %v1588, 4
      %v1591 = vshll.u32 %v1491, 16
      %v1593 = vrot.slane %v1591, 5
      %v1594 = vsel %vm1498, %v1589, %v1593
      %v1596 = vshrl.u32 %v1479, 16
      %v1598 = vrot.slane %v1596, 4
      %v1599 = vshll.u32 %v1479, 16
      %v1601 = vrot.slane %v1599, 5
      %v1602 = vor.u32 %v1598, %v1601
      %v1603 = vrot.slane %v1602, 4
      %v1605 = vshll.u32 %v1480, 16
      %v1607 = vrot.slane %v1605, 5
      %v1608 = vsel %vm1498, %v1603, %v1607
      %v1609 = vshrl.u32 %v1480, 16
      %v1611 = vrot.slane %v1609, 4
      %v1612 = vor.u32 %v1611, %v1607
      %v1613 = vrot.slane %v1612, 4
      %v1615 = vshll.u32 %v1492, 16
      %v1617 = vrot.slane %v1615, 5
      %v1618 = vsel %vm1498, %v1613, %v1617
      %v1620 = vshrl.u32 %v1481, 16
      %v1622 = vrot.slane %v1620, 4
      %v1623 = vshll.u32 %v1481, 16
      %v1625 = vrot.slane %v1623, 5
      %v1626 = vor.u32 %v1622, %v1625
      %v1627 = vrot.slane %v1626, 4
      %v1629 = vshll.u32 %v1482, 16
      %v1631 = vrot.slane %v1629, 5
      %v1632 = vsel %vm1498, %v1627, %v1631
      %v1633 = vshrl.u32 %v1482, 16
      %v1635 = vrot.slane %v1633, 4
      %v1636 = vor.u32 %v1635, %v1631
      %v1637 = vrot.slane %v1636, 4
      %v1639 = vshll.u32 %v1493, 16
      %v1641 = vrot.slane %v1639, 5
      %v1642 = vsel %vm1498, %v1637, %v1641
      %v1644 = vshrl.u32 %v1483, 16
      %v1646 = vrot.slane %v1644, 4
      %v1647 = vshll.u32 %v1483, 16
      %v1649 = vrot.slane %v1647, 5
      %v1650 = vor.u32 %v1646, %v1649
      %v1651 = vrot.slane %v1650, 4
      %v1653 = vshll.u32 %v1484, 16
      %v1655 = vrot.slane %v1653, 5
      %v1656 = vsel %vm1498, %v1651, %v1655
      %v1657 = vshrl.u32 %v1484, 16
      %v1659 = vrot.slane %v1657, 4
      %v1660 = vor.u32 %v1659, %v1655
      %v1661 = vrot.slane %v1660, 4
      %v1663 = vshll.u32 %v1494, 16
      %v1665 = vrot.slane %v1663, 5
      %v1666 = vsel %vm1498, %v1661, %v1665
      %v1668 = vshrl.u32 %v1485, 16
      %v1670 = vrot.slane %v1668, 4
      %v1671 = vshll.u32 %v1485, 16
      %v1673 = vrot.slane %v1671, 5
      %v1674 = vor.u32 %v1670, %v1673
      %v1675 = vrot.slane %v1674, 4
      %v1677 = vshll.u32 %v1486, 16
      %v1679 = vrot.slane %v1677, 5
      %v1680 = vsel %vm1498, %v1675, %v1679
      %v1681 = vshrl.u32 %v1486, 16
      %v1683 = vrot.slane %v1681, 4
      %v1684 = vor.u32 %v1683, %v1679
      %v1685 = vrot.slane %v1684, 4
      %v1687 = vshll.u32 %v1495, 16
      %v1689 = vrot.slane %v1687, 5
      %v1690 = vsel %vm1498, %v1685, %v1689
      %s1691 = scalar_lea.vmem %s2, 2
      %v1692 = vld [vmem:[%s1691] sm:$0x3]
      %v1693 = vunpack.c.l.b16 %v1512
      %v1694 = vunpack.c.l.b16 %v1522
      %v1695 = vunpack.c.l.b16 %v1536
      %v1696 = vunpack.c.l.b16 %v1546
      %v1697 = vunpack.c.l.b16 %v1560
      %v1698 = vunpack.c.l.b16 %v1570
      %v1699 = vunpack.c.l.b16 %v1584
      %v1700 = vunpack.c.l.b16 %v1594
      %v1701 = vunpack.c.l.b16 %v1608
      %v1702 = vunpack.c.l.b16 %v1618
      %v1703 = vunpack.c.l.b16 %v1632
      %v1704 = vunpack.c.l.b16 %v1642
      %v1705 = vunpack.c.l.b16 %v1656
      %v1706 = vunpack.c.l.b16 %v1666
      %v1707 = vunpack.c.l.b16 %v1680
      %v1708 = vunpack.c.l.b16 %v1690
      %v1709 = vpack.c.b16 %v1694, %v1693
      %v1710 = vpack.c.b16 %v1696, %v1695
      %v1711 = vpack.c.b16 %v1698, %v1697
      %v1712 = vpack.c.b16 %v1700, %v1699
      %v1713 = vpack.c.b16 %v1702, %v1701
      %v1714 = vpack.c.b16 %v1704, %v1703
      %v1715 = vpack.c.b16 %v1706, %v1705
      %v1716 = vpack.c.b16 %v1708, %v1707
      %vm1717 = vcmask 31744
      %v1719 = vsel %vm1717, %v1709, 0
      %v1722 = vsel %vm1717, %v1710, 0
      %v1725 = vsel %vm1717, %v1711, 0
      %v1728 = vsel %vm1717, %v1712, 0
      %v1731 = vsel %vm1717, %v1713, 0
      %v1734 = vsel %vm1717, %v1714, 0
      %v1737 = vsel %vm1717, %v1715, 0
      %v1740 = vsel %vm1717, %v1716, 0
      %vm1742 = vcmask 1041408
      %v1744 = vsel %vm1742, %v1692, 0
      %1746 = vmatprep.subr.bf16.mxu0 0
      %1747 = vmatpush1.bf16.msra.mxu0 0
      %1748 = vmatprep.subr.bf16.mxu0 0
      %1749 = vmatpush1.bf16.msra.mxu0 0
      %1750 = vmatprep.subr.bf16.mxu0 0
      %1751 = vmatpush1.bf16.msra.mxu0 0
      %1752 = vmatprep.subr.bf16.mxu0 0
      %1753 = vmatpush1.bf16.msra.mxu0 0
      %1754 = vmatprep.subr.bf16.mxu0 0
      %1755 = vmatpush1.bf16.msra.mxu0 0
      %1756 = vmatprep.subr.bf16.mxu0 0
      %1757 = vmatpush1.bf16.msra.mxu0 0
      %1758 = vmatprep.subr.bf16.mxu0 0
      %1759 = vmatpush1.bf16.msra.mxu0 0
      %1760 = vmatprep.subr.bf16.mxu0 0
      %1761 = vmatpush1.bf16.msra.mxu0 %v1744
      %1762 = vmatprep.subr.bf16.mxu0 0
      %1763 = vmatpush2.bf16.msra.mxu0 0
      %1764 = vmatprep.subr.bf16.mxu0 0
      %1765 = vmatpush2.bf16.msra.mxu0 0
      %1766 = vmatprep.subr.bf16.mxu0 0
      %1767 = vmatpush2.bf16.msra.mxu0 0
      %1768 = vmatprep.subr.bf16.mxu0 0
      %1769 = vmatpush2.bf16.msra.mxu0 0
      %1770 = vmatprep.subr.bf16.mxu0 0
      %1771 = vmatpush2.bf16.msra.mxu0 0
      %1772 = vmatprep.subr.bf16.mxu0 0
      %1773 = vmatpush2.bf16.msra.mxu0 0
      %1774 = vmatprep.subr.bf16.mxu0 0
      %1775 = vmatpush2.bf16.msra.mxu0 0
      %1776 = vmatprep.subr.bf16.mxu0 0
      %1777 = vmatpush2.bf16.msra.mxu0 0
      %1778 = vmatprep.mubr.bf16.mxu0 0
      %1779 = vmatmul.mubr.bf16.gmra.mxu0 %v1719
      %v1780 = vpop.f32.mrf.mxu0
      %v1781 = vadd.f32 0.0, %v1780
      %v1782 = vpop.f32.mrf.mxu0
      %v1783 = vpop.f32.mrf.mxu0
      %v1784 = vadd.f32 0.0, %v1783
      %v1785 = vpop.f32.mrf.mxu0
      %1786 = vmatprep.mubr.bf16.mxu0 0
      %1787 = vmatmul.mubr.bf16.gmra.mxu0 %v1722
      %v1788 = vpop.f32.mrf.mxu0
      %v1789 = vadd.f32 0.0, %v1788
      %v1790 = vpop.f32.mrf.mxu0
      %v1791 = vpop.f32.mrf.mxu0
      %v1792 = vadd.f32 0.0, %v1791
      %v1793 = vpop.f32.mrf.mxu0
      %1794 = vmatprep.mubr.bf16.mxu0 0
      %1795 = vmatmul.mubr.bf16.gmra.mxu0 %v1725
      %v1796 = vpop.f32.mrf.mxu0
      %v1797 = vadd.f32 0.0, %v1796
      %v1798 = vpop.f32.mrf.mxu0
      %v1799 = vpop.f32.mrf.mxu0
      %v1800 = vadd.f32 0.0, %v1799
      %v1801 = vpop.f32.mrf.mxu0
      %1802 = vmatprep.mubr.bf16.mxu0 0
      %1803 = vmatmul.mubr.bf16.gmra.mxu0 %v1728
      %v1804 = vpop.f32.mrf.mxu0
      %v1805 = vadd.f32 0.0, %v1804
      %v1806 = vpop.f32.mrf.mxu0
      %v1807 = vpop.f32.mrf.mxu0
      %v1808 = vadd.f32 0.0, %v1807
      %v1809 = vpop.f32.mrf.mxu0
      %1810 = vmatprep.mubr.bf16.mxu0 0
      %1811 = vmatmul.mubr.bf16.gmra.mxu0 %v1731
      %v1812 = vpop.f32.mrf.mxu0
      %v1813 = vadd.f32 0.0, %v1812
      %v1814 = vpop.f32.mrf.mxu0
      %v1815 = vpop.f32.mrf.mxu0
      %v1816 = vadd.f32 0.0, %v1815
      %v1817 = vpop.f32.mrf.mxu0
      %1818 = vmatprep.mubr.bf16.mxu0 0
      %1819 = vmatmul.mubr.bf16.gmra.mxu0 %v1734
      %v1820 = vpop.f32.mrf.mxu0
      %v1821 = vadd.f32 0.0, %v1820
      %v1822 = vpop.f32.mrf.mxu0
      %v1823 = vpop.f32.mrf.mxu0
      %v1824 = vadd.f32 0.0, %v1823
      %v1825 = vpop.f32.mrf.mxu0
      %1826 = vmatprep.mubr.bf16.mxu0 0
      %1827 = vmatmul.mubr.bf16.gmra.mxu0 %v1737
      %v1828 = vpop.f32.mrf.mxu0
      %v1829 = vadd.f32 0.0, %v1828
      %v1830 = vpop.f32.mrf.mxu0
      %v1831 = vpop.f32.mrf.mxu0
      %v1832 = vadd.f32 0.0, %v1831
      %v1833 = vpop.f32.mrf.mxu0
      %1834 = vmatprep.mubr.bf16.mxu0 0
      %1835 = vmatmul.mubr.bf16.gmra.mxu0 %v1740
      %v1836 = vpop.f32.mrf.mxu0
      %v1837 = vadd.f32 0.0, %v1836
      %v1838 = vpop.f32.mrf.mxu0
      %v1839 = vpop.f32.mrf.mxu0
      %v1840 = vadd.f32 0.0, %v1839
      %v1841 = vpop.f32.mrf.mxu0
      %1842 = vdwg.mxu0
      %v1859 = vunpack.c.l.b16 %v1471
      %v1860 = vunpack.c.l.b16 %v1472
      %v1861 = vunpack.c.l.b16 %v1473
      %v1862 = vunpack.c.l.b16 %v1474
      %v1863 = vunpack.c.l.b16 %v1475
      %v1864 = vunpack.c.l.b16 %v1476
      %v1865 = vunpack.c.l.b16 %v1477
      %v1866 = vunpack.c.l.b16 %v1478
      %v1867 = vunpack.c.l.b16 %v1479
      %v1868 = vunpack.c.l.b16 %v1480
      %v1869 = vunpack.c.l.b16 %v1481
      %v1870 = vunpack.c.l.b16 %v1482
      %v1871 = vunpack.c.l.b16 %v1483
      %v1872 = vunpack.c.l.b16 %v1484
      %v1873 = vunpack.c.l.b16 %v1485
      %v1874 = vunpack.c.l.b16 %v1486
      %v1875 = vpack.c.b16 %v1860, %v1859
      %v1876 = vpack.c.b16 %v1862, %v1861
      %v1877 = vpack.c.b16 %v1864, %v1863
      %v1878 = vpack.c.b16 %v1866, %v1865
      %v1879 = vpack.c.b16 %v1868, %v1867
      %v1880 = vpack.c.b16 %v1870, %v1869
      %v1881 = vpack.c.b16 %v1872, %v1871
      %v1882 = vpack.c.b16 %v1874, %v1873
      %v1884 = vsel %vm1717, %v1875, 0
      %v1887 = vsel %vm1717, %v1876, 0
      %v1890 = vsel %vm1717, %v1877, 0
      %v1893 = vsel %vm1717, %v1878, 0
      %v1896 = vsel %vm1717, %v1879, 0
      %v1899 = vsel %vm1717, %v1880, 0
      %v1902 = vsel %vm1717, %v1881, 0
      %v1905 = vsel %vm1717, %v1882, 0
      %v1908 = vsel %vm1742, %v1487, 0
      %1910 = vmatprep.subr.bf16.mxu0 0
      %1911 = vmatpush1.bf16.msra.mxu0 0
      %1912 = vmatprep.subr.bf16.mxu0 0
      %1913 = vmatpush1.bf16.msra.mxu0 0
      %1914 = vmatprep.subr.bf16.mxu0 0
      %1915 = vmatpush1.bf16.msra.mxu0 0
      %1916 = vmatprep.subr.bf16.mxu0 0
      %1917 = vmatpush1.bf16.msra.mxu0 0
      %1918 = vmatprep.subr.bf16.mxu0 0
      %1919 = vmatpush1.bf16.msra.mxu0 0
      %1920 = vmatprep.subr.bf16.mxu0 0
      %1921 = vmatpush1.bf16.msra.mxu0 0
      %1922 = vmatprep.subr.bf16.mxu0 0
      %1923 = vmatpush1.bf16.msra.mxu0 0
      %1924 = vmatprep.subr.bf16.mxu0 0
      %1925 = vmatpush1.bf16.msra.mxu0 %v1908
      %1926 = vmatprep.subr.bf16.mxu0 0
      %1927 = vmatpush2.bf16.msra.mxu0 0
      %1928 = vmatprep.subr.bf16.mxu0 0
      %1929 = vmatpush2.bf16.msra.mxu0 0
      %1930 = vmatprep.subr.bf16.mxu0 0
      %1931 = vmatpush2.bf16.msra.mxu0 0
      %1932 = vmatprep.subr.bf16.mxu0 0
      %1933 = vmatpush2.bf16.msra.mxu0 0
      %1934 = vmatprep.subr.bf16.mxu0 0
      %1935 = vmatpush2.bf16.msra.mxu0 0
      %1936 = vmatprep.subr.bf16.mxu0 0
      %1937 = vmatpush2.bf16.msra.mxu0 0
      %1938 = vmatprep.subr.bf16.mxu0 0
      %1939 = vmatpush2.bf16.msra.mxu0 0
      %1940 = vmatprep.subr.bf16.mxu0 0
      %1941 = vmatpush2.bf16.msra.mxu0 0
      %1942 = vmatprep.mubr.bf16.mxu0 0
      %1943 = vmatmul.mubr.bf16.gmra.mxu0 %v1884
      %v1944 = vpop.f32.mrf.mxu0
      %v1945 = vadd.f32 %v1781, %v1944
      %v1946 = vpop.f32.mrf.mxu0
      %v1947 = vpop.f32.mrf.mxu0
      %v1948 = vadd.f32 %v1784, %v1947
      %v1949 = vpop.f32.mrf.mxu0
      %1950 = vmatprep.mubr.bf16.mxu0 0
      %1951 = vmatmul.mubr.bf16.gmra.mxu0 %v1887
      %v1952 = vpop.f32.mrf.mxu0
      %v1953 = vadd.f32 %v1789, %v1952
      %v1954 = vpop.f32.mrf.mxu0
      %v1955 = vpop.f32.mrf.mxu0
      %v1956 = vadd.f32 %v1792, %v1955
      %v1957 = vpop.f32.mrf.mxu0
      %1958 = vmatprep.mubr.bf16.mxu0 0
      %1959 = vmatmul.mubr.bf16.gmra.mxu0 %v1890
      %v1960 = vpop.f32.mrf.mxu0
      %v1961 = vadd.f32 %v1797, %v1960
      %v1962 = vpop.f32.mrf.mxu0
      %v1963 = vpop.f32.mrf.mxu0
      %v1964 = vadd.f32 %v1800, %v1963
      %v1965 = vpop.f32.mrf.mxu0
      %1966 = vmatprep.mubr.bf16.mxu0 0
      %1967 = vmatmul.mubr.bf16.gmra.mxu0 %v1893
      %v1968 = vpop.f32.mrf.mxu0
      %v1969 = vadd.f32 %v1805, %v1968
      %v1970 = vpop.f32.mrf.mxu0
      %v1971 = vpop.f32.mrf.mxu0
      %v1972 = vadd.f32 %v1808, %v1971
      %v1973 = vpop.f32.mrf.mxu0
      %1974 = vmatprep.mubr.bf16.mxu0 0
      %1975 = vmatmul.mubr.bf16.gmra.mxu0 %v1896
      %v1976 = vpop.f32.mrf.mxu0
      %v1977 = vadd.f32 %v1813, %v1976
      %v1978 = vpop.f32.mrf.mxu0
      %v1979 = vpop.f32.mrf.mxu0
      %v1980 = vadd.f32 %v1816, %v1979
      %v1981 = vpop.f32.mrf.mxu0
      %1982 = vmatprep.mubr.bf16.mxu0 0
      %1983 = vmatmul.mubr.bf16.gmra.mxu0 %v1899
      %v1984 = vpop.f32.mrf.mxu0
      %v1985 = vadd.f32 %v1821, %v1984
      %v1986 = vpop.f32.mrf.mxu0
      %v1987 = vpop.f32.mrf.mxu0
      %v1988 = vadd.f32 %v1824, %v1987
      %v1989 = vpop.f32.mrf.mxu0
      %1990 = vmatprep.mubr.bf16.mxu0 0
      %1991 = vmatmul.mubr.bf16.gmra.mxu0 %v1902
      %v1992 = vpop.f32.mrf.mxu0
      %v1993 = vadd.f32 %v1829, %v1992
      %v1994 = vpop.f32.mrf.mxu0
      %v1995 = vpop.f32.mrf.mxu0
      %v1996 = vadd.f32 %v1832, %v1995
      %v1997 = vpop.f32.mrf.mxu0
      %1998 = vmatprep.mubr.bf16.mxu0 0
      %1999 = vmatmul.mubr.bf16.gmra.mxu0 %v1905
      %v2000 = vpop.f32.mrf.mxu0
      %v2001 = vadd.f32 %v1837, %v2000
      %v2002 = vpop.f32.mrf.mxu0
      %v2003 = vpop.f32.mrf.mxu0
      %v2004 = vadd.f32 %v1840, %v2003
      %v2005 = vpop.f32.mrf.mxu0
      %2006 = vdwg.mxu0
      %v2007 = vld [vmem:[%s1470] sm:$0xe]
      %v2008 = vld [vmem:[%s1470 + $0xc] sm:$0xe]
      %v2009 = vld [vmem:[%s1470 + $0x18] sm:$0xe]
      %v2010 = vld [vmem:[%s1470 + $0x24] sm:$0xe]
      %v2011 = vld [vmem:[%s1470 + $0x30] sm:$0xe]
      %v2012 = vld [vmem:[%s1470 + $0x3c] sm:$0xe]
      %v2013 = vld [vmem:[%s1470 + $0x48] sm:$0xe]
      %v2014 = vld [vmem:[%s1470 + $0x54] sm:$0xe]
      %vm2031 = vcmask 1042432
      %vm2032 = vcmask 1046532
      %vm2033 = vmor %vm2031, %vm2032
      %v2034 = vrot.slane %v2007, 5
      %v2035 = vrot.slane %v2034, 4
      %v2036 = vrot.slane %v1472, 5
      %v2037 = vsel %vm2033, %v2035, %v2036
      %v2038 = vrot.slane %v2036, 4
      %v2039 = vrot.slane %v1488, 5
      %v2040 = vsel %vm2033, %v2038, %v2039
      %v2041 = vrot.slane %v2008, 5
      %v2042 = vrot.slane %v2041, 4
      %v2043 = vrot.slane %v1474, 5
      %v2044 = vsel %vm2033, %v2042, %v2043
      %v2045 = vrot.slane %v2043, 4
      %v2046 = vrot.slane %v1489, 5
      %v2047 = vsel %vm2033, %v2045, %v2046
      %v2048 = vrot.slane %v2009, 5
      %v2049 = vrot.slane %v2048, 4
      %v2050 = vrot.slane %v1476, 5
      %v2051 = vsel %vm2033, %v2049, %v2050
      %v2052 = vrot.slane %v2050, 4
      %v2053 = vrot.slane %v1490, 5
      %v2054 = vsel %vm2033, %v2052, %v2053
      %v2055 = vrot.slane %v2010, 5
      %v2056 = vrot.slane %v2055, 4
      %v2057 = vrot.slane %v1478, 5
      %v2058 = vsel %vm2033, %v2056, %v2057
      %v2059 = vrot.slane %v2057, 4
      %v2060 = vrot.slane %v1491, 5
      %v2061 = vsel %vm2033, %v2059, %v2060
      %v2062 = vrot.slane %v2011, 5
      %v2063 = vrot.slane %v2062, 4
      %v2064 = vrot.slane %v1480, 5
      %v2065 = vsel %vm2033, %v2063, %v2064
      %v2066 = vrot.slane %v2064, 4
      %v2067 = vrot.slane %v1492, 5
      %v2068 = vsel %vm2033, %v2066, %v2067
      %v2069 = vrot.slane %v2012, 5
      %v2070 = vrot.slane %v2069, 4
      %v2071 = vrot.slane %v1482, 5
      %v2072 = vsel %vm2033, %v2070, %v2071
      %v2073 = vrot.slane %v2071, 4
      %v2074 = vrot.slane %v1493, 5
      %v2075 = vsel %vm2033, %v2073, %v2074
      %v2076 = vrot.slane %v2013, 5
      %v2077 = vrot.slane %v2076, 4
      %v2078 = vrot.slane %v1484, 5
      %v2079 = vsel %vm2033, %v2077, %v2078
      %v2080 = vrot.slane %v2078, 4
      %v2081 = vrot.slane %v1494, 5
      %v2082 = vsel %vm2033, %v2080, %v2081
      %v2083 = vrot.slane %v2014, 5
      %v2084 = vrot.slane %v2083, 4
      %v2085 = vrot.slane %v1486, 5
      %v2086 = vsel %vm2033, %v2084, %v2085
      %v2087 = vrot.slane %v2085, 4
      %v2088 = vrot.slane %v1495, 5
      %v2089 = vsel %vm2033, %v2087, %v2088
      %s2090 = scalar_lea.vmem %s2, 4
      %v2091 = vld [vmem:[%s2090] sm:$0x3]
      %v2092 = vunpack.c.l.b16 %v2037
      %v2093 = vunpack.c.l.b16 %v2040
      %v2094 = vunpack.c.l.b16 %v2044
      %v2095 = vunpack.c.l.b16 %v2047
      %v2096 = vunpack.c.l.b16 %v2051
      %v2097 = vunpack.c.l.b16 %v2054
      %v2098 = vunpack.c.l.b16 %v2058
      %v2099 = vunpack.c.l.b16 %v2061
      %v2100 = vunpack.c.l.b16 %v2065
      %v2101 = vunpack.c.l.b16 %v2068
      %v2102 = vunpack.c.l.b16 %v2072
      %v2103 = vunpack.c.l.b16 %v2075
      %v2104 = vunpack.c.l.b16 %v2079
      %v2105 = vunpack.c.l.b16 %v2082
      %v2106 = vunpack.c.l.b16 %v2086
      %v2107 = vunpack.c.l.b16 %v2089
      %v2108 = vpack.c.b16 %v2093, %v2092
      %v2109 = vpack.c.b16 %v2095, %v2094
      %v2110 = vpack.c.b16 %v2097, %v2096
      %v2111 = vpack.c.b16 %v2099, %v2098
      %v2112 = vpack.c.b16 %v2101, %v2100
      %v2113 = vpack.c.b16 %v2103, %v2102
      %v2114 = vpack.c.b16 %v2105, %v2104
      %v2115 = vpack.c.b16 %v2107, %v2106
      %v2117 = vsel %vm1717, %v2108, 0
      %v2120 = vsel %vm1717, %v2109, 0
      %v2123 = vsel %vm1717, %v2110, 0
      %v2126 = vsel %vm1717, %v2111, 0
      %v2129 = vsel %vm1717, %v2112, 0
      %v2132 = vsel %vm1717, %v2113, 0
      %v2135 = vsel %vm1717, %v2114, 0
      %v2138 = vsel %vm1717, %v2115, 0
      %v2141 = vsel %vm1742, %v2091, 0
      %2143 = vmatprep.subr.bf16.mxu0 0
      %2144 = vmatpush1.bf16.msra.mxu0 0
      %2145 = vmatprep.subr.bf16.mxu0 0
      %2146 = vmatpush1.bf16.msra.mxu0 0
      %2147 = vmatprep.subr.bf16.mxu0 0
      %2148 = vmatpush1.bf16.msra.mxu0 0
      %2149 = vmatprep.subr.bf16.mxu0 0
      %2150 = vmatpush1.bf16.msra.mxu0 0
      %2151 = vmatprep.subr.bf16.mxu0 0
      %2152 = vmatpush1.bf16.msra.mxu0 0
      %2153 = vmatprep.subr.bf16.mxu0 0
      %2154 = vmatpush1.bf16.msra.mxu0 0
      %2155 = vmatprep.subr.bf16.mxu0 0
      %2156 = vmatpush1.bf16.msra.mxu0 0
      %2157 = vmatprep.subr.bf16.mxu0 0
      %2158 = vmatpush1.bf16.msra.mxu0 %v2141
      %2159 = vmatprep.subr.bf16.mxu0 0
      %2160 = vmatpush2.bf16.msra.mxu0 0
      %2161 = vmatprep.subr.bf16.mxu0 0
      %2162 = vmatpush2.bf16.msra.mxu0 0
      %2163 = vmatprep.subr.bf16.mxu0 0
      %2164 = vmatpush2.bf16.msra.mxu0 0
      %2165 = vmatprep.subr.bf16.mxu0 0
      %2166 = vmatpush2.bf16.msra.mxu0 0
      %2167 = vmatprep.subr.bf16.mxu0 0
      %2168 = vmatpush2.bf16.msra.mxu0 0
      %2169 = vmatprep.subr.bf16.mxu0 0
      %2170 = vmatpush2.bf16.msra.mxu0 0
      %2171 = vmatprep.subr.bf16.mxu0 0
      %2172 = vmatpush2.bf16.msra.mxu0 0
      %2173 = vmatprep.subr.bf16.mxu0 0
      %2174 = vmatpush2.bf16.msra.mxu0 0
      %2175 = vmatprep.mubr.bf16.mxu0 0
      %2176 = vmatmul.mubr.bf16.gmra.mxu0 %v2117
      %v2177 = vpop.f32.mrf.mxu0
      %v2178 = vadd.f32 0.0, %v2177
      %v2179 = vpop.f32.mrf.mxu0
      %v2180 = vpop.f32.mrf.mxu0
      %v2181 = vadd.f32 0.0, %v2180
      %v2182 = vpop.f32.mrf.mxu0
      %2183 = vmatprep.mubr.bf16.mxu0 0
      %2184 = vmatmul.mubr.bf16.gmra.mxu0 %v2120
      %v2185 = vpop.f32.mrf.mxu0
      %v2186 = vadd.f32 0.0, %v2185
      %v2187 = vpop.f32.mrf.mxu0
      %v2188 = vpop.f32.mrf.mxu0
      %v2189 = vadd.f32 0.0, %v2188
      %v2190 = vpop.f32.mrf.mxu0
      %2191 = vmatprep.mubr.bf16.mxu0 0
      %2192 = vmatmul.mubr.bf16.gmra.mxu0 %v2123
      %v2193 = vpop.f32.mrf.mxu0
      %v2194 = vadd.f32 0.0, %v2193
      %v2195 = vpop.f32.mrf.mxu0
      %v2196 = vpop.f32.mrf.mxu0
      %v2197 = vadd.f32 0.0, %v2196
      %v2198 = vpop.f32.mrf.mxu0
      %2199 = vmatprep.mubr.bf16.mxu0 0
      %2200 = vmatmul.mubr.bf16.gmra.mxu0 %v2126
      %v2201 = vpop.f32.mrf.mxu0
      %v2202 = vadd.f32 0.0, %v2201
      %v2203 = vpop.f32.mrf.mxu0
      %v2204 = vpop.f32.mrf.mxu0
      %v2205 = vadd.f32 0.0, %v2204
      %v2206 = vpop.f32.mrf.mxu0
      %2207 = vmatprep.mubr.bf16.mxu0 0
      %2208 = vmatmul.mubr.bf16.gmra.mxu0 %v2129
      %v2209 = vpop.f32.mrf.mxu0
      %v2210 = vadd.f32 0.0, %v2209
      %v2211 = vpop.f32.mrf.mxu0
      %v2212 = vpop.f32.mrf.mxu0
      %v2213 = vadd.f32 0.0, %v2212
      %v2214 = vpop.f32.mrf.mxu0
      %2215 = vmatprep.mubr.bf16.mxu0 0
      %2216 = vmatmul.mubr.bf16.gmra.mxu0 %v2132
      %v2217 = vpop.f32.mrf.mxu0
      %v2218 = vadd.f32 0.0, %v2217
      %v2219 = vpop.f32.mrf.mxu0
      %v2220 = vpop.f32.mrf.mxu0
      %v2221 = vadd.f32 0.0, %v2220
      %v2222 = vpop.f32.mrf.mxu0
      %2223 = vmatprep.mubr.bf16.mxu0 0
      %2224 = vmatmul.mubr.bf16.gmra.mxu0 %v2135
      %v2225 = vpop.f32.mrf.mxu0
      %v2226 = vadd.f32 0.0, %v2225
      %v2227 = vpop.f32.mrf.mxu0
      %v2228 = vpop.f32.mrf.mxu0
      %v2229 = vadd.f32 0.0, %v2228
      %v2230 = vpop.f32.mrf.mxu0
      %2231 = vmatprep.mubr.bf16.mxu0 0
      %2232 = vmatmul.mubr.bf16.gmra.mxu0 %v2138
      %v2233 = vpop.f32.mrf.mxu0
      %v2234 = vadd.f32 0.0, %v2233
      %v2235 = vpop.f32.mrf.mxu0
      %v2236 = vpop.f32.mrf.mxu0
      %v2237 = vadd.f32 0.0, %v2236
      %v2238 = vpop.f32.mrf.mxu0
      %2239 = vdwg.mxu0
      %v2240 = vadd.f32 %v1945, %v2178
      %v2241 = vadd.f32 %v1948, %v2181
      %v2242 = vadd.f32 %v1953, %v2186
      %v2243 = vadd.f32 %v1956, %v2189
      %v2244 = vadd.f32 %v1961, %v2194
      %v2245 = vadd.f32 %v1964, %v2197
      %v2246 = vadd.f32 %v1969, %v2202
      %v2247 = vadd.f32 %v1972, %v2205
      %v2248 = vadd.f32 %v1977, %v2210
      %v2249 = vadd.f32 %v1980, %v2213
      %v2250 = vadd.f32 %v1985, %v2218
      %v2251 = vadd.f32 %v1988, %v2221
      %v2252 = vadd.f32 %v1993, %v2226
      %v2253 = vadd.f32 %v1996, %v2229
      %v2254 = vadd.f32 %v2001, %v2234
      %v2255 = vadd.f32 %v2004, %v2237
      %s2256 = sadd.s32 %s1467, 1
      %s2257 = smul.u32 %s2256, 3
      %s2258 = smul.addr %s2257, 4
      %s2259 = scalar_lea.vmem [#allocation2], %s2258
      %v2260 = vld [vmem:[%s2259] sm:$0xf]
      %v2261 = vld [vmem:[%s2259 + $0x4] sm:$0xf]
      %v2262 = vld [vmem:[%s2259 + $0xc] sm:$0xf]
      %v2263 = vld [vmem:[%s2259 + $0x10] sm:$0xf]
      %v2264 = vld [vmem:[%s2259 + $0x18] sm:$0xf]
      %v2265 = vld [vmem:[%s2259 + $0x1c] sm:$0xf]
      %v2266 = vld [vmem:[%s2259 + $0x24] sm:$0xf]
      %v2267 = vld [vmem:[%s2259 + $0x28] sm:$0xf]
      %v2268 = vld [vmem:[%s2259 + $0x30] sm:$0xf]
      %v2269 = vld [vmem:[%s2259 + $0x34] sm:$0xf]
      %v2270 = vld [vmem:[%s2259 + $0x3c] sm:$0xf]
      %v2271 = vld [vmem:[%s2259 + $0x40] sm:$0xf]
      %v2272 = vld [vmem:[%s2259 + $0x48] sm:$0xf]
      %v2273 = vld [vmem:[%s2259 + $0x4c] sm:$0xf]
      %v2274 = vld [vmem:[%s2259 + $0x54] sm:$0xf]
      %v2275 = vld [vmem:[%s2259 + $0x58] sm:$0xf]
      %s2276 = scalar_lea.vmem %s2, 6
      %v2277 = vld [vmem:[%s2276] sm:$0x3]
      %v2294 = vunpack.c.l.b16 %v2260
      %v2295 = vunpack.c.l.b16 %v2261
      %v2296 = vunpack.c.l.b16 %v2262
      %v2297 = vunpack.c.l.b16 %v2263
      %v2298 = vunpack.c.l.b16 %v2264
      %v2299 = vunpack.c.l.b16 %v2265
      %v2300 = vunpack.c.l.b16 %v2266
      %v2301 = vunpack.c.l.b16 %v2267
      %v2302 = vunpack.c.l.b16 %v2268
      %v2303 = vunpack.c.l.b16 %v2269
      %v2304 = vunpack.c.l.b16 %v2270
      %v2305 = vunpack.c.l.b16 %v2271
      %v2306 = vunpack.c.l.b16 %v2272
      %v2307 = vunpack.c.l.b16 %v2273
      %v2308 = vunpack.c.l.b16 %v2274
      %v2309 = vunpack.c.l.b16 %v2275
      %v2310 = vpack.c.b16 %v2295, %v2294
      %v2311 = vpack.c.b16 %v2297, %v2296
      %v2312 = vpack.c.b16 %v2299, %v2298
      %v2313 = vpack.c.b16 %v2301, %v2300
      %v2314 = vpack.c.b16 %v2303, %v2302
      %v2315 = vpack.c.b16 %v2305, %v2304
      %v2316 = vpack.c.b16 %v2307, %v2306
      %v2317 = vpack.c.b16 %v2309, %v2308
      %v2319 = vsel %vm1717, %v2310, 0
      %v2322 = vsel %vm1717, %v2311, 0
      %v2325 = vsel %vm1717, %v2312, 0
      %v2328 = vsel %vm1717, %v2313, 0
      %v2331 = vsel %vm1717, %v2314, 0
      %v2334 = vsel %vm1717, %v2315, 0
      %v2337 = vsel %vm1717, %v2316, 0
      %v2340 = vsel %vm1717, %v2317, 0
      %v2343 = vsel %vm1742, %v2277, 0
      %2345 = vmatprep.subr.bf16.mxu0 0
      %2346 = vmatpush1.bf16.msra.mxu0 0
      %2347 = vmatprep.subr.bf16.mxu0 0
      %2348 = vmatpush1.bf16.msra.mxu0 0
      %2349 = vmatprep.subr.bf16.mxu0 0
      %2350 = vmatpush1.bf16.msra.mxu0 0
      %2351 = vmatprep.subr.bf16.mxu0 0
      %2352 = vmatpush1.bf16.msra.mxu0 0
      %2353 = vmatprep.subr.bf16.mxu0 0
      %2354 = vmatpush1.bf16.msra.mxu0 0
      %2355 = vmatprep.subr.bf16.mxu0 0
      %2356 = vmatpush1.bf16.msra.mxu0 0
      %2357 = vmatprep.subr.bf16.mxu0 0
      %2358 = vmatpush1.bf16.msra.mxu0 0
      %2359 = vmatprep.subr.bf16.mxu0 0
      %2360 = vmatpush1.bf16.msra.mxu0 %v2343
      %2361 = vmatprep.subr.bf16.mxu0 0
      %2362 = vmatpush2.bf16.msra.mxu0 0
      %2363 = vmatprep.subr.bf16.mxu0 0
      %2364 = vmatpush2.bf16.msra.mxu0 0
      %2365 = vmatprep.subr.bf16.mxu0 0
      %2366 = vmatpush2.bf16.msra.mxu0 0
      %2367 = vmatprep.subr.bf16.mxu0 0
      %2368 = vmatpush2.bf16.msra.mxu0 0
      %2369 = vmatprep.subr.bf16.mxu0 0
      %2370 = vmatpush2.bf16.msra.mxu0 0
      %2371 = vmatprep.subr.bf16.mxu0 0
      %2372 = vmatpush2.bf16.msra.mxu0 0
      %2373 = vmatprep.subr.bf16.mxu0 0
      %2374 = vmatpush2.bf16.msra.mxu0 0
      %2375 = vmatprep.subr.bf16.mxu0 0
      %2376 = vmatpush2.bf16.msra.mxu0 0
      %2377 = vmatprep.mubr.bf16.mxu0 0
      %2378 = vmatmul.mubr.bf16.gmra.mxu0 %v2319
      %v2379 = vpop.f32.mrf.mxu0
      %v2380 = vadd.f32 0.0, %v2379
      %v2381 = vpop.f32.mrf.mxu0
      %v2382 = vpop.f32.mrf.mxu0
      %v2383 = vadd.f32 0.0, %v2382
      %v2384 = vpop.f32.mrf.mxu0
      %2385 = vmatprep.mubr.bf16.mxu0 0
      %2386 = vmatmul.mubr.bf16.gmra.mxu0 %v2322
      %v2387 = vpop.f32.mrf.mxu0
      %v2388 = vadd.f32 0.0, %v2387
      %v2389 = vpop.f32.mrf.mxu0
      %v2390 = vpop.f32.mrf.mxu0
      %v2391 = vadd.f32 0.0, %v2390
      %v2392 = vpop.f32.mrf.mxu0
      %2393 = vmatprep.mubr.bf16.mxu0 0
      %2394 = vmatmul.mubr.bf16.gmra.mxu0 %v2325
      %v2395 = vpop.f32.mrf.mxu0
      %v2396 = vadd.f32 0.0, %v2395
      %v2397 = vpop.f32.mrf.mxu0
      %v2398 = vpop.f32.mrf.mxu0
      %v2399 = vadd.f32 0.0, %v2398
      %v2400 = vpop.f32.mrf.mxu0
      %2401 = vmatprep.mubr.bf16.mxu0 0
      %2402 = vmatmul.mubr.bf16.gmra.mxu0 %v2328
      %v2403 = vpop.f32.mrf.mxu0
      %v2404 = vadd.f32 0.0, %v2403
      %v2405 = vpop.f32.mrf.mxu0
      %v2406 = vpop.f32.mrf.mxu0
      %v2407 = vadd.f32 0.0, %v2406
      %v2408 = vpop.f32.mrf.mxu0
      %2409 = vmatprep.mubr.bf16.mxu0 0
      %2410 = vmatmul.mubr.bf16.gmra.mxu0 %v2331
      %v2411 = vpop.f32.mrf.mxu0
      %v2412 = vadd.f32 0.0, %v2411
      %v2413 = vpop.f32.mrf.mxu0
      %v2414 = vpop.f32.mrf.mxu0
      %v2415 = vadd.f32 0.0, %v2414
      %v2416 = vpop.f32.mrf.mxu0
      %2417 = vmatprep.mubr.bf16.mxu0 0
      %2418 = vmatmul.mubr.bf16.gmra.mxu0 %v2334
      %v2419 = vpop.f32.mrf.mxu0
      %v2420 = vadd.f32 0.0, %v2419
      %v2421 = vpop.f32.mrf.mxu0
      %v2422 = vpop.f32.mrf.mxu0
      %v2423 = vadd.f32 0.0, %v2422
      %v2424 = vpop.f32.mrf.mxu0
      %2425 = vmatprep.mubr.bf16.mxu0 0
      %2426 = vmatmul.mubr.bf16.gmra.mxu0 %v2337
      %v2427 = vpop.f32.mrf.mxu0
      %v2428 = vadd.f32 0.0, %v2427
      %v2429 = vpop.f32.mrf.mxu0
      %v2430 = vpop.f32.mrf.mxu0
      %v2431 = vadd.f32 0.0, %v2430
      %v2432 = vpop.f32.mrf.mxu0
      %2433 = vmatprep.mubr.bf16.mxu0 0
      %2434 = vmatmul.mubr.bf16.gmra.mxu0 %v2340
      %v2435 = vpop.f32.mrf.mxu0
      %v2436 = vadd.f32 0.0, %v2435
      %v2437 = vpop.f32.mrf.mxu0
      %v2438 = vpop.f32.mrf.mxu0
      %v2439 = vadd.f32 0.0, %v2438
      %v2440 = vpop.f32.mrf.mxu0
      %2441 = vdwg.mxu0
      %v2442 = vadd.f32 %v2240, %v2380
      %v2443 = vadd.f32 %v2241, %v2383
      %v2444 = vadd.f32 %v2242, %v2388
      %v2445 = vadd.f32 %v2243, %v2391
      %v2446 = vadd.f32 %v2244, %v2396
      %v2447 = vadd.f32 %v2245, %v2399
      %v2448 = vadd.f32 %v2246, %v2404
      %v2449 = vadd.f32 %v2247, %v2407
      %v2450 = vadd.f32 %v2248, %v2412
      %v2451 = vadd.f32 %v2249, %v2415
      %v2452 = vadd.f32 %v2250, %v2420
      %v2453 = vadd.f32 %v2251, %v2423
      %v2454 = vadd.f32 %v2252, %v2428
      %v2455 = vadd.f32 %v2253, %v2431
      %v2456 = vadd.f32 %v2254, %v2436
      %v2457 = vadd.f32 %v2255, %v2439
      %v2458 = vld [vmem:[%s2259] sm:$0xf]
      %v2459 = vld [vmem:[%s2259 + $0x4] sm:$0xf]
      %v2460 = vld [vmem:[%s2259 + $0x8] sm:$0x1]
      %v2461 = vld [vmem:[%s2259 + $0xc] sm:$0xf]
      %v2462 = vld [vmem:[%s2259 + $0x10] sm:$0xf]
      %v2463 = vld [vmem:[%s2259 + $0x14] sm:$0x1]
      %v2464 = vld [vmem:[%s2259 + $0x18] sm:$0xf]
      %v2465 = vld [vmem:[%s2259 + $0x1c] sm:$0xf]
      %v2466 = vld [vmem:[%s2259 + $0x20] sm:$0x1]
      %v2467 = vld [vmem:[%s2259 + $0x24] sm:$0xf]
      %v2468 = vld [vmem:[%s2259 + $0x28] sm:$0xf]
      %v2469 = vld [vmem:[%s2259 + $0x2c] sm:$0x1]
      %v2470 = vld [vmem:[%s2259 + $0x30] sm:$0xf]
      %v2471 = vld [vmem:[%s2259 + $0x34] sm:$0xf]
      %v2472 = vld [vmem:[%s2259 + $0x38] sm:$0x1]
      %v2473 = vld [vmem:[%s2259 + $0x3c] sm:$0xf]
      %v2474 = vld [vmem:[%s2259 + $0x40] sm:$0xf]
      %v2475 = vld [vmem:[%s2259 + $0x44] sm:$0x1]
      %v2476 = vld [vmem:[%s2259 + $0x48] sm:$0xf]
      %v2477 = vld [vmem:[%s2259 + $0x4c] sm:$0xf]
      %v2478 = vld [vmem:[%s2259 + $0x50] sm:$0x1]
      %v2479 = vld [vmem:[%s2259 + $0x54] sm:$0xf]
      %v2480 = vld [vmem:[%s2259 + $0x58] sm:$0xf]
      %v2481 = vld [vmem:[%s2259 + $0x5c] sm:$0x1]
      %v2483 = vshrl.u32 %v2458, 16
      %v2485 = vrot.slane %v2483, 4
      %v2486 = vshll.u32 %v2458, 16
      %v2488 = vrot.slane %v2486, 5
      %v2489 = vor.u32 %v2485, %v2488
      %v2490 = vrot.slane %v2489, 4
      %v2492 = vshll.u32 %v2459, 16
      %v2494 = vrot.slane %v2492, 5
      %v2495 = vsel %vm1498, %v2490, %v2494
      %v2496 = vshrl.u32 %v2459, 16
      %v2498 = vrot.slane %v2496, 4
      %v2499 = vor.u32 %v2498, %v2494
      %v2500 = vrot.slane %v2499, 4
      %v2502 = vshll.u32 %v2460, 16
      %v2504 = vrot.slane %v2502, 5
      %v2505 = vsel %vm1498, %v2500, %v2504
      %v2507 = vshrl.u32 %v2461, 16
      %v2509 = vrot.slane %v2507, 4
      %v2510 = vshll.u32 %v2461, 16
      %v2512 = vrot.slane %v2510, 5
      %v2513 = vor.u32 %v2509, %v2512
      %v2514 = vrot.slane %v2513, 4
      %v2516 = vshll.u32 %v2462, 16
      %v2518 = vrot.slane %v2516, 5
      %v2519 = vsel %vm1498, %v2514, %v2518
      %v2520 = vshrl.u32 %v2462, 16
      %v2522 = vrot.slane %v2520, 4
      %v2523 = vor.u32 %v2522, %v2518
      %v2524 = vrot.slane %v2523, 4
      %v2526 = vshll.u32 %v2463, 16
      %v2528 = vrot.slane %v2526, 5
      %v2529 = vsel %vm1498, %v2524, %v2528
      %v2531 = vshrl.u32 %v2464, 16
      %v2533 = vrot.slane %v2531, 4
      %v2534 = vshll.u32 %v2464, 16
      %v2536 = vrot.slane %v2534, 5
      %v2537 = vor.u32 %v2533, %v2536
      %v2538 = vrot.slane %v2537, 4
      %v2540 = vshll.u32 %v2465, 16
      %v2542 = vrot.slane %v2540, 5
      %v2543 = vsel %vm1498, %v2538, %v2542
      %v2544 = vshrl.u32 %v2465, 16
      %v2546 = vrot.slane %v2544, 4
      %v2547 = vor.u32 %v2546, %v2542
      %v2548 = vrot.slane %v2547, 4
      %v2550 = vshll.u32 %v2466, 16
      %v2552 = vrot.slane %v2550, 5
      %v2553 = vsel %vm1498, %v2548, %v2552
      %v2555 = vshrl.u32 %v2467, 16
      %v2557 = vrot.slane %v2555, 4
      %v2558 = vshll.u32 %v2467, 16
      %v2560 = vrot.slane %v2558, 5
      %v2561 = vor.u32 %v2557, %v2560
      %v2562 = vrot.slane %v2561, 4
      %v2564 = vshll.u32 %v2468, 16
      %v2566 = vrot.slane %v2564, 5
      %v2567 = vsel %vm1498, %v2562, %v2566
      %v2568 = vshrl.u32 %v2468, 16
      %v2570 = vrot.slane %v2568, 4
      %v2571 = vor.u32 %v2570, %v2566
      %v2572 = vrot.slane %v2571, 4
      %v2574 = vshll.u32 %v2469, 16
      %v2576 = vrot.slane %v2574, 5
      %v2577 = vsel %vm1498, %v2572, %v2576
      %v2579 = vshrl.u32 %v2470, 16
      %v2581 = vrot.slane %v2579, 4
      %v2582 = vshll.u32 %v2470, 16
      %v2584 = vrot.slane %v2582, 5
      %v2585 = vor.u32 %v2581, %v2584
      %v2586 = vrot.slane %v2585, 4
      %v2588 = vshll.u32 %v2471, 16
      %v2590 = vrot.slane %v2588, 5
      %v2591 = vsel %vm1498, %v2586, %v2590
      %v2592 = vshrl.u32 %v2471, 16
      %v2594 = vrot.slane %v2592, 4
      %v2595 = vor.u32 %v2594, %v2590
      %v2596 = vrot.slane %v2595, 4
      %v2598 = vshll.u32 %v2472, 16
      %v2600 = vrot.slane %v2598, 5
      %v2601 = vsel %vm1498, %v2596, %v2600
      %v2603 = vshrl.u32 %v2473, 16
      %v2605 = vrot.slane %v2603, 4
      %v2606 = vshll.u32 %v2473, 16
      %v2608 = vrot.slane %v2606, 5
      %v2609 = vor.u32 %v2605, %v2608
      %v2610 = vrot.slane %v2609, 4
      %v2612 = vshll.u32 %v2474, 16
      %v2614 = vrot.slane %v2612, 5
      %v2615 = vsel %vm1498, %v2610, %v2614
      %v2616 = vshrl.u32 %v2474, 16
      %v2618 = vrot.slane %v2616, 4
      %v2619 = vor.u32 %v2618, %v2614
      %v2620 = vrot.slane %v2619, 4
      %v2622 = vshll.u32 %v2475, 16
      %v2624 = vrot.slane %v2622, 5
      %v2625 = vsel %vm1498, %v2620, %v2624
      %v2627 = vshrl.u32 %v2476, 16
      %v2629 = vrot.slane %v2627, 4
      %v2630 = vshll.u32 %v2476, 16
      %v2632 = vrot.slane %v2630, 5
      %v2633 = vor.u32 %v2629, %v2632
      %v2634 = vrot.slane %v2633, 4
      %v2636 = vshll.u32 %v2477, 16
      %v2638 = vrot.slane %v2636, 5
      %v2639 = vsel %vm1498, %v2634, %v2638
      %v2640 = vshrl.u32 %v2477, 16
      %v2642 = vrot.slane %v2640, 4
      %v2643 = vor.u32 %v2642, %v2638
      %v2644 = vrot.slane %v2643, 4
      %v2646 = vshll.u32 %v2478, 16
      %v2648 = vrot.slane %v2646, 5
      %v2649 = vsel %vm1498, %v2644, %v2648
      %v2651 = vshrl.u32 %v2479, 16
      %v2653 = vrot.slane %v2651, 4
      %v2654 = vshll.u32 %v2479, 16
      %v2656 = vrot.slane %v2654, 5
      %v2657 = vor.u32 %v2653, %v2656
      %v2658 = vrot.slane %v2657, 4
      %v2660 = vshll.u32 %v2480, 16
      %v2662 = vrot.slane %v2660, 5
      %v2663 = vsel %vm1498, %v2658, %v2662
      %v2664 = vshrl.u32 %v2480, 16
      %v2666 = vrot.slane %v2664, 4
      %v2667 = vor.u32 %v2666, %v2662
      %v2668 = vrot.slane %v2667, 4
      %v2670 = vshll.u32 %v2481, 16
      %v2672 = vrot.slane %v2670, 5
      %v2673 = vsel %vm1498, %v2668, %v2672
      %s2674 = scalar_lea.vmem %s2, 8
      %v2675 = vld [vmem:[%s2674] sm:$0x3]
      %v2676 = vunpack.c.l.b16 %v2495
      %v2677 = vunpack.c.l.b16 %v2505
      %v2678 = vunpack.c.l.b16 %v2519
      %v2679 = vunpack.c.l.b16 %v2529
      %v2680 = vunpack.c.l.b16 %v2543
      %v2681 = vunpack.c.l.b16 %v2553
      %v2682 = vunpack.c.l.b16 %v2567
      %v2683 = vunpack.c.l.b16 %v2577
      %v2684 = vunpack.c.l.b16 %v2591
      %v2685 = vunpack.c.l.b16 %v2601
      %v2686 = vunpack.c.l.b16 %v2615
      %v2687 = vunpack.c.l.b16 %v2625
      %v2688 = vunpack.c.l.b16 %v2639
      %v2689 = vunpack.c.l.b16 %v2649
      %v2690 = vunpack.c.l.b16 %v2663
      %v2691 = vunpack.c.l.b16 %v2673
      %v2692 = vpack.c.b16 %v2677, %v2676
      %v2693 = vpack.c.b16 %v2679, %v2678
      %v2694 = vpack.c.b16 %v2681, %v2680
      %v2695 = vpack.c.b16 %v2683, %v2682
      %v2696 = vpack.c.b16 %v2685, %v2684
      %v2697 = vpack.c.b16 %v2687, %v2686
      %v2698 = vpack.c.b16 %v2689, %v2688
      %v2699 = vpack.c.b16 %v2691, %v2690
      %v2701 = vsel %vm1717, %v2692, 0
      %v2704 = vsel %vm1717, %v2693, 0
      %v2707 = vsel %vm1717, %v2694, 0
      %v2710 = vsel %vm1717, %v2695, 0
      %v2713 = vsel %vm1717, %v2696, 0
      %v2716 = vsel %vm1717, %v2697, 0
      %v2719 = vsel %vm1717, %v2698, 0
      %v2722 = vsel %vm1717, %v2699, 0
      %v2725 = vsel %vm1742, %v2675, 0
      %2727 = vmatprep.subr.bf16.mxu0 0
      %2728 = vmatpush1.bf16.msra.mxu0 0
      %2729 = vmatprep.subr.bf16.mxu0 0
      %2730 = vmatpush1.bf16.msra.mxu0 0
      %2731 = vmatprep.subr.bf16.mxu0 0
      %2732 = vmatpush1.bf16.msra.mxu0 0
      %2733 = vmatprep.subr.bf16.mxu0 0
      %2734 = vmatpush1.bf16.msra.mxu0 0
      %2735 = vmatprep.subr.bf16.mxu0 0
      %2736 = vmatpush1.bf16.msra.mxu0 0
      %2737 = vmatprep.subr.bf16.mxu0 0
      %2738 = vmatpush1.bf16.msra.mxu0 0
      %2739 = vmatprep.subr.bf16.mxu0 0
      %2740 = vmatpush1.bf16.msra.mxu0 0
      %2741 = vmatprep.subr.bf16.mxu0 0
      %2742 = vmatpush1.bf16.msra.mxu0 %v2725
      %2743 = vmatprep.subr.bf16.mxu0 0
      %2744 = vmatpush2.bf16.msra.mxu0 0
      %2745 = vmatprep.subr.bf16.mxu0 0
      %2746 = vmatpush2.bf16.msra.mxu0 0
      %2747 = vmatprep.subr.bf16.mxu0 0
      %2748 = vmatpush2.bf16.msra.mxu0 0
      %2749 = vmatprep.subr.bf16.mxu0 0
      %2750 = vmatpush2.bf16.msra.mxu0 0
      %2751 = vmatprep.subr.bf16.mxu0 0
      %2752 = vmatpush2.bf16.msra.mxu0 0
      %2753 = vmatprep.subr.bf16.mxu0 0
      %2754 = vmatpush2.bf16.msra.mxu0 0
      %2755 = vmatprep.subr.bf16.mxu0 0
      %2756 = vmatpush2.bf16.msra.mxu0 0
      %2757 = vmatprep.subr.bf16.mxu0 0
      %2758 = vmatpush2.bf16.msra.mxu0 0
      %2759 = vmatprep.mubr.bf16.mxu0 0
      %2760 = vmatmul.mubr.bf16.gmra.mxu0 %v2701
      %v2761 = vpop.f32.mrf.mxu0
      %v2762 = vadd.f32 0.0, %v2761
      %v2763 = vpop.f32.mrf.mxu0
      %v2764 = vpop.f32.mrf.mxu0
      %v2765 = vadd.f32 0.0, %v2764
      %v2766 = vpop.f32.mrf.mxu0
      %2767 = vmatprep.mubr.bf16.mxu0 0
      %2768 = vmatmul.mubr.bf16.gmra.mxu0 %v2704
      %v2769 = vpop.f32.mrf.mxu0
      %v2770 = vadd.f32 0.0, %v2769
      %v2771 = vpop.f32.mrf.mxu0
      %v2772 = vpop.f32.mrf.mxu0
      %v2773 = vadd.f32 0.0, %v2772
      %v2774 = vpop.f32.mrf.mxu0
      %2775 = vmatprep.mubr.bf16.mxu0 0
      %2776 = vmatmul.mubr.bf16.gmra.mxu0 %v2707
      %v2777 = vpop.f32.mrf.mxu0
      %v2778 = vadd.f32 0.0, %v2777
      %v2779 = vpop.f32.mrf.mxu0
      %v2780 = vpop.f32.mrf.mxu0
      %v2781 = vadd.f32 0.0, %v2780
      %v2782 = vpop.f32.mrf.mxu0
      %2783 = vmatprep.mubr.bf16.mxu0 0
      %2784 = vmatmul.mubr.bf16.gmra.mxu0 %v2710
      %v2785 = vpop.f32.mrf.mxu0
      %v2786 = vadd.f32 0.0, %v2785
      %v2787 = vpop.f32.mrf.mxu0
      %v2788 = vpop.f32.mrf.mxu0
      %v2789 = vadd.f32 0.0, %v2788
      %v2790 = vpop.f32.mrf.mxu0
      %2791 = vmatprep.mubr.bf16.mxu0 0
      %2792 = vmatmul.mubr.bf16.gmra.mxu0 %v2713
      %v2793 = vpop.f32.mrf.mxu0
      %v2794 = vadd.f32 0.0, %v2793
      %v2795 = vpop.f32.mrf.mxu0
      %v2796 = vpop.f32.mrf.mxu0
      %v2797 = vadd.f32 0.0, %v2796
      %v2798 = vpop.f32.mrf.mxu0
      %2799 = vmatprep.mubr.bf16.mxu0 0
      %2800 = vmatmul.mubr.bf16.gmra.mxu0 %v2716
      %v2801 = vpop.f32.mrf.mxu0
      %v2802 = vadd.f32 0.0, %v2801
      %v2803 = vpop.f32.mrf.mxu0
      %v2804 = vpop.f32.mrf.mxu0
      %v2805 = vadd.f32 0.0, %v2804
      %v2806 = vpop.f32.mrf.mxu0
      %2807 = vmatprep.mubr.bf16.mxu0 0
      %2808 = vmatmul.mubr.bf16.gmra.mxu0 %v2719
      %v2809 = vpop.f32.mrf.mxu0
      %v2810 = vadd.f32 0.0, %v2809
      %v2811 = vpop.f32.mrf.mxu0
      %v2812 = vpop.f32.mrf.mxu0
      %v2813 = vadd.f32 0.0, %v2812
      %v2814 = vpop.f32.mrf.mxu0
      %2815 = vmatprep.mubr.bf16.mxu0 0
      %2816 = vmatmul.mubr.bf16.gmra.mxu0 %v2722
      %v2817 = vpop.f32.mrf.mxu0
      %v2818 = vadd.f32 0.0, %v2817
      %v2819 = vpop.f32.mrf.mxu0
      %v2820 = vpop.f32.mrf.mxu0
      %v2821 = vadd.f32 0.0, %v2820
      %v2822 = vpop.f32.mrf.mxu0
      %2823 = vdwg.mxu0
      %v2824 = vadd.f32 %v2442, %v2762
      %v2825 = vadd.f32 %v2443, %v2765
      %v2826 = vadd.f32 %v2444, %v2770
      %v2827 = vadd.f32 %v2445, %v2773
      %v2828 = vadd.f32 %v2446, %v2778
      %v2829 = vadd.f32 %v2447, %v2781
      %v2830 = vadd.f32 %v2448, %v2786
      %v2831 = vadd.f32 %v2449, %v2789
      %v2832 = vadd.f32 %v2450, %v2794
      %v2833 = vadd.f32 %v2451, %v2797
      %v2834 = vadd.f32 %v2452, %v2802
      %v2835 = vadd.f32 %v2453, %v2805
      %v2836 = vadd.f32 %v2454, %v2810
      %v2837 = vadd.f32 %v2455, %v2813
      %v2838 = vadd.f32 %v2456, %v2818
      %v2839 = vadd.f32 %v2457, %v2821
      %v2840 = vld [vmem:[%s2259] sm:$0xe]
      %v2841 = vld [vmem:[%s2259 + $0xc] sm:$0xe]
      %v2842 = vld [vmem:[%s2259 + $0x18] sm:$0xe]
      %v2843 = vld [vmem:[%s2259 + $0x24] sm:$0xe]
      %v2844 = vld [vmem:[%s2259 + $0x30] sm:$0xe]
      %v2845 = vld [vmem:[%s2259 + $0x3c] sm:$0xe]
      %v2846 = vld [vmem:[%s2259 + $0x48] sm:$0xe]
      %v2847 = vld [vmem:[%s2259 + $0x54] sm:$0xe]
      %v2872 = vrot.slane %v2840, 5
      %v2873 = vrot.slane %v2872, 4
      %v2874 = vrot.slane %v2459, 5
      %v2875 = vsel %vm2033, %v2873, %v2874
      %v2876 = vrot.slane %v2874, 4
      %v2877 = vrot.slane %v2460, 5
      %v2878 = vsel %vm2033, %v2876, %v2877
      %v2879 = vrot.slane %v2841, 5
      %v2880 = vrot.slane %v2879, 4
      %v2881 = vrot.slane %v2462, 5
      %v2882 = vsel %vm2033, %v2880, %v2881
      %v2883 = vrot.slane %v2881, 4
      %v2884 = vrot.slane %v2463, 5
      %v2885 = vsel %vm2033, %v2883, %v2884
      %v2886 = vrot.slane %v2842, 5
      %v2887 = vrot.slane %v2886, 4
      %v2888 = vrot.slane %v2465, 5
      %v2889 = vsel %vm2033, %v2887, %v2888
      %v2890 = vrot.slane %v2888, 4
      %v2891 = vrot.slane %v2466, 5
      %v2892 = vsel %vm2033, %v2890, %v2891
      %v2893 = vrot.slane %v2843, 5
      %v2894 = vrot.slane %v2893, 4
      %v2895 = vrot.slane %v2468, 5
      %v2896 = vsel %vm2033, %v2894, %v2895
      %v2897 = vrot.slane %v2895, 4
      %v2898 = vrot.slane %v2469, 5
      %v2899 = vsel %vm2033, %v2897, %v2898
      %v2900 = vrot.slane %v2844, 5
      %v2901 = vrot.slane %v2900, 4
      %v2902 = vrot.slane %v2471, 5
      %v2903 = vsel %vm2033, %v2901, %v2902
      %v2904 = vrot.slane %v2902, 4
      %v2905 = vrot.slane %v2472, 5
      %v2906 = vsel %vm2033, %v2904, %v2905
      %v2907 = vrot.slane %v2845, 5
      %v2908 = vrot.slane %v2907, 4
      %v2909 = vrot.slane %v2474, 5
      %v2910 = vsel %vm2033, %v2908, %v2909
      %v2911 = vrot.slane %v2909, 4
      %v2912 = vrot.slane %v2475, 5
      %v2913 = vsel %vm2033, %v2911, %v2912
      %v2914 = vrot.slane %v2846, 5
      %v2915 = vrot.slane %v2914, 4
      %v2916 = vrot.slane %v2477, 5
      %v2917 = vsel %vm2033, %v2915, %v2916
      %v2918 = vrot.slane %v2916, 4
      %v2919 = vrot.slane %v2478, 5
      %v2920 = vsel %vm2033, %v2918, %v2919
      %v2921 = vrot.slane %v2847, 5
      %v2922 = vrot.slane %v2921, 4
      %v2923 = vrot.slane %v2480, 5
      %v2924 = vsel %vm2033, %v2922, %v2923
      %v2925 = vrot.slane %v2923, 4
      %v2926 = vrot.slane %v2481, 5
      %v2927 = vsel %vm2033, %v2925, %v2926
      %s2928 = scalar_lea.vmem %s2, 10
      %v2929 = vld [vmem:[%s2928] sm:$0x3]
      %v2930 = vunpack.c.l.b16 %v2875
      %v2931 = vunpack.c.l.b16 %v2878
      %v2932 = vunpack.c.l.b16 %v2882
      %v2933 = vunpack.c.l.b16 %v2885
      %v2934 = vunpack.c.l.b16 %v2889
      %v2935 = vunpack.c.l.b16 %v2892
      %v2936 = vunpack.c.l.b16 %v2896
      %v2937 = vunpack.c.l.b16 %v2899
      %v2938 = vunpack.c.l.b16 %v2903
      %v2939 = vunpack.c.l.b16 %v2906
      %v2940 = vunpack.c.l.b16 %v2910
      %v2941 = vunpack.c.l.b16 %v2913
      %v2942 = vunpack.c.l.b16 %v2917
      %v2943 = vunpack.c.l.b16 %v2920
      %v2944 = vunpack.c.l.b16 %v2924
      %v2945 = vunpack.c.l.b16 %v2927
      %v2946 = vpack.c.b16 %v2931, %v2930
      %v2947 = vpack.c.b16 %v2933, %v2932
      %v2948 = vpack.c.b16 %v2935, %v2934
      %v2949 = vpack.c.b16 %v2937, %v2936
      %v2950 = vpack.c.b16 %v2939, %v2938
      %v2951 = vpack.c.b16 %v2941, %v2940
      %v2952 = vpack.c.b16 %v2943, %v2942
      %v2953 = vpack.c.b16 %v2945, %v2944
      %v2955 = vsel %vm1717, %v2946, 0
      %v2958 = vsel %vm1717, %v2947, 0
      %v2961 = vsel %vm1717, %v2948, 0
      %v2964 = vsel %vm1717, %v2949, 0
      %v2967 = vsel %vm1717, %v2950, 0
      %v2970 = vsel %vm1717, %v2951, 0
      %v2973 = vsel %vm1717, %v2952, 0
      %v2976 = vsel %vm1717, %v2953, 0
      %v2979 = vsel %vm1742, %v2929, 0
      %2981 = vmatprep.subr.bf16.mxu0 0
      %2982 = vmatpush1.bf16.msra.mxu0 0
      %2983 = vmatprep.subr.bf16.mxu0 0
      %2984 = vmatpush1.bf16.msra.mxu0 0
      %2985 = vmatprep.subr.bf16.mxu0 0
      %2986 = vmatpush1.bf16.msra.mxu0 0
      %2987 = vmatprep.subr.bf16.mxu0 0
      %2988 = vmatpush1.bf16.msra.mxu0 0
      %2989 = vmatprep.subr.bf16.mxu0 0
      %2990 = vmatpush1.bf16.msra.mxu0 0
      %2991 = vmatprep.subr.bf16.mxu0 0
      %2992 = vmatpush1.bf16.msra.mxu0 0
      %2993 = vmatprep.subr.bf16.mxu0 0
      %2994 = vmatpush1.bf16.msra.mxu0 0
      %2995 = vmatprep.subr.bf16.mxu0 0
      %2996 = vmatpush1.bf16.msra.mxu0 %v2979
      %2997 = vmatprep.subr.bf16.mxu0 0
      %2998 = vmatpush2.bf16.msra.mxu0 0
      %2999 = vmatprep.subr.bf16.mxu0 0
      %3000 = vmatpush2.bf16.msra.mxu0 0
      %3001 = vmatprep.subr.bf16.mxu0 0
      %3002 = vmatpush2.bf16.msra.mxu0 0
      %3003 = vmatprep.subr.bf16.mxu0 0
      %3004 = vmatpush2.bf16.msra.mxu0 0
      %3005 = vmatprep.subr.bf16.mxu0 0
      %3006 = vmatpush2.bf16.msra.mxu0 0
      %3007 = vmatprep.subr.bf16.mxu0 0
      %3008 = vmatpush2.bf16.msra.mxu0 0
      %3009 = vmatprep.subr.bf16.mxu0 0
      %3010 = vmatpush2.bf16.msra.mxu0 0
      %3011 = vmatprep.subr.bf16.mxu0 0
      %3012 = vmatpush2.bf16.msra.mxu0 0
      %3013 = vmatprep.mubr.bf16.mxu0 0
      %3014 = vmatmul.mubr.bf16.gmra.mxu0 %v2955
      %v3015 = vpop.f32.mrf.mxu0
      %v3016 = vadd.f32 0.0, %v3015
      %v3017 = vpop.f32.mrf.mxu0
      %v3018 = vpop.f32.mrf.mxu0
      %v3019 = vadd.f32 0.0, %v3018
      %v3020 = vpop.f32.mrf.mxu0
      %3021 = vmatprep.mubr.bf16.mxu0 0
      %3022 = vmatmul.mubr.bf16.gmra.mxu0 %v2958
      %v3023 = vpop.f32.mrf.mxu0
      %v3024 = vadd.f32 0.0, %v3023
      %v3025 = vpop.f32.mrf.mxu0
      %v3026 = vpop.f32.mrf.mxu0
      %v3027 = vadd.f32 0.0, %v3026
      %v3028 = vpop.f32.mrf.mxu0
      %3029 = vmatprep.mubr.bf16.mxu0 0
      %3030 = vmatmul.mubr.bf16.gmra.mxu0 %v2961
      %v3031 = vpop.f32.mrf.mxu0
      %v3032 = vadd.f32 0.0, %v3031
      %v3033 = vpop.f32.mrf.mxu0
      %v3034 = vpop.f32.mrf.mxu0
      %v3035 = vadd.f32 0.0, %v3034
      %v3036 = vpop.f32.mrf.mxu0
      %3037 = vmatprep.mubr.bf16.mxu0 0
      %3038 = vmatmul.mubr.bf16.gmra.mxu0 %v2964
      %v3039 = vpop.f32.mrf.mxu0
      %v3040 = vadd.f32 0.0, %v3039
      %v3041 = vpop.f32.mrf.mxu0
      %v3042 = vpop.f32.mrf.mxu0
      %v3043 = vadd.f32 0.0, %v3042
      %v3044 = vpop.f32.mrf.mxu0
      %3045 = vmatprep.mubr.bf16.mxu0 0
      %3046 = vmatmul.mubr.bf16.gmra.mxu0 %v2967
      %v3047 = vpop.f32.mrf.mxu0
      %v3048 = vadd.f32 0.0, %v3047
      %v3049 = vpop.f32.mrf.mxu0
      %v3050 = vpop.f32.mrf.mxu0
      %v3051 = vadd.f32 0.0, %v3050
      %v3052 = vpop.f32.mrf.mxu0
      %3053 = vmatprep.mubr.bf16.mxu0 0
      %3054 = vmatmul.mubr.bf16.gmra.mxu0 %v2970
      %v3055 = vpop.f32.mrf.mxu0
      %v3056 = vadd.f32 0.0, %v3055
      %v3057 = vpop.f32.mrf.mxu0
      %v3058 = vpop.f32.mrf.mxu0
      %v3059 = vadd.f32 0.0, %v3058
      %v3060 = vpop.f32.mrf.mxu0
      %3061 = vmatprep.mubr.bf16.mxu0 0
      %3062 = vmatmul.mubr.bf16.gmra.mxu0 %v2973
      %v3063 = vpop.f32.mrf.mxu0
      %v3064 = vadd.f32 0.0, %v3063
      %v3065 = vpop.f32.mrf.mxu0
      %v3066 = vpop.f32.mrf.mxu0
      %v3067 = vadd.f32 0.0, %v3066
      %v3068 = vpop.f32.mrf.mxu0
      %3069 = vmatprep.mubr.bf16.mxu0 0
      %3070 = vmatmul.mubr.bf16.gmra.mxu0 %v2976
      %v3071 = vpop.f32.mrf.mxu0
      %v3072 = vadd.f32 0.0, %v3071
      %v3073 = vpop.f32.mrf.mxu0
      %v3074 = vpop.f32.mrf.mxu0
      %v3075 = vadd.f32 0.0, %v3074
      %v3076 = vpop.f32.mrf.mxu0
      %3077 = vdwg.mxu0
      %v3078 = vadd.f32 %v2824, %v3016
      %v3079 = vadd.f32 %v2825, %v3019
      %v3080 = vadd.f32 %v2826, %v3024
      %v3081 = vadd.f32 %v2827, %v3027
      %v3082 = vadd.f32 %v2828, %v3032
      %v3083 = vadd.f32 %v2829, %v3035
      %v3084 = vadd.f32 %v2830, %v3040
      %v3085 = vadd.f32 %v2831, %v3043
      %v3086 = vadd.f32 %v2832, %v3048
      %v3087 = vadd.f32 %v2833, %v3051
      %v3088 = vadd.f32 %v2834, %v3056
      %v3089 = vadd.f32 %v2835, %v3059
      %v3090 = vadd.f32 %v2836, %v3064
      %v3091 = vadd.f32 %v2837, %v3067
      %v3092 = vadd.f32 %v2838, %v3072
      %v3093 = vadd.f32 %v2839, %v3075
      %s3094 = sadd.s32 %s1467, 2
      %s3095 = smul.u32 %s3094, 3
      %s3096 = smul.addr %s3095, 4
      %s3097 = scalar_lea.vmem [#allocation2], %s3096
      %v3098 = vld [vmem:[%s3097] sm:$0xf]
      %v3099 = vld [vmem:[%s3097 + $0x4] sm:$0xf]
      %v3100 = vld [vmem:[%s3097 + $0xc] sm:$0xf]
      %v3101 = vld [vmem:[%s3097 + $0x10] sm:$0xf]
      %v3102 = vld [vmem:[%s3097 + $0x18] sm:$0xf]
      %v3103 = vld [vmem:[%s3097 + $0x1c] sm:$0xf]
      %v3104 = vld [vmem:[%s3097 + $0x24] sm:$0xf]
      %v3105 = vld [vmem:[%s3097 + $0x28] sm:$0xf]
      %v3106 = vld [vmem:[%s3097 + $0x30] sm:$0xf]
      %v3107 = vld [vmem:[%s3097 + $0x34] sm:$0xf]
      %v3108 = vld [vmem:[%s3097 + $0x3c] sm:$0xf]
      %v3109 = vld [vmem:[%s3097 + $0x40] sm:$0xf]
      %v3110 = vld [vmem:[%s3097 + $0x48] sm:$0xf]
      %v3111 = vld [vmem:[%s3097 + $0x4c] sm:$0xf]
      %v3112 = vld [vmem:[%s3097 + $0x54] sm:$0xf]
      %v3113 = vld [vmem:[%s3097 + $0x58] sm:$0xf]
      %s3114 = scalar_lea.vmem %s2, 12
      %v3115 = vld [vmem:[%s3114] sm:$0x3]
      %v3132 = vunpack.c.l.b16 %v3098
      %v3133 = vunpack.c.l.b16 %v3099
      %v3134 = vunpack.c.l.b16 %v3100
      %v3135 = vunpack.c.l.b16 %v3101
      %v3136 = vunpack.c.l.b16 %v3102
      %v3137 = vunpack.c.l.b16 %v3103
      %v3138 = vunpack.c.l.b16 %v3104
      %v3139 = vunpack.c.l.b16 %v3105
      %v3140 = vunpack.c.l.b16 %v3106
      %v3141 = vunpack.c.l.b16 %v3107
      %v3142 = vunpack.c.l.b16 %v3108
      %v3143 = vunpack.c.l.b16 %v3109
      %v3144 = vunpack.c.l.b16 %v3110
      %v3145 = vunpack.c.l.b16 %v3111
      %v3146 = vunpack.c.l.b16 %v3112
      %v3147 = vunpack.c.l.b16 %v3113
      %v3148 = vpack.c.b16 %v3133, %v3132
      %v3149 = vpack.c.b16 %v3135, %v3134
      %v3150 = vpack.c.b16 %v3137, %v3136
      %v3151 = vpack.c.b16 %v3139, %v3138
      %v3152 = vpack.c.b16 %v3141, %v3140
      %v3153 = vpack.c.b16 %v3143, %v3142
      %v3154 = vpack.c.b16 %v3145, %v3144
      %v3155 = vpack.c.b16 %v3147, %v3146
      %v3157 = vsel %vm1717, %v3148, 0
      %v3160 = vsel %vm1717, %v3149, 0
      %v3163 = vsel %vm1717, %v3150, 0
      %v3166 = vsel %vm1717, %v3151, 0
      %v3169 = vsel %vm1717, %v3152, 0
      %v3172 = vsel %vm1717, %v3153, 0
      %v3175 = vsel %vm1717, %v3154, 0
      %v3178 = vsel %vm1717, %v3155, 0
      %v3181 = vsel %vm1742, %v3115, 0
      %3183 = vmatprep.subr.bf16.mxu0 0
      %3184 = vmatpush1.bf16.msra.mxu0 0
      %3185 = vmatprep.subr.bf16.mxu0 0
      %3186 = vmatpush1.bf16.msra.mxu0 0
      %3187 = vmatprep.subr.bf16.mxu0 0
      %3188 = vmatpush1.bf16.msra.mxu0 0
      %3189 = vmatprep.subr.bf16.mxu0 0
      %3190 = vmatpush1.bf16.msra.mxu0 0
      %3191 = vmatprep.subr.bf16.mxu0 0
      %3192 = vmatpush1.bf16.msra.mxu0 0
      %3193 = vmatprep.subr.bf16.mxu0 0
      %3194 = vmatpush1.bf16.msra.mxu0 0
      %3195 = vmatprep.subr.bf16.mxu0 0
      %3196 = vmatpush1.bf16.msra.mxu0 0
      %3197 = vmatprep.subr.bf16.mxu0 0
      %3198 = vmatpush1.bf16.msra.mxu0 %v3181
      %3199 = vmatprep.subr.bf16.mxu0 0
      %3200 = vmatpush2.bf16.msra.mxu0 0
      %3201 = vmatprep.subr.bf16.mxu0 0
      %3202 = vmatpush2.bf16.msra.mxu0 0
      %3203 = vmatprep.subr.bf16.mxu0 0
      %3204 = vmatpush2.bf16.msra.mxu0 0
      %3205 = vmatprep.subr.bf16.mxu0 0
      %3206 = vmatpush2.bf16.msra.mxu0 0
      %3207 = vmatprep.subr.bf16.mxu0 0
      %3208 = vmatpush2.bf16.msra.mxu0 0
      %3209 = vmatprep.subr.bf16.mxu0 0
      %3210 = vmatpush2.bf16.msra.mxu0 0
      %3211 = vmatprep.subr.bf16.mxu0 0
      %3212 = vmatpush2.bf16.msra.mxu0 0
      %3213 = vmatprep.subr.bf16.mxu0 0
      %3214 = vmatpush2.bf16.msra.mxu0 0
      %3215 = vmatprep.mubr.bf16.mxu0 0
      %3216 = vmatmul.mubr.bf16.gmra.mxu0 %v3157
      %v3217 = vpop.f32.mrf.mxu0
      %v3218 = vadd.f32 0.0, %v3217
      %v3219 = vpop.f32.mrf.mxu0
      %v3220 = vpop.f32.mrf.mxu0
      %v3221 = vadd.f32 0.0, %v3220
      %v3222 = vpop.f32.mrf.mxu0
      %3223 = vmatprep.mubr.bf16.mxu0 0
      %3224 = vmatmul.mubr.bf16.gmra.mxu0 %v3160
      %v3225 = vpop.f32.mrf.mxu0
      %v3226 = vadd.f32 0.0, %v3225
      %v3227 = vpop.f32.mrf.mxu0
      %v3228 = vpop.f32.mrf.mxu0
      %v3229 = vadd.f32 0.0, %v3228
      %v3230 = vpop.f32.mrf.mxu0
      %3231 = vmatprep.mubr.bf16.mxu0 0
      %3232 = vmatmul.mubr.bf16.gmra.mxu0 %v3163
      %v3233 = vpop.f32.mrf.mxu0
      %v3234 = vadd.f32 0.0, %v3233
      %v3235 = vpop.f32.mrf.mxu0
      %v3236 = vpop.f32.mrf.mxu0
      %v3237 = vadd.f32 0.0, %v3236
      %v3238 = vpop.f32.mrf.mxu0
      %3239 = vmatprep.mubr.bf16.mxu0 0
      %3240 = vmatmul.mubr.bf16.gmra.mxu0 %v3166
      %v3241 = vpop.f32.mrf.mxu0
      %v3242 = vadd.f32 0.0, %v3241
      %v3243 = vpop.f32.mrf.mxu0
      %v3244 = vpop.f32.mrf.mxu0
      %v3245 = vadd.f32 0.0, %v3244
      %v3246 = vpop.f32.mrf.mxu0
      %3247 = vmatprep.mubr.bf16.mxu0 0
      %3248 = vmatmul.mubr.bf16.gmra.mxu0 %v3169
      %v3249 = vpop.f32.mrf.mxu0
      %v3250 = vadd.f32 0.0, %v3249
      %v3251 = vpop.f32.mrf.mxu0
      %v3252 = vpop.f32.mrf.mxu0
      %v3253 = vadd.f32 0.0, %v3252
      %v3254 = vpop.f32.mrf.mxu0
      %3255 = vmatprep.mubr.bf16.mxu0 0
      %3256 = vmatmul.mubr.bf16.gmra.mxu0 %v3172
      %v3257 = vpop.f32.mrf.mxu0
      %v3258 = vadd.f32 0.0, %v3257
      %v3259 = vpop.f32.mrf.mxu0
      %v3260 = vpop.f32.mrf.mxu0
      %v3261 = vadd.f32 0.0, %v3260
      %v3262 = vpop.f32.mrf.mxu0
      %3263 = vmatprep.mubr.bf16.mxu0 0
      %3264 = vmatmul.mubr.bf16.gmra.mxu0 %v3175
      %v3265 = vpop.f32.mrf.mxu0
      %v3266 = vadd.f32 0.0, %v3265
      %v3267 = vpop.f32.mrf.mxu0
      %v3268 = vpop.f32.mrf.mxu0
      %v3269 = vadd.f32 0.0, %v3268
      %v3270 = vpop.f32.mrf.mxu0
      %3271 = vmatprep.mubr.bf16.mxu0 0
      %3272 = vmatmul.mubr.bf16.gmra.mxu0 %v3178
      %v3273 = vpop.f32.mrf.mxu0
      %v3274 = vadd.f32 0.0, %v3273
      %v3275 = vpop.f32.mrf.mxu0
      %v3276 = vpop.f32.mrf.mxu0
      %v3277 = vadd.f32 0.0, %v3276
      %v3278 = vpop.f32.mrf.mxu0
      %3279 = vdwg.mxu0
      %v3280 = vadd.f32 %v3078, %v3218
      %v3281 = vadd.f32 %v3079, %v3221
      %v3282 = vadd.f32 %v3080, %v3226
      %v3283 = vadd.f32 %v3081, %v3229
      %v3284 = vadd.f32 %v3082, %v3234
      %v3285 = vadd.f32 %v3083, %v3237
      %v3286 = vadd.f32 %v3084, %v3242
      %v3287 = vadd.f32 %v3085, %v3245
      %v3288 = vadd.f32 %v3086, %v3250
      %v3289 = vadd.f32 %v3087, %v3253
      %v3290 = vadd.f32 %v3088, %v3258
      %v3291 = vadd.f32 %v3089, %v3261
      %v3292 = vadd.f32 %v3090, %v3266
      %v3293 = vadd.f32 %v3091, %v3269
      %v3294 = vadd.f32 %v3092, %v3274
      %v3295 = vadd.f32 %v3093, %v3277
      %v3296 = vld [vmem:[%s3097] sm:$0xf]
      %v3297 = vld [vmem:[%s3097 + $0x4] sm:$0xf]
      %v3298 = vld [vmem:[%s3097 + $0x8] sm:$0x1]
      %v3299 = vld [vmem:[%s3097 + $0xc] sm:$0xf]
      %v3300 = vld [vmem:[%s3097 + $0x10] sm:$0xf]
      %v3301 = vld [vmem:[%s3097 + $0x14] sm:$0x1]
      %v3302 = vld [vmem:[%s3097 + $0x18] sm:$0xf]
      %v3303 = vld [vmem:[%s3097 + $0x1c] sm:$0xf]
      %v3304 = vld [vmem:[%s3097 + $0x20] sm:$0x1]
      %v3305 = vld [vmem:[%s3097 + $0x24] sm:$0xf]
      %v3306 = vld [vmem:[%s3097 + $0x28] sm:$0xf]
      %v3307 = vld [vmem:[%s3097 + $0x2c] sm:$0x1]
      %v3308 = vld [vmem:[%s3097 + $0x30] sm:$0xf]
      %v3309 = vld [vmem:[%s3097 + $0x34] sm:$0xf]
      %v3310 = vld [vmem:[%s3097 + $0x38] sm:$0x1]
      %v3311 = vld [vmem:[%s3097 + $0x3c] sm:$0xf]
      %v3312 = vld [vmem:[%s3097 + $0x40] sm:$0xf]
      %v3313 = vld [vmem:[%s3097 + $0x44] sm:$0x1]
      %v3314 = vld [vmem:[%s3097 + $0x48] sm:$0xf]
      %v3315 = vld [vmem:[%s3097 + $0x4c] sm:$0xf]
      %v3316 = vld [vmem:[%s3097 + $0x50] sm:$0x1]
      %v3317 = vld [vmem:[%s3097 + $0x54] sm:$0xf]
      %v3318 = vld [vmem:[%s3097 + $0x58] sm:$0xf]
      %v3319 = vld [vmem:[%s3097 + $0x5c] sm:$0x1]
      %v3321 = vshrl.u32 %v3296, 16
      %v3323 = vrot.slane %v3321, 4
      %v3324 = vshll.u32 %v3296, 16
      %v3326 = vrot.slane %v3324, 5
      %v3327 = vor.u32 %v3323, %v3326
      %v3328 = vrot.slane %v3327, 4
      %v3330 = vshll.u32 %v3297, 16
      %v3332 = vrot.slane %v3330, 5
      %v3333 = vsel %vm1498, %v3328, %v3332
      %v3334 = vshrl.u32 %v3297, 16
      %v3336 = vrot.slane %v3334, 4
      %v3337 = vor.u32 %v3336, %v3332
      %v3338 = vrot.slane %v3337, 4
      %v3340 = vshll.u32 %v3298, 16
      %v3342 = vrot.slane %v3340, 5
      %v3343 = vsel %vm1498, %v3338, %v3342
      %v3345 = vshrl.u32 %v3299, 16
      %v3347 = vrot.slane %v3345, 4
      %v3348 = vshll.u32 %v3299, 16
      %v3350 = vrot.slane %v3348, 5
      %v3351 = vor.u32 %v3347, %v3350
      %v3352 = vrot.slane %v3351, 4
      %v3354 = vshll.u32 %v3300, 16
      %v3356 = vrot.slane %v3354, 5
      %v3357 = vsel %vm1498, %v3352, %v3356
      %v3358 = vshrl.u32 %v3300, 16
      %v3360 = vrot.slane %v3358, 4
      %v3361 = vor.u32 %v3360, %v3356
      %v3362 = vrot.slane %v3361, 4
      %v3364 = vshll.u32 %v3301, 16
      %v3366 = vrot.slane %v3364, 5
      %v3367 = vsel %vm1498, %v3362, %v3366
      %v3369 = vshrl.u32 %v3302, 16
      %v3371 = vrot.slane %v3369, 4
      %v3372 = vshll.u32 %v3302, 16
      %v3374 = vrot.slane %v3372, 5
      %v3375 = vor.u32 %v3371, %v3374
      %v3376 = vrot.slane %v3375, 4
      %v3378 = vshll.u32 %v3303, 16
      %v3380 = vrot.slane %v3378, 5
      %v3381 = vsel %vm1498, %v3376, %v3380
      %v3382 = vshrl.u32 %v3303, 16
      %v3384 = vrot.slane %v3382, 4
      %v3385 = vor.u32 %v3384, %v3380
      %v3386 = vrot.slane %v3385, 4
      %v3388 = vshll.u32 %v3304, 16
      %v3390 = vrot.slane %v3388, 5
      %v3391 = vsel %vm1498, %v3386, %v3390
      %v3393 = vshrl.u32 %v3305, 16
      %v3395 = vrot.slane %v3393, 4
      %v3396 = vshll.u32 %v3305, 16
      %v3398 = vrot.slane %v3396, 5
      %v3399 = vor.u32 %v3395, %v3398
      %v3400 = vrot.slane %v3399, 4
      %v3402 = vshll.u32 %v3306, 16
      %v3404 = vrot.slane %v3402, 5
      %v3405 = vsel %vm1498, %v3400, %v3404
      %v3406 = vshrl.u32 %v3306, 16
      %v3408 = vrot.slane %v3406, 4
      %v3409 = vor.u32 %v3408, %v3404
      %v3410 = vrot.slane %v3409, 4
      %v3412 = vshll.u32 %v3307, 16
      %v3414 = vrot.slane %v3412, 5
      %v3415 = vsel %vm1498, %v3410, %v3414
      %v3417 = vshrl.u32 %v3308, 16
      %v3419 = vrot.slane %v3417, 4
      %v3420 = vshll.u32 %v3308, 16
      %v3422 = vrot.slane %v3420, 5
      %v3423 = vor.u32 %v3419, %v3422
      %v3424 = vrot.slane %v3423, 4
      %v3426 = vshll.u32 %v3309, 16
      %v3428 = vrot.slane %v3426, 5
      %v3429 = vsel %vm1498, %v3424, %v3428
      %v3430 = vshrl.u32 %v3309, 16
      %v3432 = vrot.slane %v3430, 4
      %v3433 = vor.u32 %v3432, %v3428
      %v3434 = vrot.slane %v3433, 4
      %v3436 = vshll.u32 %v3310, 16
      %v3438 = vrot.slane %v3436, 5
      %v3439 = vsel %vm1498, %v3434, %v3438
      %v3441 = vshrl.u32 %v3311, 16
      %v3443 = vrot.slane %v3441, 4
      %v3444 = vshll.u32 %v3311, 16
      %v3446 = vrot.slane %v3444, 5
      %v3447 = vor.u32 %v3443, %v3446
      %v3448 = vrot.slane %v3447, 4
      %v3450 = vshll.u32 %v3312, 16
      %v3452 = vrot.slane %v3450, 5
      %v3453 = vsel %vm1498, %v3448, %v3452
      %v3454 = vshrl.u32 %v3312, 16
      %v3456 = vrot.slane %v3454, 4
      %v3457 = vor.u32 %v3456, %v3452
      %v3458 = vrot.slane %v3457, 4
      %v3460 = vshll.u32 %v3313, 16
      %v3462 = vrot.slane %v3460, 5
      %v3463 = vsel %vm1498, %v3458, %v3462
      %v3465 = vshrl.u32 %v3314, 16
      %v3467 = vrot.slane %v3465, 4
      %v3468 = vshll.u32 %v3314, 16
      %v3470 = vrot.slane %v3468, 5
      %v3471 = vor.u32 %v3467, %v3470
      %v3472 = vrot.slane %v3471, 4
      %v3474 = vshll.u32 %v3315, 16
      %v3476 = vrot.slane %v3474, 5
      %v3477 = vsel %vm1498, %v3472, %v3476
      %v3478 = vshrl.u32 %v3315, 16
      %v3480 = vrot.slane %v3478, 4
      %v3481 = vor.u32 %v3480, %v3476
      %v3482 = vrot.slane %v3481, 4
      %v3484 = vshll.u32 %v3316, 16
      %v3486 = vrot.slane %v3484, 5
      %v3487 = vsel %vm1498, %v3482, %v3486
      %v3489 = vshrl.u32 %v3317, 16
      %v3491 = vrot.slane %v3489, 4
      %v3492 = vshll.u32 %v3317, 16
      %v3494 = vrot.slane %v3492, 5
      %v3495 = vor.u32 %v3491, %v3494
      %v3496 = vrot.slane %v3495, 4
      %v3498 = vshll.u32 %v3318, 16
      %v3500 = vrot.slane %v3498, 5
      %v3501 = vsel %vm1498, %v3496, %v3500
      %v3502 = vshrl.u32 %v3318, 16
      %v3504 = vrot.slane %v3502, 4
      %v3505 = vor.u32 %v3504, %v3500
      %v3506 = vrot.slane %v3505, 4
      %v3508 = vshll.u32 %v3319, 16
      %v3510 = vrot.slane %v3508, 5
      %v3511 = vsel %vm1498, %v3506, %v3510
      %s3512 = scalar_lea.vmem %s2, 14
      %v3513 = vld [vmem:[%s3512] sm:$0x3]
      %v3514 = vunpack.c.l.b16 %v3333
      %v3515 = vunpack.c.l.b16 %v3343
      %v3516 = vunpack.c.l.b16 %v3357
      %v3517 = vunpack.c.l.b16 %v3367
      %v3518 = vunpack.c.l.b16 %v3381
      %v3519 = vunpack.c.l.b16 %v3391
      %v3520 = vunpack.c.l.b16 %v3405
      %v3521 = vunpack.c.l.b16 %v3415
      %v3522 = vunpack.c.l.b16 %v3429
      %v3523 = vunpack.c.l.b16 %v3439
      %v3524 = vunpack.c.l.b16 %v3453
      %v3525 = vunpack.c.l.b16 %v3463
      %v3526 = vunpack.c.l.b16 %v3477
      %v3527 = vunpack.c.l.b16 %v3487
      %v3528 = vunpack.c.l.b16 %v3501
      %v3529 = vunpack.c.l.b16 %v3511
      %v3530 = vpack.c.b16 %v3515, %v3514
      %v3531 = vpack.c.b16 %v3517, %v3516
      %v3532 = vpack.c.b16 %v3519, %v3518
      %v3533 = vpack.c.b16 %v3521, %v3520
      %v3534 = vpack.c.b16 %v3523, %v3522
      %v3535 = vpack.c.b16 %v3525, %v3524
      %v3536 = vpack.c.b16 %v3527, %v3526
      %v3537 = vpack.c.b16 %v3529, %v3528
      %v3539 = vsel %vm1717, %v3530, 0
      %v3542 = vsel %vm1717, %v3531, 0
      %v3545 = vsel %vm1717, %v3532, 0
      %v3548 = vsel %vm1717, %v3533, 0
      %v3551 = vsel %vm1717, %v3534, 0
      %v3554 = vsel %vm1717, %v3535, 0
      %v3557 = vsel %vm1717, %v3536, 0
      %v3560 = vsel %vm1717, %v3537, 0
      %v3563 = vsel %vm1742, %v3513, 0
      %3565 = vmatprep.subr.bf16.mxu0 0
      %3566 = vmatpush1.bf16.msra.mxu0 0
      %3567 = vmatprep.subr.bf16.mxu0 0
      %3568 = vmatpush1.bf16.msra.mxu0 0
      %3569 = vmatprep.subr.bf16.mxu0 0
      %3570 = vmatpush1.bf16.msra.mxu0 0
      %3571 = vmatprep.subr.bf16.mxu0 0
      %3572 = vmatpush1.bf16.msra.mxu0 0
      %3573 = vmatprep.subr.bf16.mxu0 0
      %3574 = vmatpush1.bf16.msra.mxu0 0
      %3575 = vmatprep.subr.bf16.mxu0 0
      %3576 = vmatpush1.bf16.msra.mxu0 0
      %3577 = vmatprep.subr.bf16.mxu0 0
      %3578 = vmatpush1.bf16.msra.mxu0 0
      %3579 = vmatprep.subr.bf16.mxu0 0
      %3580 = vmatpush1.bf16.msra.mxu0 %v3563
      %3581 = vmatprep.subr.bf16.mxu0 0
      %3582 = vmatpush2.bf16.msra.mxu0 0
      %3583 = vmatprep.subr.bf16.mxu0 0
      %3584 = vmatpush2.bf16.msra.mxu0 0
      %3585 = vmatprep.subr.bf16.mxu0 0
      %3586 = vmatpush2.bf16.msra.mxu0 0
      %3587 = vmatprep.subr.bf16.mxu0 0
      %3588 = vmatpush2.bf16.msra.mxu0 0
      %3589 = vmatprep.subr.bf16.mxu0 0
      %3590 = vmatpush2.bf16.msra.mxu0 0
      %3591 = vmatprep.subr.bf16.mxu0 0
      %3592 = vmatpush2.bf16.msra.mxu0 0
      %3593 = vmatprep.subr.bf16.mxu0 0
      %3594 = vmatpush2.bf16.msra.mxu0 0
      %3595 = vmatprep.subr.bf16.mxu0 0
      %3596 = vmatpush2.bf16.msra.mxu0 0
      %3597 = vmatprep.mubr.bf16.mxu0 0
      %3598 = vmatmul.mubr.bf16.gmra.mxu0 %v3539
      %v3599 = vpop.f32.mrf.mxu0
      %v3600 = vadd.f32 0.0, %v3599
      %v3601 = vpop.f32.mrf.mxu0
      %v3602 = vpop.f32.mrf.mxu0
      %v3603 = vadd.f32 0.0, %v3602
      %v3604 = vpop.f32.mrf.mxu0
      %3605 = vmatprep.mubr.bf16.mxu0 0
      %3606 = vmatmul.mubr.bf16.gmra.mxu0 %v3542
      %v3607 = vpop.f32.mrf.mxu0
      %v3608 = vadd.f32 0.0, %v3607
      %v3609 = vpop.f32.mrf.mxu0
      %v3610 = vpop.f32.mrf.mxu0
      %v3611 = vadd.f32 0.0, %v3610
      %v3612 = vpop.f32.mrf.mxu0
      %3613 = vmatprep.mubr.bf16.mxu0 0
      %3614 = vmatmul.mubr.bf16.gmra.mxu0 %v3545
      %v3615 = vpop.f32.mrf.mxu0
      %v3616 = vadd.f32 0.0, %v3615
      %v3617 = vpop.f32.mrf.mxu0
      %v3618 = vpop.f32.mrf.mxu0
      %v3619 = vadd.f32 0.0, %v3618
      %v3620 = vpop.f32.mrf.mxu0
      %3621 = vmatprep.mubr.bf16.mxu0 0
      %3622 = vmatmul.mubr.bf16.gmra.mxu0 %v3548
      %v3623 = vpop.f32.mrf.mxu0
      %v3624 = vadd.f32 0.0, %v3623
      %v3625 = vpop.f32.mrf.mxu0
      %v3626 = vpop.f32.mrf.mxu0
      %v3627 = vadd.f32 0.0, %v3626
      %v3628 = vpop.f32.mrf.mxu0
      %3629 = vmatprep.mubr.bf16.mxu0 0
      %3630 = vmatmul.mubr.bf16.gmra.mxu0 %v3551
      %v3631 = vpop.f32.mrf.mxu0
      %v3632 = vadd.f32 0.0, %v3631
      %v3633 = vpop.f32.mrf.mxu0
      %v3634 = vpop.f32.mrf.mxu0
      %v3635 = vadd.f32 0.0, %v3634
      %v3636 = vpop.f32.mrf.mxu0
      %3637 = vmatprep.mubr.bf16.mxu0 0
      %3638 = vmatmul.mubr.bf16.gmra.mxu0 %v3554
      %v3639 = vpop.f32.mrf.mxu0
      %v3640 = vadd.f32 0.0, %v3639
      %v3641 = vpop.f32.mrf.mxu0
      %v3642 = vpop.f32.mrf.mxu0
      %v3643 = vadd.f32 0.0, %v3642
      %v3644 = vpop.f32.mrf.mxu0
      %3645 = vmatprep.mubr.bf16.mxu0 0
      %3646 = vmatmul.mubr.bf16.gmra.mxu0 %v3557
      %v3647 = vpop.f32.mrf.mxu0
      %v3648 = vadd.f32 0.0, %v3647
      %v3649 = vpop.f32.mrf.mxu0
      %v3650 = vpop.f32.mrf.mxu0
      %v3651 = vadd.f32 0.0, %v3650
      %v3652 = vpop.f32.mrf.mxu0
      %3653 = vmatprep.mubr.bf16.mxu0 0
      %3654 = vmatmul.mubr.bf16.gmra.mxu0 %v3560
      %v3655 = vpop.f32.mrf.mxu0
      %v3656 = vadd.f32 0.0, %v3655
      %v3657 = vpop.f32.mrf.mxu0
      %v3658 = vpop.f32.mrf.mxu0
      %v3659 = vadd.f32 0.0, %v3658
      %v3660 = vpop.f32.mrf.mxu0
      %3661 = vdwg.mxu0
      %v3662 = vadd.f32 %v3280, %v3600
      %v3663 = vadd.f32 %v3281, %v3603
      %v3664 = vadd.f32 %v3282, %v3608
      %v3665 = vadd.f32 %v3283, %v3611
      %v3666 = vadd.f32 %v3284, %v3616
      %v3667 = vadd.f32 %v3285, %v3619
      %v3668 = vadd.f32 %v3286, %v3624
      %v3669 = vadd.f32 %v3287, %v3627
      %v3670 = vadd.f32 %v3288, %v3632
      %v3671 = vadd.f32 %v3289, %v3635
      %v3672 = vadd.f32 %v3290, %v3640
      %v3673 = vadd.f32 %v3291, %v3643
      %v3674 = vadd.f32 %v3292, %v3648
      %v3675 = vadd.f32 %v3293, %v3651
      %v3676 = vadd.f32 %v3294, %v3656
      %v3677 = vadd.f32 %v3295, %v3659
      %v3678 = vld [vmem:[%s3097] sm:$0xe]
      %v3679 = vld [vmem:[%s3097 + $0xc] sm:$0xe]
      %v3680 = vld [vmem:[%s3097 + $0x18] sm:$0xe]
      %v3681 = vld [vmem:[%s3097 + $0x24] sm:$0xe]
      %v3682 = vld [vmem:[%s3097 + $0x30] sm:$0xe]
      %v3683 = vld [vmem:[%s3097 + $0x3c] sm:$0xe]
      %v3684 = vld [vmem:[%s3097 + $0x48] sm:$0xe]
      %v3685 = vld [vmem:[%s3097 + $0x54] sm:$0xe]
      %v3710 = vrot.slane %v3678, 5
      %v3711 = vrot.slane %v3710, 4
      %v3712 = vrot.slane %v3297, 5
      %v3713 = vsel %vm2033, %v3711, %v3712
      %v3714 = vrot.slane %v3712, 4
      %v3715 = vrot.slane %v3298, 5
      %v3716 = vsel %vm2033, %v3714, %v3715
      %v3717 = vrot.slane %v3679, 5
      %v3718 = vrot.slane %v3717, 4
      %v3719 = vrot.slane %v3300, 5
      %v3720 = vsel %vm2033, %v3718, %v3719
      %v3721 = vrot.slane %v3719, 4
      %v3722 = vrot.slane %v3301, 5
      %v3723 = vsel %vm2033, %v3721, %v3722
      %v3724 = vrot.slane %v3680, 5
      %v3725 = vrot.slane %v3724, 4
      %v3726 = vrot.slane %v3303, 5
      %v3727 = vsel %vm2033, %v3725, %v3726
      %v3728 = vrot.slane %v3726, 4
      %v3729 = vrot.slane %v3304, 5
      %v3730 = vsel %vm2033, %v3728, %v3729
      %v3731 = vrot.slane %v3681, 5
      %v3732 = vrot.slane %v3731, 4
      %v3733 = vrot.slane %v3306, 5
      %v3734 = vsel %vm2033, %v3732, %v3733
      %v3735 = vrot.slane %v3733, 4
      %v3736 = vrot.slane %v3307, 5
      %v3737 = vsel %vm2033, %v3735, %v3736
      %v3738 = vrot.slane %v3682, 5
      %v3739 = vrot.slane %v3738, 4
      %v3740 = vrot.slane %v3309, 5
      %v3741 = vsel %vm2033, %v3739, %v3740
      %v3742 = vrot.slane %v3740, 4
      %v3743 = vrot.slane %v3310, 5
      %v3744 = vsel %vm2033, %v3742, %v3743
      %v3745 = vrot.slane %v3683, 5
      %v3746 = vrot.slane %v3745, 4
      %v3747 = vrot.slane %v3312, 5
      %v3748 = vsel %vm2033, %v3746, %v3747
      %v3749 = vrot.slane %v3747, 4
      %v3750 = vrot.slane %v3313, 5
      %v3751 = vsel %vm2033, %v3749, %v3750
      %v3752 = vrot.slane %v3684, 5
      %v3753 = vrot.slane %v3752, 4
      %v3754 = vrot.slane %v3315, 5
      %v3755 = vsel %vm2033, %v3753, %v3754
      %v3756 = vrot.slane %v3754, 4
      %v3757 = vrot.slane %v3316, 5
      %v3758 = vsel %vm2033, %v3756, %v3757
      %v3759 = vrot.slane %v3685, 5
      %v3760 = vrot.slane %v3759, 4
      %v3761 = vrot.slane %v3318, 5
      %v3762 = vsel %vm2033, %v3760, %v3761
      %v3763 = vrot.slane %v3761, 4
      %v3764 = vrot.slane %v3319, 5
      %v3765 = vsel %vm2033, %v3763, %v3764
      %s3766 = scalar_lea.vmem %s2, 16
      %v3767 = vld [vmem:[%s3766] sm:$0x3]
      %v3768 = vunpack.c.l.b16 %v3713
      %v3769 = vunpack.c.l.b16 %v3716
      %v3770 = vunpack.c.l.b16 %v3720
      %v3771 = vunpack.c.l.b16 %v3723
      %v3772 = vunpack.c.l.b16 %v3727
      %v3773 = vunpack.c.l.b16 %v3730
      %v3774 = vunpack.c.l.b16 %v3734
      %v3775 = vunpack.c.l.b16 %v3737
      %v3776 = vunpack.c.l.b16 %v3741
      %v3777 = vunpack.c.l.b16 %v3744
      %v3778 = vunpack.c.l.b16 %v3748
      %v3779 = vunpack.c.l.b16 %v3751
      %v3780 = vunpack.c.l.b16 %v3755
      %v3781 = vunpack.c.l.b16 %v3758
      %v3782 = vunpack.c.l.b16 %v3762
      %v3783 = vunpack.c.l.b16 %v3765
      %v3784 = vpack.c.b16 %v3769, %v3768
      %v3785 = vpack.c.b16 %v3771, %v3770
      %v3786 = vpack.c.b16 %v3773, %v3772
      %v3787 = vpack.c.b16 %v3775, %v3774
      %v3788 = vpack.c.b16 %v3777, %v3776
      %v3789 = vpack.c.b16 %v3779, %v3778
      %v3790 = vpack.c.b16 %v3781, %v3780
      %v3791 = vpack.c.b16 %v3783, %v3782
      %v3793 = vsel %vm1717, %v3784, 0
      %v3796 = vsel %vm1717, %v3785, 0
      %v3799 = vsel %vm1717, %v3786, 0
      %v3802 = vsel %vm1717, %v3787, 0
      %v3805 = vsel %vm1717, %v3788, 0
      %v3808 = vsel %vm1717, %v3789, 0
      %v3811 = vsel %vm1717, %v3790, 0
      %v3814 = vsel %vm1717, %v3791, 0
      %v3817 = vsel %vm1742, %v3767, 0
      %3819 = vmatprep.subr.bf16.mxu0 0
      %3820 = vmatpush1.bf16.msra.mxu0 0
      %3821 = vmatprep.subr.bf16.mxu0 0
      %3822 = vmatpush1.bf16.msra.mxu0 0
      %3823 = vmatprep.subr.bf16.mxu0 0
      %3824 = vmatpush1.bf16.msra.mxu0 0
      %3825 = vmatprep.subr.bf16.mxu0 0
      %3826 = vmatpush1.bf16.msra.mxu0 0
      %3827 = vmatprep.subr.bf16.mxu0 0
      %3828 = vmatpush1.bf16.msra.mxu0 0
      %3829 = vmatprep.subr.bf16.mxu0 0
      %3830 = vmatpush1.bf16.msra.mxu0 0
      %3831 = vmatprep.subr.bf16.mxu0 0
      %3832 = vmatpush1.bf16.msra.mxu0 0
      %3833 = vmatprep.subr.bf16.mxu0 0
      %3834 = vmatpush1.bf16.msra.mxu0 %v3817
      %3835 = vmatprep.subr.bf16.mxu0 0
      %3836 = vmatpush2.bf16.msra.mxu0 0
      %3837 = vmatprep.subr.bf16.mxu0 0
      %3838 = vmatpush2.bf16.msra.mxu0 0
      %3839 = vmatprep.subr.bf16.mxu0 0
      %3840 = vmatpush2.bf16.msra.mxu0 0
      %3841 = vmatprep.subr.bf16.mxu0 0
      %3842 = vmatpush2.bf16.msra.mxu0 0
      %3843 = vmatprep.subr.bf16.mxu0 0
      %3844 = vmatpush2.bf16.msra.mxu0 0
      %3845 = vmatprep.subr.bf16.mxu0 0
      %3846 = vmatpush2.bf16.msra.mxu0 0
      %3847 = vmatprep.subr.bf16.mxu0 0
      %3848 = vmatpush2.bf16.msra.mxu0 0
      %3849 = vmatprep.subr.bf16.mxu0 0
      %3850 = vmatpush2.bf16.msra.mxu0 0
      %3851 = vmatprep.mubr.bf16.mxu0 0
      %3852 = vmatmul.mubr.bf16.gmra.mxu0 %v3793
      %v3853 = vpop.f32.mrf.mxu0
      %v3854 = vadd.f32 0.0, %v3853
      %v3855 = vpop.f32.mrf.mxu0
      %v3856 = vpop.f32.mrf.mxu0
      %v3857 = vadd.f32 0.0, %v3856
      %v3858 = vpop.f32.mrf.mxu0
      %3859 = vmatprep.mubr.bf16.mxu0 0
      %3860 = vmatmul.mubr.bf16.gmra.mxu0 %v3796
      %v3861 = vpop.f32.mrf.mxu0
      %v3862 = vadd.f32 0.0, %v3861
      %v3863 = vpop.f32.mrf.mxu0
      %v3864 = vpop.f32.mrf.mxu0
      %v3865 = vadd.f32 0.0, %v3864
      %v3866 = vpop.f32.mrf.mxu0
      %3867 = vmatprep.mubr.bf16.mxu0 0
      %3868 = vmatmul.mubr.bf16.gmra.mxu0 %v3799
      %v3869 = vpop.f32.mrf.mxu0
      %v3870 = vadd.f32 0.0, %v3869
      %v3871 = vpop.f32.mrf.mxu0
      %v3872 = vpop.f32.mrf.mxu0
      %v3873 = vadd.f32 0.0, %v3872
      %v3874 = vpop.f32.mrf.mxu0
      %3875 = vmatprep.mubr.bf16.mxu0 0
      %3876 = vmatmul.mubr.bf16.gmra.mxu0 %v3802
      %v3877 = vpop.f32.mrf.mxu0
      %v3878 = vadd.f32 0.0, %v3877
      %v3879 = vpop.f32.mrf.mxu0
      %v3880 = vpop.f32.mrf.mxu0
      %v3881 = vadd.f32 0.0, %v3880
      %v3882 = vpop.f32.mrf.mxu0
      %3883 = vmatprep.mubr.bf16.mxu0 0
      %3884 = vmatmul.mubr.bf16.gmra.mxu0 %v3805
      %v3885 = vpop.f32.mrf.mxu0
      %v3886 = vadd.f32 0.0, %v3885
      %v3887 = vpop.f32.mrf.mxu0
      %v3888 = vpop.f32.mrf.mxu0
      %v3889 = vadd.f32 0.0, %v3888
      %v3890 = vpop.f32.mrf.mxu0
      %3891 = vmatprep.mubr.bf16.mxu0 0
      %3892 = vmatmul.mubr.bf16.gmra.mxu0 %v3808
      %v3893 = vpop.f32.mrf.mxu0
      %v3894 = vadd.f32 0.0, %v3893
      %v3895 = vpop.f32.mrf.mxu0
      %v3896 = vpop.f32.mrf.mxu0
      %v3897 = vadd.f32 0.0, %v3896
      %v3898 = vpop.f32.mrf.mxu0
      %3899 = vmatprep.mubr.bf16.mxu0 0
      %3900 = vmatmul.mubr.bf16.gmra.mxu0 %v3811
      %v3901 = vpop.f32.mrf.mxu0
      %v3902 = vadd.f32 0.0, %v3901
      %v3903 = vpop.f32.mrf.mxu0
      %v3904 = vpop.f32.mrf.mxu0
      %v3905 = vadd.f32 0.0, %v3904
      %v3906 = vpop.f32.mrf.mxu0
      %3907 = vmatprep.mubr.bf16.mxu0 0
      %3908 = vmatmul.mubr.bf16.gmra.mxu0 %v3814
      %v3909 = vpop.f32.mrf.mxu0
      %v3910 = vadd.f32 0.0, %v3909
      %v3911 = vpop.f32.mrf.mxu0
      %v3912 = vpop.f32.mrf.mxu0
      %v3913 = vadd.f32 0.0, %v3912
      %v3914 = vpop.f32.mrf.mxu0
      %3915 = vdwg.mxu0
      %v3916 = vadd.f32 %v3662, %v3854
      %v3917 = vadd.f32 %v3663, %v3857
      %v3918 = vadd.f32 %v3664, %v3862
      %v3919 = vadd.f32 %v3665, %v3865
      %v3920 = vadd.f32 %v3666, %v3870
      %v3921 = vadd.f32 %v3667, %v3873
      %v3922 = vadd.f32 %v3668, %v3878
      %v3923 = vadd.f32 %v3669, %v3881
      %v3924 = vadd.f32 %v3670, %v3886
      %v3925 = vadd.f32 %v3671, %v3889
      %v3926 = vadd.f32 %v3672, %v3894
      %v3927 = vadd.f32 %v3673, %v3897
      %v3928 = vadd.f32 %v3674, %v3902
      %v3929 = vadd.f32 %v3675, %v3905
      %v3930 = vadd.f32 %v3676, %v3910
      %v3931 = vadd.f32 %v3677, %v3913
      %s3932 = smul.addr %s1468, 4
      %s3933 = scalar_lea.vmem [#allocation3], %s3932
      %v3934 = vld [vmem:[%s3933] sm:$0xf]
      %v3935 = vld [vmem:[%s3933 + $0x4] sm:$0xf]
      %v3936 = vld [vmem:[%s3933 + $0xc] sm:$0xf]
      %v3937 = vld [vmem:[%s3933 + $0x10] sm:$0xf]
      %v3938 = vld [vmem:[%s3933 + $0x18] sm:$0xf]
      %v3939 = vld [vmem:[%s3933 + $0x1c] sm:$0xf]
      %v3940 = vld [vmem:[%s3933 + $0x24] sm:$0xf]
      %v3941 = vld [vmem:[%s3933 + $0x28] sm:$0xf]
      %v3942 = vld [vmem:[%s3933 + $0x30] sm:$0xf]
      %v3943 = vld [vmem:[%s3933 + $0x34] sm:$0xf]
      %v3944 = vld [vmem:[%s3933 + $0x3c] sm:$0xf]
      %v3945 = vld [vmem:[%s3933 + $0x40] sm:$0xf]
      %v3946 = vld [vmem:[%s3933 + $0x48] sm:$0xf]
      %v3947 = vld [vmem:[%s3933 + $0x4c] sm:$0xf]
      %v3948 = vld [vmem:[%s3933 + $0x54] sm:$0xf]
      %v3949 = vld [vmem:[%s3933 + $0x58] sm:$0xf]
      %v3950 = vld [vmem:[%s3] sm:$0x3]
      %v3967 = vunpack.c.l.b16 %v3934
      %v3968 = vunpack.c.l.b16 %v3935
      %v3969 = vunpack.c.l.b16 %v3936
      %v3970 = vunpack.c.l.b16 %v3937
      %v3971 = vunpack.c.l.b16 %v3938
      %v3972 = vunpack.c.l.b16 %v3939
      %v3973 = vunpack.c.l.b16 %v3940
      %v3974 = vunpack.c.l.b16 %v3941
      %v3975 = vunpack.c.l.b16 %v3942
      %v3976 = vunpack.c.l.b16 %v3943
      %v3977 = vunpack.c.l.b16 %v3944
      %v3978 = vunpack.c.l.b16 %v3945
      %v3979 = vunpack.c.l.b16 %v3946
      %v3980 = vunpack.c.l.b16 %v3947
      %v3981 = vunpack.c.l.b16 %v3948
      %v3982 = vunpack.c.l.b16 %v3949
      %v3983 = vpack.c.b16 %v3968, %v3967
      %v3984 = vpack.c.b16 %v3970, %v3969
      %v3985 = vpack.c.b16 %v3972, %v3971
      %v3986 = vpack.c.b16 %v3974, %v3973
      %v3987 = vpack.c.b16 %v3976, %v3975
      %v3988 = vpack.c.b16 %v3978, %v3977
      %v3989 = vpack.c.b16 %v3980, %v3979
      %v3990 = vpack.c.b16 %v3982, %v3981
      %v3992 = vsel %vm1717, %v3983, 0
      %v3995 = vsel %vm1717, %v3984, 0
      %v3998 = vsel %vm1717, %v3985, 0
      %v4001 = vsel %vm1717, %v3986, 0
      %v4004 = vsel %vm1717, %v3987, 0
      %v4007 = vsel %vm1717, %v3988, 0
      %v4010 = vsel %vm1717, %v3989, 0
      %v4013 = vsel %vm1717, %v3990, 0
      %v4016 = vsel %vm1742, %v3950, 0
      %4018 = vmatprep.subr.bf16.mxu0 0
      %4019 = vmatpush1.bf16.msra.mxu0 0
      %4020 = vmatprep.subr.bf16.mxu0 0
      %4021 = vmatpush1.bf16.msra.mxu0 0
      %4022 = vmatprep.subr.bf16.mxu0 0
      %4023 = vmatpush1.bf16.msra.mxu0 0
      %4024 = vmatprep.subr.bf16.mxu0 0
      %4025 = vmatpush1.bf16.msra.mxu0 0
      %4026 = vmatprep.subr.bf16.mxu0 0
      %4027 = vmatpush1.bf16.msra.mxu0 0
      %4028 = vmatprep.subr.bf16.mxu0 0
      %4029 = vmatpush1.bf16.msra.mxu0 0
      %4030 = vmatprep.subr.bf16.mxu0 0
      %4031 = vmatpush1.bf16.msra.mxu0 0
      %4032 = vmatprep.subr.bf16.mxu0 0
      %4033 = vmatpush1.bf16.msra.mxu0 %v4016
      %4034 = vmatprep.subr.bf16.mxu0 0
      %4035 = vmatpush2.bf16.msra.mxu0 0
      %4036 = vmatprep.subr.bf16.mxu0 0
      %4037 = vmatpush2.bf16.msra.mxu0 0
      %4038 = vmatprep.subr.bf16.mxu0 0
      %4039 = vmatpush2.bf16.msra.mxu0 0
      %4040 = vmatprep.subr.bf16.mxu0 0
      %4041 = vmatpush2.bf16.msra.mxu0 0
      %4042 = vmatprep.subr.bf16.mxu0 0
      %4043 = vmatpush2.bf16.msra.mxu0 0
      %4044 = vmatprep.subr.bf16.mxu0 0
      %4045 = vmatpush2.bf16.msra.mxu0 0
      %4046 = vmatprep.subr.bf16.mxu0 0
      %4047 = vmatpush2.bf16.msra.mxu0 0
      %4048 = vmatprep.subr.bf16.mxu0 0
      %4049 = vmatpush2.bf16.msra.mxu0 0
      %4050 = vmatprep.mubr.bf16.mxu0 0
      %4051 = vmatmul.mubr.bf16.gmra.mxu0 %v3992
      %v4052 = vpop.f32.mrf.mxu0
      %v4053 = vadd.f32 0.0, %v4052
      %v4054 = vpop.f32.mrf.mxu0
      %v4055 = vpop.f32.mrf.mxu0
      %v4056 = vadd.f32 0.0, %v4055
      %v4057 = vpop.f32.mrf.mxu0
      %4058 = vmatprep.mubr.bf16.mxu0 0
      %4059 = vmatmul.mubr.bf16.gmra.mxu0 %v3995
      %v4060 = vpop.f32.mrf.mxu0
      %v4061 = vadd.f32 0.0, %v4060
      %v4062 = vpop.f32.mrf.mxu0
      %v4063 = vpop.f32.mrf.mxu0
      %v4064 = vadd.f32 0.0, %v4063
      %v4065 = vpop.f32.mrf.mxu0
      %4066 = vmatprep.mubr.bf16.mxu0 0
      %4067 = vmatmul.mubr.bf16.gmra.mxu0 %v3998
      %v4068 = vpop.f32.mrf.mxu0
      %v4069 = vadd.f32 0.0, %v4068
      %v4070 = vpop.f32.mrf.mxu0
      %v4071 = vpop.f32.mrf.mxu0
      %v4072 = vadd.f32 0.0, %v4071
      %v4073 = vpop.f32.mrf.mxu0
      %4074 = vmatprep.mubr.bf16.mxu0 0
      %4075 = vmatmul.mubr.bf16.gmra.mxu0 %v4001
      %v4076 = vpop.f32.mrf.mxu0
      %v4077 = vadd.f32 0.0, %v4076
      %v4078 = vpop.f32.mrf.mxu0
      %v4079 = vpop.f32.mrf.mxu0
      %v4080 = vadd.f32 0.0, %v4079
      %v4081 = vpop.f32.mrf.mxu0
      %4082 = vmatprep.mubr.bf16.mxu0 0
      %4083 = vmatmul.mubr.bf16.gmra.mxu0 %v4004
      %v4084 = vpop.f32.mrf.mxu0
      %v4085 = vadd.f32 0.0, %v4084
      %v4086 = vpop.f32.mrf.mxu0
      %v4087 = vpop.f32.mrf.mxu0
      %v4088 = vadd.f32 0.0, %v4087
      %v4089 = vpop.f32.mrf.mxu0
      %4090 = vmatprep.mubr.bf16.mxu0 0
      %4091 = vmatmul.mubr.bf16.gmra.mxu0 %v4007
      %v4092 = vpop.f32.mrf.mxu0
      %v4093 = vadd.f32 0.0, %v4092
      %v4094 = vpop.f32.mrf.mxu0
      %v4095 = vpop.f32.mrf.mxu0
      %v4096 = vadd.f32 0.0, %v4095
      %v4097 = vpop.f32.mrf.mxu0
      %4098 = vmatprep.mubr.bf16.mxu0 0
      %4099 = vmatmul.mubr.bf16.gmra.mxu0 %v4010
      %v4100 = vpop.f32.mrf.mxu0
      %v4101 = vadd.f32 0.0, %v4100
      %v4102 = vpop.f32.mrf.mxu0
      %v4103 = vpop.f32.mrf.mxu0
      %v4104 = vadd.f32 0.0, %v4103
      %v4105 = vpop.f32.mrf.mxu0
      %4106 = vmatprep.mubr.bf16.mxu0 0
      %4107 = vmatmul.mubr.bf16.gmra.mxu0 %v4013
      %v4108 = vpop.f32.mrf.mxu0
      %v4109 = vadd.f32 0.0, %v4108
      %v4110 = vpop.f32.mrf.mxu0
      %v4111 = vpop.f32.mrf.mxu0
      %v4112 = vadd.f32 0.0, %v4111
      %v4113 = vpop.f32.mrf.mxu0
      %4114 = vdwg.mxu0
      %v4115 = vadd.f32 %v3916, %v4053
      %v4116 = vadd.f32 %v3917, %v4056
      %v4117 = vadd.f32 %v3918, %v4061
      %v4118 = vadd.f32 %v3919, %v4064
      %v4119 = vadd.f32 %v3920, %v4069
      %v4120 = vadd.f32 %v3921, %v4072
      %v4121 = vadd.f32 %v3922, %v4077
      %v4122 = vadd.f32 %v3923, %v4080
      %v4123 = vadd.f32 %v3924, %v4085
      %v4124 = vadd.f32 %v3925, %v4088
      %v4125 = vadd.f32 %v3926, %v4093
      %v4126 = vadd.f32 %v3927, %v4096
      %v4127 = vadd.f32 %v3928, %v4101
      %v4128 = vadd.f32 %v3929, %v4104
      %v4129 = vadd.f32 %v3930, %v4109
      %v4130 = vadd.f32 %v3931, %v4112
      %v4131 = vld [vmem:[%s3933] sm:$0xf]
      %v4132 = vld [vmem:[%s3933 + $0x4] sm:$0xf]
      %v4133 = vld [vmem:[%s3933 + $0x8] sm:$0x1]
      %v4134 = vld [vmem:[%s3933 + $0xc] sm:$0xf]
      %v4135 = vld [vmem:[%s3933 + $0x10] sm:$0xf]
      %v4136 = vld [vmem:[%s3933 + $0x14] sm:$0x1]
      %v4137 = vld [vmem:[%s3933 + $0x18] sm:$0xf]
      %v4138 = vld [vmem:[%s3933 + $0x1c] sm:$0xf]
      %v4139 = vld [vmem:[%s3933 + $0x20] sm:$0x1]
      %v4140 = vld [vmem:[%s3933 + $0x24] sm:$0xf]
      %v4141 = vld [vmem:[%s3933 + $0x28] sm:$0xf]
      %v4142 = vld [vmem:[%s3933 + $0x2c] sm:$0x1]
      %v4143 = vld [vmem:[%s3933 + $0x30] sm:$0xf]
      %v4144 = vld [vmem:[%s3933 + $0x34] sm:$0xf]
      %v4145 = vld [vmem:[%s3933 + $0x38] sm:$0x1]
      %v4146 = vld [vmem:[%s3933 + $0x3c] sm:$0xf]
      %v4147 = vld [vmem:[%s3933 + $0x40] sm:$0xf]
      %v4148 = vld [vmem:[%s3933 + $0x44] sm:$0x1]
      %v4149 = vld [vmem:[%s3933 + $0x48] sm:$0xf]
      %v4150 = vld [vmem:[%s3933 + $0x4c] sm:$0xf]
      %v4151 = vld [vmem:[%s3933 + $0x50] sm:$0x1]
      %v4152 = vld [vmem:[%s3933 + $0x54] sm:$0xf]
      %v4153 = vld [vmem:[%s3933 + $0x58] sm:$0xf]
      %v4154 = vld [vmem:[%s3933 + $0x5c] sm:$0x1]
      %v4156 = vshrl.u32 %v4131, 16
      %v4158 = vrot.slane %v4156, 4
      %v4159 = vshll.u32 %v4131, 16
      %v4161 = vrot.slane %v4159, 5
      %v4162 = vor.u32 %v4158, %v4161
      %v4163 = vrot.slane %v4162, 4
      %v4165 = vshll.u32 %v4132, 16
      %v4167 = vrot.slane %v4165, 5
      %v4168 = vsel %vm1498, %v4163, %v4167
      %v4169 = vshrl.u32 %v4132, 16
      %v4171 = vrot.slane %v4169, 4
      %v4172 = vor.u32 %v4171, %v4167
      %v4173 = vrot.slane %v4172, 4
      %v4175 = vshll.u32 %v4133, 16
      %v4177 = vrot.slane %v4175, 5
      %v4178 = vsel %vm1498, %v4173, %v4177
      %v4180 = vshrl.u32 %v4134, 16
      %v4182 = vrot.slane %v4180, 4
      %v4183 = vshll.u32 %v4134, 16
      %v4185 = vrot.slane %v4183, 5
      %v4186 = vor.u32 %v4182, %v4185
      %v4187 = vrot.slane %v4186, 4
      %v4189 = vshll.u32 %v4135, 16
      %v4191 = vrot.slane %v4189, 5
      %v4192 = vsel %vm1498, %v4187, %v4191
      %v4193 = vshrl.u32 %v4135, 16
      %v4195 = vrot.slane %v4193, 4
      %v4196 = vor.u32 %v4195, %v4191
      %v4197 = vrot.slane %v4196, 4
      %v4199 = vshll.u32 %v4136, 16
      %v4201 = vrot.slane %v4199, 5
      %v4202 = vsel %vm1498, %v4197, %v4201
      %v4204 = vshrl.u32 %v4137, 16
      %v4206 = vrot.slane %v4204, 4
      %v4207 = vshll.u32 %v4137, 16
      %v4209 = vrot.slane %v4207, 5
      %v4210 = vor.u32 %v4206, %v4209
      %v4211 = vrot.slane %v4210, 4
      %v4213 = vshll.u32 %v4138, 16
      %v4215 = vrot.slane %v4213, 5
      %v4216 = vsel %vm1498, %v4211, %v4215
      %v4217 = vshrl.u32 %v4138, 16
      %v4219 = vrot.slane %v4217, 4
      %v4220 = vor.u32 %v4219, %v4215
      %v4221 = vrot.slane %v4220, 4
      %v4223 = vshll.u32 %v4139, 16
      %v4225 = vrot.slane %v4223, 5
      %v4226 = vsel %vm1498, %v4221, %v4225
      %v4228 = vshrl.u32 %v4140, 16
      %v4230 = vrot.slane %v4228, 4
      %v4231 = vshll.u32 %v4140, 16
      %v4233 = vrot.slane %v4231, 5
      %v4234 = vor.u32 %v4230, %v4233
      %v4235 = vrot.slane %v4234, 4
      %v4237 = vshll.u32 %v4141, 16
      %v4239 = vrot.slane %v4237, 5
      %v4240 = vsel %vm1498, %v4235, %v4239
      %v4241 = vshrl.u32 %v4141, 16
      %v4243 = vrot.slane %v4241, 4
      %v4244 = vor.u32 %v4243, %v4239
      %v4245 = vrot.slane %v4244, 4
      %v4247 = vshll.u32 %v4142, 16
      %v4249 = vrot.slane %v4247, 5
      %v4250 = vsel %vm1498, %v4245, %v4249
      %v4252 = vshrl.u32 %v4143, 16
      %v4254 = vrot.slane %v4252, 4
      %v4255 = vshll.u32 %v4143, 16
      %v4257 = vrot.slane %v4255, 5
      %v4258 = vor.u32 %v4254, %v4257
      %v4259 = vrot.slane %v4258, 4
      %v4261 = vshll.u32 %v4144, 16
      %v4263 = vrot.slane %v4261, 5
      %v4264 = vsel %vm1498, %v4259, %v4263
      %v4265 = vshrl.u32 %v4144, 16
      %v4267 = vrot.slane %v4265, 4
      %v4268 = vor.u32 %v4267, %v4263
      %v4269 = vrot.slane %v4268, 4
      %v4271 = vshll.u32 %v4145, 16
      %v4273 = vrot.slane %v4271, 5
      %v4274 = vsel %vm1498, %v4269, %v4273
      %v4276 = vshrl.u32 %v4146, 16
      %v4278 = vrot.slane %v4276, 4
      %v4279 = vshll.u32 %v4146, 16
      %v4281 = vrot.slane %v4279, 5
      %v4282 = vor.u32 %v4278, %v4281
      %v4283 = vrot.slane %v4282, 4
      %v4285 = vshll.u32 %v4147, 16
      %v4287 = vrot.slane %v4285, 5
      %v4288 = vsel %vm1498, %v4283, %v4287
      %v4289 = vshrl.u32 %v4147, 16
      %v4291 = vrot.slane %v4289, 4
      %v4292 = vor.u32 %v4291, %v4287
      %v4293 = vrot.slane %v4292, 4
      %v4295 = vshll.u32 %v4148, 16
      %v4297 = vrot.slane %v4295, 5
      %v4298 = vsel %vm1498, %v4293, %v4297
      %v4300 = vshrl.u32 %v4149, 16
      %v4302 = vrot.slane %v4300, 4
      %v4303 = vshll.u32 %v4149, 16
      %v4305 = vrot.slane %v4303, 5
      %v4306 = vor.u32 %v4302, %v4305
      %v4307 = vrot.slane %v4306, 4
      %v4309 = vshll.u32 %v4150, 16
      %v4311 = vrot.slane %v4309, 5
      %v4312 = vsel %vm1498, %v4307, %v4311
      %v4313 = vshrl.u32 %v4150, 16
      %v4315 = vrot.slane %v4313, 4
      %v4316 = vor.u32 %v4315, %v4311
      %v4317 = vrot.slane %v4316, 4
      %v4319 = vshll.u32 %v4151, 16
      %v4321 = vrot.slane %v4319, 5
      %v4322 = vsel %vm1498, %v4317, %v4321
      %v4324 = vshrl.u32 %v4152, 16
      %v4326 = vrot.slane %v4324, 4
      %v4327 = vshll.u32 %v4152, 16
      %v4329 = vrot.slane %v4327, 5
      %v4330 = vor.u32 %v4326, %v4329
      %v4331 = vrot.slane %v4330, 4
      %v4333 = vshll.u32 %v4153, 16
      %v4335 = vrot.slane %v4333, 5
      %v4336 = vsel %vm1498, %v4331, %v4335
      %v4337 = vshrl.u32 %v4153, 16
      %v4339 = vrot.slane %v4337, 4
      %v4340 = vor.u32 %v4339, %v4335
      %v4341 = vrot.slane %v4340, 4
      %v4343 = vshll.u32 %v4154, 16
      %v4345 = vrot.slane %v4343, 5
      %v4346 = vsel %vm1498, %v4341, %v4345
      %s4347 = scalar_lea.vmem %s3, 2
      %v4348 = vld [vmem:[%s4347] sm:$0x3]
      %v4349 = vunpack.c.l.b16 %v4168
      %v4350 = vunpack.c.l.b16 %v4178
      %v4351 = vunpack.c.l.b16 %v4192
      %v4352 = vunpack.c.l.b16 %v4202
      %v4353 = vunpack.c.l.b16 %v4216
      %v4354 = vunpack.c.l.b16 %v4226
      %v4355 = vunpack.c.l.b16 %v4240
      %v4356 = vunpack.c.l.b16 %v4250
      %v4357 = vunpack.c.l.b16 %v4264
      %v4358 = vunpack.c.l.b16 %v4274
      %v4359 = vunpack.c.l.b16 %v4288
      %v4360 = vunpack.c.l.b16 %v4298
      %v4361 = vunpack.c.l.b16 %v4312
      %v4362 = vunpack.c.l.b16 %v4322
      %v4363 = vunpack.c.l.b16 %v4336
      %v4364 = vunpack.c.l.b16 %v4346
      %v4365 = vpack.c.b16 %v4350, %v4349
      %v4366 = vpack.c.b16 %v4352, %v4351
      %v4367 = vpack.c.b16 %v4354, %v4353
      %v4368 = vpack.c.b16 %v4356, %v4355
      %v4369 = vpack.c.b16 %v4358, %v4357
      %v4370 = vpack.c.b16 %v4360, %v4359
      %v4371 = vpack.c.b16 %v4362, %v4361
      %v4372 = vpack.c.b16 %v4364, %v4363
      %v4374 = vsel %vm1717, %v4365, 0
      %v4377 = vsel %vm1717, %v4366, 0
      %v4380 = vsel %vm1717, %v4367, 0
      %v4383 = vsel %vm1717, %v4368, 0
      %v4386 = vsel %vm1717, %v4369, 0
      %v4389 = vsel %vm1717, %v4370, 0
      %v4392 = vsel %vm1717, %v4371, 0
      %v4395 = vsel %vm1717, %v4372, 0
      %v4398 = vsel %vm1742, %v4348, 0
      %4400 = vmatprep.subr.bf16.mxu0 0
      %4401 = vmatpush1.bf16.msra.mxu0 0
      %4402 = vmatprep.subr.bf16.mxu0 0
      %4403 = vmatpush1.bf16.msra.mxu0 0
      %4404 = vmatprep.subr.bf16.mxu0 0
      %4405 = vmatpush1.bf16.msra.mxu0 0
      %4406 = vmatprep.subr.bf16.mxu0 0
      %4407 = vmatpush1.bf16.msra.mxu0 0
      %4408 = vmatprep.subr.bf16.mxu0 0
      %4409 = vmatpush1.bf16.msra.mxu0 0
      %4410 = vmatprep.subr.bf16.mxu0 0
      %4411 = vmatpush1.bf16.msra.mxu0 0
      %4412 = vmatprep.subr.bf16.mxu0 0
      %4413 = vmatpush1.bf16.msra.mxu0 0
      %4414 = vmatprep.subr.bf16.mxu0 0
      %4415 = vmatpush1.bf16.msra.mxu0 %v4398
      %4416 = vmatprep.subr.bf16.mxu0 0
      %4417 = vmatpush2.bf16.msra.mxu0 0
      %4418 = vmatprep.subr.bf16.mxu0 0
      %4419 = vmatpush2.bf16.msra.mxu0 0
      %4420 = vmatprep.subr.bf16.mxu0 0
      %4421 = vmatpush2.bf16.msra.mxu0 0
      %4422 = vmatprep.subr.bf16.mxu0 0
      %4423 = vmatpush2.bf16.msra.mxu0 0
      %4424 = vmatprep.subr.bf16.mxu0 0
      %4425 = vmatpush2.bf16.msra.mxu0 0
      %4426 = vmatprep.subr.bf16.mxu0 0
      %4427 = vmatpush2.bf16.msra.mxu0 0
      %4428 = vmatprep.subr.bf16.mxu0 0
      %4429 = vmatpush2.bf16.msra.mxu0 0
      %4430 = vmatprep.subr.bf16.mxu0 0
      %4431 = vmatpush2.bf16.msra.mxu0 0
      %4432 = vmatprep.mubr.bf16.mxu0 0
      %4433 = vmatmul.mubr.bf16.gmra.mxu0 %v4374
      %v4434 = vpop.f32.mrf.mxu0
      %v4435 = vadd.f32 0.0, %v4434
      %v4436 = vpop.f32.mrf.mxu0
      %v4437 = vpop.f32.mrf.mxu0
      %v4438 = vadd.f32 0.0, %v4437
      %v4439 = vpop.f32.mrf.mxu0
      %4440 = vmatprep.mubr.bf16.mxu0 0
      %4441 = vmatmul.mubr.bf16.gmra.mxu0 %v4377
      %v4442 = vpop.f32.mrf.mxu0
      %v4443 = vadd.f32 0.0, %v4442
      %v4444 = vpop.f32.mrf.mxu0
      %v4445 = vpop.f32.mrf.mxu0
      %v4446 = vadd.f32 0.0, %v4445
      %v4447 = vpop.f32.mrf.mxu0
      %4448 = vmatprep.mubr.bf16.mxu0 0
      %4449 = vmatmul.mubr.bf16.gmra.mxu0 %v4380
      %v4450 = vpop.f32.mrf.mxu0
      %v4451 = vadd.f32 0.0, %v4450
      %v4452 = vpop.f32.mrf.mxu0
      %v4453 = vpop.f32.mrf.mxu0
      %v4454 = vadd.f32 0.0, %v4453
      %v4455 = vpop.f32.mrf.mxu0
      %4456 = vmatprep.mubr.bf16.mxu0 0
      %4457 = vmatmul.mubr.bf16.gmra.mxu0 %v4383
      %v4458 = vpop.f32.mrf.mxu0
      %v4459 = vadd.f32 0.0, %v4458
      %v4460 = vpop.f32.mrf.mxu0
      %v4461 = vpop.f32.mrf.mxu0
      %v4462 = vadd.f32 0.0, %v4461
      %v4463 = vpop.f32.mrf.mxu0
      %4464 = vmatprep.mubr.bf16.mxu0 0
      %4465 = vmatmul.mubr.bf16.gmra.mxu0 %v4386
      %v4466 = vpop.f32.mrf.mxu0
      %v4467 = vadd.f32 0.0, %v4466
      %v4468 = vpop.f32.mrf.mxu0
      %v4469 = vpop.f32.mrf.mxu0
      %v4470 = vadd.f32 0.0, %v4469
      %v4471 = vpop.f32.mrf.mxu0
      %4472 = vmatprep.mubr.bf16.mxu0 0
      %4473 = vmatmul.mubr.bf16.gmra.mxu0 %v4389
      %v4474 = vpop.f32.mrf.mxu0
      %v4475 = vadd.f32 0.0, %v4474
      %v4476 = vpop.f32.mrf.mxu0
      %v4477 = vpop.f32.mrf.mxu0
      %v4478 = vadd.f32 0.0, %v4477
      %v4479 = vpop.f32.mrf.mxu0
      %4480 = vmatprep.mubr.bf16.mxu0 0
      %4481 = vmatmul.mubr.bf16.gmra.mxu0 %v4392
      %v4482 = vpop.f32.mrf.mxu0
      %v4483 = vadd.f32 0.0, %v4482
      %v4484 = vpop.f32.mrf.mxu0
      %v4485 = vpop.f32.mrf.mxu0
      %v4486 = vadd.f32 0.0, %v4485
      %v4487 = vpop.f32.mrf.mxu0
      %4488 = vmatprep.mubr.bf16.mxu0 0
      %4489 = vmatmul.mubr.bf16.gmra.mxu0 %v4395
      %v4490 = vpop.f32.mrf.mxu0
      %v4491 = vadd.f32 0.0, %v4490
      %v4492 = vpop.f32.mrf.mxu0
      %v4493 = vpop.f32.mrf.mxu0
      %v4494 = vadd.f32 0.0, %v4493
      %v4495 = vpop.f32.mrf.mxu0
      %4496 = vdwg.mxu0
      %v4497 = vadd.f32 %v4115, %v4435
      %v4498 = vadd.f32 %v4116, %v4438
      %v4499 = vadd.f32 %v4117, %v4443
      %v4500 = vadd.f32 %v4118, %v4446
      %v4501 = vadd.f32 %v4119, %v4451
      %v4502 = vadd.f32 %v4120, %v4454
      %v4503 = vadd.f32 %v4121, %v4459
      %v4504 = vadd.f32 %v4122, %v4462
      %v4505 = vadd.f32 %v4123, %v4467
      %v4506 = vadd.f32 %v4124, %v4470
      %v4507 = vadd.f32 %v4125, %v4475
      %v4508 = vadd.f32 %v4126, %v4478
      %v4509 = vadd.f32 %v4127, %v4483
      %v4510 = vadd.f32 %v4128, %v4486
      %v4511 = vadd.f32 %v4129, %v4491
      %v4512 = vadd.f32 %v4130, %v4494
      %v4513 = vld [vmem:[%s3933] sm:$0xe]
      %v4514 = vld [vmem:[%s3933 + $0xc] sm:$0xe]
      %v4515 = vld [vmem:[%s3933 + $0x18] sm:$0xe]
      %v4516 = vld [vmem:[%s3933 + $0x24] sm:$0xe]
      %v4517 = vld [vmem:[%s3933 + $0x30] sm:$0xe]
      %v4518 = vld [vmem:[%s3933 + $0x3c] sm:$0xe]
      %v4519 = vld [vmem:[%s3933 + $0x48] sm:$0xe]
      %v4520 = vld [vmem:[%s3933 + $0x54] sm:$0xe]
      %v4545 = vrot.slane %v4513, 5
      %v4546 = vrot.slane %v4545, 4
      %v4547 = vrot.slane %v4132, 5
      %v4548 = vsel %vm2033, %v4546, %v4547
      %v4549 = vrot.slane %v4547, 4
      %v4550 = vrot.slane %v4133, 5
      %v4551 = vsel %vm2033, %v4549, %v4550
      %v4552 = vrot.slane %v4514, 5
      %v4553 = vrot.slane %v4552, 4
      %v4554 = vrot.slane %v4135, 5
      %v4555 = vsel %vm2033, %v4553, %v4554
      %v4556 = vrot.slane %v4554, 4
      %v4557 = vrot.slane %v4136, 5
      %v4558 = vsel %vm2033, %v4556, %v4557
      %v4559 = vrot.slane %v4515, 5
      %v4560 = vrot.slane %v4559, 4
      %v4561 = vrot.slane %v4138, 5
      %v4562 = vsel %vm2033, %v4560, %v4561
      %v4563 = vrot.slane %v4561, 4
      %v4564 = vrot.slane %v4139, 5
      %v4565 = vsel %vm2033, %v4563, %v4564
      %v4566 = vrot.slane %v4516, 5
      %v4567 = vrot.slane %v4566, 4
      %v4568 = vrot.slane %v4141, 5
      %v4569 = vsel %vm2033, %v4567, %v4568
      %v4570 = vrot.slane %v4568, 4
      %v4571 = vrot.slane %v4142, 5
      %v4572 = vsel %vm2033, %v4570, %v4571
      %v4573 = vrot.slane %v4517, 5
      %v4574 = vrot.slane %v4573, 4
      %v4575 = vrot.slane %v4144, 5
      %v4576 = vsel %vm2033, %v4574, %v4575
      %v4577 = vrot.slane %v4575, 4
      %v4578 = vrot.slane %v4145, 5
      %v4579 = vsel %vm2033, %v4577, %v4578
      %v4580 = vrot.slane %v4518, 5
      %v4581 = vrot.slane %v4580, 4
      %v4582 = vrot.slane %v4147, 5
      %v4583 = vsel %vm2033, %v4581, %v4582
      %v4584 = vrot.slane %v4582, 4
      %v4585 = vrot.slane %v4148, 5
      %v4586 = vsel %vm2033, %v4584, %v4585
      %v4587 = vrot.slane %v4519, 5
      %v4588 = vrot.slane %v4587, 4
      %v4589 = vrot.slane %v4150, 5
      %v4590 = vsel %vm2033, %v4588, %v4589
      %v4591 = vrot.slane %v4589, 4
      %v4592 = vrot.slane %v4151, 5
      %v4593 = vsel %vm2033, %v4591, %v4592
      %v4594 = vrot.slane %v4520, 5
      %v4595 = vrot.slane %v4594, 4
      %v4596 = vrot.slane %v4153, 5
      %v4597 = vsel %vm2033, %v4595, %v4596
      %v4598 = vrot.slane %v4596, 4
      %v4599 = vrot.slane %v4154, 5
      %v4600 = vsel %vm2033, %v4598, %v4599
      %s4601 = scalar_lea.vmem %s3, 4
      %v4602 = vld [vmem:[%s4601] sm:$0x3]
      %v4603 = vunpack.c.l.b16 %v4548
      %v4604 = vunpack.c.l.b16 %v4551
      %v4605 = vunpack.c.l.b16 %v4555
      %v4606 = vunpack.c.l.b16 %v4558
      %v4607 = vunpack.c.l.b16 %v4562
      %v4608 = vunpack.c.l.b16 %v4565
      %v4609 = vunpack.c.l.b16 %v4569
      %v4610 = vunpack.c.l.b16 %v4572
      %v4611 = vunpack.c.l.b16 %v4576
      %v4612 = vunpack.c.l.b16 %v4579
      %v4613 = vunpack.c.l.b16 %v4583
      %v4614 = vunpack.c.l.b16 %v4586
      %v4615 = vunpack.c.l.b16 %v4590
      %v4616 = vunpack.c.l.b16 %v4593
      %v4617 = vunpack.c.l.b16 %v4597
      %v4618 = vunpack.c.l.b16 %v4600
      %v4619 = vpack.c.b16 %v4604, %v4603
      %v4620 = vpack.c.b16 %v4606, %v4605
      %v4621 = vpack.c.b16 %v4608, %v4607
      %v4622 = vpack.c.b16 %v4610, %v4609
      %v4623 = vpack.c.b16 %v4612, %v4611
      %v4624 = vpack.c.b16 %v4614, %v4613
      %v4625 = vpack.c.b16 %v4616, %v4615
      %v4626 = vpack.c.b16 %v4618, %v4617
      %v4628 = vsel %vm1717, %v4619, 0
      %v4631 = vsel %vm1717, %v4620, 0
      %v4634 = vsel %vm1717, %v4621, 0
      %v4637 = vsel %vm1717, %v4622, 0
      %v4640 = vsel %vm1717, %v4623, 0
      %v4643 = vsel %vm1717, %v4624, 0
      %v4646 = vsel %vm1717, %v4625, 0
      %v4649 = vsel %vm1717, %v4626, 0
      %v4652 = vsel %vm1742, %v4602, 0
      %4654 = vmatprep.subr.bf16.mxu0 0
      %4655 = vmatpush1.bf16.msra.mxu0 0
      %4656 = vmatprep.subr.bf16.mxu0 0
      %4657 = vmatpush1.bf16.msra.mxu0 0
      %4658 = vmatprep.subr.bf16.mxu0 0
      %4659 = vmatpush1.bf16.msra.mxu0 0
      %4660 = vmatprep.subr.bf16.mxu0 0
      %4661 = vmatpush1.bf16.msra.mxu0 0
      %4662 = vmatprep.subr.bf16.mxu0 0
      %4663 = vmatpush1.bf16.msra.mxu0 0
      %4664 = vmatprep.subr.bf16.mxu0 0
      %4665 = vmatpush1.bf16.msra.mxu0 0
      %4666 = vmatprep.subr.bf16.mxu0 0
      %4667 = vmatpush1.bf16.msra.mxu0 0
      %4668 = vmatprep.subr.bf16.mxu0 0
      %4669 = vmatpush1.bf16.msra.mxu0 %v4652
      %4670 = vmatprep.subr.bf16.mxu0 0
      %4671 = vmatpush2.bf16.msra.mxu0 0
      %4672 = vmatprep.subr.bf16.mxu0 0
      %4673 = vmatpush2.bf16.msra.mxu0 0
      %4674 = vmatprep.subr.bf16.mxu0 0
      %4675 = vmatpush2.bf16.msra.mxu0 0
      %4676 = vmatprep.subr.bf16.mxu0 0
      %4677 = vmatpush2.bf16.msra.mxu0 0
      %4678 = vmatprep.subr.bf16.mxu0 0
      %4679 = vmatpush2.bf16.msra.mxu0 0
      %4680 = vmatprep.subr.bf16.mxu0 0
      %4681 = vmatpush2.bf16.msra.mxu0 0
      %4682 = vmatprep.subr.bf16.mxu0 0
      %4683 = vmatpush2.bf16.msra.mxu0 0
      %4684 = vmatprep.subr.bf16.mxu0 0
      %4685 = vmatpush2.bf16.msra.mxu0 0
      %4686 = vmatprep.mubr.bf16.mxu0 0
      %4687 = vmatmul.mubr.bf16.gmra.mxu0 %v4628
      %v4688 = vpop.f32.mrf.mxu0
      %v4689 = vadd.f32 0.0, %v4688
      %v4690 = vpop.f32.mrf.mxu0
      %v4691 = vpop.f32.mrf.mxu0
      %v4692 = vadd.f32 0.0, %v4691
      %v4693 = vpop.f32.mrf.mxu0
      %4694 = vmatprep.mubr.bf16.mxu0 0
      %4695 = vmatmul.mubr.bf16.gmra.mxu0 %v4631
      %v4696 = vpop.f32.mrf.mxu0
      %v4697 = vadd.f32 0.0, %v4696
      %v4698 = vpop.f32.mrf.mxu0
      %v4699 = vpop.f32.mrf.mxu0
      %v4700 = vadd.f32 0.0, %v4699
      %v4701 = vpop.f32.mrf.mxu0
      %4702 = vmatprep.mubr.bf16.mxu0 0
      %4703 = vmatmul.mubr.bf16.gmra.mxu0 %v4634
      %v4704 = vpop.f32.mrf.mxu0
      %v4705 = vadd.f32 0.0, %v4704
      %v4706 = vpop.f32.mrf.mxu0
      %v4707 = vpop.f32.mrf.mxu0
      %v4708 = vadd.f32 0.0, %v4707
      %v4709 = vpop.f32.mrf.mxu0
      %4710 = vmatprep.mubr.bf16.mxu0 0
      %4711 = vmatmul.mubr.bf16.gmra.mxu0 %v4637
      %v4712 = vpop.f32.mrf.mxu0
      %v4713 = vadd.f32 0.0, %v4712
      %v4714 = vpop.f32.mrf.mxu0
      %v4715 = vpop.f32.mrf.mxu0
      %v4716 = vadd.f32 0.0, %v4715
      %v4717 = vpop.f32.mrf.mxu0
      %4718 = vmatprep.mubr.bf16.mxu0 0
      %4719 = vmatmul.mubr.bf16.gmra.mxu0 %v4640
      %v4720 = vpop.f32.mrf.mxu0
      %v4721 = vadd.f32 0.0, %v4720
      %v4722 = vpop.f32.mrf.mxu0
      %v4723 = vpop.f32.mrf.mxu0
      %v4724 = vadd.f32 0.0, %v4723
      %v4725 = vpop.f32.mrf.mxu0
      %4726 = vmatprep.mubr.bf16.mxu0 0
      %4727 = vmatmul.mubr.bf16.gmra.mxu0 %v4643
      %v4728 = vpop.f32.mrf.mxu0
      %v4729 = vadd.f32 0.0, %v4728
      %v4730 = vpop.f32.mrf.mxu0
      %v4731 = vpop.f32.mrf.mxu0
      %v4732 = vadd.f32 0.0, %v4731
      %v4733 = vpop.f32.mrf.mxu0
      %4734 = vmatprep.mubr.bf16.mxu0 0
      %4735 = vmatmul.mubr.bf16.gmra.mxu0 %v4646
      %v4736 = vpop.f32.mrf.mxu0
      %v4737 = vadd.f32 0.0, %v4736
      %v4738 = vpop.f32.mrf.mxu0
      %v4739 = vpop.f32.mrf.mxu0
      %v4740 = vadd.f32 0.0, %v4739
      %v4741 = vpop.f32.mrf.mxu0
      %4742 = vmatprep.mubr.bf16.mxu0 0
      %4743 = vmatmul.mubr.bf16.gmra.mxu0 %v4649
      %v4744 = vpop.f32.mrf.mxu0
      %v4745 = vadd.f32 0.0, %v4744
      %v4746 = vpop.f32.mrf.mxu0
      %v4747 = vpop.f32.mrf.mxu0
      %v4748 = vadd.f32 0.0, %v4747
      %v4749 = vpop.f32.mrf.mxu0
      %4750 = vdwg.mxu0
      %v4751 = vadd.f32 %v4497, %v4689
      %v4752 = vadd.f32 %v4498, %v4692
      %v4753 = vadd.f32 %v4499, %v4697
      %v4754 = vadd.f32 %v4500, %v4700
      %v4755 = vadd.f32 %v4501, %v4705
      %v4756 = vadd.f32 %v4502, %v4708
      %v4757 = vadd.f32 %v4503, %v4713
      %v4758 = vadd.f32 %v4504, %v4716
      %v4759 = vadd.f32 %v4505, %v4721
      %v4760 = vadd.f32 %v4506, %v4724
      %v4761 = vadd.f32 %v4507, %v4729
      %v4762 = vadd.f32 %v4508, %v4732
      %v4763 = vadd.f32 %v4509, %v4737
      %v4764 = vadd.f32 %v4510, %v4740
      %v4765 = vadd.f32 %v4511, %v4745
      %v4766 = vadd.f32 %v4512, %v4748
      %s4767 = smul.addr %s2257, 4
      %s4768 = scalar_lea.vmem [#allocation3], %s4767
      %v4769 = vld [vmem:[%s4768] sm:$0xf]
      %v4770 = vld [vmem:[%s4768 + $0x4] sm:$0xf]
      %v4771 = vld [vmem:[%s4768 + $0xc] sm:$0xf]
      %v4772 = vld [vmem:[%s4768 + $0x10] sm:$0xf]
      %v4773 = vld [vmem:[%s4768 + $0x18] sm:$0xf]
      %v4774 = vld [vmem:[%s4768 + $0x1c] sm:$0xf]
      %v4775 = vld [vmem:[%s4768 + $0x24] sm:$0xf]
      %v4776 = vld [vmem:[%s4768 + $0x28] sm:$0xf]
      %v4777 = vld [vmem:[%s4768 + $0x30] sm:$0xf]
      %v4778 = vld [vmem:[%s4768 + $0x34] sm:$0xf]
      %v4779 = vld [vmem:[%s4768 + $0x3c] sm:$0xf]
      %v4780 = vld [vmem:[%s4768 + $0x40] sm:$0xf]
      %v4781 = vld [vmem:[%s4768 + $0x48] sm:$0xf]
      %v4782 = vld [vmem:[%s4768 + $0x4c] sm:$0xf]
      %v4783 = vld [vmem:[%s4768 + $0x54] sm:$0xf]
      %v4784 = vld [vmem:[%s4768 + $0x58] sm:$0xf]
      %s4785 = scalar_lea.vmem %s3, 6
      %v4786 = vld [vmem:[%s4785] sm:$0x3]
      %v4803 = vunpack.c.l.b16 %v4769
      %v4804 = vunpack.c.l.b16 %v4770
      %v4805 = vunpack.c.l.b16 %v4771
      %v4806 = vunpack.c.l.b16 %v4772
      %v4807 = vunpack.c.l.b16 %v4773
      %v4808 = vunpack.c.l.b16 %v4774
      %v4809 = vunpack.c.l.b16 %v4775
      %v4810 = vunpack.c.l.b16 %v4776
      %v4811 = vunpack.c.l.b16 %v4777
      %v4812 = vunpack.c.l.b16 %v4778
      %v4813 = vunpack.c.l.b16 %v4779
      %v4814 = vunpack.c.l.b16 %v4780
      %v4815 = vunpack.c.l.b16 %v4781
      %v4816 = vunpack.c.l.b16 %v4782
      %v4817 = vunpack.c.l.b16 %v4783
      %v4818 = vunpack.c.l.b16 %v4784
      %v4819 = vpack.c.b16 %v4804, %v4803
      %v4820 = vpack.c.b16 %v4806, %v4805
      %v4821 = vpack.c.b16 %v4808, %v4807
      %v4822 = vpack.c.b16 %v4810, %v4809
      %v4823 = vpack.c.b16 %v4812, %v4811
      %v4824 = vpack.c.b16 %v4814, %v4813
      %v4825 = vpack.c.b16 %v4816, %v4815
      %v4826 = vpack.c.b16 %v4818, %v4817
      %v4828 = vsel %vm1717, %v4819, 0
      %v4831 = vsel %vm1717, %v4820, 0
      %v4834 = vsel %vm1717, %v4821, 0
      %v4837 = vsel %vm1717, %v4822, 0
      %v4840 = vsel %vm1717, %v4823, 0
      %v4843 = vsel %vm1717, %v4824, 0
      %v4846 = vsel %vm1717, %v4825, 0
      %v4849 = vsel %vm1717, %v4826, 0
      %v4852 = vsel %vm1742, %v4786, 0
      %4854 = vmatprep.subr.bf16.mxu0 0
      %4855 = vmatpush1.bf16.msra.mxu0 0
      %4856 = vmatprep.subr.bf16.mxu0 0
      %4857 = vmatpush1.bf16.msra.mxu0 0
      %4858 = vmatprep.subr.bf16.mxu0 0
      %4859 = vmatpush1.bf16.msra.mxu0 0
      %4860 = vmatprep.subr.bf16.mxu0 0
      %4861 = vmatpush1.bf16.msra.mxu0 0
      %4862 = vmatprep.subr.bf16.mxu0 0
      %4863 = vmatpush1.bf16.msra.mxu0 0
      %4864 = vmatprep.subr.bf16.mxu0 0
      %4865 = vmatpush1.bf16.msra.mxu0 0
      %4866 = vmatprep.subr.bf16.mxu0 0
      %4867 = vmatpush1.bf16.msra.mxu0 0
      %4868 = vmatprep.subr.bf16.mxu0 0
      %4869 = vmatpush1.bf16.msra.mxu0 %v4852
      %4870 = vmatprep.subr.bf16.mxu0 0
      %4871 = vmatpush2.bf16.msra.mxu0 0
      %4872 = vmatprep.subr.bf16.mxu0 0
      %4873 = vmatpush2.bf16.msra.mxu0 0
      %4874 = vmatprep.subr.bf16.mxu0 0
      %4875 = vmatpush2.bf16.msra.mxu0 0
      %4876 = vmatprep.subr.bf16.mxu0 0
      %4877 = vmatpush2.bf16.msra.mxu0 0
      %4878 = vmatprep.subr.bf16.mxu0 0
      %4879 = vmatpush2.bf16.msra.mxu0 0
      %4880 = vmatprep.subr.bf16.mxu0 0
      %4881 = vmatpush2.bf16.msra.mxu0 0
      %4882 = vmatprep.subr.bf16.mxu0 0
      %4883 = vmatpush2.bf16.msra.mxu0 0
      %4884 = vmatprep.subr.bf16.mxu0 0
      %4885 = vmatpush2.bf16.msra.mxu0 0
      %4886 = vmatprep.mubr.bf16.mxu0 0
      %4887 = vmatmul.mubr.bf16.gmra.mxu0 %v4828
      %v4888 = vpop.f32.mrf.mxu0
      %v4889 = vadd.f32 0.0, %v4888
      %v4890 = vpop.f32.mrf.mxu0
      %v4891 = vpop.f32.mrf.mxu0
      %v4892 = vadd.f32 0.0, %v4891
      %v4893 = vpop.f32.mrf.mxu0
      %4894 = vmatprep.mubr.bf16.mxu0 0
      %4895 = vmatmul.mubr.bf16.gmra.mxu0 %v4831
      %v4896 = vpop.f32.mrf.mxu0
      %v4897 = vadd.f32 0.0, %v4896
      %v4898 = vpop.f32.mrf.mxu0
      %v4899 = vpop.f32.mrf.mxu0
      %v4900 = vadd.f32 0.0, %v4899
      %v4901 = vpop.f32.mrf.mxu0
      %4902 = vmatprep.mubr.bf16.mxu0 0
      %4903 = vmatmul.mubr.bf16.gmra.mxu0 %v4834
      %v4904 = vpop.f32.mrf.mxu0
      %v4905 = vadd.f32 0.0, %v4904
      %v4906 = vpop.f32.mrf.mxu0
      %v4907 = vpop.f32.mrf.mxu0
      %v4908 = vadd.f32 0.0, %v4907
      %v4909 = vpop.f32.mrf.mxu0
      %4910 = vmatprep.mubr.bf16.mxu0 0
      %4911 = vmatmul.mubr.bf16.gmra.mxu0 %v4837
      %v4912 = vpop.f32.mrf.mxu0
      %v4913 = vadd.f32 0.0, %v4912
      %v4914 = vpop.f32.mrf.mxu0
      %v4915 = vpop.f32.mrf.mxu0
      %v4916 = vadd.f32 0.0, %v4915
      %v4917 = vpop.f32.mrf.mxu0
      %4918 = vmatprep.mubr.bf16.mxu0 0
      %4919 = vmatmul.mubr.bf16.gmra.mxu0 %v4840
      %v4920 = vpop.f32.mrf.mxu0
      %v4921 = vadd.f32 0.0, %v4920
      %v4922 = vpop.f32.mrf.mxu0
      %v4923 = vpop.f32.mrf.mxu0
      %v4924 = vadd.f32 0.0, %v4923
      %v4925 = vpop.f32.mrf.mxu0
      %4926 = vmatprep.mubr.bf16.mxu0 0
      %4927 = vmatmul.mubr.bf16.gmra.mxu0 %v4843
      %v4928 = vpop.f32.mrf.mxu0
      %v4929 = vadd.f32 0.0, %v4928
      %v4930 = vpop.f32.mrf.mxu0
      %v4931 = vpop.f32.mrf.mxu0
      %v4932 = vadd.f32 0.0, %v4931
      %v4933 = vpop.f32.mrf.mxu0
      %4934 = vmatprep.mubr.bf16.mxu0 0
      %4935 = vmatmul.mubr.bf16.gmra.mxu0 %v4846
      %v4936 = vpop.f32.mrf.mxu0
      %v4937 = vadd.f32 0.0, %v4936
      %v4938 = vpop.f32.mrf.mxu0
      %v4939 = vpop.f32.mrf.mxu0
      %v4940 = vadd.f32 0.0, %v4939
      %v4941 = vpop.f32.mrf.mxu0
      %4942 = vmatprep.mubr.bf16.mxu0 0
      %4943 = vmatmul.mubr.bf16.gmra.mxu0 %v4849
      %v4944 = vpop.f32.mrf.mxu0
      %v4945 = vadd.f32 0.0, %v4944
      %v4946 = vpop.f32.mrf.mxu0
      %v4947 = vpop.f32.mrf.mxu0
      %v4948 = vadd.f32 0.0, %v4947
      %v4949 = vpop.f32.mrf.mxu0
      %4950 = vdwg.mxu0
      %v4951 = vadd.f32 %v4751, %v4889
      %v4952 = vadd.f32 %v4752, %v4892
      %v4953 = vadd.f32 %v4753, %v4897
      %v4954 = vadd.f32 %v4754, %v4900
      %v4955 = vadd.f32 %v4755, %v4905
      %v4956 = vadd.f32 %v4756, %v4908
      %v4957 = vadd.f32 %v4757, %v4913
      %v4958 = vadd.f32 %v4758, %v4916
      %v4959 = vadd.f32 %v4759, %v4921
      %v4960 = vadd.f32 %v4760, %v4924
      %v4961 = vadd.f32 %v4761, %v4929
      %v4962 = vadd.f32 %v4762, %v4932
      %v4963 = vadd.f32 %v4763, %v4937
      %v4964 = vadd.f32 %v4764, %v4940
      %v4965 = vadd.f32 %v4765, %v4945
      %v4966 = vadd.f32 %v4766, %v4948
      %v4967 = vld [vmem:[%s4768] sm:$0xf]
      %v4968 = vld [vmem:[%s4768 + $0x4] sm:$0xf]
      %v4969 = vld [vmem:[%s4768 + $0x8] sm:$0x1]
      %v4970 = vld [vmem:[%s4768 + $0xc] sm:$0xf]
      %v4971 = vld [vmem:[%s4768 + $0x10] sm:$0xf]
      %v4972 = vld [vmem:[%s4768 + $0x14] sm:$0x1]
      %v4973 = vld [vmem:[%s4768 + $0x18] sm:$0xf]
      %v4974 = vld [vmem:[%s4768 + $0x1c] sm:$0xf]
      %v4975 = vld [vmem:[%s4768 + $0x20] sm:$0x1]
      %v4976 = vld [vmem:[%s4768 + $0x24] sm:$0xf]
      %v4977 = vld [vmem:[%s4768 + $0x28] sm:$0xf]
      %v4978 = vld [vmem:[%s4768 + $0x2c] sm:$0x1]
      %v4979 = vld [vmem:[%s4768 + $0x30] sm:$0xf]
      %v4980 = vld [vmem:[%s4768 + $0x34] sm:$0xf]
      %v4981 = vld [vmem:[%s4768 + $0x38] sm:$0x1]
      %v4982 = vld [vmem:[%s4768 + $0x3c] sm:$0xf]
      %v4983 = vld [vmem:[%s4768 + $0x40] sm:$0xf]
      %v4984 = vld [vmem:[%s4768 + $0x44] sm:$0x1]
      %v4985 = vld [vmem:[%s4768 + $0x48] sm:$0xf]
      %v4986 = vld [vmem:[%s4768 + $0x4c] sm:$0xf]
      %v4987 = vld [vmem:[%s4768 + $0x50] sm:$0x1]
      %v4988 = vld [vmem:[%s4768 + $0x54] sm:$0xf]
      %v4989 = vld [vmem:[%s4768 + $0x58] sm:$0xf]
      %v4990 = vld [vmem:[%s4768 + $0x5c] sm:$0x1]
      %v4992 = vshrl.u32 %v4967, 16
      %v4994 = vrot.slane %v4992, 4
      %v4995 = vshll.u32 %v4967, 16
      %v4997 = vrot.slane %v4995, 5
      %v4998 = vor.u32 %v4994, %v4997
      %v4999 = vrot.slane %v4998, 4
      %v5001 = vshll.u32 %v4968, 16
      %v5003 = vrot.slane %v5001, 5
      %v5004 = vsel %vm1498, %v4999, %v5003
      %v5005 = vshrl.u32 %v4968, 16
      %v5007 = vrot.slane %v5005, 4
      %v5008 = vor.u32 %v5007, %v5003
      %v5009 = vrot.slane %v5008, 4
      %v5011 = vshll.u32 %v4969, 16
      %v5013 = vrot.slane %v5011, 5
      %v5014 = vsel %vm1498, %v5009, %v5013
      %v5016 = vshrl.u32 %v4970, 16
      %v5018 = vrot.slane %v5016, 4
      %v5019 = vshll.u32 %v4970, 16
      %v5021 = vrot.slane %v5019, 5
      %v5022 = vor.u32 %v5018, %v5021
      %v5023 = vrot.slane %v5022, 4
      %v5025 = vshll.u32 %v4971, 16
      %v5027 = vrot.slane %v5025, 5
      %v5028 = vsel %vm1498, %v5023, %v5027
      %v5029 = vshrl.u32 %v4971, 16
      %v5031 = vrot.slane %v5029, 4
      %v5032 = vor.u32 %v5031, %v5027
      %v5033 = vrot.slane %v5032, 4
      %v5035 = vshll.u32 %v4972, 16
      %v5037 = vrot.slane %v5035, 5
      %v5038 = vsel %vm1498, %v5033, %v5037
      %v5040 = vshrl.u32 %v4973, 16
      %v5042 = vrot.slane %v5040, 4
      %v5043 = vshll.u32 %v4973, 16
      %v5045 = vrot.slane %v5043, 5
      %v5046 = vor.u32 %v5042, %v5045
      %v5047 = vrot.slane %v5046, 4
      %v5049 = vshll.u32 %v4974, 16
      %v5051 = vrot.slane %v5049, 5
      %v5052 = vsel %vm1498, %v5047, %v5051
      %v5053 = vshrl.u32 %v4974, 16
      %v5055 = vrot.slane %v5053, 4
      %v5056 = vor.u32 %v5055, %v5051
      %v5057 = vrot.slane %v5056, 4
      %v5059 = vshll.u32 %v4975, 16
      %v5061 = vrot.slane %v5059, 5
      %v5062 = vsel %vm1498, %v5057, %v5061
      %v5064 = vshrl.u32 %v4976, 16
      %v5066 = vrot.slane %v5064, 4
      %v5067 = vshll.u32 %v4976, 16
      %v5069 = vrot.slane %v5067, 5
      %v5070 = vor.u32 %v5066, %v5069
      %v5071 = vrot.slane %v5070, 4
      %v5073 = vshll.u32 %v4977, 16
      %v5075 = vrot.slane %v5073, 5
      %v5076 = vsel %vm1498, %v5071, %v5075
      %v5077 = vshrl.u32 %v4977, 16
      %v5079 = vrot.slane %v5077, 4
      %v5080 = vor.u32 %v5079, %v5075
      %v5081 = vrot.slane %v5080, 4
      %v5083 = vshll.u32 %v4978, 16
      %v5085 = vrot.slane %v5083, 5
      %v5086 = vsel %vm1498, %v5081, %v5085
      %v5088 = vshrl.u32 %v4979, 16
      %v5090 = vrot.slane %v5088, 4
      %v5091 = vshll.u32 %v4979, 16
      %v5093 = vrot.slane %v5091, 5
      %v5094 = vor.u32 %v5090, %v5093
      %v5095 = vrot.slane %v5094, 4
      %v5097 = vshll.u32 %v4980, 16
      %v5099 = vrot.slane %v5097, 5
      %v5100 = vsel %vm1498, %v5095, %v5099
      %v5101 = vshrl.u32 %v4980, 16
      %v5103 = vrot.slane %v5101, 4
      %v5104 = vor.u32 %v5103, %v5099
      %v5105 = vrot.slane %v5104, 4
      %v5107 = vshll.u32 %v4981, 16
      %v5109 = vrot.slane %v5107, 5
      %v5110 = vsel %vm1498, %v5105, %v5109
      %v5112 = vshrl.u32 %v4982, 16
      %v5114 = vrot.slane %v5112, 4
      %v5115 = vshll.u32 %v4982, 16
      %v5117 = vrot.slane %v5115, 5
      %v5118 = vor.u32 %v5114, %v5117
      %v5119 = vrot.slane %v5118, 4
      %v5121 = vshll.u32 %v4983, 16
      %v5123 = vrot.slane %v5121, 5
      %v5124 = vsel %vm1498, %v5119, %v5123
      %v5125 = vshrl.u32 %v4983, 16
      %v5127 = vrot.slane %v5125, 4
      %v5128 = vor.u32 %v5127, %v5123
      %v5129 = vrot.slane %v5128, 4
      %v5131 = vshll.u32 %v4984, 16
      %v5133 = vrot.slane %v5131, 5
      %v5134 = vsel %vm1498, %v5129, %v5133
      %v5136 = vshrl.u32 %v4985, 16
      %v5138 = vrot.slane %v5136, 4
      %v5139 = vshll.u32 %v4985, 16
      %v5141 = vrot.slane %v5139, 5
      %v5142 = vor.u32 %v5138, %v5141
      %v5143 = vrot.slane %v5142, 4
      %v5145 = vshll.u32 %v4986, 16
      %v5147 = vrot.slane %v5145, 5
      %v5148 = vsel %vm1498, %v5143, %v5147
      %v5149 = vshrl.u32 %v4986, 16
      %v5151 = vrot.slane %v5149, 4
      %v5152 = vor.u32 %v5151, %v5147
      %v5153 = vrot.slane %v5152, 4
      %v5155 = vshll.u32 %v4987, 16
      %v5157 = vrot.slane %v5155, 5
      %v5158 = vsel %vm1498, %v5153, %v5157
      %v5160 = vshrl.u32 %v4988, 16
      %v5162 = vrot.slane %v5160, 4
      %v5163 = vshll.u32 %v4988, 16
      %v5165 = vrot.slane %v5163, 5
      %v5166 = vor.u32 %v5162, %v5165
      %v5167 = vrot.slane %v5166, 4
      %v5169 = vshll.u32 %v4989, 16
      %v5171 = vrot.slane %v5169, 5
      %v5172 = vsel %vm1498, %v5167, %v5171
      %v5173 = vshrl.u32 %v4989, 16
      %v5175 = vrot.slane %v5173, 4
      %v5176 = vor.u32 %v5175, %v5171
      %v5177 = vrot.slane %v5176, 4
      %v5179 = vshll.u32 %v4990, 16
      %v5181 = vrot.slane %v5179, 5
      %v5182 = vsel %vm1498, %v5177, %v5181
      %s5183 = scalar_lea.vmem %s3, 8
      %v5184 = vld [vmem:[%s5183] sm:$0x3]
      %v5185 = vunpack.c.l.b16 %v5004
      %v5186 = vunpack.c.l.b16 %v5014
      %v5187 = vunpack.c.l.b16 %v5028
      %v5188 = vunpack.c.l.b16 %v5038
      %v5189 = vunpack.c.l.b16 %v5052
      %v5190 = vunpack.c.l.b16 %v5062
      %v5191 = vunpack.c.l.b16 %v5076
      %v5192 = vunpack.c.l.b16 %v5086
      %v5193 = vunpack.c.l.b16 %v5100
      %v5194 = vunpack.c.l.b16 %v5110
      %v5195 = vunpack.c.l.b16 %v5124
      %v5196 = vunpack.c.l.b16 %v5134
      %v5197 = vunpack.c.l.b16 %v5148
      %v5198 = vunpack.c.l.b16 %v5158
      %v5199 = vunpack.c.l.b16 %v5172
      %v5200 = vunpack.c.l.b16 %v5182
      %v5201 = vpack.c.b16 %v5186, %v5185
      %v5202 = vpack.c.b16 %v5188, %v5187
      %v5203 = vpack.c.b16 %v5190, %v5189
      %v5204 = vpack.c.b16 %v5192, %v5191
      %v5205 = vpack.c.b16 %v5194, %v5193
      %v5206 = vpack.c.b16 %v5196, %v5195
      %v5207 = vpack.c.b16 %v5198, %v5197
      %v5208 = vpack.c.b16 %v5200, %v5199
      %v5210 = vsel %vm1717, %v5201, 0
      %v5213 = vsel %vm1717, %v5202, 0
      %v5216 = vsel %vm1717, %v5203, 0
      %v5219 = vsel %vm1717, %v5204, 0
      %v5222 = vsel %vm1717, %v5205, 0
      %v5225 = vsel %vm1717, %v5206, 0
      %v5228 = vsel %vm1717, %v5207, 0
      %v5231 = vsel %vm1717, %v5208, 0
      %v5234 = vsel %vm1742, %v5184, 0
      %5236 = vmatprep.subr.bf16.mxu0 0
      %5237 = vmatpush1.bf16.msra.mxu0 0
      %5238 = vmatprep.subr.bf16.mxu0 0
      %5239 = vmatpush1.bf16.msra.mxu0 0
      %5240 = vmatprep.subr.bf16.mxu0 0
      %5241 = vmatpush1.bf16.msra.mxu0 0
      %5242 = vmatprep.subr.bf16.mxu0 0
      %5243 = vmatpush1.bf16.msra.mxu0 0
      %5244 = vmatprep.subr.bf16.mxu0 0
      %5245 = vmatpush1.bf16.msra.mxu0 0
      %5246 = vmatprep.subr.bf16.mxu0 0
      %5247 = vmatpush1.bf16.msra.mxu0 0
      %5248 = vmatprep.subr.bf16.mxu0 0
      %5249 = vmatpush1.bf16.msra.mxu0 0
      %5250 = vmatprep.subr.bf16.mxu0 0
      %5251 = vmatpush1.bf16.msra.mxu0 %v5234
      %5252 = vmatprep.subr.bf16.mxu0 0
      %5253 = vmatpush2.bf16.msra.mxu0 0
      %5254 = vmatprep.subr.bf16.mxu0 0
      %5255 = vmatpush2.bf16.msra.mxu0 0
      %5256 = vmatprep.subr.bf16.mxu0 0
      %5257 = vmatpush2.bf16.msra.mxu0 0
      %5258 = vmatprep.subr.bf16.mxu0 0
      %5259 = vmatpush2.bf16.msra.mxu0 0
      %5260 = vmatprep.subr.bf16.mxu0 0
      %5261 = vmatpush2.bf16.msra.mxu0 0
      %5262 = vmatprep.subr.bf16.mxu0 0
      %5263 = vmatpush2.bf16.msra.mxu0 0
      %5264 = vmatprep.subr.bf16.mxu0 0
      %5265 = vmatpush2.bf16.msra.mxu0 0
      %5266 = vmatprep.subr.bf16.mxu0 0
      %5267 = vmatpush2.bf16.msra.mxu0 0
      %5268 = vmatprep.mubr.bf16.mxu0 0
      %5269 = vmatmul.mubr.bf16.gmra.mxu0 %v5210
      %v5270 = vpop.f32.mrf.mxu0
      %v5271 = vadd.f32 0.0, %v5270
      %v5272 = vpop.f32.mrf.mxu0
      %v5273 = vpop.f32.mrf.mxu0
      %v5274 = vadd.f32 0.0, %v5273
      %v5275 = vpop.f32.mrf.mxu0
      %5276 = vmatprep.mubr.bf16.mxu0 0
      %5277 = vmatmul.mubr.bf16.gmra.mxu0 %v5213
      %v5278 = vpop.f32.mrf.mxu0
      %v5279 = vadd.f32 0.0, %v5278
      %v5280 = vpop.f32.mrf.mxu0
      %v5281 = vpop.f32.mrf.mxu0
      %v5282 = vadd.f32 0.0, %v5281
      %v5283 = vpop.f32.mrf.mxu0
      %5284 = vmatprep.mubr.bf16.mxu0 0
      %5285 = vmatmul.mubr.bf16.gmra.mxu0 %v5216
      %v5286 = vpop.f32.mrf.mxu0
      %v5287 = vadd.f32 0.0, %v5286
      %v5288 = vpop.f32.mrf.mxu0
      %v5289 = vpop.f32.mrf.mxu0
      %v5290 = vadd.f32 0.0, %v5289
      %v5291 = vpop.f32.mrf.mxu0
      %5292 = vmatprep.mubr.bf16.mxu0 0
      %5293 = vmatmul.mubr.bf16.gmra.mxu0 %v5219
      %v5294 = vpop.f32.mrf.mxu0
      %v5295 = vadd.f32 0.0, %v5294
      %v5296 = vpop.f32.mrf.mxu0
      %v5297 = vpop.f32.mrf.mxu0
      %v5298 = vadd.f32 0.0, %v5297
      %v5299 = vpop.f32.mrf.mxu0
      %5300 = vmatprep.mubr.bf16.mxu0 0
      %5301 = vmatmul.mubr.bf16.gmra.mxu0 %v5222
      %v5302 = vpop.f32.mrf.mxu0
      %v5303 = vadd.f32 0.0, %v5302
      %v5304 = vpop.f32.mrf.mxu0
      %v5305 = vpop.f32.mrf.mxu0
      %v5306 = vadd.f32 0.0, %v5305
      %v5307 = vpop.f32.mrf.mxu0
      %5308 = vmatprep.mubr.bf16.mxu0 0
      %5309 = vmatmul.mubr.bf16.gmra.mxu0 %v5225
      %v5310 = vpop.f32.mrf.mxu0
      %v5311 = vadd.f32 0.0, %v5310
      %v5312 = vpop.f32.mrf.mxu0
      %v5313 = vpop.f32.mrf.mxu0
      %v5314 = vadd.f32 0.0, %v5313
      %v5315 = vpop.f32.mrf.mxu0
      %5316 = vmatprep.mubr.bf16.mxu0 0
      %5317 = vmatmul.mubr.bf16.gmra.mxu0 %v5228
      %v5318 = vpop.f32.mrf.mxu0
      %v5319 = vadd.f32 0.0, %v5318
      %v5320 = vpop.f32.mrf.mxu0
      %v5321 = vpop.f32.mrf.mxu0
      %v5322 = vadd.f32 0.0, %v5321
      %v5323 = vpop.f32.mrf.mxu0
      %5324 = vmatprep.mubr.bf16.mxu0 0
      %5325 = vmatmul.mubr.bf16.gmra.mxu0 %v5231
      %v5326 = vpop.f32.mrf.mxu0
      %v5327 = vadd.f32 0.0, %v5326
      %v5328 = vpop.f32.mrf.mxu0
      %v5329 = vpop.f32.mrf.mxu0
      %v5330 = vadd.f32 0.0, %v5329
      %v5331 = vpop.f32.mrf.mxu0
      %5332 = vdwg.mxu0
      %v5333 = vadd.f32 %v4951, %v5271
      %v5334 = vadd.f32 %v4952, %v5274
      %v5335 = vadd.f32 %v4953, %v5279
      %v5336 = vadd.f32 %v4954, %v5282
      %v5337 = vadd.f32 %v4955, %v5287
      %v5338 = vadd.f32 %v4956, %v5290
      %v5339 = vadd.f32 %v4957, %v5295
      %v5340 = vadd.f32 %v4958, %v5298
      %v5341 = vadd.f32 %v4959, %v5303
      %v5342 = vadd.f32 %v4960, %v5306
      %v5343 = vadd.f32 %v4961, %v5311
      %v5344 = vadd.f32 %v4962, %v5314
      %v5345 = vadd.f32 %v4963, %v5319
      %v5346 = vadd.f32 %v4964, %v5322
      %v5347 = vadd.f32 %v4965, %v5327
      %v5348 = vadd.f32 %v4966, %v5330
      %v5349 = vld [vmem:[%s4768] sm:$0xe]
      %v5350 = vld [vmem:[%s4768 + $0xc] sm:$0xe]
      %v5351 = vld [vmem:[%s4768 + $0x18] sm:$0xe]
      %v5352 = vld [vmem:[%s4768 + $0x24] sm:$0xe]
      %v5353 = vld [vmem:[%s4768 + $0x30] sm:$0xe]
      %v5354 = vld [vmem:[%s4768 + $0x3c] sm:$0xe]
      %v5355 = vld [vmem:[%s4768 + $0x48] sm:$0xe]
      %v5356 = vld [vmem:[%s4768 + $0x54] sm:$0xe]
      %v5381 = vrot.slane %v5349, 5
      %v5382 = vrot.slane %v5381, 4
      %v5383 = vrot.slane %v4968, 5
      %v5384 = vsel %vm2033, %v5382, %v5383
      %v5385 = vrot.slane %v5383, 4
      %v5386 = vrot.slane %v4969, 5
      %v5387 = vsel %vm2033, %v5385, %v5386
      %v5388 = vrot.slane %v5350, 5
      %v5389 = vrot.slane %v5388, 4
      %v5390 = vrot.slane %v4971, 5
      %v5391 = vsel %vm2033, %v5389, %v5390
      %v5392 = vrot.slane %v5390, 4
      %v5393 = vrot.slane %v4972, 5
      %v5394 = vsel %vm2033, %v5392, %v5393
      %v5395 = vrot.slane %v5351, 5
      %v5396 = vrot.slane %v5395, 4
      %v5397 = vrot.slane %v4974, 5
      %v5398 = vsel %vm2033, %v5396, %v5397
      %v5399 = vrot.slane %v5397, 4
      %v5400 = vrot.slane %v4975, 5
      %v5401 = vsel %vm2033, %v5399, %v5400
      %v5402 = vrot.slane %v5352, 5
      %v5403 = vrot.slane %v5402, 4
      %v5404 = vrot.slane %v4977, 5
      %v5405 = vsel %vm2033, %v5403, %v5404
      %v5406 = vrot.slane %v5404, 4
      %v5407 = vrot.slane %v4978, 5
      %v5408 = vsel %vm2033, %v5406, %v5407
      %v5409 = vrot.slane %v5353, 5
      %v5410 = vrot.slane %v5409, 4
      %v5411 = vrot.slane %v4980, 5
      %v5412 = vsel %vm2033, %v5410, %v5411
      %v5413 = vrot.slane %v5411, 4
      %v5414 = vrot.slane %v4981, 5
      %v5415 = vsel %vm2033, %v5413, %v5414
      %v5416 = vrot.slane %v5354, 5
      %v5417 = vrot.slane %v5416, 4
      %v5418 = vrot.slane %v4983, 5
      %v5419 = vsel %vm2033, %v5417, %v5418
      %v5420 = vrot.slane %v5418, 4
      %v5421 = vrot.slane %v4984, 5
      %v5422 = vsel %vm2033, %v5420, %v5421
      %v5423 = vrot.slane %v5355, 5
      %v5424 = vrot.slane %v5423, 4
      %v5425 = vrot.slane %v4986, 5
      %v5426 = vsel %vm2033, %v5424, %v5425
      %v5427 = vrot.slane %v5425, 4
      %v5428 = vrot.slane %v4987, 5
      %v5429 = vsel %vm2033, %v5427, %v5428
      %v5430 = vrot.slane %v5356, 5
      %v5431 = vrot.slane %v5430, 4
      %v5432 = vrot.slane %v4989, 5
      %v5433 = vsel %vm2033, %v5431, %v5432
      %v5434 = vrot.slane %v5432, 4
      %v5435 = vrot.slane %v4990, 5
      %v5436 = vsel %vm2033, %v5434, %v5435
      %s5437 = scalar_lea.vmem %s3, 10
      %v5438 = vld [vmem:[%s5437] sm:$0x3]
      %v5439 = vunpack.c.l.b16 %v5384
      %v5440 = vunpack.c.l.b16 %v5387
      %v5441 = vunpack.c.l.b16 %v5391
      %v5442 = vunpack.c.l.b16 %v5394
      %v5443 = vunpack.c.l.b16 %v5398
      %v5444 = vunpack.c.l.b16 %v5401
      %v5445 = vunpack.c.l.b16 %v5405
      %v5446 = vunpack.c.l.b16 %v5408
      %v5447 = vunpack.c.l.b16 %v5412
      %v5448 = vunpack.c.l.b16 %v5415
      %v5449 = vunpack.c.l.b16 %v5419
      %v5450 = vunpack.c.l.b16 %v5422
      %v5451 = vunpack.c.l.b16 %v5426
      %v5452 = vunpack.c.l.b16 %v5429
      %v5453 = vunpack.c.l.b16 %v5433
      %v5454 = vunpack.c.l.b16 %v5436
      %v5455 = vpack.c.b16 %v5440, %v5439
      %v5456 = vpack.c.b16 %v5442, %v5441
      %v5457 = vpack.c.b16 %v5444, %v5443
      %v5458 = vpack.c.b16 %v5446, %v5445
      %v5459 = vpack.c.b16 %v5448, %v5447
      %v5460 = vpack.c.b16 %v5450, %v5449
      %v5461 = vpack.c.b16 %v5452, %v5451
      %v5462 = vpack.c.b16 %v5454, %v5453
      %v5464 = vsel %vm1717, %v5455, 0
      %v5467 = vsel %vm1717, %v5456, 0
      %v5470 = vsel %vm1717, %v5457, 0
      %v5473 = vsel %vm1717, %v5458, 0
      %v5476 = vsel %vm1717, %v5459, 0
      %v5479 = vsel %vm1717, %v5460, 0
      %v5482 = vsel %vm1717, %v5461, 0
      %v5485 = vsel %vm1717, %v5462, 0
      %v5488 = vsel %vm1742, %v5438, 0
      %5490 = vmatprep.subr.bf16.mxu0 0
      %5491 = vmatpush1.bf16.msra.mxu0 0
      %5492 = vmatprep.subr.bf16.mxu0 0
      %5493 = vmatpush1.bf16.msra.mxu0 0
      %5494 = vmatprep.subr.bf16.mxu0 0
      %5495 = vmatpush1.bf16.msra.mxu0 0
      %5496 = vmatprep.subr.bf16.mxu0 0
      %5497 = vmatpush1.bf16.msra.mxu0 0
      %5498 = vmatprep.subr.bf16.mxu0 0
      %5499 = vmatpush1.bf16.msra.mxu0 0
      %5500 = vmatprep.subr.bf16.mxu0 0
      %5501 = vmatpush1.bf16.msra.mxu0 0
      %5502 = vmatprep.subr.bf16.mxu0 0
      %5503 = vmatpush1.bf16.msra.mxu0 0
      %5504 = vmatprep.subr.bf16.mxu0 0
      %5505 = vmatpush1.bf16.msra.mxu0 %v5488
      %5506 = vmatprep.subr.bf16.mxu0 0
      %5507 = vmatpush2.bf16.msra.mxu0 0
      %5508 = vmatprep.subr.bf16.mxu0 0
      %5509 = vmatpush2.bf16.msra.mxu0 0
      %5510 = vmatprep.subr.bf16.mxu0 0
      %5511 = vmatpush2.bf16.msra.mxu0 0
      %5512 = vmatprep.subr.bf16.mxu0 0
      %5513 = vmatpush2.bf16.msra.mxu0 0
      %5514 = vmatprep.subr.bf16.mxu0 0
      %5515 = vmatpush2.bf16.msra.mxu0 0
      %5516 = vmatprep.subr.bf16.mxu0 0
      %5517 = vmatpush2.bf16.msra.mxu0 0
      %5518 = vmatprep.subr.bf16.mxu0 0
      %5519 = vmatpush2.bf16.msra.mxu0 0
      %5520 = vmatprep.subr.bf16.mxu0 0
      %5521 = vmatpush2.bf16.msra.mxu0 0
      %5522 = vmatprep.mubr.bf16.mxu0 0
      %5523 = vmatmul.mubr.bf16.gmra.mxu0 %v5464
      %v5524 = vpop.f32.mrf.mxu0
      %v5525 = vadd.f32 0.0, %v5524
      %v5526 = vpop.f32.mrf.mxu0
      %v5527 = vpop.f32.mrf.mxu0
      %v5528 = vadd.f32 0.0, %v5527
      %v5529 = vpop.f32.mrf.mxu0
      %5530 = vmatprep.mubr.bf16.mxu0 0
      %5531 = vmatmul.mubr.bf16.gmra.mxu0 %v5467
      %v5532 = vpop.f32.mrf.mxu0
      %v5533 = vadd.f32 0.0, %v5532
      %v5534 = vpop.f32.mrf.mxu0
      %v5535 = vpop.f32.mrf.mxu0
      %v5536 = vadd.f32 0.0, %v5535
      %v5537 = vpop.f32.mrf.mxu0
      %5538 = vmatprep.mubr.bf16.mxu0 0
      %5539 = vmatmul.mubr.bf16.gmra.mxu0 %v5470
      %v5540 = vpop.f32.mrf.mxu0
      %v5541 = vadd.f32 0.0, %v5540
      %v5542 = vpop.f32.mrf.mxu0
      %v5543 = vpop.f32.mrf.mxu0
      %v5544 = vadd.f32 0.0, %v5543
      %v5545 = vpop.f32.mrf.mxu0
      %5546 = vmatprep.mubr.bf16.mxu0 0
      %5547 = vmatmul.mubr.bf16.gmra.mxu0 %v5473
      %v5548 = vpop.f32.mrf.mxu0
      %v5549 = vadd.f32 0.0, %v5548
      %v5550 = vpop.f32.mrf.mxu0
      %v5551 = vpop.f32.mrf.mxu0
      %v5552 = vadd.f32 0.0, %v5551
      %v5553 = vpop.f32.mrf.mxu0
      %5554 = vmatprep.mubr.bf16.mxu0 0
      %5555 = vmatmul.mubr.bf16.gmra.mxu0 %v5476
      %v5556 = vpop.f32.mrf.mxu0
      %v5557 = vadd.f32 0.0, %v5556
      %v5558 = vpop.f32.mrf.mxu0
      %v5559 = vpop.f32.mrf.mxu0
      %v5560 = vadd.f32 0.0, %v5559
      %v5561 = vpop.f32.mrf.mxu0
      %5562 = vmatprep.mubr.bf16.mxu0 0
      %5563 = vmatmul.mubr.bf16.gmra.mxu0 %v5479
      %v5564 = vpop.f32.mrf.mxu0
      %v5565 = vadd.f32 0.0, %v5564
      %v5566 = vpop.f32.mrf.mxu0
      %v5567 = vpop.f32.mrf.mxu0
      %v5568 = vadd.f32 0.0, %v5567
      %v5569 = vpop.f32.mrf.mxu0
      %5570 = vmatprep.mubr.bf16.mxu0 0
      %5571 = vmatmul.mubr.bf16.gmra.mxu0 %v5482
      %v5572 = vpop.f32.mrf.mxu0
      %v5573 = vadd.f32 0.0, %v5572
      %v5574 = vpop.f32.mrf.mxu0
      %v5575 = vpop.f32.mrf.mxu0
      %v5576 = vadd.f32 0.0, %v5575
      %v5577 = vpop.f32.mrf.mxu0
      %5578 = vmatprep.mubr.bf16.mxu0 0
      %5579 = vmatmul.mubr.bf16.gmra.mxu0 %v5485
      %v5580 = vpop.f32.mrf.mxu0
      %v5581 = vadd.f32 0.0, %v5580
      %v5582 = vpop.f32.mrf.mxu0
      %v5583 = vpop.f32.mrf.mxu0
      %v5584 = vadd.f32 0.0, %v5583
      %v5585 = vpop.f32.mrf.mxu0
      %5586 = vdwg.mxu0
      %v5587 = vadd.f32 %v5333, %v5525
      %v5588 = vadd.f32 %v5334, %v5528
      %v5589 = vadd.f32 %v5335, %v5533
      %v5590 = vadd.f32 %v5336, %v5536
      %v5591 = vadd.f32 %v5337, %v5541
      %v5592 = vadd.f32 %v5338, %v5544
      %v5593 = vadd.f32 %v5339, %v5549
      %v5594 = vadd.f32 %v5340, %v5552
      %v5595 = vadd.f32 %v5341, %v5557
      %v5596 = vadd.f32 %v5342, %v5560
      %v5597 = vadd.f32 %v5343, %v5565
      %v5598 = vadd.f32 %v5344, %v5568
      %v5599 = vadd.f32 %v5345, %v5573
      %v5600 = vadd.f32 %v5346, %v5576
      %v5601 = vadd.f32 %v5347, %v5581
      %v5602 = vadd.f32 %v5348, %v5584
      %s5603 = smul.addr %s3095, 4
      %s5604 = scalar_lea.vmem [#allocation3], %s5603
      %v5605 = vld [vmem:[%s5604] sm:$0xf]
      %v5606 = vld [vmem:[%s5604 + $0x4] sm:$0xf]
      %v5607 = vld [vmem:[%s5604 + $0xc] sm:$0xf]
      %v5608 = vld [vmem:[%s5604 + $0x10] sm:$0xf]
      %v5609 = vld [vmem:[%s5604 + $0x18] sm:$0xf]
      %v5610 = vld [vmem:[%s5604 + $0x1c] sm:$0xf]
      %v5611 = vld [vmem:[%s5604 + $0x24] sm:$0xf]
      %v5612 = vld [vmem:[%s5604 + $0x28] sm:$0xf]
      %v5613 = vld [vmem:[%s5604 + $0x30] sm:$0xf]
      %v5614 = vld [vmem:[%s5604 + $0x34] sm:$0xf]
      %v5615 = vld [vmem:[%s5604 + $0x3c] sm:$0xf]
      %v5616 = vld [vmem:[%s5604 + $0x40] sm:$0xf]
      %v5617 = vld [vmem:[%s5604 + $0x48] sm:$0xf]
      %v5618 = vld [vmem:[%s5604 + $0x4c] sm:$0xf]
      %v5619 = vld [vmem:[%s5604 + $0x54] sm:$0xf]
      %v5620 = vld [vmem:[%s5604 + $0x58] sm:$0xf]
      %s5621 = scalar_lea.vmem %s3, 12
      %v5622 = vld [vmem:[%s5621] sm:$0x3]
      %v5639 = vunpack.c.l.b16 %v5605
      %v5640 = vunpack.c.l.b16 %v5606
      %v5641 = vunpack.c.l.b16 %v5607
      %v5642 = vunpack.c.l.b16 %v5608
      %v5643 = vunpack.c.l.b16 %v5609
      %v5644 = vunpack.c.l.b16 %v5610
      %v5645 = vunpack.c.l.b16 %v5611
      %v5646 = vunpack.c.l.b16 %v5612
      %v5647 = vunpack.c.l.b16 %v5613
      %v5648 = vunpack.c.l.b16 %v5614
      %v5649 = vunpack.c.l.b16 %v5615
      %v5650 = vunpack.c.l.b16 %v5616
      %v5651 = vunpack.c.l.b16 %v5617
      %v5652 = vunpack.c.l.b16 %v5618
      %v5653 = vunpack.c.l.b16 %v5619
      %v5654 = vunpack.c.l.b16 %v5620
      %v5655 = vpack.c.b16 %v5640, %v5639
      %v5656 = vpack.c.b16 %v5642, %v5641
      %v5657 = vpack.c.b16 %v5644, %v5643
      %v5658 = vpack.c.b16 %v5646, %v5645
      %v5659 = vpack.c.b16 %v5648, %v5647
      %v5660 = vpack.c.b16 %v5650, %v5649
      %v5661 = vpack.c.b16 %v5652, %v5651
      %v5662 = vpack.c.b16 %v5654, %v5653
      %v5664 = vsel %vm1717, %v5655, 0
      %v5667 = vsel %vm1717, %v5656, 0
      %v5670 = vsel %vm1717, %v5657, 0
      %v5673 = vsel %vm1717, %v5658, 0
      %v5676 = vsel %vm1717, %v5659, 0
      %v5679 = vsel %vm1717, %v5660, 0
      %v5682 = vsel %vm1717, %v5661, 0
      %v5685 = vsel %vm1717, %v5662, 0
      %v5688 = vsel %vm1742, %v5622, 0
      %5690 = vmatprep.subr.bf16.mxu0 0
      %5691 = vmatpush1.bf16.msra.mxu0 0
      %5692 = vmatprep.subr.bf16.mxu0 0
      %5693 = vmatpush1.bf16.msra.mxu0 0
      %5694 = vmatprep.subr.bf16.mxu0 0
      %5695 = vmatpush1.bf16.msra.mxu0 0
      %5696 = vmatprep.subr.bf16.mxu0 0
      %5697 = vmatpush1.bf16.msra.mxu0 0
      %5698 = vmatprep.subr.bf16.mxu0 0
      %5699 = vmatpush1.bf16.msra.mxu0 0
      %5700 = vmatprep.subr.bf16.mxu0 0
      %5701 = vmatpush1.bf16.msra.mxu0 0
      %5702 = vmatprep.subr.bf16.mxu0 0
      %5703 = vmatpush1.bf16.msra.mxu0 0
      %5704 = vmatprep.subr.bf16.mxu0 0
      %5705 = vmatpush1.bf16.msra.mxu0 %v5688
      %5706 = vmatprep.subr.bf16.mxu0 0
      %5707 = vmatpush2.bf16.msra.mxu0 0
      %5708 = vmatprep.subr.bf16.mxu0 0
      %5709 = vmatpush2.bf16.msra.mxu0 0
      %5710 = vmatprep.subr.bf16.mxu0 0
      %5711 = vmatpush2.bf16.msra.mxu0 0
      %5712 = vmatprep.subr.bf16.mxu0 0
      %5713 = vmatpush2.bf16.msra.mxu0 0
      %5714 = vmatprep.subr.bf16.mxu0 0
      %5715 = vmatpush2.bf16.msra.mxu0 0
      %5716 = vmatprep.subr.bf16.mxu0 0
      %5717 = vmatpush2.bf16.msra.mxu0 0
      %5718 = vmatprep.subr.bf16.mxu0 0
      %5719 = vmatpush2.bf16.msra.mxu0 0
      %5720 = vmatprep.subr.bf16.mxu0 0
      %5721 = vmatpush2.bf16.msra.mxu0 0
      %5722 = vmatprep.mubr.bf16.mxu0 0
      %5723 = vmatmul.mubr.bf16.gmra.mxu0 %v5664
      %v5724 = vpop.f32.mrf.mxu0
      %v5725 = vadd.f32 0.0, %v5724
      %v5726 = vpop.f32.mrf.mxu0
      %v5727 = vpop.f32.mrf.mxu0
      %v5728 = vadd.f32 0.0, %v5727
      %v5729 = vpop.f32.mrf.mxu0
      %5730 = vmatprep.mubr.bf16.mxu0 0
      %5731 = vmatmul.mubr.bf16.gmra.mxu0 %v5667
      %v5732 = vpop.f32.mrf.mxu0
      %v5733 = vadd.f32 0.0, %v5732
      %v5734 = vpop.f32.mrf.mxu0
      %v5735 = vpop.f32.mrf.mxu0
      %v5736 = vadd.f32 0.0, %v5735
      %v5737 = vpop.f32.mrf.mxu0
      %5738 = vmatprep.mubr.bf16.mxu0 0
      %5739 = vmatmul.mubr.bf16.gmra.mxu0 %v5670
      %v5740 = vpop.f32.mrf.mxu0
      %v5741 = vadd.f32 0.0, %v5740
      %v5742 = vpop.f32.mrf.mxu0
      %v5743 = vpop.f32.mrf.mxu0
      %v5744 = vadd.f32 0.0, %v5743
      %v5745 = vpop.f32.mrf.mxu0
      %5746 = vmatprep.mubr.bf16.mxu0 0
      %5747 = vmatmul.mubr.bf16.gmra.mxu0 %v5673
      %v5748 = vpop.f32.mrf.mxu0
      %v5749 = vadd.f32 0.0, %v5748
      %v5750 = vpop.f32.mrf.mxu0
      %v5751 = vpop.f32.mrf.mxu0
      %v5752 = vadd.f32 0.0, %v5751
      %v5753 = vpop.f32.mrf.mxu0
      %5754 = vmatprep.mubr.bf16.mxu0 0
      %5755 = vmatmul.mubr.bf16.gmra.mxu0 %v5676
      %v5756 = vpop.f32.mrf.mxu0
      %v5757 = vadd.f32 0.0, %v5756
      %v5758 = vpop.f32.mrf.mxu0
      %v5759 = vpop.f32.mrf.mxu0
      %v5760 = vadd.f32 0.0, %v5759
      %v5761 = vpop.f32.mrf.mxu0
      %5762 = vmatprep.mubr.bf16.mxu0 0
      %5763 = vmatmul.mubr.bf16.gmra.mxu0 %v5679
      %v5764 = vpop.f32.mrf.mxu0
      %v5765 = vadd.f32 0.0, %v5764
      %v5766 = vpop.f32.mrf.mxu0
      %v5767 = vpop.f32.mrf.mxu0
      %v5768 = vadd.f32 0.0, %v5767
      %v5769 = vpop.f32.mrf.mxu0
      %5770 = vmatprep.mubr.bf16.mxu0 0
      %5771 = vmatmul.mubr.bf16.gmra.mxu0 %v5682
      %v5772 = vpop.f32.mrf.mxu0
      %v5773 = vadd.f32 0.0, %v5772
      %v5774 = vpop.f32.mrf.mxu0
      %v5775 = vpop.f32.mrf.mxu0
      %v5776 = vadd.f32 0.0, %v5775
      %v5777 = vpop.f32.mrf.mxu0
      %5778 = vmatprep.mubr.bf16.mxu0 0
      %5779 = vmatmul.mubr.bf16.gmra.mxu0 %v5685
      %v5780 = vpop.f32.mrf.mxu0
      %v5781 = vadd.f32 0.0, %v5780
      %v5782 = vpop.f32.mrf.mxu0
      %v5783 = vpop.f32.mrf.mxu0
      %v5784 = vadd.f32 0.0, %v5783
      %v5785 = vpop.f32.mrf.mxu0
      %5786 = vdwg.mxu0
      %v5787 = vadd.f32 %v5587, %v5725
      %v5788 = vadd.f32 %v5588, %v5728
      %v5789 = vadd.f32 %v5589, %v5733
      %v5790 = vadd.f32 %v5590, %v5736
      %v5791 = vadd.f32 %v5591, %v5741
      %v5792 = vadd.f32 %v5592, %v5744
      %v5793 = vadd.f32 %v5593, %v5749
      %v5794 = vadd.f32 %v5594, %v5752
      %v5795 = vadd.f32 %v5595, %v5757
      %v5796 = vadd.f32 %v5596, %v5760
      %v5797 = vadd.f32 %v5597, %v5765
      %v5798 = vadd.f32 %v5598, %v5768
      %v5799 = vadd.f32 %v5599, %v5773
      %v5800 = vadd.f32 %v5600, %v5776
      %v5801 = vadd.f32 %v5601, %v5781
      %v5802 = vadd.f32 %v5602, %v5784
      %v5803 = vld [vmem:[%s5604] sm:$0xf]
      %v5804 = vld [vmem:[%s5604 + $0x4] sm:$0xf]
      %v5805 = vld [vmem:[%s5604 + $0x8] sm:$0x1]
      %v5806 = vld [vmem:[%s5604 + $0xc] sm:$0xf]
      %v5807 = vld [vmem:[%s5604 + $0x10] sm:$0xf]
      %v5808 = vld [vmem:[%s5604 + $0x14] sm:$0x1]
      %v5809 = vld [vmem:[%s5604 + $0x18] sm:$0xf]
      %v5810 = vld [vmem:[%s5604 + $0x1c] sm:$0xf]
      %v5811 = vld [vmem:[%s5604 + $0x20] sm:$0x1]
      %v5812 = vld [vmem:[%s5604 + $0x24] sm:$0xf]
      %v5813 = vld [vmem:[%s5604 + $0x28] sm:$0xf]
      %v5814 = vld [vmem:[%s5604 + $0x2c] sm:$0x1]
      %v5815 = vld [vmem:[%s5604 + $0x30] sm:$0xf]
      %v5816 = vld [vmem:[%s5604 + $0x34] sm:$0xf]
      %v5817 = vld [vmem:[%s5604 + $0x38] sm:$0x1]
      %v5818 = vld [vmem:[%s5604 + $0x3c] sm:$0xf]
      %v5819 = vld [vmem:[%s5604 + $0x40] sm:$0xf]
      %v5820 = vld [vmem:[%s5604 + $0x44] sm:$0x1]
      %v5821 = vld [vmem:[%s5604 + $0x48] sm:$0xf]
      %v5822 = vld [vmem:[%s5604 + $0x4c] sm:$0xf]
      %v5823 = vld [vmem:[%s5604 + $0x50] sm:$0x1]
      %v5824 = vld [vmem:[%s5604 + $0x54] sm:$0xf]
      %v5825 = vld [vmem:[%s5604 + $0x58] sm:$0xf]
      %v5826 = vld [vmem:[%s5604 + $0x5c] sm:$0x1]
      %v5828 = vshrl.u32 %v5803, 16
      %v5830 = vrot.slane %v5828, 4
      %v5831 = vshll.u32 %v5803, 16
      %v5833 = vrot.slane %v5831, 5
      %v5834 = vor.u32 %v5830, %v5833
      %v5835 = vrot.slane %v5834, 4
      %v5837 = vshll.u32 %v5804, 16
      %v5839 = vrot.slane %v5837, 5
      %v5840 = vsel %vm1498, %v5835, %v5839
      %v5841 = vshrl.u32 %v5804, 16
      %v5843 = vrot.slane %v5841, 4
      %v5844 = vor.u32 %v5843, %v5839
      %v5845 = vrot.slane %v5844, 4
      %v5847 = vshll.u32 %v5805, 16
      %v5849 = vrot.slane %v5847, 5
      %v5850 = vsel %vm1498, %v5845, %v5849
      %v5852 = vshrl.u32 %v5806, 16
      %v5854 = vrot.slane %v5852, 4
      %v5855 = vshll.u32 %v5806, 16
      %v5857 = vrot.slane %v5855, 5
      %v5858 = vor.u32 %v5854, %v5857
      %v5859 = vrot.slane %v5858, 4
      %v5861 = vshll.u32 %v5807, 16
      %v5863 = vrot.slane %v5861, 5
      %v5864 = vsel %vm1498, %v5859, %v5863
      %v5865 = vshrl.u32 %v5807, 16
      %v5867 = vrot.slane %v5865, 4
      %v5868 = vor.u32 %v5867, %v5863
      %v5869 = vrot.slane %v5868, 4
      %v5871 = vshll.u32 %v5808, 16
      %v5873 = vrot.slane %v5871, 5
      %v5874 = vsel %vm1498, %v5869, %v5873
      %v5876 = vshrl.u32 %v5809, 16
      %v5878 = vrot.slane %v5876, 4
      %v5879 = vshll.u32 %v5809, 16
      %v5881 = vrot.slane %v5879, 5
      %v5882 = vor.u32 %v5878, %v5881
      %v5883 = vrot.slane %v5882, 4
      %v5885 = vshll.u32 %v5810, 16
      %v5887 = vrot.slane %v5885, 5
      %v5888 = vsel %vm1498, %v5883, %v5887
      %v5889 = vshrl.u32 %v5810, 16
      %v5891 = vrot.slane %v5889, 4
      %v5892 = vor.u32 %v5891, %v5887
      %v5893 = vrot.slane %v5892, 4
      %v5895 = vshll.u32 %v5811, 16
      %v5897 = vrot.slane %v5895, 5
      %v5898 = vsel %vm1498, %v5893, %v5897
      %v5900 = vshrl.u32 %v5812, 16
      %v5902 = vrot.slane %v5900, 4
      %v5903 = vshll.u32 %v5812, 16
      %v5905 = vrot.slane %v5903, 5
      %v5906 = vor.u32 %v5902, %v5905
      %v5907 = vrot.slane %v5906, 4
      %v5909 = vshll.u32 %v5813, 16
      %v5911 = vrot.slane %v5909, 5
      %v5912 = vsel %vm1498, %v5907, %v5911
      %v5913 = vshrl.u32 %v5813, 16
      %v5915 = vrot.slane %v5913, 4
      %v5916 = vor.u32 %v5915, %v5911
      %v5917 = vrot.slane %v5916, 4
      %v5919 = vshll.u32 %v5814, 16
      %v5921 = vrot.slane %v5919, 5
      %v5922 = vsel %vm1498, %v5917, %v5921
      %v5924 = vshrl.u32 %v5815, 16
      %v5926 = vrot.slane %v5924, 4
      %v5927 = vshll.u32 %v5815, 16
      %v5929 = vrot.slane %v5927, 5
      %v5930 = vor.u32 %v5926, %v5929
      %v5931 = vrot.slane %v5930, 4
      %v5933 = vshll.u32 %v5816, 16
      %v5935 = vrot.slane %v5933, 5
      %v5936 = vsel %vm1498, %v5931, %v5935
      %v5937 = vshrl.u32 %v5816, 16
      %v5939 = vrot.slane %v5937, 4
      %v5940 = vor.u32 %v5939, %v5935
      %v5941 = vrot.slane %v5940, 4
      %v5943 = vshll.u32 %v5817, 16
      %v5945 = vrot.slane %v5943, 5
      %v5946 = vsel %vm1498, %v5941, %v5945
      %v5948 = vshrl.u32 %v5818, 16
      %v5950 = vrot.slane %v5948, 4
      %v5951 = vshll.u32 %v5818, 16
      %v5953 = vrot.slane %v5951, 5
      %v5954 = vor.u32 %v5950, %v5953
      %v5955 = vrot.slane %v5954, 4
      %v5957 = vshll.u32 %v5819, 16
      %v5959 = vrot.slane %v5957, 5
      %v5960 = vsel %vm1498, %v5955, %v5959
      %v5961 = vshrl.u32 %v5819, 16
      %v5963 = vrot.slane %v5961, 4
      %v5964 = vor.u32 %v5963, %v5959
      %v5965 = vrot.slane %v5964, 4
      %v5967 = vshll.u32 %v5820, 16
      %v5969 = vrot.slane %v5967, 5
      %v5970 = vsel %vm1498, %v5965, %v5969
      %v5972 = vshrl.u32 %v5821, 16
      %v5974 = vrot.slane %v5972, 4
      %v5975 = vshll.u32 %v5821, 16
      %v5977 = vrot.slane %v5975, 5
      %v5978 = vor.u32 %v5974, %v5977
      %v5979 = vrot.slane %v5978, 4
      %v5981 = vshll.u32 %v5822, 16
      %v5983 = vrot.slane %v5981, 5
      %v5984 = vsel %vm1498, %v5979, %v5983
      %v5985 = vshrl.u32 %v5822, 16
      %v5987 = vrot.slane %v5985, 4
      %v5988 = vor.u32 %v5987, %v5983
      %v5989 = vrot.slane %v5988, 4
      %v5991 = vshll.u32 %v5823, 16
      %v5993 = vrot.slane %v5991, 5
      %v5994 = vsel %vm1498, %v5989, %v5993
      %v5996 = vshrl.u32 %v5824, 16
      %v5998 = vrot.slane %v5996, 4
      %v5999 = vshll.u32 %v5824, 16
      %v6001 = vrot.slane %v5999, 5
      %v6002 = vor.u32 %v5998, %v6001
      %v6003 = vrot.slane %v6002, 4
      %v6005 = vshll.u32 %v5825, 16
      %v6007 = vrot.slane %v6005, 5
      %v6008 = vsel %vm1498, %v6003, %v6007
      %v6009 = vshrl.u32 %v5825, 16
      %v6011 = vrot.slane %v6009, 4
      %v6012 = vor.u32 %v6011, %v6007
      %v6013 = vrot.slane %v6012, 4
      %v6015 = vshll.u32 %v5826, 16
      %v6017 = vrot.slane %v6015, 5
      %v6018 = vsel %vm1498, %v6013, %v6017
      %s6019 = scalar_lea.vmem %s3, 14
      %v6020 = vld [vmem:[%s6019] sm:$0x3]
      %v6021 = vunpack.c.l.b16 %v5840
      %v6022 = vunpack.c.l.b16 %v5850
      %v6023 = vunpack.c.l.b16 %v5864
      %v6024 = vunpack.c.l.b16 %v5874
      %v6025 = vunpack.c.l.b16 %v5888
      %v6026 = vunpack.c.l.b16 %v5898
      %v6027 = vunpack.c.l.b16 %v5912
      %v6028 = vunpack.c.l.b16 %v5922
      %v6029 = vunpack.c.l.b16 %v5936
      %v6030 = vunpack.c.l.b16 %v5946
      %v6031 = vunpack.c.l.b16 %v5960
      %v6032 = vunpack.c.l.b16 %v5970
      %v6033 = vunpack.c.l.b16 %v5984
      %v6034 = vunpack.c.l.b16 %v5994
      %v6035 = vunpack.c.l.b16 %v6008
      %v6036 = vunpack.c.l.b16 %v6018
      %v6037 = vpack.c.b16 %v6022, %v6021
      %v6038 = vpack.c.b16 %v6024, %v6023
      %v6039 = vpack.c.b16 %v6026, %v6025
      %v6040 = vpack.c.b16 %v6028, %v6027
      %v6041 = vpack.c.b16 %v6030, %v6029
      %v6042 = vpack.c.b16 %v6032, %v6031
      %v6043 = vpack.c.b16 %v6034, %v6033
      %v6044 = vpack.c.b16 %v6036, %v6035
      %v6046 = vsel %vm1717, %v6037, 0
      %v6049 = vsel %vm1717, %v6038, 0
      %v6052 = vsel %vm1717, %v6039, 0
      %v6055 = vsel %vm1717, %v6040, 0
      %v6058 = vsel %vm1717, %v6041, 0
      %v6061 = vsel %vm1717, %v6042, 0
      %v6064 = vsel %vm1717, %v6043, 0
      %v6067 = vsel %vm1717, %v6044, 0
      %v6070 = vsel %vm1742, %v6020, 0
      %6072 = vmatprep.subr.bf16.mxu0 0
      %6073 = vmatpush1.bf16.msra.mxu0 0
      %6074 = vmatprep.subr.bf16.mxu0 0
      %6075 = vmatpush1.bf16.msra.mxu0 0
      %6076 = vmatprep.subr.bf16.mxu0 0
      %6077 = vmatpush1.bf16.msra.mxu0 0
      %6078 = vmatprep.subr.bf16.mxu0 0
      %6079 = vmatpush1.bf16.msra.mxu0 0
      %6080 = vmatprep.subr.bf16.mxu0 0
      %6081 = vmatpush1.bf16.msra.mxu0 0
      %6082 = vmatprep.subr.bf16.mxu0 0
      %6083 = vmatpush1.bf16.msra.mxu0 0
      %6084 = vmatprep.subr.bf16.mxu0 0
      %6085 = vmatpush1.bf16.msra.mxu0 0
      %6086 = vmatprep.subr.bf16.mxu0 0
      %6087 = vmatpush1.bf16.msra.mxu0 %v6070
      %6088 = vmatprep.subr.bf16.mxu0 0
      %6089 = vmatpush2.bf16.msra.mxu0 0
      %6090 = vmatprep.subr.bf16.mxu0 0
      %6091 = vmatpush2.bf16.msra.mxu0 0
      %6092 = vmatprep.subr.bf16.mxu0 0
      %6093 = vmatpush2.bf16.msra.mxu0 0
      %6094 = vmatprep.subr.bf16.mxu0 0
      %6095 = vmatpush2.bf16.msra.mxu0 0
      %6096 = vmatprep.subr.bf16.mxu0 0
      %6097 = vmatpush2.bf16.msra.mxu0 0
      %6098 = vmatprep.subr.bf16.mxu0 0
      %6099 = vmatpush2.bf16.msra.mxu0 0
      %6100 = vmatprep.subr.bf16.mxu0 0
      %6101 = vmatpush2.bf16.msra.mxu0 0
      %6102 = vmatprep.subr.bf16.mxu0 0
      %6103 = vmatpush2.bf16.msra.mxu0 0
      %6104 = vmatprep.mubr.bf16.mxu0 0
      %6105 = vmatmul.mubr.bf16.gmra.mxu0 %v6046
      %v6106 = vpop.f32.mrf.mxu0
      %v6107 = vadd.f32 0.0, %v6106
      %v6108 = vpop.f32.mrf.mxu0
      %v6109 = vpop.f32.mrf.mxu0
      %v6110 = vadd.f32 0.0, %v6109
      %v6111 = vpop.f32.mrf.mxu0
      %6112 = vmatprep.mubr.bf16.mxu0 0
      %6113 = vmatmul.mubr.bf16.gmra.mxu0 %v6049
      %v6114 = vpop.f32.mrf.mxu0
      %v6115 = vadd.f32 0.0, %v6114
      %v6116 = vpop.f32.mrf.mxu0
      %v6117 = vpop.f32.mrf.mxu0
      %v6118 = vadd.f32 0.0, %v6117
      %v6119 = vpop.f32.mrf.mxu0
      %6120 = vmatprep.mubr.bf16.mxu0 0
      %6121 = vmatmul.mubr.bf16.gmra.mxu0 %v6052
      %v6122 = vpop.f32.mrf.mxu0
      %v6123 = vadd.f32 0.0, %v6122
      %v6124 = vpop.f32.mrf.mxu0
      %v6125 = vpop.f32.mrf.mxu0
      %v6126 = vadd.f32 0.0, %v6125
      %v6127 = vpop.f32.mrf.mxu0
      %6128 = vmatprep.mubr.bf16.mxu0 0
      %6129 = vmatmul.mubr.bf16.gmra.mxu0 %v6055
      %v6130 = vpop.f32.mrf.mxu0
      %v6131 = vadd.f32 0.0, %v6130
      %v6132 = vpop.f32.mrf.mxu0
      %v6133 = vpop.f32.mrf.mxu0
      %v6134 = vadd.f32 0.0, %v6133
      %v6135 = vpop.f32.mrf.mxu0
      %6136 = vmatprep.mubr.bf16.mxu0 0
      %6137 = vmatmul.mubr.bf16.gmra.mxu0 %v6058
      %v6138 = vpop.f32.mrf.mxu0
      %v6139 = vadd.f32 0.0, %v6138
      %v6140 = vpop.f32.mrf.mxu0
      %v6141 = vpop.f32.mrf.mxu0
      %v6142 = vadd.f32 0.0, %v6141
      %v6143 = vpop.f32.mrf.mxu0
      %6144 = vmatprep.mubr.bf16.mxu0 0
      %6145 = vmatmul.mubr.bf16.gmra.mxu0 %v6061
      %v6146 = vpop.f32.mrf.mxu0
      %v6147 = vadd.f32 0.0, %v6146
      %v6148 = vpop.f32.mrf.mxu0
      %v6149 = vpop.f32.mrf.mxu0
      %v6150 = vadd.f32 0.0, %v6149
      %v6151 = vpop.f32.mrf.mxu0
      %6152 = vmatprep.mubr.bf16.mxu0 0
      %6153 = vmatmul.mubr.bf16.gmra.mxu0 %v6064
      %v6154 = vpop.f32.mrf.mxu0
      %v6155 = vadd.f32 0.0, %v6154
      %v6156 = vpop.f32.mrf.mxu0
      %v6157 = vpop.f32.mrf.mxu0
      %v6158 = vadd.f32 0.0, %v6157
      %v6159 = vpop.f32.mrf.mxu0
      %6160 = vmatprep.mubr.bf16.mxu0 0
      %6161 = vmatmul.mubr.bf16.gmra.mxu0 %v6067
      %v6162 = vpop.f32.mrf.mxu0
      %v6163 = vadd.f32 0.0, %v6162
      %v6164 = vpop.f32.mrf.mxu0
      %v6165 = vpop.f32.mrf.mxu0
      %v6166 = vadd.f32 0.0, %v6165
      %v6167 = vpop.f32.mrf.mxu0
      %6168 = vdwg.mxu0
      %v6169 = vadd.f32 %v5787, %v6107
      %v6170 = vadd.f32 %v5788, %v6110
      %v6171 = vadd.f32 %v5789, %v6115
      %v6172 = vadd.f32 %v5790, %v6118
      %v6173 = vadd.f32 %v5791, %v6123
      %v6174 = vadd.f32 %v5792, %v6126
      %v6175 = vadd.f32 %v5793, %v6131
      %v6176 = vadd.f32 %v5794, %v6134
      %v6177 = vadd.f32 %v5795, %v6139
      %v6178 = vadd.f32 %v5796, %v6142
      %v6179 = vadd.f32 %v5797, %v6147
      %v6180 = vadd.f32 %v5798, %v6150
      %v6181 = vadd.f32 %v5799, %v6155
      %v6182 = vadd.f32 %v5800, %v6158
      %v6183 = vadd.f32 %v5801, %v6163
      %v6184 = vadd.f32 %v5802, %v6166
      %v6185 = vld [vmem:[%s5604] sm:$0xe]
      %v6186 = vld [vmem:[%s5604 + $0xc] sm:$0xe]
      %v6187 = vld [vmem:[%s5604 + $0x18] sm:$0xe]
      %v6188 = vld [vmem:[%s5604 + $0x24] sm:$0xe]
      %v6189 = vld [vmem:[%s5604 + $0x30] sm:$0xe]
      %v6190 = vld [vmem:[%s5604 + $0x3c] sm:$0xe]
      %v6191 = vld [vmem:[%s5604 + $0x48] sm:$0xe]
      %v6192 = vld [vmem:[%s5604 + $0x54] sm:$0xe]
      %v6217 = vrot.slane %v6185, 5
      %v6218 = vrot.slane %v6217, 4
      %v6219 = vrot.slane %v5804, 5
      %v6220 = vsel %vm2033, %v6218, %v6219
      %v6221 = vrot.slane %v6219, 4
      %v6222 = vrot.slane %v5805, 5
      %v6223 = vsel %vm2033, %v6221, %v6222
      %v6224 = vrot.slane %v6186, 5
      %v6225 = vrot.slane %v6224, 4
      %v6226 = vrot.slane %v5807, 5
      %v6227 = vsel %vm2033, %v6225, %v6226
      %v6228 = vrot.slane %v6226, 4
      %v6229 = vrot.slane %v5808, 5
      %v6230 = vsel %vm2033, %v6228, %v6229
      %v6231 = vrot.slane %v6187, 5
      %v6232 = vrot.slane %v6231, 4
      %v6233 = vrot.slane %v5810, 5
      %v6234 = vsel %vm2033, %v6232, %v6233
      %v6235 = vrot.slane %v6233, 4
      %v6236 = vrot.slane %v5811, 5
      %v6237 = vsel %vm2033, %v6235, %v6236
      %v6238 = vrot.slane %v6188, 5
      %v6239 = vrot.slane %v6238, 4
      %v6240 = vrot.slane %v5813, 5
      %v6241 = vsel %vm2033, %v6239, %v6240
      %v6242 = vrot.slane %v6240, 4
      %v6243 = vrot.slane %v5814, 5
      %v6244 = vsel %vm2033, %v6242, %v6243
      %v6245 = vrot.slane %v6189, 5
      %v6246 = vrot.slane %v6245, 4
      %v6247 = vrot.slane %v5816, 5
      %v6248 = vsel %vm2033, %v6246, %v6247
      %v6249 = vrot.slane %v6247, 4
      %v6250 = vrot.slane %v5817, 5
      %v6251 = vsel %vm2033, %v6249, %v6250
      %v6252 = vrot.slane %v6190, 5
      %v6253 = vrot.slane %v6252, 4
      %v6254 = vrot.slane %v5819, 5
      %v6255 = vsel %vm2033, %v6253, %v6254
      %v6256 = vrot.slane %v6254, 4
      %v6257 = vrot.slane %v5820, 5
      %v6258 = vsel %vm2033, %v6256, %v6257
      %v6259 = vrot.slane %v6191, 5
      %v6260 = vrot.slane %v6259, 4
      %v6261 = vrot.slane %v5822, 5
      %v6262 = vsel %vm2033, %v6260, %v6261
      %v6263 = vrot.slane %v6261, 4
      %v6264 = vrot.slane %v5823, 5
      %v6265 = vsel %vm2033, %v6263, %v6264
      %v6266 = vrot.slane %v6192, 5
      %v6267 = vrot.slane %v6266, 4
      %v6268 = vrot.slane %v5825, 5
      %v6269 = vsel %vm2033, %v6267, %v6268
      %v6270 = vrot.slane %v6268, 4
      %v6271 = vrot.slane %v5826, 5
      %v6272 = vsel %vm2033, %v6270, %v6271
      %s6273 = scalar_lea.vmem %s3, 16
      %v6274 = vld [vmem:[%s6273] sm:$0x3]
      %v6275 = vunpack.c.l.b16 %v6220
      %v6276 = vunpack.c.l.b16 %v6223
      %v6277 = vunpack.c.l.b16 %v6227
      %v6278 = vunpack.c.l.b16 %v6230
      %v6279 = vunpack.c.l.b16 %v6234
      %v6280 = vunpack.c.l.b16 %v6237
      %v6281 = vunpack.c.l.b16 %v6241
      %v6282 = vunpack.c.l.b16 %v6244
      %v6283 = vunpack.c.l.b16 %v6248
      %v6284 = vunpack.c.l.b16 %v6251
      %v6285 = vunpack.c.l.b16 %v6255
      %v6286 = vunpack.c.l.b16 %v6258
      %v6287 = vunpack.c.l.b16 %v6262
      %v6288 = vunpack.c.l.b16 %v6265
      %v6289 = vunpack.c.l.b16 %v6269
      %v6290 = vunpack.c.l.b16 %v6272
      %v6291 = vpack.c.b16 %v6276, %v6275
      %v6292 = vpack.c.b16 %v6278, %v6277
      %v6293 = vpack.c.b16 %v6280, %v6279
      %v6294 = vpack.c.b16 %v6282, %v6281
      %v6295 = vpack.c.b16 %v6284, %v6283
      %v6296 = vpack.c.b16 %v6286, %v6285
      %v6297 = vpack.c.b16 %v6288, %v6287
      %v6298 = vpack.c.b16 %v6290, %v6289
      %v6300 = vsel %vm1717, %v6291, 0
      %v6303 = vsel %vm1717, %v6292, 0
      %v6306 = vsel %vm1717, %v6293, 0
      %v6309 = vsel %vm1717, %v6294, 0
      %v6312 = vsel %vm1717, %v6295, 0
      %v6315 = vsel %vm1717, %v6296, 0
      %v6318 = vsel %vm1717, %v6297, 0
      %v6321 = vsel %vm1717, %v6298, 0
      %v6324 = vsel %vm1742, %v6274, 0
      %6326 = vmatprep.subr.bf16.mxu0 0
      %6327 = vmatpush1.bf16.msra.mxu0 0
      %6328 = vmatprep.subr.bf16.mxu0 0
      %6329 = vmatpush1.bf16.msra.mxu0 0
      %6330 = vmatprep.subr.bf16.mxu0 0
      %6331 = vmatpush1.bf16.msra.mxu0 0
      %6332 = vmatprep.subr.bf16.mxu0 0
      %6333 = vmatpush1.bf16.msra.mxu0 0
      %6334 = vmatprep.subr.bf16.mxu0 0
      %6335 = vmatpush1.bf16.msra.mxu0 0
      %6336 = vmatprep.subr.bf16.mxu0 0
      %6337 = vmatpush1.bf16.msra.mxu0 0
      %6338 = vmatprep.subr.bf16.mxu0 0
      %6339 = vmatpush1.bf16.msra.mxu0 0
      %6340 = vmatprep.subr.bf16.mxu0 0
      %6341 = vmatpush1.bf16.msra.mxu0 %v6324
      %6342 = vmatprep.subr.bf16.mxu0 0
      %6343 = vmatpush2.bf16.msra.mxu0 0
      %6344 = vmatprep.subr.bf16.mxu0 0
      %6345 = vmatpush2.bf16.msra.mxu0 0
      %6346 = vmatprep.subr.bf16.mxu0 0
      %6347 = vmatpush2.bf16.msra.mxu0 0
      %6348 = vmatprep.subr.bf16.mxu0 0
      %6349 = vmatpush2.bf16.msra.mxu0 0
      %6350 = vmatprep.subr.bf16.mxu0 0
      %6351 = vmatpush2.bf16.msra.mxu0 0
      %6352 = vmatprep.subr.bf16.mxu0 0
      %6353 = vmatpush2.bf16.msra.mxu0 0
      %6354 = vmatprep.subr.bf16.mxu0 0
      %6355 = vmatpush2.bf16.msra.mxu0 0
      %6356 = vmatprep.subr.bf16.mxu0 0
      %6357 = vmatpush2.bf16.msra.mxu0 0
      %6358 = vmatprep.mubr.bf16.mxu0 0
      %6359 = vmatmul.mubr.bf16.gmra.mxu0 %v6300
      %v6360 = vpop.f32.mrf.mxu0
      %v6361 = vadd.f32 0.0, %v6360
      %v6362 = vpop.f32.mrf.mxu0
      %v6363 = vpop.f32.mrf.mxu0
      %v6364 = vadd.f32 0.0, %v6363
      %v6365 = vpop.f32.mrf.mxu0
      %6366 = vmatprep.mubr.bf16.mxu0 0
      %6367 = vmatmul.mubr.bf16.gmra.mxu0 %v6303
      %v6368 = vpop.f32.mrf.mxu0
      %v6369 = vadd.f32 0.0, %v6368
      %v6370 = vpop.f32.mrf.mxu0
      %v6371 = vpop.f32.mrf.mxu0
      %v6372 = vadd.f32 0.0, %v6371
      %v6373 = vpop.f32.mrf.mxu0
      %6374 = vmatprep.mubr.bf16.mxu0 0
      %6375 = vmatmul.mubr.bf16.gmra.mxu0 %v6306
      %v6376 = vpop.f32.mrf.mxu0
      %v6377 = vadd.f32 0.0, %v6376
      %v6378 = vpop.f32.mrf.mxu0
      %v6379 = vpop.f32.mrf.mxu0
      %v6380 = vadd.f32 0.0, %v6379
      %v6381 = vpop.f32.mrf.mxu0
      %6382 = vmatprep.mubr.bf16.mxu0 0
      %6383 = vmatmul.mubr.bf16.gmra.mxu0 %v6309
      %v6384 = vpop.f32.mrf.mxu0
      %v6385 = vadd.f32 0.0, %v6384
      %v6386 = vpop.f32.mrf.mxu0
      %v6387 = vpop.f32.mrf.mxu0
      %v6388 = vadd.f32 0.0, %v6387
      %v6389 = vpop.f32.mrf.mxu0
      %6390 = vmatprep.mubr.bf16.mxu0 0
      %6391 = vmatmul.mubr.bf16.gmra.mxu0 %v6312
      %v6392 = vpop.f32.mrf.mxu0
      %v6393 = vadd.f32 0.0, %v6392
      %v6394 = vpop.f32.mrf.mxu0
      %v6395 = vpop.f32.mrf.mxu0
      %v6396 = vadd.f32 0.0, %v6395
      %v6397 = vpop.f32.mrf.mxu0
      %6398 = vmatprep.mubr.bf16.mxu0 0
      %6399 = vmatmul.mubr.bf16.gmra.mxu0 %v6315
      %v6400 = vpop.f32.mrf.mxu0
      %v6401 = vadd.f32 0.0, %v6400
      %v6402 = vpop.f32.mrf.mxu0
      %v6403 = vpop.f32.mrf.mxu0
      %v6404 = vadd.f32 0.0, %v6403
      %v6405 = vpop.f32.mrf.mxu0
      %6406 = vmatprep.mubr.bf16.mxu0 0
      %6407 = vmatmul.mubr.bf16.gmra.mxu0 %v6318
      %v6408 = vpop.f32.mrf.mxu0
      %v6409 = vadd.f32 0.0, %v6408
      %v6410 = vpop.f32.mrf.mxu0
      %v6411 = vpop.f32.mrf.mxu0
      %v6412 = vadd.f32 0.0, %v6411
      %v6413 = vpop.f32.mrf.mxu0
      %6414 = vmatprep.mubr.bf16.mxu0 0
      %6415 = vmatmul.mubr.bf16.gmra.mxu0 %v6321
      %v6416 = vpop.f32.mrf.mxu0
      %v6417 = vadd.f32 0.0, %v6416
      %v6418 = vpop.f32.mrf.mxu0
      %v6419 = vpop.f32.mrf.mxu0
      %v6420 = vadd.f32 0.0, %v6419
      %v6421 = vpop.f32.mrf.mxu0
      %6422 = vdwg.mxu0
      %v6423 = vadd.f32 %v6169, %v6361
      %v6424 = vadd.f32 %v6170, %v6364
      %v6425 = vadd.f32 %v6171, %v6369
      %v6426 = vadd.f32 %v6172, %v6372
      %v6427 = vadd.f32 %v6173, %v6377
      %v6428 = vadd.f32 %v6174, %v6380
      %v6429 = vadd.f32 %v6175, %v6385
      %v6430 = vadd.f32 %v6176, %v6388
      %v6431 = vadd.f32 %v6177, %v6393
      %v6432 = vadd.f32 %v6178, %v6396
      %v6433 = vadd.f32 %v6179, %v6401
      %v6434 = vadd.f32 %v6180, %v6404
      %v6435 = vadd.f32 %v6181, %v6409
      %v6436 = vadd.f32 %v6182, %v6412
      %v6437 = vadd.f32 %v6183, %v6417
      %v6438 = vadd.f32 %v6184, %v6420
      %v6439 = vpack.c.bf16 %v6424, %v6423
      %v6440 = vpack.c.bf16 %v6426, %v6425
      %v6441 = vpack.c.bf16 %v6428, %v6427
      %v6442 = vpack.c.bf16 %v6430, %v6429
      %v6443 = vpack.c.bf16 %v6432, %v6431
      %v6444 = vpack.c.bf16 %v6434, %v6433
      %v6445 = vpack.c.bf16 %v6436, %v6435
      %v6446 = vpack.c.bf16 %v6438, %v6437
      %v6455 = vunpack.c.l.b16 %v6439
      %v6456 = vunpack.c.h.b16 %v6439
      %v6457 = vunpack.c.l.b16 %v6440
      %v6458 = vunpack.c.h.b16 %v6440
      %v6459 = vunpack.c.l.b16 %v6441
      %v6460 = vunpack.c.h.b16 %v6441
      %v6461 = vunpack.c.l.b16 %v6442
      %v6462 = vunpack.c.h.b16 %v6442
      %v6463 = vunpack.c.l.b16 %v6443
      %v6464 = vunpack.c.h.b16 %v6443
      %v6465 = vunpack.c.l.b16 %v6444
      %v6466 = vunpack.c.h.b16 %v6444
      %v6467 = vunpack.c.l.b16 %v6445
      %v6468 = vunpack.c.h.b16 %v6445
      %v6469 = vunpack.c.l.b16 %v6446
      %v6470 = vunpack.c.h.b16 %v6446
      %v6471 = vpack.c.b16 %v6455, %v6455
      %v6472 = vpack.c.b16 %v6456, %v6456
      %v6473 = vpack.c.b16 %v6457, %v6457
      %v6474 = vpack.c.b16 %v6458, %v6458
      %v6475 = vpack.c.b16 %v6459, %v6459
      %v6476 = vpack.c.b16 %v6460, %v6460
      %v6477 = vpack.c.b16 %v6461, %v6461
      %v6478 = vpack.c.b16 %v6462, %v6462
      %v6479 = vpack.c.b16 %v6463, %v6463
      %v6480 = vpack.c.b16 %v6464, %v6464
      %v6481 = vpack.c.b16 %v6465, %v6465
      %v6482 = vpack.c.b16 %v6466, %v6466
      %v6483 = vpack.c.b16 %v6467, %v6467
      %v6484 = vpack.c.b16 %v6468, %v6468
      %v6485 = vpack.c.b16 %v6469, %v6469
      %v6486 = vpack.c.b16 %v6470, %v6470
      %vm6503 = vcmask 27648
      %6504 = vst.msk [vmem:[%s281] sm:$0xf] %vm6503, %v6471
      %6505 = vst.msk [vmem:[%s281 + $0x4] sm:$0xf] %vm6503, %v6472
      %6506 = vst.msk [vmem:[%s281 + $0x8] sm:$0xf] %vm6503, %v6473
      %6507 = vst.msk [vmem:[%s281 + $0xc] sm:$0xf] %vm6503, %v6474
      %6508 = vst.msk [vmem:[%s281 + $0x10] sm:$0xf] %vm6503, %v6475
      %6509 = vst.msk [vmem:[%s281 + $0x14] sm:$0xf] %vm6503, %v6476
      %6510 = vst.msk [vmem:[%s281 + $0x18] sm:$0xf] %vm6503, %v6477
      %6511 = vst.msk [vmem:[%s281 + $0x1c] sm:$0xf] %vm6503, %v6478
      %6512 = vst.msk [vmem:[%s281 + $0x20] sm:$0xf] %vm6503, %v6479
      %6513 = vst.msk [vmem:[%s281 + $0x24] sm:$0xf] %vm6503, %v6480
      %6514 = vst.msk [vmem:[%s281 + $0x28] sm:$0xf] %vm6503, %v6481
      %6515 = vst.msk [vmem:[%s281 + $0x2c] sm:$0xf] %vm6503, %v6482
      %6516 = vst.msk [vmem:[%s281 + $0x30] sm:$0xf] %vm6503, %v6483
      %6517 = vst.msk [vmem:[%s281 + $0x34] sm:$0xf] %vm6503, %v6484
      %6518 = vst.msk [vmem:[%s281 + $0x38] sm:$0xf] %vm6503, %v6485
      %6519 = vst.msk [vmem:[%s281 + $0x3c] sm:$0xf] %vm6503, %v6486
      %v6520 = vsel %vm1717, %v6423, 0.0
      %v6521 = vsel %vm1717, %v6424, 0.0
      %v6522 = vadd.f32 %v6520, %v6521
      %v6523 = vsel %vm1717, %v6425, 0.0
      %v6524 = vadd.f32 %v6522, %v6523
      %v6525 = vsel %vm1717, %v6426, 0.0
      %v6526 = vadd.f32 %v6524, %v6525
      %v6527 = vsel %vm1717, %v6427, 0.0
      %v6528 = vadd.f32 %v6526, %v6527
      %v6529 = vsel %vm1717, %v6428, 0.0
      %v6530 = vadd.f32 %v6528, %v6529
      %v6531 = vsel %vm1717, %v6429, 0.0
      %v6532 = vadd.f32 %v6530, %v6531
      %v6533 = vsel %vm1717, %v6430, 0.0
      %v6534 = vadd.f32 %v6532, %v6533
      %v6535 = vsel %vm1717, %v6431, 0.0
      %v6536 = vadd.f32 %v6534, %v6535
      %v6537 = vsel %vm1717, %v6432, 0.0
      %v6538 = vadd.f32 %v6536, %v6537
      %v6539 = vsel %vm1717, %v6433, 0.0
      %v6540 = vadd.f32 %v6538, %v6539
      %v6541 = vsel %vm1717, %v6434, 0.0
      %v6542 = vadd.f32 %v6540, %v6541
      %v6543 = vsel %vm1717, %v6435, 0.0
      %v6544 = vadd.f32 %v6542, %v6543
      %v6545 = vsel %vm1717, %v6436, 0.0
      %v6546 = vadd.f32 %v6544, %v6545
      %v6547 = vsel %vm1717, %v6437, 0.0
      %v6548 = vadd.f32 %v6546, %v6547
      %v6549 = vsel %vm1717, %v6438, 0.0
      %v6550 = vadd.f32 %v6548, %v6549
      %v6551 = vrot.slane %v6550, 4
      %v6552 = vadd.f32 %v6550, %v6551
      %v6553 = vrot.slane %v6552, 2
      %v6554 = vadd.f32 %v6552, %v6553
      %v6555 = vrot.slane %v6554, 1
      %v6556 = vadd.f32 %v6554, %v6555
      %v6557 = vrcp.pop 128.0
      %v6558 = vmul.f32 %v6556, %v6557
      %v6559 = vsub.f32 %v6423, %v6558
      %v6560 = vsub.f32 %v6424, %v6558
      %v6561 = vsub.f32 %v6425, %v6558
      %v6562 = vsub.f32 %v6426, %v6558
      %v6563 = vsub.f32 %v6427, %v6558
      %v6564 = vsub.f32 %v6428, %v6558
      %v6565 = vsub.f32 %v6429, %v6558
      %v6566 = vsub.f32 %v6430, %v6558
      %v6567 = vsub.f32 %v6431, %v6558
      %v6568 = vsub.f32 %v6432, %v6558
      %v6569 = vsub.f32 %v6433, %v6558
      %v6570 = vsub.f32 %v6434, %v6558
      %v6571 = vsub.f32 %v6435, %v6558
      %v6572 = vsub.f32 %v6436, %v6558
      %v6573 = vsub.f32 %v6437, %v6558
      %v6574 = vsub.f32 %v6438, %v6558
      %v6575 = vmul.f32 %v6559, %v6559
      %v6576 = vmul.f32 %v6560, %v6560
      %v6577 = vmul.f32 %v6561, %v6561
      %v6578 = vmul.f32 %v6562, %v6562
      %v6579 = vmul.f32 %v6563, %v6563
      %v6580 = vmul.f32 %v6564, %v6564
      %v6581 = vmul.f32 %v6565, %v6565
      %v6582 = vmul.f32 %v6566, %v6566
      %v6583 = vmul.f32 %v6567, %v6567
      %v6584 = vmul.f32 %v6568, %v6568
      %v6585 = vmul.f32 %v6569, %v6569
      %v6586 = vmul.f32 %v6570, %v6570
      %v6587 = vmul.f32 %v6571, %v6571
      %v6588 = vmul.f32 %v6572, %v6572
      %v6589 = vmul.f32 %v6573, %v6573
      %v6590 = vmul.f32 %v6574, %v6574
      %v6591 = vsel %vm1717, %v6575, 0.0
      %v6592 = vsel %vm1717, %v6576, 0.0
      %v6593 = vadd.f32 %v6591, %v6592
      %v6594 = vsel %vm1717, %v6577, 0.0
      %v6595 = vadd.f32 %v6593, %v6594
      %v6596 = vsel %vm1717, %v6578, 0.0
      %v6597 = vadd.f32 %v6595, %v6596
      %v6598 = vsel %vm1717, %v6579, 0.0
      %v6599 = vadd.f32 %v6597, %v6598
      %v6600 = vsel %vm1717, %v6580, 0.0
      %v6601 = vadd.f32 %v6599, %v6600
      %v6602 = vsel %vm1717, %v6581, 0.0
      %v6603 = vadd.f32 %v6601, %v6602
      %v6604 = vsel %vm1717, %v6582, 0.0
      %v6605 = vadd.f32 %v6603, %v6604
      %v6606 = vsel %vm1717, %v6583, 0.0
      %v6607 = vadd.f32 %v6605, %v6606
      %v6608 = vsel %vm1717, %v6584, 0.0
      %v6609 = vadd.f32 %v6607, %v6608
      %v6610 = vsel %vm1717, %v6585, 0.0
      %v6611 = vadd.f32 %v6609, %v6610
      %v6612 = vsel %vm1717, %v6586, 0.0
      %v6613 = vadd.f32 %v6611, %v6612
      %v6614 = vsel %vm1717, %v6587, 0.0
      %v6615 = vadd.f32 %v6613, %v6614
      %v6616 = vsel %vm1717, %v6588, 0.0
      %v6617 = vadd.f32 %v6615, %v6616
      %v6618 = vsel %vm1717, %v6589, 0.0
      %v6619 = vadd.f32 %v6617, %v6618
      %v6620 = vsel %vm1717, %v6590, 0.0
      %v6621 = vadd.f32 %v6619, %v6620
      %v6622 = vrot.slane %v6621, 4
      %v6623 = vadd.f32 %v6621, %v6622
      %v6624 = vrot.slane %v6623, 2
      %v6625 = vadd.f32 %v6623, %v6624
      %v6626 = vrot.slane %v6625, 1
      %v6627 = vadd.f32 %v6625, %v6626
      %vm6628 = vcmask 24576
      %6629 = vst.msk [vmem:[%s290] sm:$0x1] %vm6628, %v6556
      %6630 = vst.msk [vmem:[%s290 + $0x1] sm:$0x1] %vm6628, %v6627
      %s6631 = smul.u32 8, %s22
      %p6632 = scmp.lt.s32.totalorder %s21, 1
      %s6633 = scalar_select %p6632, %s21, 1
      %p6634 = scmp.lt.s32.totalorder %s6631, 15
      %s6635 = scalar_select %p6634, %s6631, 15
      %s6636 = smul.addr %s6635, 2
      %s6637 = smul.addr %s6633, 32
      %s6638 = sadd.s32 %s6636, %s6637
      %s6639 = smul.addr %s6638, 4
      %s6640 = scalar_lea.vmem %s4, %s6639
      %p6641 = scmp.lt.s32.totalorder %s21, 1
      %s6642 = scalar_select %p6641, %s21, 1
      %p6643 = scmp.lt.s32.totalorder %s22, 1
      %s6644 = scalar_select %p6643, %s22, 1
      %s6645 = smul.addr %s6642, 2
      %s6646 = sadd.s32 %s6644, %s6645
      %s6647 = smul.addr %s6646, 2
      %s6648 = scalar_lea.vmem %s5, %s6647
      // Predicated region
      $region41: #{up_forward.3} parent=35 // pred_check
        %p6649 = pneg %p143
      $region42: #{up_forward.3} parent=35 // pred_check_branch
        %6651 = sbr.rel (%p6649) target = $region44
      $region43: #{up_forward.3} parent=35 // pred_region
        %s6652 = smul.u32 8, %s22
      $region44: #{up_forward.3} parent=35 // pred_fallthru
        _
      // Predicated region
      $region45: #{up_forward.3} parent=35 // pred_check
        %p6653 = pneg %p171
      $region46: #{up_forward.3} parent=35 // pred_check_branch
        %6655 = sbr.rel (%p6653) target = $region48
      $region47: #{up_forward.3} parent=35 // pred_region
        _
      $region48: #{up_forward.3} parent=35 // pred_fallthru
        _
    $region36: #{up_forward.3} parent=5 // pred_fallthru
      _
    %p6656 = scmp.le.s32.totalorder 2, %s12
    // Predicated region
    $region49: #{up_forward.3} parent=5 // pred_check
      %p6657 = pneg %p6656
    $region50: #{up_forward.3} parent=5 // pred_check_branch
      %6659 = sbr.rel (%p6657) target = $region52
    $region51: #{up_forward.3} parent=5 // pred_region
      %s6660 = ssub.s32 %s12, 2
      // Predicated region
      $region53: #{up_forward.3} parent=51 // pred_check
        %p6661 = pneg %p149
      $region54: #{up_forward.3} parent=51 // pred_check_branch
        %6663 = sbr.rel (%p6661) target = $region56
      $region55: #{up_forward.3} parent=51 // pred_region
        %s6664 = smul.u32 8, %s24
        %p6665 = scmp.lt.s32.totalorder %s23, 1
        %s6666 = scalar_select %p6665, %s23, 1
        %p6667 = scmp.lt.s32.totalorder %s6664, 15
        %s6668 = scalar_select %p6667, %s6664, 15
        %s6669 = smul.addr %s6668, 2
        %s6670 = smul.addr %s6666, 32
        %s6671 = sadd.s32 %s6669, %s6670
        %s6672 = smul.addr %s6671, 4
        %s6673 = scalar_lea.vmem %s4, %s6672
      $region56: #{up_forward.3} parent=51 // pred_fallthru
        _
      // Predicated region
      $region57: #{up_forward.3} parent=51 // pred_check
        %p6674 = pneg %p177
      $region58: #{up_forward.3} parent=51 // pred_check_branch
        %6676 = sbr.rel (%p6674) target = $region60
      $region59: #{up_forward.3} parent=51 // pred_region
        %p6677 = scmp.lt.s32.totalorder %s23, 1
        %s6678 = scalar_select %p6677, %s23, 1
        %p6679 = scmp.lt.s32.totalorder %s24, 1
        %s6680 = scalar_select %p6679, %s24, 1
        %s6681 = smul.addr %s6678, 2
        %s6682 = sadd.s32 %s6680, %s6681
        %s6683 = smul.addr %s6682, 2
        %s6684 = scalar_lea.vmem %s5, %s6683
      $region60: #{up_forward.3} parent=51 // pred_fallthru
        _
    $region52: #{up_forward.3} parent=5 // pred_fallthru
      _
  $region6: #{up_forward.3} parent=0 // loop_footer
    %s16 = sadd.s32 1, %s12
  $region7: #{up_forward.3} parent=0 // loop_footer_branch
    %11 = sbr.rel target = $region3
  $region8: #{up_forward.3} parent=0 // loop_exit
    _

</llo_original>
